<compile_context>
chip_gen: v6e
topology: v6e:2x2x1
jax: 0.10.0
libtpu: 0.0.40
codegen_flags: <defaults>
</compile_context>

<pallas_src>
import functools

import jax
import jax.numpy as jnp
import numpy as np
from jax.experimental import pallas as pl
from jax.experimental.pallas import tpu as pltpu

BN_EPS = 1e-5
CPAD = 128                     # lane-padded output-channel width used inside the kernel

# (Cin, Cout, K, stride) -- ConvBNReLU's padding arg is never forwarded to Conv2d.
CONV_CFG = [
    (12, 32, 7, 2),
    (32, 32, 3, 1),
    (32, 64, 7, 2),
    (64, 64, 3, 1),
    (64, 128, 7, 2),
]
FC_CFG = [(128, 64), (64, 32), (32, 1)]


def _round_up(v, m):
    return ((v + m - 1) // m) * m


def conv_plan(H, W):
    """Static per-layer geometry for the (1,K)-kernel conv stack."""
    plan = []
    h, w = H, W
    p_in = H * W                                  # per-image row pitch of the current input
    for (cin, cout, K, s) in CONV_CFG:
        hout = (h - 1) // s + 1
        wout = (w - K) // s + 1
        assert hout >= 1 and wout >= 1, f"input too small for conv stack: {(h, w, K, s)}"
        rows = hout * wout
        plan.append(dict(Hin=h, Win=w, Hout=hout, Wout=wout, K=K, s=s,
                         Cin=cin, Cout=cout,
                         kc=K * cin,                      # true contraction width
                         kc_pad=_round_up(K * cin, 128),  # MXU-granule padded width
                         p_in=p_in,                       # per-image row pitch of input
                         p_out=_round_up(rows, 8)))       # per-image row pitch of output
        h, w, p_in = hout, wout, _round_up(rows, 8)
    return plan


# ---------------------------------------------------------------------------
# Fused kernel: conv stack (im2col + 1 matmul / layer) + max pool + classifier
# ---------------------------------------------------------------------------
def _fused_forward_kernel(x_ref, w0_ref, w1_ref, w2_ref, w3_ref, w4_ref,
                          shift_ref, fcw_ref, fcb_ref, o_ref,
                          act_ref, stage_ref, pool_ref, *, plan, bt):
    """One grid step processes `bt` images.

    x_ref:     (bt*H*W, 12)        f32  flattened NHWC input rows (row = b*H*W + h*W + w)
    w*_ref:    (kc_pad_i, 128)     bf16 im2col conv weights (BN scale folded, Cout padded)
    shift_ref: (5, 128)            f32  per-layer folded BN shift
    fcw_ref:   (3, 128, 128)       bf16 padded FC weights (y = x @ w + b layout)
    fcb_ref:   (3, 128)            f32  padded FC biases
    o_ref:     (bt, 128)           f32  lane-dense output rows (lane 0 = logit)
    act_ref:   (bt*pmax, 128)      f32  activation scratch (reused in place each layer)
    stage_ref: (bt*pmax, kcmax)    f32  im2col staging scratch
    pool_ref:  (bt, 128)           f32  pooled features
    """
    w_refs = (w0_ref, w1_ref, w2_ref, w3_ref, w4_ref)
    n_conv = len(plan)

    # Finite-fill staging so the zero weight-pad rows / unused staging rows never see
    # stale NaNs (scratch is uninitialized; grid axis is "parallel", so do it per step).
    stage_ref[...] = jnp.zeros_like(stage_ref)

    src_ref = x_ref
    for li, cfg in enumerate(plan):
        Hout, Wout = cfg["Hout"], cfg["Wout"]
        K, s, Cin = cfg["K"], cfg["s"], cfg["Cin"]
        Win, p_in, p_out, kc_pad = cfg["Win"], cfg["p_in"], cfg["p_out"], cfg["kc_pad"]

        # -- im2col: one strided sublane copy per (image, output row, tap).
        #    Staging column block k holds input channels of tap k at lanes [k*Cin, (k+1)*Cin)
        #    (never crosses a 128-lane tile for these configs).
        for b in range(bt):
            for ho in range(Hout):
                dst0 = b * p_out + ho * Wout
                src0 = b * p_in + ho * s * Win
                for k in range(K):
                    if s == 1:
                        xk = src_ref[pl.ds(src0 + k, Wout), pl.ds(0, Cin)]
                    else:
                        xk = src_ref[pl.ds(src0 + k, Wout, stride=s), pl.ds(0, Cin)]
                    stage_ref[pl.ds(dst0, Wout), pl.ds(k * Cin, Cin)] = xk

        # -- ONE MXU matmul per layer over the bt-stacked staging block.
        rows = bt * p_out
        lhs = stage_ref[pl.ds(0, rows), pl.ds(0, kc_pad)].astype(jnp.bfloat16)
        y = jnp.dot(lhs, w_refs[li][...], preferred_element_type=jnp.float32)
        y = jnp.maximum(y + shift_ref[pl.ds(li, 1), :], 0.0)      # folded-BN shift + ReLU

        if li < n_conv - 1:
            act_ref[pl.ds(0, rows), :] = y                        # becomes next layer's input
            src_ref = act_ref
        else:
            # Fused AdaptiveMaxPool2d((1,1)): per-image max over the valid rows only.
            r_true = Hout * Wout
            for b in range(bt):
                pool_ref[pl.ds(b, 1), :] = jnp.max(
                    y[b * p_out:b * p_out + r_true, :], axis=0, keepdims=True)

    # -- classifier: Linear(128,64)+ReLU, Linear(64,32)+ReLU, Linear(32,1), M = bt.
    h = pool_ref[...]
    n_fc = fcw_ref.shape[0]
    for j in range(n_fc):
        h = jnp.dot(h.astype(jnp.bfloat16), fcw_ref[j],
                    preferred_element_type=jnp.float32) + fcb_ref[pl.ds(j, 1), :]
        if j < n_fc - 1:
            h = jnp.maximum(h, 0.0)
    o_ref[...] = h.astype(o_ref.dtype)


def cnn_lstm_forward(x, prep, *, bt=2):
    """x: (B, H, W, 12) float32 -> (B, 1) float32."""
    B, H, W, C0 = x.shape
    assert B % bt == 0, (B, bt)
    plan = conv_plan(H, W)
    G = B // bt
    pmax = max(cfg["p_out"] for cfg in plan)       # max per-image row pitch
    kcmax = max(cfg["kc_pad"] for cfg in plan)     # max padded contraction width
    # Keep bt small enough that bt*pmax stays O(few hundred) rows; larger batches are
    # handled by more grid steps, not bigger matmul results.
    x3d = x.reshape(G, bt * H * W, C0).astype(jnp.float32)

    conv_ws = prep["conv_w"]
    shifts = prep["conv_shift"]
    fcw = prep["fc_w"]
    fcb = prep["fc_b"]

    in_specs = [pl.BlockSpec((None, bt * H * W, C0), lambda i: (i, 0, 0))]
    for w in conv_ws:                              # weights: whole-array, VMEM-resident
        in_specs.append(pl.BlockSpec(w.shape, lambda i: (0, 0)))
    in_specs += [
        pl.BlockSpec(shifts.shape, lambda i: (0, 0)),
        pl.BlockSpec(fcw.shape, lambda i: (0, 0, 0)),
        pl.BlockSpec(fcb.shape, lambda i: (0, 0)),
    ]

    out = pl.pallas_call(
        functools.partial(_fused_forward_kernel, plan=plan, bt=bt),
        out_shape=jax.ShapeDtypeStruct((G, bt, CPAD), jnp.float32),
        grid=(G,),
        in_specs=in_specs,
        out_specs=pl.BlockSpec((None, bt, CPAD), lambda i: (i, 0, 0)),
        scratch_shapes=[
            pltpu.VMEM((bt * pmax, CPAD), jnp.float32),    # activations (single buffer)
            pltpu.VMEM((bt * pmax, kcmax), jnp.float32),   # im2col staging
            pltpu.VMEM((bt, CPAD), jnp.float32),           # pooled features
        ],
        compiler_params=pltpu.CompilerParams(
            dimension_semantics=("parallel",),             # v7x: split batch over 2 TCs
        ),
    )(x3d, *conv_ws, shifts, fcw, fcb)
    return out.reshape(B, CPAD)[:, :1]                     # (B, 1); only lane 0 is real


# ---------------------------------------------------------------------------
# Parameters (mirror CNN_LSTM._initialize_weights) and kernel-ready prep
# ---------------------------------------------------------------------------
def init_params(key):
    params = {"conv": [], "fc": []}
    keys = jax.random.split(key, len(CONV_CFG) + len(FC_CFG))
    for i, (cin, cout, k, s) in enumerate(CONV_CFG):
        w = jax.random.normal(keys[i], (cout, cin, 1, k), jnp.float32)  # init.normal_
        gamma = jnp.ones((cout,), jnp.float32)    # BN weight
        beta = jnp.zeros((cout,), jnp.float32)    # BN bias
        mean = jnp.zeros((cout,), jnp.float32)    # running_mean
        var = jnp.ones((cout,), jnp.float32)      # running_var
        params["conv"].append((w, gamma, beta, mean, var, s))
    for j, (fin, fout) in enumerate(FC_CFG):
        w = 0.01 * jax.random.normal(keys[len(CONV_CFG) + j], (fout, fin), jnp.float32)
        b = jnp.zeros((fout,), jnp.float32)
        params["fc"].append((w.T, b))             # stored as (fin, fout)
    return params


def prepare_params(params):
    """Fold BN scale into conv weights, build im2col (K*Cin, 128) weights, pad FCs."""
    conv_ws, shifts = [], []
    for (w, gamma, beta, mean, var, _s) in params["conv"]:
        cout, cin, _, K = w.shape
        scale = gamma / jnp.sqrt(var + BN_EPS)
        shift = beta - mean * scale
        wk = jnp.transpose(w[:, :, 0, :], (2, 1, 0)) * scale[None, None, :]  # (K,Cin,Cout)
        wk = wk.reshape(K * cin, cout)            # row = k*Cin + c  (matches staging cols)
        kc_pad = _round_up(K * cin, 128)
        wk = jnp.pad(wk, ((0, kc_pad - K * cin), (0, CPAD - cout)))
        conv_ws.append(wk.astype(jnp.bfloat16))
        shifts.append(jnp.pad(shift, (0, CPAD - cout)))
    fcw, fcb = [], []
    for (wT, b) in params["fc"]:
        fin, fout = wT.shape
        fcw.append(jnp.pad(wT, ((0, CPAD - fin), (0, CPAD - fout))))
        fcb.append(jnp.pad(b, (0, CPAD - fout)))
    return {
        "conv_w": conv_ws,
        "conv_shift": jnp.stack(shifts).astype(jnp.float32),
        "fc_w": jnp.stack(fcw).astype(jnp.bfloat16),
        "fc_b": jnp.stack(fcb).astype(jnp.float32),
    }


def reference_forward(x, prep):
    """Pure-jnp reference using the same bf16-matmul / f32-accumulate recipe."""
    # TODO(synk): this checks the kernel's fusion/indexing; it is not an f32 PyTorch baseline.
    B = x.shape[0]
    plan = conv_plan(x.shape[1], x.shape[2])
    act = x.astype(jnp.bfloat16)                  # (B, H, W, C)
    for li, cfg in enumerate(plan):
        Hout, Wout, K, s, cin = cfg["Hout"], cfg["Wout"], cfg["K"], cfg["s"], cfg["Cin"]
        wfull = prep["conv_w"][li]                # (kc_pad, 128) bf16
        y = None
        for k in range(K):
            xk = act[:, ::s, k:k + s * (Wout - 1) + 1:s, :cin].astype(jnp.bfloat16)
            wk = wfull[k * cin:(k + 1) * cin, :]
            t = jnp.einsum("bhwc,co->bhwo", xk, wk, preferred_element_type=jnp.float32)
            y = t if y is None else y + t
        y = jnp.maximum(y + prep["conv_shift"][li][None, None, None, :], 0.0)
        act = y if li == len(plan) - 1 else y.astype(jnp.bfloat16)
    h = jnp.max(act.reshape(B, -1, CPAD), axis=1)      # AdaptiveMaxPool2d((1,1)), f32
    n_fc = prep["fc_w"].shape[0]
    for j in range(n_fc):
        h = jnp.dot(h.astype(jnp.bfloat16), prep["fc_w"][j],
                    preferred_element_type=jnp.float32) + prep["fc_b"][j]
        if j < n_fc - 1:
            h = jnp.maximum(h, 0.0)
    return h[:, :1]


if __name__ == "__main__":
    key = jax.random.PRNGKey(0)
    pkey, xkey = jax.random.split(key)
    params = init_params(pkey)
    prep = prepare_params(params)

    B, H, W, C = 4, 8, 64, 12   # W must survive three stride-2 (1,7) convs
    BT = 2                      # images per grid step -> grid=(2,), even for v7x megacore
    x = jax.random.normal(xkey, (B, H, W, C), jnp.float32)

    fwd = jax.jit(lambda inp: cnn_lstm_forward(inp, prep, bt=BT))
    out = jax.block_until_ready(fwd(x))
    assert out.shape == (B, 1) and out.dtype == jnp.float32, (out.shape, out.dtype)

    ref = jax.block_until_ready(jax.jit(lambda inp: reference_forward(inp, prep))(x))
    tol_scale = float(jnp.max(jnp.abs(ref))) + 1e-6
    np.testing.assert_allclose(np.asarray(out), np.asarray(ref),
                               rtol=1e-2, atol=1e-2 * tol_scale)
    print("KERNEL_OK")
</pallas_src>

<mosaic_0001>
module attributes {stable_mosaic.version = 11 : i64} {
  func.func @_fused_forward_kernel(%arg0: i32, %arg1: memref<1x1024x12xf32, #tpu.memory_space<vmem>>, %arg2: memref<128x128xbf16, #tpu.memory_space<vmem>>, %arg3: memref<128x128xbf16, #tpu.memory_space<vmem>>, %arg4: memref<256x128xbf16, #tpu.memory_space<vmem>>, %arg5: memref<256x128xbf16, #tpu.memory_space<vmem>>, %arg6: memref<512x128xbf16, #tpu.memory_space<vmem>>, %arg7: memref<5x128xf32, #tpu.memory_space<vmem>>, %arg8: memref<3x128x128xbf16, #tpu.memory_space<vmem>>, %arg9: memref<3x128xf32, #tpu.memory_space<vmem>>, %arg10: memref<1x2x128xf32, #tpu.memory_space<vmem>>, %arg11: memref<240x128xf32, #tpu.memory_space<vmem>>, %arg12: memref<240x512xf32, #tpu.memory_space<vmem>>, %arg13: memref<2x128xf32, #tpu.memory_space<vmem>>) attributes {dimension_semantics = [#tpu.dimension_semantics<parallel>], iteration_bounds = array<i64: 2>, scalar_prefetch = 0 : i64, scratch_operands = 3 : i64, tpu.core_type = #tpu.core_type<tc>, window_params = [{transform_indices = @transform_0, window_bounds = array<i64: 1, 1024, 12>}, {pipeline_mode = #tpu.pipeline_mode<synchronous>, transform_indices = @transform_1, window_bounds = array<i64: 128, 128>}, {pipeline_mode = #tpu.pipeline_mode<synchronous>, transform_indices = @transform_2, window_bounds = array<i64: 128, 128>}, {pipeline_mode = #tpu.pipeline_mode<synchronous>, transform_indices = @transform_3, window_bounds = array<i64: 256, 128>}, {pipeline_mode = #tpu.pipeline_mode<synchronous>, transform_indices = @transform_4, window_bounds = array<i64: 256, 128>}, {pipeline_mode = #tpu.pipeline_mode<synchronous>, transform_indices = @transform_5, window_bounds = array<i64: 512, 128>}, {pipeline_mode = #tpu.pipeline_mode<synchronous>, transform_indices = @transform_6, window_bounds = array<i64: 5, 128>}, {pipeline_mode = #tpu.pipeline_mode<synchronous>, transform_indices = @transform_7, window_bounds = array<i64: 3, 128, 128>}, {pipeline_mode = #tpu.pipeline_mode<synchronous>, transform_indices = @transform_8, window_bounds = array<i64: 3, 128>}, {transform_indices = @transform_9, window_bounds = array<i64: 1, 2, 128>}]} {
    %cst = arith.constant 0.000000e+00 : f32
    %0 = vector.broadcast %cst : f32 to vector<240x512xf32>
    %c0 = arith.constant 0 : index
    %c0_0 = arith.constant 0 : index
    %1 = vector.load %arg12[%c0, %c0_0] : memref<240x512xf32, #tpu.memory_space<vmem>>, vector<240x512xf32>
    tpu.vector_store %arg12[%c0, %c0_0], %0 {strides = array<i32>} : memref<240x512xf32, #tpu.memory_space<vmem>>, vector<240x512xf32>,
    %c0_1 = arith.constant 0 : index
    %c0_2 = arith.constant 0 : index
    %c0_3 = arith.constant 0 : index
    %2 = tpu.strided_load %arg1[%c0_1, %c0_2, %c0_3] {strides = array<i32: 1, 2, 1>} : memref<1x1024x12xf32, #tpu.memory_space<vmem>>, vector<1x29x12xf32>
    %3 = vector.shape_cast %2 : vector<1x29x12xf32> to vector<29x12xf32>
    %c0_4 = arith.constant 0 : index
    %c0_5 = arith.constant 0 : index
    %4 = vector.load %arg12[%c0_4, %c0_5] : memref<240x512xf32, #tpu.memory_space<vmem>>, vector<29x12xf32>
    tpu.vector_store %arg12[%c0_4, %c0_5], %3 {strides = array<i32>} : memref<240x512xf32, #tpu.memory_space<vmem>>, vector<29x12xf32>,
    %c0_6 = arith.constant 0 : index
    %c1 = arith.constant 1 : index
    %c0_7 = arith.constant 0 : index
    %5 = tpu.strided_load %arg1[%c0_6, %c1, %c0_7] {strides = array<i32: 1, 2, 1>} : memref<1x1024x12xf32, #tpu.memory_space<vmem>>, vector<1x29x12xf32>
    %6 = vector.shape_cast %5 : vector<1x29x12xf32> to vector<29x12xf32>
    %c0_8 = arith.constant 0 : index
    %c12 = arith.constant 12 : index
    %7 = vector.load %arg12[%c0_8, %c12] : memref<240x512xf32, #tpu.memory_space<vmem>>, vector<29x12xf32>
    tpu.vector_store %arg12[%c0_8, %c12], %6 {strides = array<i32>} : memref<240x512xf32, #tpu.memory_space<vmem>>, vector<29x12xf32>,
    %c0_9 = arith.constant 0 : index
    %c2 = arith.constant 2 : index
    %c0_10 = arith.constant 0 : index
    %8 = tpu.strided_load %arg1[%c0_9, %c2, %c0_10] {strides = array<i32: 1, 2, 1>} : memref<1x1024x12xf32, #tpu.memory_space<vmem>>, vector<1x29x12xf32>
    %9 = vector.shape_cast %8 : vector<1x29x12xf32> to vector<29x12xf32>
    %c0_11 = arith.constant 0 : index
    %c24 = arith.constant 24 : index
    %10 = vector.load %arg12[%c0_11, %c24] : memref<240x512xf32, #tpu.memory_space<vmem>>, vector<29x12xf32>
    tpu.vector_store %arg12[%c0_11, %c24], %9 {strides = array<i32>} : memref<240x512xf32, #tpu.memory_space<vmem>>, vector<29x12xf32>,
    %c0_12 = arith.constant 0 : index
    %c3 = arith.constant 3 : index
    %c0_13 = arith.constant 0 : index
    %11 = tpu.strided_load %arg1[%c0_12, %c3, %c0_13] {strides = array<i32: 1, 2, 1>} : memref<1x1024x12xf32, #tpu.memory_space<vmem>>, vector<1x29x12xf32>
    %12 = vector.shape_cast %11 : vector<1x29x12xf32> to vector<29x12xf32>
    %c0_14 = arith.constant 0 : index
    %c36 = arith.constant 36 : index
    %13 = vector.load %arg12[%c0_14, %c36] : memref<240x512xf32, #tpu.memory_space<vmem>>, vector<29x12xf32>
    tpu.vector_store %arg12[%c0_14, %c36], %12 {strides = array<i32>} : memref<240x512xf32, #tpu.memory_space<vmem>>, vector<29x12xf32>,
    %c0_15 = arith.constant 0 : index
    %c4 = arith.constant 4 : index
    %c0_16 = arith.constant 0 : index
    %14 = tpu.strided_load %arg1[%c0_15, %c4, %c0_16] {strides = array<i32: 1, 2, 1>} : memref<1x1024x12xf32, #tpu.memory_space<vmem>>, vector<1x29x12xf32>
    %15 = vector.shape_cast %14 : vector<1x29x12xf32> to vector<29x12xf32>
    %c0_17 = arith.constant 0 : index
    %c48 = arith.constant 48 : index
    %16 = vector.load %arg12[%c0_17, %c48] : memref<240x512xf32, #tpu.memory_space<vmem>>, vector<29x12xf32>
    tpu.vector_store %arg12[%c0_17, %c48], %15 {strides = array<i32>} : memref<240x512xf32, #tpu.memory_space<vmem>>, vector<29x12xf32>,
    %c0_18 = arith.constant 0 : index
    %c5 = arith.constant 5 : index
    %c0_19 = arith.constant 0 : index
    %17 = tpu.strided_load %arg1[%c0_18, %c5, %c0_19] {strides = array<i32: 1, 2, 1>} : memref<1x1024x12xf32, #tpu.memory_space<vmem>>, vector<1x29x12xf32>
    %18 = vector.shape_cast %17 : vector<1x29x12xf32> to vector<29x12xf32>
    %c0_20 = arith.constant 0 : index
    %c60 = arith.constant 60 : index
    %19 = vector.load %arg12[%c0_20, %c60] : memref<240x512xf32, #tpu.memory_space<vmem>>, vector<29x12xf32>
    tpu.vector_store %arg12[%c0_20, %c60], %18 {strides = array<i32>} : memref<240x512xf32, #tpu.memory_space<vmem>>, vector<29x12xf32>,
    %c0_21 = arith.constant 0 : index
    %c6 = arith.constant 6 : index
    %c0_22 = arith.constant 0 : index
    %20 = tpu.strided_load %arg1[%c0_21, %c6, %c0_22] {strides = array<i32: 1, 2, 1>} : memref<1x1024x12xf32, #tpu.memory_space<vmem>>, vector<1x29x12xf32>
    %21 = vector.shape_cast %20 : vector<1x29x12xf32> to vector<29x12xf32>
    %c0_23 = arith.constant 0 : index
    %c72 = arith.constant 72 : index
    %22 = vector.load %arg12[%c0_23, %c72] : memref<240x512xf32, #tpu.memory_space<vmem>>, vector<29x12xf32>
    tpu.vector_store %arg12[%c0_23, %c72], %21 {strides = array<i32>} : memref<240x512xf32, #tpu.memory_space<vmem>>, vector<29x12xf32>,
    %c0_24 = arith.constant 0 : index
    %c128 = arith.constant 128 : index
    %c0_25 = arith.constant 0 : index
    %23 = tpu.strided_load %arg1[%c0_24, %c128, %c0_25] {strides = array<i32: 1, 2, 1>} : memref<1x1024x12xf32, #tpu.memory_space<vmem>>, vector<1x29x12xf32>
    %24 = vector.shape_cast %23 : vector<1x29x12xf32> to vector<29x12xf32>
    %c29 = arith.constant 29 : index
    %c0_26 = arith.constant 0 : index
    %25 = vector.load %arg12[%c29, %c0_26] : memref<240x512xf32, #tpu.memory_space<vmem>>, vector<29x12xf32>
    tpu.vector_store %arg12[%c29, %c0_26], %24 {strides = array<i32>} : memref<240x512xf32, #tpu.memory_space<vmem>>, vector<29x12xf32>,
    %c0_27 = arith.constant 0 : index
    %c129 = arith.constant 129 : index
    %c0_28 = arith.constant 0 : index
    %26 = tpu.strided_load %arg1[%c0_27, %c129, %c0_28] {strides = array<i32: 1, 2, 1>} : memref<1x1024x12xf32, #tpu.memory_space<vmem>>, vector<1x29x12xf32>
    %27 = vector.shape_cast %26 : vector<1x29x12xf32> to vector<29x12xf32>
    %c29_29 = arith.constant 29 : index
    %c12_30 = arith.constant 12 : index
    %28 = vector.load %arg12[%c29_29, %c12_30] : memref<240x512xf32, #tpu.memory_space<vmem>>, vector<29x12xf32>
    tpu.vector_store %arg12[%c29_29, %c12_30], %27 {strides = array<i32>} : memref<240x512xf32, #tpu.memory_space<vmem>>, vector<29x12xf32>,
    %c0_31 = arith.constant 0 : index
    %c130 = arith.constant 130 : index
    %c0_32 = arith.constant 0 : index
    %29 = tpu.strided_load %arg1[%c0_31, %c130, %c0_32] {strides = array<i32: 1, 2, 1>} : memref<1x1024x12xf32, #tpu.memory_space<vmem>>, vector<1x29x12xf32>
    %30 = vector.shape_cast %29 : vector<1x29x12xf32> to vector<29x12xf32>
    %c29_33 = arith.constant 29 : index
    %c24_34 = arith.constant 24 : index
    %31 = vector.load %arg12[%c29_33, %c24_34] : memref<240x512xf32, #tpu.memory_space<vmem>>, vector<29x12xf32>
    tpu.vector_store %arg12[%c29_33, %c24_34], %30 {strides = array<i32>} : memref<240x512xf32, #tpu.memory_space<vmem>>, vector<29x12xf32>,
    %c0_35 = arith.constant 0 : index
    %c131 = arith.constant 131 : index
    %c0_36 = arith.constant 0 : index
    %32 = tpu.strided_load %arg1[%c0_35, %c131, %c0_36] {strides = array<i32: 1, 2, 1>} : memref<1x1024x12xf32, #tpu.memory_space<vmem>>, vector<1x29x12xf32>
    %33 = vector.shape_cast %32 : vector<1x29x12xf32> to vector<29x12xf32>
    %c29_37 = arith.constant 29 : index
    %c36_38 = arith.constant 36 : index
    %34 = vector.load %arg12[%c29_37, %c36_38] : memref<240x512xf32, #tpu.memory_space<vmem>>, vector<29x12xf32>
    tpu.vector_store %arg12[%c29_37, %c36_38], %33 {strides = array<i32>} : memref<240x512xf32, #tpu.memory_space<vmem>>, vector<29x12xf32>,
    %c0_39 = arith.constant 0 : index
    %c132 = arith.constant 132 : index
    %c0_40 = arith.constant 0 : index
    %35 = tpu.strided_load %arg1[%c0_39, %c132, %c0_40] {strides = array<i32: 1, 2, 1>} : memref<1x1024x12xf32, #tpu.memory_space<vmem>>, vector<1x29x12xf32>
    %36 = vector.shape_cast %35 : vector<1x29x12xf32> to vector<29x12xf32>
    %c29_41 = arith.constant 29 : index
    %c48_42 = arith.constant 48 : index
    %37 = vector.load %arg12[%c29_41, %c48_42] : memref<240x512xf32, #tpu.memory_space<vmem>>, vector<29x12xf32>
    tpu.vector_store %arg12[%c29_41, %c48_42], %36 {strides = array<i32>} : memref<240x512xf32, #tpu.memory_space<vmem>>, vector<29x12xf32>,
    %c0_43 = arith.constant 0 : index
    %c133 = arith.constant 133 : index
    %c0_44 = arith.constant 0 : index
    %38 = tpu.strided_load %arg1[%c0_43, %c133, %c0_44] {strides = array<i32: 1, 2, 1>} : memref<1x1024x12xf32, #tpu.memory_space<vmem>>, vector<1x29x12xf32>
    %39 = vector.shape_cast %38 : vector<1x29x12xf32> to vector<29x12xf32>
    %c29_45 = arith.constant 29 : index
    %c60_46 = arith.constant 60 : index
    %40 = vector.load %arg12[%c29_45, %c60_46] : memref<240x512xf32, #tpu.memory_space<vmem>>, vector<29x12xf32>
    tpu.vector_store %arg12[%c29_45, %c60_46], %39 {strides = array<i32>} : memref<240x512xf32, #tpu.memory_space<vmem>>, vector<29x12xf32>,
    %c0_47 = arith.constant 0 : index
    %c134 = arith.constant 134 : index
    %c0_48 = arith.constant 0 : index
    %41 = tpu.strided_load %arg1[%c0_47, %c134, %c0_48] {strides = array<i32: 1, 2, 1>} : memref<1x1024x12xf32, #tpu.memory_space<vmem>>, vector<1x29x12xf32>
    %42 = vector.shape_cast %41 : vector<1x29x12xf32> to vector<29x12xf32>
    %c29_49 = arith.constant 29 : index
    %c72_50 = arith.constant 72 : index
    %43 = vector.load %arg12[%c29_49, %c72_50] : memref<240x512xf32, #tpu.memory_space<vmem>>, vector<29x12xf32>
    tpu.vector_store %arg12[%c29_49, %c72_50], %42 {strides = array<i32>} : memref<240x512xf32, #tpu.memory_space<vmem>>, vector<29x12xf32>,
    %c0_51 = arith.constant 0 : index
    %c256 = arith.constant 256 : index
    %c0_52 = arith.constant 0 : index
    %44 = tpu.strided_load %arg1[%c0_51, %c256, %c0_52] {strides = array<i32: 1, 2, 1>} : memref<1x1024x12xf32, #tpu.memory_space<vmem>>, vector<1x29x12xf32>
    %45 = vector.shape_cast %44 : vector<1x29x12xf32> to vector<29x12xf32>
    %c58 = arith.constant 58 : index
    %c0_53 = arith.constant 0 : index
    %46 = vector.load %arg12[%c58, %c0_53] : memref<240x512xf32, #tpu.memory_space<vmem>>, vector<29x12xf32>
    tpu.vector_store %arg12[%c58, %c0_53], %45 {strides = array<i32>} : memref<240x512xf32, #tpu.memory_space<vmem>>, vector<29x12xf32>,
    %c0_54 = arith.constant 0 : index
    %c257 = arith.constant 257 : index
    %c0_55 = arith.constant 0 : index
    %47 = tpu.strided_load %arg1[%c0_54, %c257, %c0_55] {strides = array<i32: 1, 2, 1>} : memref<1x1024x12xf32, #tpu.memory_space<vmem>>, vector<1x29x12xf32>
    %48 = vector.shape_cast %47 : vector<1x29x12xf32> to vector<29x12xf32>
    %c58_56 = arith.constant 58 : index
    %c12_57 = arith.constant 12 : index
    %49 = vector.load %arg12[%c58_56, %c12_57] : memref<240x512xf32, #tpu.memory_space<vmem>>, vector<29x12xf32>
    tpu.vector_store %arg12[%c58_56, %c12_57], %48 {strides = array<i32>} : memref<240x512xf32, #tpu.memory_space<vmem>>, vector<29x12xf32>,
    %c0_58 = arith.constant 0 : index
    %c258 = arith.constant 258 : index
    %c0_59 = arith.constant 0 : index
    %50 = tpu.strided_load %arg1[%c0_58, %c258, %c0_59] {strides = array<i32: 1, 2, 1>} : memref<1x1024x12xf32, #tpu.memory_space<vmem>>, vector<1x29x12xf32>
    %51 = vector.shape_cast %50 : vector<1x29x12xf32> to vector<29x12xf32>
    %c58_60 = arith.constant 58 : index
    %c24_61 = arith.constant 24 : index
    %52 = vector.load %arg12[%c58_60, %c24_61] : memref<240x512xf32, #tpu.memory_space<vmem>>, vector<29x12xf32>
    tpu.vector_store %arg12[%c58_60, %c24_61], %51 {strides = array<i32>} : memref<240x512xf32, #tpu.memory_space<vmem>>, vector<29x12xf32>,
    %c0_62 = arith.constant 0 : index
    %c259 = arith.constant 259 : index
    %c0_63 = arith.constant 0 : index
    %53 = tpu.strided_load %arg1[%c0_62, %c259, %c0_63] {strides = array<i32: 1, 2, 1>} : memref<1x1024x12xf32, #tpu.memory_space<vmem>>, vector<1x29x12xf32>
    %54 = vector.shape_cast %53 : vector<1x29x12xf32> to vector<29x12xf32>
    %c58_64 = arith.constant 58 : index
    %c36_65 = arith.constant 36 : index
    %55 = vector.load %arg12[%c58_64, %c36_65] : memref<240x512xf32, #tpu.memory_space<vmem>>, vector<29x12xf32>
    tpu.vector_store %arg12[%c58_64, %c36_65], %54 {strides = array<i32>} : memref<240x512xf32, #tpu.memory_space<vmem>>, vector<29x12xf32>,
    %c0_66 = arith.constant 0 : index
    %c260 = arith.constant 260 : index
    %c0_67 = arith.constant 0 : index
    %56 = tpu.strided_load %arg1[%c0_66, %c260, %c0_67] {strides = array<i32: 1, 2, 1>} : memref<1x1024x12xf32, #tpu.memory_space<vmem>>, vector<1x29x12xf32>
    %57 = vector.shape_cast %56 : vector<1x29x12xf32> to vector<29x12xf32>
    %c58_68 = arith.constant 58 : index
    %c48_69 = arith.constant 48 : index
    %58 = vector.load %arg12[%c58_68, %c48_69] : memref<240x512xf32, #tpu.memory_space<vmem>>, vector<29x12xf32>
    tpu.vector_store %arg12[%c58_68, %c48_69], %57 {strides = array<i32>} : memref<240x512xf32, #tpu.memory_space<vmem>>, vector<29x12xf32>,
    %c0_70 = arith.constant 0 : index
    %c261 = arith.constant 261 : index
    %c0_71 = arith.constant 0 : index
    %59 = tpu.strided_load %arg1[%c0_70, %c261, %c0_71] {strides = array<i32: 1, 2, 1>} : memref<1x1024x12xf32, #tpu.memory_space<vmem>>, vector<1x29x12xf32>
    %60 = vector.shape_cast %59 : vector<1x29x12xf32> to vector<29x12xf32>
    %c58_72 = arith.constant 58 : index
    %c60_73 = arith.constant 60 : index
    %61 = vector.load %arg12[%c58_72, %c60_73] : memref<240x512xf32, #tpu.memory_space<vmem>>, vector<29x12xf32>
    tpu.vector_store %arg12[%c58_72, %c60_73], %60 {strides = array<i32>} : memref<240x512xf32, #tpu.memory_space<vmem>>, vector<29x12xf32>,
    %c0_74 = arith.constant 0 : index
    %c262 = arith.constant 262 : index
    %c0_75 = arith.constant 0 : index
    %62 = tpu.strided_load %arg1[%c0_74, %c262, %c0_75] {strides = array<i32: 1, 2, 1>} : memref<1x1024x12xf32, #tpu.memory_space<vmem>>, vector<1x29x12xf32>
    %63 = vector.shape_cast %62 : vector<1x29x12xf32> to vector<29x12xf32>
    %c58_76 = arith.constant 58 : index
    %c72_77 = arith.constant 72 : index
    %64 = vector.load %arg12[%c58_76, %c72_77] : memref<240x512xf32, #tpu.memory_space<vmem>>, vector<29x12xf32>
    tpu.vector_store %arg12[%c58_76, %c72_77], %63 {strides = array<i32>} : memref<240x512xf32, #tpu.memory_space<vmem>>, vector<29x12xf32>,
    %c0_78 = arith.constant 0 : index
    %c384 = arith.constant 384 : index
    %c0_79 = arith.constant 0 : index
    %65 = tpu.strided_load %arg1[%c0_78, %c384, %c0_79] {strides = array<i32: 1, 2, 1>} : memref<1x1024x12xf32, #tpu.memory_space<vmem>>, vector<1x29x12xf32>
    %66 = vector.shape_cast %65 : vector<1x29x12xf32> to vector<29x12xf32>
    %c87 = arith.constant 87 : index
    %c0_80 = arith.constant 0 : index
    %67 = vector.load %arg12[%c87, %c0_80] : memref<240x512xf32, #tpu.memory_space<vmem>>, vector<29x12xf32>
    tpu.vector_store %arg12[%c87, %c0_80], %66 {strides = array<i32>} : memref<240x512xf32, #tpu.memory_space<vmem>>, vector<29x12xf32>,
    %c0_81 = arith.constant 0 : index
    %c385 = arith.constant 385 : index
    %c0_82 = arith.constant 0 : index
    %68 = tpu.strided_load %arg1[%c0_81, %c385, %c0_82] {strides = array<i32: 1, 2, 1>} : memref<1x1024x12xf32, #tpu.memory_space<vmem>>, vector<1x29x12xf32>
    %69 = vector.shape_cast %68 : vector<1x29x12xf32> to vector<29x12xf32>
    %c87_83 = arith.constant 87 : index
    %c12_84 = arith.constant 12 : index
    %70 = vector.load %arg12[%c87_83, %c12_84] : memref<240x512xf32, #tpu.memory_space<vmem>>, vector<29x12xf32>
    tpu.vector_store %arg12[%c87_83, %c12_84], %69 {strides = array<i32>} : memref<240x512xf32, #tpu.memory_space<vmem>>, vector<29x12xf32>,
    %c0_85 = arith.constant 0 : index
    %c386 = arith.constant 386 : index
    %c0_86 = arith.constant 0 : index
    %71 = tpu.strided_load %arg1[%c0_85, %c386, %c0_86] {strides = array<i32: 1, 2, 1>} : memref<1x1024x12xf32, #tpu.memory_space<vmem>>, vector<1x29x12xf32>
    %72 = vector.shape_cast %71 : vector<1x29x12xf32> to vector<29x12xf32>
    %c87_87 = arith.constant 87 : index
    %c24_88 = arith.constant 24 : index
    %73 = vector.load %arg12[%c87_87, %c24_88] : memref<240x512xf32, #tpu.memory_space<vmem>>, vector<29x12xf32>
    tpu.vector_store %arg12[%c87_87, %c24_88], %72 {strides = array<i32>} : memref<240x512xf32, #tpu.memory_space<vmem>>, vector<29x12xf32>,
    %c0_89 = arith.constant 0 : index
    %c387 = arith.constant 387 : index
    %c0_90 = arith.constant 0 : index
    %74 = tpu.strided_load %arg1[%c0_89, %c387, %c0_90] {strides = array<i32: 1, 2, 1>} : memref<1x1024x12xf32, #tpu.memory_space<vmem>>, vector<1x29x12xf32>
    %75 = vector.shape_cast %74 : vector<1x29x12xf32> to vector<29x12xf32>
    %c87_91 = arith.constant 87 : index
    %c36_92 = arith.constant 36 : index
    %76 = vector.load %arg12[%c87_91, %c36_92] : memref<240x512xf32, #tpu.memory_space<vmem>>, vector<29x12xf32>
    tpu.vector_store %arg12[%c87_91, %c36_92], %75 {strides = array<i32>} : memref<240x512xf32, #tpu.memory_space<vmem>>, vector<29x12xf32>,
    %c0_93 = arith.constant 0 : index
    %c388 = arith.constant 388 : index
    %c0_94 = arith.constant 0 : index
    %77 = tpu.strided_load %arg1[%c0_93, %c388, %c0_94] {strides = array<i32: 1, 2, 1>} : memref<1x1024x12xf32, #tpu.memory_space<vmem>>, vector<1x29x12xf32>
    %78 = vector.shape_cast %77 : vector<1x29x12xf32> to vector<29x12xf32>
    %c87_95 = arith.constant 87 : index
    %c48_96 = arith.constant 48 : index
    %79 = vector.load %arg12[%c87_95, %c48_96] : memref<240x512xf32, #tpu.memory_space<vmem>>, vector<29x12xf32>
    tpu.vector_store %arg12[%c87_95, %c48_96], %78 {strides = array<i32>} : memref<240x512xf32, #tpu.memory_space<vmem>>, vector<29x12xf32>,
    %c0_97 = arith.constant 0 : index
    %c389 = arith.constant 389 : index
    %c0_98 = arith.constant 0 : index
    %80 = tpu.strided_load %arg1[%c0_97, %c389, %c0_98] {strides = array<i32: 1, 2, 1>} : memref<1x1024x12xf32, #tpu.memory_space<vmem>>, vector<1x29x12xf32>
    %81 = vector.shape_cast %80 : vector<1x29x12xf32> to vector<29x12xf32>
    %c87_99 = arith.constant 87 : index
    %c60_100 = arith.constant 60 : index
    %82 = vector.load %arg12[%c87_99, %c60_100] : memref<240x512xf32, #tpu.memory_space<vmem>>, vector<29x12xf32>
    tpu.vector_store %arg12[%c87_99, %c60_100], %81 {strides = array<i32>} : memref<240x512xf32, #tpu.memory_space<vmem>>, vector<29x12xf32>,
    %c0_101 = arith.constant 0 : index
    %c390 = arith.constant 390 : index
    %c0_102 = arith.constant 0 : index
    %83 = tpu.strided_load %arg1[%c0_101, %c390, %c0_102] {strides = array<i32: 1, 2, 1>} : memref<1x1024x12xf32, #tpu.memory_space<vmem>>, vector<1x29x12xf32>
    %84 = vector.shape_cast %83 : vector<1x29x12xf32> to vector<29x12xf32>
    %c87_103 = arith.constant 87 : index
    %c72_104 = arith.constant 72 : index
    %85 = vector.load %arg12[%c87_103, %c72_104] : memref<240x512xf32, #tpu.memory_space<vmem>>, vector<29x12xf32>
    tpu.vector_store %arg12[%c87_103, %c72_104], %84 {strides = array<i32>} : memref<240x512xf32, #tpu.memory_space<vmem>>, vector<29x12xf32>,
    %c0_105 = arith.constant 0 : index
    %c512 = arith.constant 512 : index
    %c0_106 = arith.constant 0 : index
    %86 = tpu.strided_load %arg1[%c0_105, %c512, %c0_106] {strides = array<i32: 1, 2, 1>} : memref<1x1024x12xf32, #tpu.memory_space<vmem>>, vector<1x29x12xf32>
    %87 = vector.shape_cast %86 : vector<1x29x12xf32> to vector<29x12xf32>
    %c120 = arith.constant 120 : index
    %c0_107 = arith.constant 0 : index
    %88 = vector.load %arg12[%c120, %c0_107] : memref<240x512xf32, #tpu.memory_space<vmem>>, vector<29x12xf32>
    tpu.vector_store %arg12[%c120, %c0_107], %87 {strides = array<i32>} : memref<240x512xf32, #tpu.memory_space<vmem>>, vector<29x12xf32>,
    %c0_108 = arith.constant 0 : index
    %c513 = arith.constant 513 : index
    %c0_109 = arith.constant 0 : index
    %89 = tpu.strided_load %arg1[%c0_108, %c513, %c0_109] {strides = array<i32: 1, 2, 1>} : memref<1x1024x12xf32, #tpu.memory_space<vmem>>, vector<1x29x12xf32>
    %90 = vector.shape_cast %89 : vector<1x29x12xf32> to vector<29x12xf32>
    %c120_110 = arith.constant 120 : index
    %c12_111 = arith.constant 12 : index
    %91 = vector.load %arg12[%c120_110, %c12_111] : memref<240x512xf32, #tpu.memory_space<vmem>>, vector<29x12xf32>
    tpu.vector_store %arg12[%c120_110, %c12_111], %90 {strides = array<i32>} : memref<240x512xf32, #tpu.memory_space<vmem>>, vector<29x12xf32>,
    %c0_112 = arith.constant 0 : index
    %c514 = arith.constant 514 : index
    %c0_113 = arith.constant 0 : index
    %92 = tpu.strided_load %arg1[%c0_112, %c514, %c0_113] {strides = array<i32: 1, 2, 1>} : memref<1x1024x12xf32, #tpu.memory_space<vmem>>, vector<1x29x12xf32>
    %93 = vector.shape_cast %92 : vector<1x29x12xf32> to vector<29x12xf32>
    %c120_114 = arith.constant 120 : index
    %c24_115 = arith.constant 24 : index
    %94 = vector.load %arg12[%c120_114, %c24_115] : memref<240x512xf32, #tpu.memory_space<vmem>>, vector<29x12xf32>
    tpu.vector_store %arg12[%c120_114, %c24_115], %93 {strides = array<i32>} : memref<240x512xf32, #tpu.memory_space<vmem>>, vector<29x12xf32>,
    %c0_116 = arith.constant 0 : index
    %c515 = arith.constant 515 : index
    %c0_117 = arith.constant 0 : index
    %95 = tpu.strided_load %arg1[%c0_116, %c515, %c0_117] {strides = array<i32: 1, 2, 1>} : memref<1x1024x12xf32, #tpu.memory_space<vmem>>, vector<1x29x12xf32>
    %96 = vector.shape_cast %95 : vector<1x29x12xf32> to vector<29x12xf32>
    %c120_118 = arith.constant 120 : index
    %c36_119 = arith.constant 36 : index
    %97 = vector.load %arg12[%c120_118, %c36_119] : memref<240x512xf32, #tpu.memory_space<vmem>>, vector<29x12xf32>
    tpu.vector_store %arg12[%c120_118, %c36_119], %96 {strides = array<i32>} : memref<240x512xf32, #tpu.memory_space<vmem>>, vector<29x12xf32>,
    %c0_120 = arith.constant 0 : index
    %c516 = arith.constant 516 : index
    %c0_121 = arith.constant 0 : index
    %98 = tpu.strided_load %arg1[%c0_120, %c516, %c0_121] {strides = array<i32: 1, 2, 1>} : memref<1x1024x12xf32, #tpu.memory_space<vmem>>, vector<1x29x12xf32>
    %99 = vector.shape_cast %98 : vector<1x29x12xf32> to vector<29x12xf32>
    %c120_122 = arith.constant 120 : index
    %c48_123 = arith.constant 48 : index
    %100 = vector.load %arg12[%c120_122, %c48_123] : memref<240x512xf32, #tpu.memory_space<vmem>>, vector<29x12xf32>
    tpu.vector_store %arg12[%c120_122, %c48_123], %99 {strides = array<i32>} : memref<240x512xf32, #tpu.memory_space<vmem>>, vector<29x12xf32>,
    %c0_124 = arith.constant 0 : index
    %c517 = arith.constant 517 : index
    %c0_125 = arith.constant 0 : index
    %101 = tpu.strided_load %arg1[%c0_124, %c517, %c0_125] {strides = array<i32: 1, 2, 1>} : memref<1x1024x12xf32, #tpu.memory_space<vmem>>, vector<1x29x12xf32>
    %102 = vector.shape_cast %101 : vector<1x29x12xf32> to vector<29x12xf32>
    %c120_126 = arith.constant 120 : index
    %c60_127 = arith.constant 60 : index
    %103 = vector.load %arg12[%c120_126, %c60_127] : memref<240x512xf32, #tpu.memory_space<vmem>>, vector<29x12xf32>
    tpu.vector_store %arg12[%c120_126, %c60_127], %102 {strides = array<i32>} : memref<240x512xf32, #tpu.memory_space<vmem>>, vector<29x12xf32>,
    %c0_128 = arith.constant 0 : index
    %c518 = arith.constant 518 : index
    %c0_129 = arith.constant 0 : index
    %104 = tpu.strided_load %arg1[%c0_128, %c518, %c0_129] {strides = array<i32: 1, 2, 1>} : memref<1x1024x12xf32, #tpu.memory_space<vmem>>, vector<1x29x12xf32>
    %105 = vector.shape_cast %104 : vector<1x29x12xf32> to vector<29x12xf32>
    %c120_130 = arith.constant 120 : index
    %c72_131 = arith.constant 72 : index
    %106 = vector.load %arg12[%c120_130, %c72_131] : memref<240x512xf32, #tpu.memory_space<vmem>>, vector<29x12xf32>
    tpu.vector_store %arg12[%c120_130, %c72_131], %105 {strides = array<i32>} : memref<240x512xf32, #tpu.memory_space<vmem>>, vector<29x12xf32>,
    %c0_132 = arith.constant 0 : index
    %c640 = arith.constant 640 : index
    %c0_133 = arith.constant 0 : index
    %107 = tpu.strided_load %arg1[%c0_132, %c640, %c0_133] {strides = array<i32: 1, 2, 1>} : memref<1x1024x12xf32, #tpu.memory_space<vmem>>, vector<1x29x12xf32>
    %108 = vector.shape_cast %107 : vector<1x29x12xf32> to vector<29x12xf32>
    %c149 = arith.constant 149 : index
    %c0_134 = arith.constant 0 : index
    %109 = vector.load %arg12[%c149, %c0_134] : memref<240x512xf32, #tpu.memory_space<vmem>>, vector<29x12xf32>
    tpu.vector_store %arg12[%c149, %c0_134], %108 {strides = array<i32>} : memref<240x512xf32, #tpu.memory_space<vmem>>, vector<29x12xf32>,
    %c0_135 = arith.constant 0 : index
    %c641 = arith.constant 641 : index
    %c0_136 = arith.constant 0 : index
    %110 = tpu.strided_load %arg1[%c0_135, %c641, %c0_136] {strides = array<i32: 1, 2, 1>} : memref<1x1024x12xf32, #tpu.memory_space<vmem>>, vector<1x29x12xf32>
    %111 = vector.shape_cast %110 : vector<1x29x12xf32> to vector<29x12xf32>
    %c149_137 = arith.constant 149 : index
    %c12_138 = arith.constant 12 : index
    %112 = vector.load %arg12[%c149_137, %c12_138] : memref<240x512xf32, #tpu.memory_space<vmem>>, vector<29x12xf32>
    tpu.vector_store %arg12[%c149_137, %c12_138], %111 {strides = array<i32>} : memref<240x512xf32, #tpu.memory_space<vmem>>, vector<29x12xf32>,
    %c0_139 = arith.constant 0 : index
    %c642 = arith.constant 642 : index
    %c0_140 = arith.constant 0 : index
    %113 = tpu.strided_load %arg1[%c0_139, %c642, %c0_140] {strides = array<i32: 1, 2, 1>} : memref<1x1024x12xf32, #tpu.memory_space<vmem>>, vector<1x29x12xf32>
    %114 = vector.shape_cast %113 : vector<1x29x12xf32> to vector<29x12xf32>
    %c149_141 = arith.constant 149 : index
    %c24_142 = arith.constant 24 : index
    %115 = vector.load %arg12[%c149_141, %c24_142] : memref<240x512xf32, #tpu.memory_space<vmem>>, vector<29x12xf32>
    tpu.vector_store %arg12[%c149_141, %c24_142], %114 {strides = array<i32>} : memref<240x512xf32, #tpu.memory_space<vmem>>, vector<29x12xf32>,
    %c0_143 = arith.constant 0 : index
    %c643 = arith.constant 643 : index
    %c0_144 = arith.constant 0 : index
    %116 = tpu.strided_load %arg1[%c0_143, %c643, %c0_144] {strides = array<i32: 1, 2, 1>} : memref<1x1024x12xf32, #tpu.memory_space<vmem>>, vector<1x29x12xf32>
    %117 = vector.shape_cast %116 : vector<1x29x12xf32> to vector<29x12xf32>
    %c149_145 = arith.constant 149 : index
    %c36_146 = arith.constant 36 : index
    %118 = vector.load %arg12[%c149_145, %c36_146] : memref<240x512xf32, #tpu.memory_space<vmem>>, vector<29x12xf32>
    tpu.vector_store %arg12[%c149_145, %c36_146], %117 {strides = array<i32>} : memref<240x512xf32, #tpu.memory_space<vmem>>, vector<29x12xf32>,
    %c0_147 = arith.constant 0 : index
    %c644 = arith.constant 644 : index
    %c0_148 = arith.constant 0 : index
    %119 = tpu.strided_load %arg1[%c0_147, %c644, %c0_148] {strides = array<i32: 1, 2, 1>} : memref<1x1024x12xf32, #tpu.memory_space<vmem>>, vector<1x29x12xf32>
    %120 = vector.shape_cast %119 : vector<1x29x12xf32> to vector<29x12xf32>
    %c149_149 = arith.constant 149 : index
    %c48_150 = arith.constant 48 : index
    %121 = vector.load %arg12[%c149_149, %c48_150] : memref<240x512xf32, #tpu.memory_space<vmem>>, vector<29x12xf32>
    tpu.vector_store %arg12[%c149_149, %c48_150], %120 {strides = array<i32>} : memref<240x512xf32, #tpu.memory_space<vmem>>, vector<29x12xf32>,
    %c0_151 = arith.constant 0 : index
    %c645 = arith.constant 645 : index
    %c0_152 = arith.constant 0 : index
    %122 = tpu.strided_load %arg1[%c0_151, %c645, %c0_152] {strides = array<i32: 1, 2, 1>} : memref<1x1024x12xf32, #tpu.memory_space<vmem>>, vector<1x29x12xf32>
    %123 = vector.shape_cast %122 : vector<1x29x12xf32> to vector<29x12xf32>
    %c149_153 = arith.constant 149 : index
    %c60_154 = arith.constant 60 : index
    %124 = vector.load %arg12[%c149_153, %c60_154] : memref<240x512xf32, #tpu.memory_space<vmem>>, vector<29x12xf32>
    tpu.vector_store %arg12[%c149_153, %c60_154], %123 {strides = array<i32>} : memref<240x512xf32, #tpu.memory_space<vmem>>, vector<29x12xf32>,
    %c0_155 = arith.constant 0 : index
    %c646 = arith.constant 646 : index
    %c0_156 = arith.constant 0 : index
    %125 = tpu.strided_load %arg1[%c0_155, %c646, %c0_156] {strides = array<i32: 1, 2, 1>} : memref<1x1024x12xf32, #tpu.memory_space<vmem>>, vector<1x29x12xf32>
    %126 = vector.shape_cast %125 : vector<1x29x12xf32> to vector<29x12xf32>
    %c149_157 = arith.constant 149 : index
    %c72_158 = arith.constant 72 : index
    %127 = vector.load %arg12[%c149_157, %c72_158] : memref<240x512xf32, #tpu.memory_space<vmem>>, vector<29x12xf32>
    tpu.vector_store %arg12[%c149_157, %c72_158], %126 {strides = array<i32>} : memref<240x512xf32, #tpu.memory_space<vmem>>, vector<29x12xf32>,
    %c0_159 = arith.constant 0 : index
    %c768 = arith.constant 768 : index
    %c0_160 = arith.constant 0 : index
    %128 = tpu.strided_load %arg1[%c0_159, %c768, %c0_160] {strides = array<i32: 1, 2, 1>} : memref<1x1024x12xf32, #tpu.memory_space<vmem>>, vector<1x29x12xf32>
    %129 = vector.shape_cast %128 : vector<1x29x12xf32> to vector<29x12xf32>
    %c178 = arith.constant 178 : index
    %c0_161 = arith.constant 0 : index
    %130 = vector.load %arg12[%c178, %c0_161] : memref<240x512xf32, #tpu.memory_space<vmem>>, vector<29x12xf32>
    tpu.vector_store %arg12[%c178, %c0_161], %129 {strides = array<i32>} : memref<240x512xf32, #tpu.memory_space<vmem>>, vector<29x12xf32>,
    %c0_162 = arith.constant 0 : index
    %c769 = arith.constant 769 : index
    %c0_163 = arith.constant 0 : index
    %131 = tpu.strided_load %arg1[%c0_162, %c769, %c0_163] {strides = array<i32: 1, 2, 1>} : memref<1x1024x12xf32, #tpu.memory_space<vmem>>, vector<1x29x12xf32>
    %132 = vector.shape_cast %131 : vector<1x29x12xf32> to vector<29x12xf32>
    %c178_164 = arith.constant 178 : index
    %c12_165 = arith.constant 12 : index
    %133 = vector.load %arg12[%c178_164, %c12_165] : memref<240x512xf32, #tpu.memory_space<vmem>>, vector<29x12xf32>
    tpu.vector_store %arg12[%c178_164, %c12_165], %132 {strides = array<i32>} : memref<240x512xf32, #tpu.memory_space<vmem>>, vector<29x12xf32>,
    %c0_166 = arith.constant 0 : index
    %c770 = arith.constant 770 : index
    %c0_167 = arith.constant 0 : index
    %134 = tpu.strided_load %arg1[%c0_166, %c770, %c0_167] {strides = array<i32: 1, 2, 1>} : memref<1x1024x12xf32, #tpu.memory_space<vmem>>, vector<1x29x12xf32>
    %135 = vector.shape_cast %134 : vector<1x29x12xf32> to vector<29x12xf32>
    %c178_168 = arith.constant 178 : index
    %c24_169 = arith.constant 24 : index
    %136 = vector.load %arg12[%c178_168, %c24_169] : memref<240x512xf32, #tpu.memory_space<vmem>>, vector<29x12xf32>
    tpu.vector_store %arg12[%c178_168, %c24_169], %135 {strides = array<i32>} : memref<240x512xf32, #tpu.memory_space<vmem>>, vector<29x12xf32>,
    %c0_170 = arith.constant 0 : index
    %c771 = arith.constant 771 : index
    %c0_171 = arith.constant 0 : index
    %137 = tpu.strided_load %arg1[%c0_170, %c771, %c0_171] {strides = array<i32: 1, 2, 1>} : memref<1x1024x12xf32, #tpu.memory_space<vmem>>, vector<1x29x12xf32>
    %138 = vector.shape_cast %137 : vector<1x29x12xf32> to vector<29x12xf32>
    %c178_172 = arith.constant 178 : index
    %c36_173 = arith.constant 36 : index
    %139 = vector.load %arg12[%c178_172, %c36_173] : memref<240x512xf32, #tpu.memory_space<vmem>>, vector<29x12xf32>
    tpu.vector_store %arg12[%c178_172, %c36_173], %138 {strides = array<i32>} : memref<240x512xf32, #tpu.memory_space<vmem>>, vector<29x12xf32>,
    %c0_174 = arith.constant 0 : index
    %c772 = arith.constant 772 : index
    %c0_175 = arith.constant 0 : index
    %140 = tpu.strided_load %arg1[%c0_174, %c772, %c0_175] {strides = array<i32: 1, 2, 1>} : memref<1x1024x12xf32, #tpu.memory_space<vmem>>, vector<1x29x12xf32>
    %141 = vector.shape_cast %140 : vector<1x29x12xf32> to vector<29x12xf32>
    %c178_176 = arith.constant 178 : index
    %c48_177 = arith.constant 48 : index
    %142 = vector.load %arg12[%c178_176, %c48_177] : memref<240x512xf32, #tpu.memory_space<vmem>>, vector<29x12xf32>
    tpu.vector_store %arg12[%c178_176, %c48_177], %141 {strides = array<i32>} : memref<240x512xf32, #tpu.memory_space<vmem>>, vector<29x12xf32>,
    %c0_178 = arith.constant 0 : index
    %c773 = arith.constant 773 : index
    %c0_179 = arith.constant 0 : index
    %143 = tpu.strided_load %arg1[%c0_178, %c773, %c0_179] {strides = array<i32: 1, 2, 1>} : memref<1x1024x12xf32, #tpu.memory_space<vmem>>, vector<1x29x12xf32>
    %144 = vector.shape_cast %143 : vector<1x29x12xf32> to vector<29x12xf32>
    %c178_180 = arith.constant 178 : index
    %c60_181 = arith.constant 60 : index
    %145 = vector.load %arg12[%c178_180, %c60_181] : memref<240x512xf32, #tpu.memory_space<vmem>>, vector<29x12xf32>
    tpu.vector_store %arg12[%c178_180, %c60_181], %144 {strides = array<i32>} : memref<240x512xf32, #tpu.memory_space<vmem>>, vector<29x12xf32>,
    %c0_182 = arith.constant 0 : index
    %c774 = arith.constant 774 : index
    %c0_183 = arith.constant 0 : index
    %146 = tpu.strided_load %arg1[%c0_182, %c774, %c0_183] {strides = array<i32: 1, 2, 1>} : memref<1x1024x12xf32, #tpu.memory_space<vmem>>, vector<1x29x12xf32>
    %147 = vector.shape_cast %146 : vector<1x29x12xf32> to vector<29x12xf32>
    %c178_184 = arith.constant 178 : index
    %c72_185 = arith.constant 72 : index
    %148 = vector.load %arg12[%c178_184, %c72_185] : memref<240x512xf32, #tpu.memory_space<vmem>>, vector<29x12xf32>
    tpu.vector_store %arg12[%c178_184, %c72_185], %147 {strides = array<i32>} : memref<240x512xf32, #tpu.memory_space<vmem>>, vector<29x12xf32>,
    %c0_186 = arith.constant 0 : index
    %c896 = arith.constant 896 : index
    %c0_187 = arith.constant 0 : index
    %149 = tpu.strided_load %arg1[%c0_186, %c896, %c0_187] {strides = array<i32: 1, 2, 1>} : memref<1x1024x12xf32, #tpu.memory_space<vmem>>, vector<1x29x12xf32>
    %150 = vector.shape_cast %149 : vector<1x29x12xf32> to vector<29x12xf32>
    %c207 = arith.constant 207 : index
    %c0_188 = arith.constant 0 : index
    %151 = vector.load %arg12[%c207, %c0_188] : memref<240x512xf32, #tpu.memory_space<vmem>>, vector<29x12xf32>
    tpu.vector_store %arg12[%c207, %c0_188], %150 {strides = array<i32>} : memref<240x512xf32, #tpu.memory_space<vmem>>, vector<29x12xf32>,
    %c0_189 = arith.constant 0 : index
    %c897 = arith.constant 897 : index
    %c0_190 = arith.constant 0 : index
    %152 = tpu.strided_load %arg1[%c0_189, %c897, %c0_190] {strides = array<i32: 1, 2, 1>} : memref<1x1024x12xf32, #tpu.memory_space<vmem>>, vector<1x29x12xf32>
    %153 = vector.shape_cast %152 : vector<1x29x12xf32> to vector<29x12xf32>
    %c207_191 = arith.constant 207 : index
    %c12_192 = arith.constant 12 : index
    %154 = vector.load %arg12[%c207_191, %c12_192] : memref<240x512xf32, #tpu.memory_space<vmem>>, vector<29x12xf32>
    tpu.vector_store %arg12[%c207_191, %c12_192], %153 {strides = array<i32>} : memref<240x512xf32, #tpu.memory_space<vmem>>, vector<29x12xf32>,
    %c0_193 = arith.constant 0 : index
    %c898 = arith.constant 898 : index
    %c0_194 = arith.constant 0 : index
    %155 = tpu.strided_load %arg1[%c0_193, %c898, %c0_194] {strides = array<i32: 1, 2, 1>} : memref<1x1024x12xf32, #tpu.memory_space<vmem>>, vector<1x29x12xf32>
    %156 = vector.shape_cast %155 : vector<1x29x12xf32> to vector<29x12xf32>
    %c207_195 = arith.constant 207 : index
    %c24_196 = arith.constant 24 : index
    %157 = vector.load %arg12[%c207_195, %c24_196] : memref<240x512xf32, #tpu.memory_space<vmem>>, vector<29x12xf32>
    tpu.vector_store %arg12[%c207_195, %c24_196], %156 {strides = array<i32>} : memref<240x512xf32, #tpu.memory_space<vmem>>, vector<29x12xf32>,
    %c0_197 = arith.constant 0 : index
    %c899 = arith.constant 899 : index
    %c0_198 = arith.constant 0 : index
    %158 = tpu.strided_load %arg1[%c0_197, %c899, %c0_198] {strides = array<i32: 1, 2, 1>} : memref<1x1024x12xf32, #tpu.memory_space<vmem>>, vector<1x29x12xf32>
    %159 = vector.shape_cast %158 : vector<1x29x12xf32> to vector<29x12xf32>
    %c207_199 = arith.constant 207 : index
    %c36_200 = arith.constant 36 : index
    %160 = vector.load %arg12[%c207_199, %c36_200] : memref<240x512xf32, #tpu.memory_space<vmem>>, vector<29x12xf32>
    tpu.vector_store %arg12[%c207_199, %c36_200], %159 {strides = array<i32>} : memref<240x512xf32, #tpu.memory_space<vmem>>, vector<29x12xf32>,
    %c0_201 = arith.constant 0 : index
    %c900 = arith.constant 900 : index
    %c0_202 = arith.constant 0 : index
    %161 = tpu.strided_load %arg1[%c0_201, %c900, %c0_202] {strides = array<i32: 1, 2, 1>} : memref<1x1024x12xf32, #tpu.memory_space<vmem>>, vector<1x29x12xf32>
    %162 = vector.shape_cast %161 : vector<1x29x12xf32> to vector<29x12xf32>
    %c207_203 = arith.constant 207 : index
    %c48_204 = arith.constant 48 : index
    %163 = vector.load %arg12[%c207_203, %c48_204] : memref<240x512xf32, #tpu.memory_space<vmem>>, vector<29x12xf32>
    tpu.vector_store %arg12[%c207_203, %c48_204], %162 {strides = array<i32>} : memref<240x512xf32, #tpu.memory_space<vmem>>, vector<29x12xf32>,
    %c0_205 = arith.constant 0 : index
    %c901 = arith.constant 901 : index
    %c0_206 = arith.constant 0 : index
    %164 = tpu.strided_load %arg1[%c0_205, %c901, %c0_206] {strides = array<i32: 1, 2, 1>} : memref<1x1024x12xf32, #tpu.memory_space<vmem>>, vector<1x29x12xf32>
    %165 = vector.shape_cast %164 : vector<1x29x12xf32> to vector<29x12xf32>
    %c207_207 = arith.constant 207 : index
    %c60_208 = arith.constant 60 : index
    %166 = vector.load %arg12[%c207_207, %c60_208] : memref<240x512xf32, #tpu.memory_space<vmem>>, vector<29x12xf32>
    tpu.vector_store %arg12[%c207_207, %c60_208], %165 {strides = array<i32>} : memref<240x512xf32, #tpu.memory_space<vmem>>, vector<29x12xf32>,
    %c0_209 = arith.constant 0 : index
    %c902 = arith.constant 902 : index
    %c0_210 = arith.constant 0 : index
    %167 = tpu.strided_load %arg1[%c0_209, %c902, %c0_210] {strides = array<i32: 1, 2, 1>} : memref<1x1024x12xf32, #tpu.memory_space<vmem>>, vector<1x29x12xf32>
    %168 = vector.shape_cast %167 : vector<1x29x12xf32> to vector<29x12xf32>
    %c207_211 = arith.constant 207 : index
    %c72_212 = arith.constant 72 : index
    %169 = vector.load %arg12[%c207_211, %c72_212] : memref<240x512xf32, #tpu.memory_space<vmem>>, vector<29x12xf32>
    tpu.vector_store %arg12[%c207_211, %c72_212], %168 {strides = array<i32>} : memref<240x512xf32, #tpu.memory_space<vmem>>, vector<29x12xf32>,
    %c0_213 = arith.constant 0 : index
    %c0_214 = arith.constant 0 : index
    %170 = vector.load %arg12[%c0_213, %c0_214] : memref<240x512xf32, #tpu.memory_space<vmem>>, vector<240x128xf32>
    %171 = arith.truncf %170 : vector<240x128xf32> to vector<240x128xbf16>
    %c0_215 = arith.constant 0 : index
    %c0_216 = arith.constant 0 : index
    %172 = vector.load %arg2[%c0_215, %c0_216] : memref<128x128xbf16, #tpu.memory_space<vmem>>, vector<128x128xbf16>
    %cst_217 = arith.constant dense<0.000000e+00> : vector<240x128xf32>
    %173 = tpu.matmul %171, %172, %cst_217 {dimension_numbers = #tpu.dot_dimension_numbers<[1], [0], [0], [1], [0, 0, 1, 1], [], []>} : vector<240x128xbf16>, vector<128x128xbf16>, vector<240x128xf32> -> vector<240x128xf32>
    %c0_218 = arith.constant 0 : index
    %c0_219 = arith.constant 0 : index
    %174 = vector.load %arg7[%c0_218, %c0_219] : memref<5x128xf32, #tpu.memory_space<vmem>>, vector<1x128xf32>
    %175 = vector.broadcast %174 : vector<1x128xf32> to vector<240x128xf32>
    %176 = arith.addf %173, %175 : vector<240x128xf32>
    %cst_220 = arith.constant 0.000000e+00 : f32
    %177 = vector.broadcast %cst_220 : f32 to vector<240x128xf32>
    %178 = arith.maximumf %176, %177 : vector<240x128xf32>
    %c0_221 = arith.constant 0 : index
    %c0_222 = arith.constant 0 : index
    %179 = vector.load %arg11[%c0_221, %c0_222] : memref<240x128xf32, #tpu.memory_space<vmem>>, vector<240x128xf32>
    tpu.vector_store %arg11[%c0_221, %c0_222], %178 {strides = array<i32>} : memref<240x128xf32, #tpu.memory_space<vmem>>, vector<240x128xf32>,
    %c0_223 = arith.constant 0 : index
    %c0_224 = arith.constant 0 : index
    %180 = vector.load %arg11[%c0_223, %c0_224] : memref<240x128xf32, #tpu.memory_space<vmem>>, vector<27x32xf32>
    %c0_225 = arith.constant 0 : index
    %c0_226 = arith.constant 0 : index
    %181 = vector.load %arg12[%c0_225, %c0_226] : memref<240x512xf32, #tpu.memory_space<vmem>>, vector<27x32xf32>
    tpu.vector_store %arg12[%c0_225, %c0_226], %180 {strides = array<i32>} : memref<240x512xf32, #tpu.memory_space<vmem>>, vector<27x32xf32>,
    %c1_227 = arith.constant 1 : index
    %c0_228 = arith.constant 0 : index
    %182 = vector.load %arg11[%c1_227, %c0_228] : memref<240x128xf32, #tpu.memory_space<vmem>>, vector<27x32xf32>
    %c0_229 = arith.constant 0 : index
    %c32 = arith.constant 32 : index
    %183 = vector.load %arg12[%c0_229, %c32] : memref<240x512xf32, #tpu.memory_space<vmem>>, vector<27x32xf32>
    tpu.vector_store %arg12[%c0_229, %c32], %182 {strides = array<i32>} : memref<240x512xf32, #tpu.memory_space<vmem>>, vector<27x32xf32>,
    %c2_230 = arith.constant 2 : index
    %c0_231 = arith.constant 0 : index
    %184 = vector.load %arg11[%c2_230, %c0_231] : memref<240x128xf32, #tpu.memory_space<vmem>>, vector<27x32xf32>
    %c0_232 = arith.constant 0 : index
    %c64 = arith.constant 64 : index
    %185 = vector.load %arg12[%c0_232, %c64] : memref<240x512xf32, #tpu.memory_space<vmem>>, vector<27x32xf32>
    tpu.vector_store %arg12[%c0_232, %c64], %184 {strides = array<i32>} : memref<240x512xf32, #tpu.memory_space<vmem>>, vector<27x32xf32>,
    %c29_233 = arith.constant 29 : index
    %c0_234 = arith.constant 0 : index
    %186 = vector.load %arg11[%c29_233, %c0_234] : memref<240x128xf32, #tpu.memory_space<vmem>>, vector<27x32xf32>
    %c27 = arith.constant 27 : index
    %c0_235 = arith.constant 0 : index
    %187 = vector.load %arg12[%c27, %c0_235] : memref<240x512xf32, #tpu.memory_space<vmem>>, vector<27x32xf32>
    tpu.vector_store %arg12[%c27, %c0_235], %186 {strides = array<i32>} : memref<240x512xf32, #tpu.memory_space<vmem>>, vector<27x32xf32>,
    %c30 = arith.constant 30 : index
    %c0_236 = arith.constant 0 : index
    %188 = vector.load %arg11[%c30, %c0_236] : memref<240x128xf32, #tpu.memory_space<vmem>>, vector<27x32xf32>
    %c27_237 = arith.constant 27 : index
    %c32_238 = arith.constant 32 : index
    %189 = vector.load %arg12[%c27_237, %c32_238] : memref<240x512xf32, #tpu.memory_space<vmem>>, vector<27x32xf32>
    tpu.vector_store %arg12[%c27_237, %c32_238], %188 {strides = array<i32>} : memref<240x512xf32, #tpu.memory_space<vmem>>, vector<27x32xf32>,
    %c31 = arith.constant 31 : index
    %c0_239 = arith.constant 0 : index
    %190 = vector.load %arg11[%c31, %c0_239] : memref<240x128xf32, #tpu.memory_space<vmem>>, vector<27x32xf32>
    %c27_240 = arith.constant 27 : index
    %c64_241 = arith.constant 64 : index
    %191 = vector.load %arg12[%c27_240, %c64_241] : memref<240x512xf32, #tpu.memory_space<vmem>>, vector<27x32xf32>
    tpu.vector_store %arg12[%c27_240, %c64_241], %190 {strides = array<i32>} : memref<240x512xf32, #tpu.memory_space<vmem>>, vector<27x32xf32>,
    %c58_242 = arith.constant 58 : index
    %c0_243 = arith.constant 0 : index
    %192 = vector.load %arg11[%c58_242, %c0_243] : memref<240x128xf32, #tpu.memory_space<vmem>>, vector<27x32xf32>
    %c54 = arith.constant 54 : index
    %c0_244 = arith.constant 0 : index
    %193 = vector.load %arg12[%c54, %c0_244] : memref<240x512xf32, #tpu.memory_space<vmem>>, vector<27x32xf32>
    tpu.vector_store %arg12[%c54, %c0_244], %192 {strides = array<i32>} : memref<240x512xf32, #tpu.memory_space<vmem>>, vector<27x32xf32>,
    %c59 = arith.constant 59 : index
    %c0_245 = arith.constant 0 : index
    %194 = vector.load %arg11[%c59, %c0_245] : memref<240x128xf32, #tpu.memory_space<vmem>>, vector<27x32xf32>
    %c54_246 = arith.constant 54 : index
    %c32_247 = arith.constant 32 : index
    %195 = vector.load %arg12[%c54_246, %c32_247] : memref<240x512xf32, #tpu.memory_space<vmem>>, vector<27x32xf32>
    tpu.vector_store %arg12[%c54_246, %c32_247], %194 {strides = array<i32>} : memref<240x512xf32, #tpu.memory_space<vmem>>, vector<27x32xf32>,
    %c60_248 = arith.constant 60 : index
    %c0_249 = arith.constant 0 : index
    %196 = vector.load %arg11[%c60_248, %c0_249] : memref<240x128xf32, #tpu.memory_space<vmem>>, vector<27x32xf32>
    %c54_250 = arith.constant 54 : index
    %c64_251 = arith.constant 64 : index
    %197 = vector.load %arg12[%c54_250, %c64_251] : memref<240x512xf32, #tpu.memory_space<vmem>>, vector<27x32xf32>
    tpu.vector_store %arg12[%c54_250, %c64_251], %196 {strides = array<i32>} : memref<240x512xf32, #tpu.memory_space<vmem>>, vector<27x32xf32>,
    %c87_252 = arith.constant 87 : index
    %c0_253 = arith.constant 0 : index
    %198 = vector.load %arg11[%c87_252, %c0_253] : memref<240x128xf32, #tpu.memory_space<vmem>>, vector<27x32xf32>
    %c81 = arith.constant 81 : index
    %c0_254 = arith.constant 0 : index
    %199 = vector.load %arg12[%c81, %c0_254] : memref<240x512xf32, #tpu.memory_space<vmem>>, vector<27x32xf32>
    tpu.vector_store %arg12[%c81, %c0_254], %198 {strides = array<i32>} : memref<240x512xf32, #tpu.memory_space<vmem>>, vector<27x32xf32>,
    %c88 = arith.constant 88 : index
    %c0_255 = arith.constant 0 : index
    %200 = vector.load %arg11[%c88, %c0_255] : memref<240x128xf32, #tpu.memory_space<vmem>>, vector<27x32xf32>
    %c81_256 = arith.constant 81 : index
    %c32_257 = arith.constant 32 : index
    %201 = vector.load %arg12[%c81_256, %c32_257] : memref<240x512xf32, #tpu.memory_space<vmem>>, vector<27x32xf32>
    tpu.vector_store %arg12[%c81_256, %c32_257], %200 {strides = array<i32>} : memref<240x512xf32, #tpu.memory_space<vmem>>, vector<27x32xf32>,
    %c89 = arith.constant 89 : index
    %c0_258 = arith.constant 0 : index
    %202 = vector.load %arg11[%c89, %c0_258] : memref<240x128xf32, #tpu.memory_space<vmem>>, vector<27x32xf32>
    %c81_259 = arith.constant 81 : index
    %c64_260 = arith.constant 64 : index
    %203 = vector.load %arg12[%c81_259, %c64_260] : memref<240x512xf32, #tpu.memory_space<vmem>>, vector<27x32xf32>
    tpu.vector_store %arg12[%c81_259, %c64_260], %202 {strides = array<i32>} : memref<240x512xf32, #tpu.memory_space<vmem>>, vector<27x32xf32>,
    %c120_261 = arith.constant 120 : index
    %c0_262 = arith.constant 0 : index
    %204 = vector.load %arg11[%c120_261, %c0_262] : memref<240x128xf32, #tpu.memory_space<vmem>>, vector<27x32xf32>
    %c112 = arith.constant 112 : index
    %c0_263 = arith.constant 0 : index
    %205 = vector.load %arg12[%c112, %c0_263] : memref<240x512xf32, #tpu.memory_space<vmem>>, vector<27x32xf32>
    tpu.vector_store %arg12[%c112, %c0_263], %204 {strides = array<i32>} : memref<240x512xf32, #tpu.memory_space<vmem>>, vector<27x32xf32>,
    %c121 = arith.constant 121 : index
    %c0_264 = arith.constant 0 : index
    %206 = vector.load %arg11[%c121, %c0_264] : memref<240x128xf32, #tpu.memory_space<vmem>>, vector<27x32xf32>
    %c112_265 = arith.constant 112 : index
    %c32_266 = arith.constant 32 : index
    %207 = vector.load %arg12[%c112_265, %c32_266] : memref<240x512xf32, #tpu.memory_space<vmem>>, vector<27x32xf32>
    tpu.vector_store %arg12[%c112_265, %c32_266], %206 {strides = array<i32>} : memref<240x512xf32, #tpu.memory_space<vmem>>, vector<27x32xf32>,
    %c122 = arith.constant 122 : index
    %c0_267 = arith.constant 0 : index
    %208 = vector.load %arg11[%c122, %c0_267] : memref<240x128xf32, #tpu.memory_space<vmem>>, vector<27x32xf32>
    %c112_268 = arith.constant 112 : index
    %c64_269 = arith.constant 64 : index
    %209 = vector.load %arg12[%c112_268, %c64_269] : memref<240x512xf32, #tpu.memory_space<vmem>>, vector<27x32xf32>
    tpu.vector_store %arg12[%c112_268, %c64_269], %208 {strides = array<i32>} : memref<240x512xf32, #tpu.memory_space<vmem>>, vector<27x32xf32>,
    %c149_270 = arith.constant 149 : index
    %c0_271 = arith.constant 0 : index
    %210 = vector.load %arg11[%c149_270, %c0_271] : memref<240x128xf32, #tpu.memory_space<vmem>>, vector<27x32xf32>
    %c139 = arith.constant 139 : index
    %c0_272 = arith.constant 0 : index
    %211 = vector.load %arg12[%c139, %c0_272] : memref<240x512xf32, #tpu.memory_space<vmem>>, vector<27x32xf32>
    tpu.vector_store %arg12[%c139, %c0_272], %210 {strides = array<i32>} : memref<240x512xf32, #tpu.memory_space<vmem>>, vector<27x32xf32>,
    %c150 = arith.constant 150 : index
    %c0_273 = arith.constant 0 : index
    %212 = vector.load %arg11[%c150, %c0_273] : memref<240x128xf32, #tpu.memory_space<vmem>>, vector<27x32xf32>
    %c139_274 = arith.constant 139 : index
    %c32_275 = arith.constant 32 : index
    %213 = vector.load %arg12[%c139_274, %c32_275] : memref<240x512xf32, #tpu.memory_space<vmem>>, vector<27x32xf32>
    tpu.vector_store %arg12[%c139_274, %c32_275], %212 {strides = array<i32>} : memref<240x512xf32, #tpu.memory_space<vmem>>, vector<27x32xf32>,
    %c151 = arith.constant 151 : index
    %c0_276 = arith.constant 0 : index
    %214 = vector.load %arg11[%c151, %c0_276] : memref<240x128xf32, #tpu.memory_space<vmem>>, vector<27x32xf32>
    %c139_277 = arith.constant 139 : index
    %c64_278 = arith.constant 64 : index
    %215 = vector.load %arg12[%c139_277, %c64_278] : memref<240x512xf32, #tpu.memory_space<vmem>>, vector<27x32xf32>
    tpu.vector_store %arg12[%c139_277, %c64_278], %214 {strides = array<i32>} : memref<240x512xf32, #tpu.memory_space<vmem>>, vector<27x32xf32>,
    %c178_279 = arith.constant 178 : index
    %c0_280 = arith.constant 0 : index
    %216 = vector.load %arg11[%c178_279, %c0_280] : memref<240x128xf32, #tpu.memory_space<vmem>>, vector<27x32xf32>
    %c166 = arith.constant 166 : index
    %c0_281 = arith.constant 0 : index
    %217 = vector.load %arg12[%c166, %c0_281] : memref<240x512xf32, #tpu.memory_space<vmem>>, vector<27x32xf32>
    tpu.vector_store %arg12[%c166, %c0_281], %216 {strides = array<i32>} : memref<240x512xf32, #tpu.memory_space<vmem>>, vector<27x32xf32>,
    %c179 = arith.constant 179 : index
    %c0_282 = arith.constant 0 : index
    %218 = vector.load %arg11[%c179, %c0_282] : memref<240x128xf32, #tpu.memory_space<vmem>>, vector<27x32xf32>
    %c166_283 = arith.constant 166 : index
    %c32_284 = arith.constant 32 : index
    %219 = vector.load %arg12[%c166_283, %c32_284] : memref<240x512xf32, #tpu.memory_space<vmem>>, vector<27x32xf32>
    tpu.vector_store %arg12[%c166_283, %c32_284], %218 {strides = array<i32>} : memref<240x512xf32, #tpu.memory_space<vmem>>, vector<27x32xf32>,
    %c180 = arith.constant 180 : index
    %c0_285 = arith.constant 0 : index
    %220 = vector.load %arg11[%c180, %c0_285] : memref<240x128xf32, #tpu.memory_space<vmem>>, vector<27x32xf32>
    %c166_286 = arith.constant 166 : index
    %c64_287 = arith.constant 64 : index
    %221 = vector.load %arg12[%c166_286, %c64_287] : memref<240x512xf32, #tpu.memory_space<vmem>>, vector<27x32xf32>
    tpu.vector_store %arg12[%c166_286, %c64_287], %220 {strides = array<i32>} : memref<240x512xf32, #tpu.memory_space<vmem>>, vector<27x32xf32>,
    %c207_288 = arith.constant 207 : index
    %c0_289 = arith.constant 0 : index
    %222 = vector.load %arg11[%c207_288, %c0_289] : memref<240x128xf32, #tpu.memory_space<vmem>>, vector<27x32xf32>
    %c193 = arith.constant 193 : index
    %c0_290 = arith.constant 0 : index
    %223 = vector.load %arg12[%c193, %c0_290] : memref<240x512xf32, #tpu.memory_space<vmem>>, vector<27x32xf32>
    tpu.vector_store %arg12[%c193, %c0_290], %222 {strides = array<i32>} : memref<240x512xf32, #tpu.memory_space<vmem>>, vector<27x32xf32>,
    %c208 = arith.constant 208 : index
    %c0_291 = arith.constant 0 : index
    %224 = vector.load %arg11[%c208, %c0_291] : memref<240x128xf32, #tpu.memory_space<vmem>>, vector<27x32xf32>
    %c193_292 = arith.constant 193 : index
    %c32_293 = arith.constant 32 : index
    %225 = vector.load %arg12[%c193_292, %c32_293] : memref<240x512xf32, #tpu.memory_space<vmem>>, vector<27x32xf32>
    tpu.vector_store %arg12[%c193_292, %c32_293], %224 {strides = array<i32>} : memref<240x512xf32, #tpu.memory_space<vmem>>, vector<27x32xf32>,
    %c209 = arith.constant 209 : index
    %c0_294 = arith.constant 0 : index
    %226 = vector.load %arg11[%c209, %c0_294] : memref<240x128xf32, #tpu.memory_space<vmem>>, vector<27x32xf32>
    %c193_295 = arith.constant 193 : index
    %c64_296 = arith.constant 64 : index
    %227 = vector.load %arg12[%c193_295, %c64_296] : memref<240x512xf32, #tpu.memory_space<vmem>>, vector<27x32xf32>
    tpu.vector_store %arg12[%c193_295, %c64_296], %226 {strides = array<i32>} : memref<240x512xf32, #tpu.memory_space<vmem>>, vector<27x32xf32>,
    %c0_297 = arith.constant 0 : index
    %c0_298 = arith.constant 0 : index
    %228 = vector.load %arg12[%c0_297, %c0_298] : memref<240x512xf32, #tpu.memory_space<vmem>>, vector<224x128xf32>
    %229 = arith.truncf %228 : vector<224x128xf32> to vector<224x128xbf16>
    %c0_299 = arith.constant 0 : index
    %c0_300 = arith.constant 0 : index
    %230 = vector.load %arg3[%c0_299, %c0_300] : memref<128x128xbf16, #tpu.memory_space<vmem>>, vector<128x128xbf16>
    %cst_301 = arith.constant dense<0.000000e+00> : vector<224x128xf32>
    %231 = tpu.matmul %229, %230, %cst_301 {dimension_numbers = #tpu.dot_dimension_numbers<[1], [0], [0], [1], [0, 0, 1, 1], [], []>} : vector<224x128xbf16>, vector<128x128xbf16>, vector<224x128xf32> -> vector<224x128xf32>
    %c1_302 = arith.constant 1 : index
    %c0_303 = arith.constant 0 : index
    %232 = vector.load %arg7[%c1_302, %c0_303] : memref<5x128xf32, #tpu.memory_space<vmem>>, vector<1x128xf32>
    %233 = vector.broadcast %232 : vector<1x128xf32> to vector<224x128xf32>
    %234 = arith.addf %231, %233 : vector<224x128xf32>
    %cst_304 = arith.constant 0.000000e+00 : f32
    %235 = vector.broadcast %cst_304 : f32 to vector<224x128xf32>
    %236 = arith.maximumf %234, %235 : vector<224x128xf32>
    %c0_305 = arith.constant 0 : index
    %c0_306 = arith.constant 0 : index
    %237 = vector.load %arg11[%c0_305, %c0_306] : memref<240x128xf32, #tpu.memory_space<vmem>>, vector<224x128xf32>
    tpu.vector_store %arg11[%c0_305, %c0_306], %236 {strides = array<i32>} : memref<240x128xf32, #tpu.memory_space<vmem>>, vector<224x128xf32>,
    %c0_307 = arith.constant 0 : index
    %c0_308 = arith.constant 0 : index
    %238 = tpu.strided_load %arg11[%c0_307, %c0_308] {strides = array<i32: 2, 1>} : memref<240x128xf32, #tpu.memory_space<vmem>>, vector<11x32xf32>
    %c0_309 = arith.constant 0 : index
    %c0_310 = arith.constant 0 : index
    %239 = vector.load %arg12[%c0_309, %c0_310] : memref<240x512xf32, #tpu.memory_space<vmem>>, vector<11x32xf32>
    tpu.vector_store %arg12[%c0_309, %c0_310], %238 {strides = array<i32>} : memref<240x512xf32, #tpu.memory_space<vmem>>, vector<11x32xf32>,
    %c1_311 = arith.constant 1 : index
    %c0_312 = arith.constant 0 : index
    %240 = tpu.strided_load %arg11[%c1_311, %c0_312] {strides = array<i32: 2, 1>} : memref<240x128xf32, #tpu.memory_space<vmem>>, vector<11x32xf32>
    %c0_313 = arith.constant 0 : index
    %c32_314 = arith.constant 32 : index
    %241 = vector.load %arg12[%c0_313, %c32_314] : memref<240x512xf32, #tpu.memory_space<vmem>>, vector<11x32xf32>
    tpu.vector_store %arg12[%c0_313, %c32_314], %240 {strides = array<i32>} : memref<240x512xf32, #tpu.memory_space<vmem>>, vector<11x32xf32>,
    %c2_315 = arith.constant 2 : index
    %c0_316 = arith.constant 0 : index
    %242 = tpu.strided_load %arg11[%c2_315, %c0_316] {strides = array<i32: 2, 1>} : memref<240x128xf32, #tpu.memory_space<vmem>>, vector<11x32xf32>
    %c0_317 = arith.constant 0 : index
    %c64_318 = arith.constant 64 : index
    %243 = vector.load %arg12[%c0_317, %c64_318] : memref<240x512xf32, #tpu.memory_space<vmem>>, vector<11x32xf32>
    tpu.vector_store %arg12[%c0_317, %c64_318], %242 {strides = array<i32>} : memref<240x512xf32, #tpu.memory_space<vmem>>, vector<11x32xf32>,
    %c3_319 = arith.constant 3 : index
    %c0_320 = arith.constant 0 : index
    %244 = tpu.strided_load %arg11[%c3_319, %c0_320] {strides = array<i32: 2, 1>} : memref<240x128xf32, #tpu.memory_space<vmem>>, vector<11x32xf32>
    %c0_321 = arith.constant 0 : index
    %c96 = arith.constant 96 : index
    %245 = vector.load %arg12[%c0_321, %c96] : memref<240x512xf32, #tpu.memory_space<vmem>>, vector<11x32xf32>
    tpu.vector_store %arg12[%c0_321, %c96], %244 {strides = array<i32>} : memref<240x512xf32, #tpu.memory_space<vmem>>, vector<11x32xf32>,
    %c4_322 = arith.constant 4 : index
    %c0_323 = arith.constant 0 : index
    %246 = tpu.strided_load %arg11[%c4_322, %c0_323] {strides = array<i32: 2, 1>} : memref<240x128xf32, #tpu.memory_space<vmem>>, vector<11x32xf32>
    %c0_324 = arith.constant 0 : index
    %c128_325 = arith.constant 128 : index
    %247 = vector.load %arg12[%c0_324, %c128_325] : memref<240x512xf32, #tpu.memory_space<vmem>>, vector<11x32xf32>
    tpu.vector_store %arg12[%c0_324, %c128_325], %246 {strides = array<i32>} : memref<240x512xf32, #tpu.memory_space<vmem>>, vector<11x32xf32>,
    %c5_326 = arith.constant 5 : index
    %c0_327 = arith.constant 0 : index
    %248 = tpu.strided_load %arg11[%c5_326, %c0_327] {strides = array<i32: 2, 1>} : memref<240x128xf32, #tpu.memory_space<vmem>>, vector<11x32xf32>
    %c0_328 = arith.constant 0 : index
    %c160 = arith.constant 160 : index
    %249 = vector.load %arg12[%c0_328, %c160] : memref<240x512xf32, #tpu.memory_space<vmem>>, vector<11x32xf32>
    tpu.vector_store %arg12[%c0_328, %c160], %248 {strides = array<i32>} : memref<240x512xf32, #tpu.memory_space<vmem>>, vector<11x32xf32>,
    %c6_329 = arith.constant 6 : index
    %c0_330 = arith.constant 0 : index
    %250 = tpu.strided_load %arg11[%c6_329, %c0_330] {strides = array<i32: 2, 1>} : memref<240x128xf32, #tpu.memory_space<vmem>>, vector<11x32xf32>
    %c0_331 = arith.constant 0 : index
    %c192 = arith.constant 192 : index
    %251 = vector.load %arg12[%c0_331, %c192] : memref<240x512xf32, #tpu.memory_space<vmem>>, vector<11x32xf32>
    tpu.vector_store %arg12[%c0_331, %c192], %250 {strides = array<i32>} : memref<240x512xf32, #tpu.memory_space<vmem>>, vector<11x32xf32>,
    %c54_332 = arith.constant 54 : index
    %c0_333 = arith.constant 0 : index
    %252 = tpu.strided_load %arg11[%c54_332, %c0_333] {strides = array<i32: 2, 1>} : memref<240x128xf32, #tpu.memory_space<vmem>>, vector<11x32xf32>
    %c11 = arith.constant 11 : index
    %c0_334 = arith.constant 0 : index
    %253 = vector.load %arg12[%c11, %c0_334] : memref<240x512xf32, #tpu.memory_space<vmem>>, vector<11x32xf32>
    tpu.vector_store %arg12[%c11, %c0_334], %252 {strides = array<i32>} : memref<240x512xf32, #tpu.memory_space<vmem>>, vector<11x32xf32>,
    %c55 = arith.constant 55 : index
    %c0_335 = arith.constant 0 : index
    %254 = tpu.strided_load %arg11[%c55, %c0_335] {strides = array<i32: 2, 1>} : memref<240x128xf32, #tpu.memory_space<vmem>>, vector<11x32xf32>
    %c11_336 = arith.constant 11 : index
    %c32_337 = arith.constant 32 : index
    %255 = vector.load %arg12[%c11_336, %c32_337] : memref<240x512xf32, #tpu.memory_space<vmem>>, vector<11x32xf32>
    tpu.vector_store %arg12[%c11_336, %c32_337], %254 {strides = array<i32>} : memref<240x512xf32, #tpu.memory_space<vmem>>, vector<11x32xf32>,
    %c56 = arith.constant 56 : index
    %c0_338 = arith.constant 0 : index
    %256 = tpu.strided_load %arg11[%c56, %c0_338] {strides = array<i32: 2, 1>} : memref<240x128xf32, #tpu.memory_space<vmem>>, vector<11x32xf32>
    %c11_339 = arith.constant 11 : index
    %c64_340 = arith.constant 64 : index
    %257 = vector.load %arg12[%c11_339, %c64_340] : memref<240x512xf32, #tpu.memory_space<vmem>>, vector<11x32xf32>
    tpu.vector_store %arg12[%c11_339, %c64_340], %256 {strides = array<i32>} : memref<240x512xf32, #tpu.memory_space<vmem>>, vector<11x32xf32>,
    %c57 = arith.constant 57 : index
    %c0_341 = arith.constant 0 : index
    %258 = tpu.strided_load %arg11[%c57, %c0_341] {strides = array<i32: 2, 1>} : memref<240x128xf32, #tpu.memory_space<vmem>>, vector<11x32xf32>
    %c11_342 = arith.constant 11 : index
    %c96_343 = arith.constant 96 : index
    %259 = vector.load %arg12[%c11_342, %c96_343] : memref<240x512xf32, #tpu.memory_space<vmem>>, vector<11x32xf32>
    tpu.vector_store %arg12[%c11_342, %c96_343], %258 {strides = array<i32>} : memref<240x512xf32, #tpu.memory_space<vmem>>, vector<11x32xf32>,
    %c58_344 = arith.constant 58 : index
    %c0_345 = arith.constant 0 : index
    %260 = tpu.strided_load %arg11[%c58_344, %c0_345] {strides = array<i32: 2, 1>} : memref<240x128xf32, #tpu.memory_space<vmem>>, vector<11x32xf32>
    %c11_346 = arith.constant 11 : index
    %c128_347 = arith.constant 128 : index
    %261 = vector.load %arg12[%c11_346, %c128_347] : memref<240x512xf32, #tpu.memory_space<vmem>>, vector<11x32xf32>
    tpu.vector_store %arg12[%c11_346, %c128_347], %260 {strides = array<i32>} : memref<240x512xf32, #tpu.memory_space<vmem>>, vector<11x32xf32>,
    %c59_348 = arith.constant 59 : index
    %c0_349 = arith.constant 0 : index
    %262 = tpu.strided_load %arg11[%c59_348, %c0_349] {strides = array<i32: 2, 1>} : memref<240x128xf32, #tpu.memory_space<vmem>>, vector<11x32xf32>
    %c11_350 = arith.constant 11 : index
    %c160_351 = arith.constant 160 : index
    %263 = vector.load %arg12[%c11_350, %c160_351] : memref<240x512xf32, #tpu.memory_space<vmem>>, vector<11x32xf32>
    tpu.vector_store %arg12[%c11_350, %c160_351], %262 {strides = array<i32>} : memref<240x512xf32, #tpu.memory_space<vmem>>, vector<11x32xf32>,
    %c60_352 = arith.constant 60 : index
    %c0_353 = arith.constant 0 : index
    %264 = tpu.strided_load %arg11[%c60_352, %c0_353] {strides = array<i32: 2, 1>} : memref<240x128xf32, #tpu.memory_space<vmem>>, vector<11x32xf32>
    %c11_354 = arith.constant 11 : index
    %c192_355 = arith.constant 192 : index
    %265 = vector.load %arg12[%c11_354, %c192_355] : memref<240x512xf32, #tpu.memory_space<vmem>>, vector<11x32xf32>
    tpu.vector_store %arg12[%c11_354, %c192_355], %264 {strides = array<i32>} : memref<240x512xf32, #tpu.memory_space<vmem>>, vector<11x32xf32>,
    %c112_356 = arith.constant 112 : index
    %c0_357 = arith.constant 0 : index
    %266 = tpu.strided_load %arg11[%c112_356, %c0_357] {strides = array<i32: 2, 1>} : memref<240x128xf32, #tpu.memory_space<vmem>>, vector<11x32xf32>
    %c24_358 = arith.constant 24 : index
    %c0_359 = arith.constant 0 : index
    %267 = vector.load %arg12[%c24_358, %c0_359] : memref<240x512xf32, #tpu.memory_space<vmem>>, vector<11x32xf32>
    tpu.vector_store %arg12[%c24_358, %c0_359], %266 {strides = array<i32>} : memref<240x512xf32, #tpu.memory_space<vmem>>, vector<11x32xf32>,
    %c113 = arith.constant 113 : index
    %c0_360 = arith.constant 0 : index
    %268 = tpu.strided_load %arg11[%c113, %c0_360] {strides = array<i32: 2, 1>} : memref<240x128xf32, #tpu.memory_space<vmem>>, vector<11x32xf32>
    %c24_361 = arith.constant 24 : index
    %c32_362 = arith.constant 32 : index
    %269 = vector.load %arg12[%c24_361, %c32_362] : memref<240x512xf32, #tpu.memory_space<vmem>>, vector<11x32xf32>
    tpu.vector_store %arg12[%c24_361, %c32_362], %268 {strides = array<i32>} : memref<240x512xf32, #tpu.memory_space<vmem>>, vector<11x32xf32>,
    %c114 = arith.constant 114 : index
    %c0_363 = arith.constant 0 : index
    %270 = tpu.strided_load %arg11[%c114, %c0_363] {strides = array<i32: 2, 1>} : memref<240x128xf32, #tpu.memory_space<vmem>>, vector<11x32xf32>
    %c24_364 = arith.constant 24 : index
    %c64_365 = arith.constant 64 : index
    %271 = vector.load %arg12[%c24_364, %c64_365] : memref<240x512xf32, #tpu.memory_space<vmem>>, vector<11x32xf32>
    tpu.vector_store %arg12[%c24_364, %c64_365], %270 {strides = array<i32>} : memref<240x512xf32, #tpu.memory_space<vmem>>, vector<11x32xf32>,
    %c115 = arith.constant 115 : index
    %c0_366 = arith.constant 0 : index
    %272 = tpu.strided_load %arg11[%c115, %c0_366] {strides = array<i32: 2, 1>} : memref<240x128xf32, #tpu.memory_space<vmem>>, vector<11x32xf32>
    %c24_367 = arith.constant 24 : index
    %c96_368 = arith.constant 96 : index
    %273 = vector.load %arg12[%c24_367, %c96_368] : memref<240x512xf32, #tpu.memory_space<vmem>>, vector<11x32xf32>
    tpu.vector_store %arg12[%c24_367, %c96_368], %272 {strides = array<i32>} : memref<240x512xf32, #tpu.memory_space<vmem>>, vector<11x32xf32>,
    %c116 = arith.constant 116 : index
    %c0_369 = arith.constant 0 : index
    %274 = tpu.strided_load %arg11[%c116, %c0_369] {strides = array<i32: 2, 1>} : memref<240x128xf32, #tpu.memory_space<vmem>>, vector<11x32xf32>
    %c24_370 = arith.constant 24 : index
    %c128_371 = arith.constant 128 : index
    %275 = vector.load %arg12[%c24_370, %c128_371] : memref<240x512xf32, #tpu.memory_space<vmem>>, vector<11x32xf32>
    tpu.vector_store %arg12[%c24_370, %c128_371], %274 {strides = array<i32>} : memref<240x512xf32, #tpu.memory_space<vmem>>, vector<11x32xf32>,
    %c117 = arith.constant 117 : index
    %c0_372 = arith.constant 0 : index
    %276 = tpu.strided_load %arg11[%c117, %c0_372] {strides = array<i32: 2, 1>} : memref<240x128xf32, #tpu.memory_space<vmem>>, vector<11x32xf32>
    %c24_373 = arith.constant 24 : index
    %c160_374 = arith.constant 160 : index
    %277 = vector.load %arg12[%c24_373, %c160_374] : memref<240x512xf32, #tpu.memory_space<vmem>>, vector<11x32xf32>
    tpu.vector_store %arg12[%c24_373, %c160_374], %276 {strides = array<i32>} : memref<240x512xf32, #tpu.memory_space<vmem>>, vector<11x32xf32>,
    %c118 = arith.constant 118 : index
    %c0_375 = arith.constant 0 : index
    %278 = tpu.strided_load %arg11[%c118, %c0_375] {strides = array<i32: 2, 1>} : memref<240x128xf32, #tpu.memory_space<vmem>>, vector<11x32xf32>
    %c24_376 = arith.constant 24 : index
    %c192_377 = arith.constant 192 : index
    %279 = vector.load %arg12[%c24_376, %c192_377] : memref<240x512xf32, #tpu.memory_space<vmem>>, vector<11x32xf32>
    tpu.vector_store %arg12[%c24_376, %c192_377], %278 {strides = array<i32>} : memref<240x512xf32, #tpu.memory_space<vmem>>, vector<11x32xf32>,
    %c166_378 = arith.constant 166 : index
    %c0_379 = arith.constant 0 : index
    %280 = tpu.strided_load %arg11[%c166_378, %c0_379] {strides = array<i32: 2, 1>} : memref<240x128xf32, #tpu.memory_space<vmem>>, vector<11x32xf32>
    %c35 = arith.constant 35 : index
    %c0_380 = arith.constant 0 : index
    %281 = vector.load %arg12[%c35, %c0_380] : memref<240x512xf32, #tpu.memory_space<vmem>>, vector<11x32xf32>
    tpu.vector_store %arg12[%c35, %c0_380], %280 {strides = array<i32>} : memref<240x512xf32, #tpu.memory_space<vmem>>, vector<11x32xf32>,
    %c167 = arith.constant 167 : index
    %c0_381 = arith.constant 0 : index
    %282 = tpu.strided_load %arg11[%c167, %c0_381] {strides = array<i32: 2, 1>} : memref<240x128xf32, #tpu.memory_space<vmem>>, vector<11x32xf32>
    %c35_382 = arith.constant 35 : index
    %c32_383 = arith.constant 32 : index
    %283 = vector.load %arg12[%c35_382, %c32_383] : memref<240x512xf32, #tpu.memory_space<vmem>>, vector<11x32xf32>
    tpu.vector_store %arg12[%c35_382, %c32_383], %282 {strides = array<i32>} : memref<240x512xf32, #tpu.memory_space<vmem>>, vector<11x32xf32>,
    %c168 = arith.constant 168 : index
    %c0_384 = arith.constant 0 : index
    %284 = tpu.strided_load %arg11[%c168, %c0_384] {strides = array<i32: 2, 1>} : memref<240x128xf32, #tpu.memory_space<vmem>>, vector<11x32xf32>
    %c35_385 = arith.constant 35 : index
    %c64_386 = arith.constant 64 : index
    %285 = vector.load %arg12[%c35_385, %c64_386] : memref<240x512xf32, #tpu.memory_space<vmem>>, vector<11x32xf32>
    tpu.vector_store %arg12[%c35_385, %c64_386], %284 {strides = array<i32>} : memref<240x512xf32, #tpu.memory_space<vmem>>, vector<11x32xf32>,
    %c169 = arith.constant 169 : index
    %c0_387 = arith.constant 0 : index
    %286 = tpu.strided_load %arg11[%c169, %c0_387] {strides = array<i32: 2, 1>} : memref<240x128xf32, #tpu.memory_space<vmem>>, vector<11x32xf32>
    %c35_388 = arith.constant 35 : index
    %c96_389 = arith.constant 96 : index
    %287 = vector.load %arg12[%c35_388, %c96_389] : memref<240x512xf32, #tpu.memory_space<vmem>>, vector<11x32xf32>
    tpu.vector_store %arg12[%c35_388, %c96_389], %286 {strides = array<i32>} : memref<240x512xf32, #tpu.memory_space<vmem>>, vector<11x32xf32>,
    %c170 = arith.constant 170 : index
    %c0_390 = arith.constant 0 : index
    %288 = tpu.strided_load %arg11[%c170, %c0_390] {strides = array<i32: 2, 1>} : memref<240x128xf32, #tpu.memory_space<vmem>>, vector<11x32xf32>
    %c35_391 = arith.constant 35 : index
    %c128_392 = arith.constant 128 : index
    %289 = vector.load %arg12[%c35_391, %c128_392] : memref<240x512xf32, #tpu.memory_space<vmem>>, vector<11x32xf32>
    tpu.vector_store %arg12[%c35_391, %c128_392], %288 {strides = array<i32>} : memref<240x512xf32, #tpu.memory_space<vmem>>, vector<11x32xf32>,
    %c171 = arith.constant 171 : index
    %c0_393 = arith.constant 0 : index
    %290 = tpu.strided_load %arg11[%c171, %c0_393] {strides = array<i32: 2, 1>} : memref<240x128xf32, #tpu.memory_space<vmem>>, vector<11x32xf32>
    %c35_394 = arith.constant 35 : index
    %c160_395 = arith.constant 160 : index
    %291 = vector.load %arg12[%c35_394, %c160_395] : memref<240x512xf32, #tpu.memory_space<vmem>>, vector<11x32xf32>
    tpu.vector_store %arg12[%c35_394, %c160_395], %290 {strides = array<i32>} : memref<240x512xf32, #tpu.memory_space<vmem>>, vector<11x32xf32>,
    %c172 = arith.constant 172 : index
    %c0_396 = arith.constant 0 : index
    %292 = tpu.strided_load %arg11[%c172, %c0_396] {strides = array<i32: 2, 1>} : memref<240x128xf32, #tpu.memory_space<vmem>>, vector<11x32xf32>
    %c35_397 = arith.constant 35 : index
    %c192_398 = arith.constant 192 : index
    %293 = vector.load %arg12[%c35_397, %c192_398] : memref<240x512xf32, #tpu.memory_space<vmem>>, vector<11x32xf32>
    tpu.vector_store %arg12[%c35_397, %c192_398], %292 {strides = array<i32>} : memref<240x512xf32, #tpu.memory_space<vmem>>, vector<11x32xf32>,
    %c0_399 = arith.constant 0 : index
    %c0_400 = arith.constant 0 : index
    %294 = vector.load %arg12[%c0_399, %c0_400] : memref<240x512xf32, #tpu.memory_space<vmem>>, vector<48x256xf32>
    %295 = arith.truncf %294 : vector<48x256xf32> to vector<48x256xbf16>
    %c0_401 = arith.constant 0 : index
    %c0_402 = arith.constant 0 : index
    %296 = vector.load %arg4[%c0_401, %c0_402] : memref<256x128xbf16, #tpu.memory_space<vmem>>, vector<256x128xbf16>
    %cst_403 = arith.constant dense<0.000000e+00> : vector<48x128xf32>
    %297 = tpu.matmul %295, %296, %cst_403 {dimension_numbers = #tpu.dot_dimension_numbers<[1], [0], [0], [1], [0, 0, 1, 1], [], []>} : vector<48x256xbf16>, vector<256x128xbf16>, vector<48x128xf32> -> vector<48x128xf32>
    %c2_404 = arith.constant 2 : index
    %c0_405 = arith.constant 0 : index
    %298 = vector.load %arg7[%c2_404, %c0_405] : memref<5x128xf32, #tpu.memory_space<vmem>>, vector<1x128xf32>
    %299 = vector.broadcast %298 : vector<1x128xf32> to vector<48x128xf32>
    %300 = arith.addf %297, %299 : vector<48x128xf32>
    %cst_406 = arith.constant 0.000000e+00 : f32
    %301 = vector.broadcast %cst_406 : f32 to vector<48x128xf32>
    %302 = arith.maximumf %300, %301 : vector<48x128xf32>
    %c0_407 = arith.constant 0 : index
    %c0_408 = arith.constant 0 : index
    %303 = vector.load %arg11[%c0_407, %c0_408] : memref<240x128xf32, #tpu.memory_space<vmem>>, vector<48x128xf32>
    tpu.vector_store %arg11[%c0_407, %c0_408], %302 {strides = array<i32>} : memref<240x128xf32, #tpu.memory_space<vmem>>, vector<48x128xf32>,
    %c0_409 = arith.constant 0 : index
    %c0_410 = arith.constant 0 : index
    %304 = vector.load %arg11[%c0_409, %c0_410] : memref<240x128xf32, #tpu.memory_space<vmem>>, vector<9x64xf32>
    %c0_411 = arith.constant 0 : index
    %c0_412 = arith.constant 0 : index
    %305 = vector.load %arg12[%c0_411, %c0_412] : memref<240x512xf32, #tpu.memory_space<vmem>>, vector<9x64xf32>
    tpu.vector_store %arg12[%c0_411, %c0_412], %304 {strides = array<i32>} : memref<240x512xf32, #tpu.memory_space<vmem>>, vector<9x64xf32>,
    %c1_413 = arith.constant 1 : index
    %c0_414 = arith.constant 0 : index
    %306 = vector.load %arg11[%c1_413, %c0_414] : memref<240x128xf32, #tpu.memory_space<vmem>>, vector<9x64xf32>
    %c0_415 = arith.constant 0 : index
    %c64_416 = arith.constant 64 : index
    %307 = vector.load %arg12[%c0_415, %c64_416] : memref<240x512xf32, #tpu.memory_space<vmem>>, vector<9x64xf32>
    tpu.vector_store %arg12[%c0_415, %c64_416], %306 {strides = array<i32>} : memref<240x512xf32, #tpu.memory_space<vmem>>, vector<9x64xf32>,
    %c2_417 = arith.constant 2 : index
    %c0_418 = arith.constant 0 : index
    %308 = vector.load %arg11[%c2_417, %c0_418] : memref<240x128xf32, #tpu.memory_space<vmem>>, vector<9x64xf32>
    %c0_419 = arith.constant 0 : index
    %c128_420 = arith.constant 128 : index
    %309 = vector.load %arg12[%c0_419, %c128_420] : memref<240x512xf32, #tpu.memory_space<vmem>>, vector<9x64xf32>
    tpu.vector_store %arg12[%c0_419, %c128_420], %308 {strides = array<i32>} : memref<240x512xf32, #tpu.memory_space<vmem>>, vector<9x64xf32>,
    %c11_421 = arith.constant 11 : index
    %c0_422 = arith.constant 0 : index
    %310 = vector.load %arg11[%c11_421, %c0_422] : memref<240x128xf32, #tpu.memory_space<vmem>>, vector<9x64xf32>
    %c9 = arith.constant 9 : index
    %c0_423 = arith.constant 0 : index
    %311 = vector.load %arg12[%c9, %c0_423] : memref<240x512xf32, #tpu.memory_space<vmem>>, vector<9x64xf32>
    tpu.vector_store %arg12[%c9, %c0_423], %310 {strides = array<i32>} : memref<240x512xf32, #tpu.memory_space<vmem>>, vector<9x64xf32>,
    %c12_424 = arith.constant 12 : index
    %c0_425 = arith.constant 0 : index
    %312 = vector.load %arg11[%c12_424, %c0_425] : memref<240x128xf32, #tpu.memory_space<vmem>>, vector<9x64xf32>
    %c9_426 = arith.constant 9 : index
    %c64_427 = arith.constant 64 : index
    %313 = vector.load %arg12[%c9_426, %c64_427] : memref<240x512xf32, #tpu.memory_space<vmem>>, vector<9x64xf32>
    tpu.vector_store %arg12[%c9_426, %c64_427], %312 {strides = array<i32>} : memref<240x512xf32, #tpu.memory_space<vmem>>, vector<9x64xf32>,
    %c13 = arith.constant 13 : index
    %c0_428 = arith.constant 0 : index
    %314 = vector.load %arg11[%c13, %c0_428] : memref<240x128xf32, #tpu.memory_space<vmem>>, vector<9x64xf32>
    %c9_429 = arith.constant 9 : index
    %c128_430 = arith.constant 128 : index
    %315 = vector.load %arg12[%c9_429, %c128_430] : memref<240x512xf32, #tpu.memory_space<vmem>>, vector<9x64xf32>
    tpu.vector_store %arg12[%c9_429, %c128_430], %314 {strides = array<i32>} : memref<240x512xf32, #tpu.memory_space<vmem>>, vector<9x64xf32>,
    %c24_431 = arith.constant 24 : index
    %c0_432 = arith.constant 0 : index
    %316 = vector.load %arg11[%c24_431, %c0_432] : memref<240x128xf32, #tpu.memory_space<vmem>>, vector<9x64xf32>
    %c24_433 = arith.constant 24 : index
    %c0_434 = arith.constant 0 : index
    %317 = vector.load %arg12[%c24_433, %c0_434] : memref<240x512xf32, #tpu.memory_space<vmem>>, vector<9x64xf32>
    tpu.vector_store %arg12[%c24_433, %c0_434], %316 {strides = array<i32>} : memref<240x512xf32, #tpu.memory_space<vmem>>, vector<9x64xf32>,
    %c25 = arith.constant 25 : index
    %c0_435 = arith.constant 0 : index
    %318 = vector.load %arg11[%c25, %c0_435] : memref<240x128xf32, #tpu.memory_space<vmem>>, vector<9x64xf32>
    %c24_436 = arith.constant 24 : index
    %c64_437 = arith.constant 64 : index
    %319 = vector.load %arg12[%c24_436, %c64_437] : memref<240x512xf32, #tpu.memory_space<vmem>>, vector<9x64xf32>
    tpu.vector_store %arg12[%c24_436, %c64_437], %318 {strides = array<i32>} : memref<240x512xf32, #tpu.memory_space<vmem>>, vector<9x64xf32>,
    %c26 = arith.constant 26 : index
    %c0_438 = arith.constant 0 : index
    %320 = vector.load %arg11[%c26, %c0_438] : memref<240x128xf32, #tpu.memory_space<vmem>>, vector<9x64xf32>
    %c24_439 = arith.constant 24 : index
    %c128_440 = arith.constant 128 : index
    %321 = vector.load %arg12[%c24_439, %c128_440] : memref<240x512xf32, #tpu.memory_space<vmem>>, vector<9x64xf32>
    tpu.vector_store %arg12[%c24_439, %c128_440], %320 {strides = array<i32>} : memref<240x512xf32, #tpu.memory_space<vmem>>, vector<9x64xf32>,
    %c35_441 = arith.constant 35 : index
    %c0_442 = arith.constant 0 : index
    %322 = vector.load %arg11[%c35_441, %c0_442] : memref<240x128xf32, #tpu.memory_space<vmem>>, vector<9x64xf32>
    %c33 = arith.constant 33 : index
    %c0_443 = arith.constant 0 : index
    %323 = vector.load %arg12[%c33, %c0_443] : memref<240x512xf32, #tpu.memory_space<vmem>>, vector<9x64xf32>
    tpu.vector_store %arg12[%c33, %c0_443], %322 {strides = array<i32>} : memref<240x512xf32, #tpu.memory_space<vmem>>, vector<9x64xf32>,
    %c36_444 = arith.constant 36 : index
    %c0_445 = arith.constant 0 : index
    %324 = vector.load %arg11[%c36_444, %c0_445] : memref<240x128xf32, #tpu.memory_space<vmem>>, vector<9x64xf32>
    %c33_446 = arith.constant 33 : index
    %c64_447 = arith.constant 64 : index
    %325 = vector.load %arg12[%c33_446, %c64_447] : memref<240x512xf32, #tpu.memory_space<vmem>>, vector<9x64xf32>
    tpu.vector_store %arg12[%c33_446, %c64_447], %324 {strides = array<i32>} : memref<240x512xf32, #tpu.memory_space<vmem>>, vector<9x64xf32>,
    %c37 = arith.constant 37 : index
    %c0_448 = arith.constant 0 : index
    %326 = vector.load %arg11[%c37, %c0_448] : memref<240x128xf32, #tpu.memory_space<vmem>>, vector<9x64xf32>
    %c33_449 = arith.constant 33 : index
    %c128_450 = arith.constant 128 : index
    %327 = vector.load %arg12[%c33_449, %c128_450] : memref<240x512xf32, #tpu.memory_space<vmem>>, vector<9x64xf32>
    tpu.vector_store %arg12[%c33_449, %c128_450], %326 {strides = array<i32>} : memref<240x512xf32, #tpu.memory_space<vmem>>, vector<9x64xf32>,
    %c0_451 = arith.constant 0 : index
    %c0_452 = arith.constant 0 : index
    %328 = vector.load %arg12[%c0_451, %c0_452] : memref<240x512xf32, #tpu.memory_space<vmem>>, vector<48x256xf32>
    %329 = arith.truncf %328 : vector<48x256xf32> to vector<48x256xbf16>
    %c0_453 = arith.constant 0 : index
    %c0_454 = arith.constant 0 : index
    %330 = vector.load %arg5[%c0_453, %c0_454] : memref<256x128xbf16, #tpu.memory_space<vmem>>, vector<256x128xbf16>
    %cst_455 = arith.constant dense<0.000000e+00> : vector<48x128xf32>
    %331 = tpu.matmul %329, %330, %cst_455 {dimension_numbers = #tpu.dot_dimension_numbers<[1], [0], [0], [1], [0, 0, 1, 1], [], []>} : vector<48x256xbf16>, vector<256x128xbf16>, vector<48x128xf32> -> vector<48x128xf32>
    %c3_456 = arith.constant 3 : index
    %c0_457 = arith.constant 0 : index
    %332 = vector.load %arg7[%c3_456, %c0_457] : memref<5x128xf32, #tpu.memory_space<vmem>>, vector<1x128xf32>
    %333 = vector.broadcast %332 : vector<1x128xf32> to vector<48x128xf32>
    %334 = arith.addf %331, %333 : vector<48x128xf32>
    %cst_458 = arith.constant 0.000000e+00 : f32
    %335 = vector.broadcast %cst_458 : f32 to vector<48x128xf32>
    %336 = arith.maximumf %334, %335 : vector<48x128xf32>
    %c0_459 = arith.constant 0 : index
    %c0_460 = arith.constant 0 : index
    %337 = vector.load %arg11[%c0_459, %c0_460] : memref<240x128xf32, #tpu.memory_space<vmem>>, vector<48x128xf32>
    tpu.vector_store %arg11[%c0_459, %c0_460], %336 {strides = array<i32>} : memref<240x128xf32, #tpu.memory_space<vmem>>, vector<48x128xf32>,
    %c0_461 = arith.constant 0 : index
    %c0_462 = arith.constant 0 : index
    %338 = tpu.strided_load %arg11[%c0_461, %c0_462] {strides = array<i32: 2, 1>} : memref<240x128xf32, #tpu.memory_space<vmem>>, vector<2x64xf32>
    %c0_463 = arith.constant 0 : index
    %c0_464 = arith.constant 0 : index
    %339 = vector.load %arg12[%c0_463, %c0_464] : memref<240x512xf32, #tpu.memory_space<vmem>>, vector<2x64xf32>
    tpu.vector_store %arg12[%c0_463, %c0_464], %338 {strides = array<i32>} : memref<240x512xf32, #tpu.memory_space<vmem>>, vector<2x64xf32>,
    %c1_465 = arith.constant 1 : index
    %c0_466 = arith.constant 0 : index
    %340 = tpu.strided_load %arg11[%c1_465, %c0_466] {strides = array<i32: 2, 1>} : memref<240x128xf32, #tpu.memory_space<vmem>>, vector<2x64xf32>
    %c0_467 = arith.constant 0 : index
    %c64_468 = arith.constant 64 : index
    %341 = vector.load %arg12[%c0_467, %c64_468] : memref<240x512xf32, #tpu.memory_space<vmem>>, vector<2x64xf32>
    tpu.vector_store %arg12[%c0_467, %c64_468], %340 {strides = array<i32>} : memref<240x512xf32, #tpu.memory_space<vmem>>, vector<2x64xf32>,
    %c2_469 = arith.constant 2 : index
    %c0_470 = arith.constant 0 : index
    %342 = tpu.strided_load %arg11[%c2_469, %c0_470] {strides = array<i32: 2, 1>} : memref<240x128xf32, #tpu.memory_space<vmem>>, vector<2x64xf32>
    %c0_471 = arith.constant 0 : index
    %c128_472 = arith.constant 128 : index
    %343 = vector.load %arg12[%c0_471, %c128_472] : memref<240x512xf32, #tpu.memory_space<vmem>>, vector<2x64xf32>
    tpu.vector_store %arg12[%c0_471, %c128_472], %342 {strides = array<i32>} : memref<240x512xf32, #tpu.memory_space<vmem>>, vector<2x64xf32>,
    %c3_473 = arith.constant 3 : index
    %c0_474 = arith.constant 0 : index
    %344 = tpu.strided_load %arg11[%c3_473, %c0_474] {strides = array<i32: 2, 1>} : memref<240x128xf32, #tpu.memory_space<vmem>>, vector<2x64xf32>
    %c0_475 = arith.constant 0 : index
    %c192_476 = arith.constant 192 : index
    %345 = vector.load %arg12[%c0_475, %c192_476] : memref<240x512xf32, #tpu.memory_space<vmem>>, vector<2x64xf32>
    tpu.vector_store %arg12[%c0_475, %c192_476], %344 {strides = array<i32>} : memref<240x512xf32, #tpu.memory_space<vmem>>, vector<2x64xf32>,
    %c4_477 = arith.constant 4 : index
    %c0_478 = arith.constant 0 : index
    %346 = tpu.strided_load %arg11[%c4_477, %c0_478] {strides = array<i32: 2, 1>} : memref<240x128xf32, #tpu.memory_space<vmem>>, vector<2x64xf32>
    %c0_479 = arith.constant 0 : index
    %c256_480 = arith.constant 256 : index
    %347 = vector.load %arg12[%c0_479, %c256_480] : memref<240x512xf32, #tpu.memory_space<vmem>>, vector<2x64xf32>
    tpu.vector_store %arg12[%c0_479, %c256_480], %346 {strides = array<i32>} : memref<240x512xf32, #tpu.memory_space<vmem>>, vector<2x64xf32>,
    %c5_481 = arith.constant 5 : index
    %c0_482 = arith.constant 0 : index
    %348 = tpu.strided_load %arg11[%c5_481, %c0_482] {strides = array<i32: 2, 1>} : memref<240x128xf32, #tpu.memory_space<vmem>>, vector<2x64xf32>
    %c0_483 = arith.constant 0 : index
    %c320 = arith.constant 320 : index
    %349 = vector.load %arg12[%c0_483, %c320] : memref<240x512xf32, #tpu.memory_space<vmem>>, vector<2x64xf32>
    tpu.vector_store %arg12[%c0_483, %c320], %348 {strides = array<i32>} : memref<240x512xf32, #tpu.memory_space<vmem>>, vector<2x64xf32>,
    %c6_484 = arith.constant 6 : index
    %c0_485 = arith.constant 0 : index
    %350 = tpu.strided_load %arg11[%c6_484, %c0_485] {strides = array<i32: 2, 1>} : memref<240x128xf32, #tpu.memory_space<vmem>>, vector<2x64xf32>
    %c0_486 = arith.constant 0 : index
    %c384_487 = arith.constant 384 : index
    %351 = vector.load %arg12[%c0_486, %c384_487] : memref<240x512xf32, #tpu.memory_space<vmem>>, vector<2x64xf32>
    tpu.vector_store %arg12[%c0_486, %c384_487], %350 {strides = array<i32>} : memref<240x512xf32, #tpu.memory_space<vmem>>, vector<2x64xf32>,
    %c24_488 = arith.constant 24 : index
    %c0_489 = arith.constant 0 : index
    %352 = tpu.strided_load %arg11[%c24_488, %c0_489] {strides = array<i32: 2, 1>} : memref<240x128xf32, #tpu.memory_space<vmem>>, vector<2x64xf32>
    %c8 = arith.constant 8 : index
    %c0_490 = arith.constant 0 : index
    %353 = vector.load %arg12[%c8, %c0_490] : memref<240x512xf32, #tpu.memory_space<vmem>>, vector<2x64xf32>
    tpu.vector_store %arg12[%c8, %c0_490], %352 {strides = array<i32>} : memref<240x512xf32, #tpu.memory_space<vmem>>, vector<2x64xf32>,
    %c25_491 = arith.constant 25 : index
    %c0_492 = arith.constant 0 : index
    %354 = tpu.strided_load %arg11[%c25_491, %c0_492] {strides = array<i32: 2, 1>} : memref<240x128xf32, #tpu.memory_space<vmem>>, vector<2x64xf32>
    %c8_493 = arith.constant 8 : index
    %c64_494 = arith.constant 64 : index
    %355 = vector.load %arg12[%c8_493, %c64_494] : memref<240x512xf32, #tpu.memory_space<vmem>>, vector<2x64xf32>
    tpu.vector_store %arg12[%c8_493, %c64_494], %354 {strides = array<i32>} : memref<240x512xf32, #tpu.memory_space<vmem>>, vector<2x64xf32>,
    %c26_495 = arith.constant 26 : index
    %c0_496 = arith.constant 0 : index
    %356 = tpu.strided_load %arg11[%c26_495, %c0_496] {strides = array<i32: 2, 1>} : memref<240x128xf32, #tpu.memory_space<vmem>>, vector<2x64xf32>
    %c8_497 = arith.constant 8 : index
    %c128_498 = arith.constant 128 : index
    %357 = vector.load %arg12[%c8_497, %c128_498] : memref<240x512xf32, #tpu.memory_space<vmem>>, vector<2x64xf32>
    tpu.vector_store %arg12[%c8_497, %c128_498], %356 {strides = array<i32>} : memref<240x512xf32, #tpu.memory_space<vmem>>, vector<2x64xf32>,
    %c27_499 = arith.constant 27 : index
    %c0_500 = arith.constant 0 : index
    %358 = tpu.strided_load %arg11[%c27_499, %c0_500] {strides = array<i32: 2, 1>} : memref<240x128xf32, #tpu.memory_space<vmem>>, vector<2x64xf32>
    %c8_501 = arith.constant 8 : index
    %c192_502 = arith.constant 192 : index
    %359 = vector.load %arg12[%c8_501, %c192_502] : memref<240x512xf32, #tpu.memory_space<vmem>>, vector<2x64xf32>
    tpu.vector_store %arg12[%c8_501, %c192_502], %358 {strides = array<i32>} : memref<240x512xf32, #tpu.memory_space<vmem>>, vector<2x64xf32>,
    %c28 = arith.constant 28 : index
    %c0_503 = arith.constant 0 : index
    %360 = tpu.strided_load %arg11[%c28, %c0_503] {strides = array<i32: 2, 1>} : memref<240x128xf32, #tpu.memory_space<vmem>>, vector<2x64xf32>
    %c8_504 = arith.constant 8 : index
    %c256_505 = arith.constant 256 : index
    %361 = vector.load %arg12[%c8_504, %c256_505] : memref<240x512xf32, #tpu.memory_space<vmem>>, vector<2x64xf32>
    tpu.vector_store %arg12[%c8_504, %c256_505], %360 {strides = array<i32>} : memref<240x512xf32, #tpu.memory_space<vmem>>, vector<2x64xf32>,
    %c29_506 = arith.constant 29 : index
    %c0_507 = arith.constant 0 : index
    %362 = tpu.strided_load %arg11[%c29_506, %c0_507] {strides = array<i32: 2, 1>} : memref<240x128xf32, #tpu.memory_space<vmem>>, vector<2x64xf32>
    %c8_508 = arith.constant 8 : index
    %c320_509 = arith.constant 320 : index
    %363 = vector.load %arg12[%c8_508, %c320_509] : memref<240x512xf32, #tpu.memory_space<vmem>>, vector<2x64xf32>
    tpu.vector_store %arg12[%c8_508, %c320_509], %362 {strides = array<i32>} : memref<240x512xf32, #tpu.memory_space<vmem>>, vector<2x64xf32>,
    %c30_510 = arith.constant 30 : index
    %c0_511 = arith.constant 0 : index
    %364 = tpu.strided_load %arg11[%c30_510, %c0_511] {strides = array<i32: 2, 1>} : memref<240x128xf32, #tpu.memory_space<vmem>>, vector<2x64xf32>
    %c8_512 = arith.constant 8 : index
    %c384_513 = arith.constant 384 : index
    %365 = vector.load %arg12[%c8_512, %c384_513] : memref<240x512xf32, #tpu.memory_space<vmem>>, vector<2x64xf32>
    tpu.vector_store %arg12[%c8_512, %c384_513], %364 {strides = array<i32>} : memref<240x512xf32, #tpu.memory_space<vmem>>, vector<2x64xf32>,
    %c0_514 = arith.constant 0 : index
    %c0_515 = arith.constant 0 : index
    %366 = vector.load %arg12[%c0_514, %c0_515] : memref<240x512xf32, #tpu.memory_space<vmem>>, vector<16x512xf32>
    %367 = arith.truncf %366 : vector<16x512xf32> to vector<16x512xbf16>
    %c0_516 = arith.constant 0 : index
    %c0_517 = arith.constant 0 : index
    %368 = vector.load %arg6[%c0_516, %c0_517] : memref<512x128xbf16, #tpu.memory_space<vmem>>, vector<512x128xbf16>
    %cst_518 = arith.constant dense<0.000000e+00> : vector<16x128xf32>
    %369 = tpu.matmul %367, %368, %cst_518 {dimension_numbers = #tpu.dot_dimension_numbers<[1], [0], [0], [1], [0, 0, 1, 1], [], []>} : vector<16x512xbf16>, vector<512x128xbf16>, vector<16x128xf32> -> vector<16x128xf32>
    %c4_519 = arith.constant 4 : index
    %c0_520 = arith.constant 0 : index
    %370 = vector.load %arg7[%c4_519, %c0_520] : memref<5x128xf32, #tpu.memory_space<vmem>>, vector<1x128xf32>
    %371 = vector.broadcast %370 : vector<1x128xf32> to vector<16x128xf32>
    %372 = arith.addf %369, %371 : vector<16x128xf32>
    %cst_521 = arith.constant 0.000000e+00 : f32
    %373 = vector.broadcast %cst_521 : f32 to vector<16x128xf32>
    %374 = arith.maximumf %372, %373 : vector<16x128xf32>
    %375 = vector.extract_strided_slice %374 {offsets = [0, 0], sizes = [2, 128], strides = [1, 1]} : vector<16x128xf32> to vector<2x128xf32>
    %cst_522 = arith.constant dense<0xFF800000> : vector<128xf32>
    %376 = vector.multi_reduction <maximumf>, %375, %cst_522 [0] : vector<2x128xf32> to vector<128xf32>
    %377 = vector.shape_cast %376 : vector<128xf32> to vector<1x128xf32>
    %c0_523 = arith.constant 0 : index
    %c0_524 = arith.constant 0 : index
    %378 = vector.load %arg13[%c0_523, %c0_524] : memref<2x128xf32, #tpu.memory_space<vmem>>, vector<1x128xf32>
    tpu.vector_store %arg13[%c0_523, %c0_524], %377 {strides = array<i32>} : memref<2x128xf32, #tpu.memory_space<vmem>>, vector<1x128xf32>,
    %379 = vector.extract_strided_slice %374 {offsets = [8, 0], sizes = [2, 128], strides = [1, 1]} : vector<16x128xf32> to vector<2x128xf32>
    %cst_525 = arith.constant dense<0xFF800000> : vector<128xf32>
    %380 = vector.multi_reduction <maximumf>, %379, %cst_525 [0] : vector<2x128xf32> to vector<128xf32>
    %381 = vector.shape_cast %380 : vector<128xf32> to vector<1x128xf32>
    %c1_526 = arith.constant 1 : index
    %c0_527 = arith.constant 0 : index
    %382 = vector.load %arg13[%c1_526, %c0_527] : memref<2x128xf32, #tpu.memory_space<vmem>>, vector<1x128xf32>
    tpu.vector_store %arg13[%c1_526, %c0_527], %381 {strides = array<i32>} : memref<2x128xf32, #tpu.memory_space<vmem>>, vector<1x128xf32>,
    %c0_528 = arith.constant 0 : index
    %c0_529 = arith.constant 0 : index
    %383 = vector.load %arg13[%c0_528, %c0_529] : memref<2x128xf32, #tpu.memory_space<vmem>>, vector<2x128xf32>
    %384 = arith.truncf %383 : vector<2x128xf32> to vector<2x128xbf16>
    %c0_530 = arith.constant 0 : index
    %c0_531 = arith.constant 0 : index
    %c0_532 = arith.constant 0 : index
    %385 = vector.load %arg8[%c0_530, %c0_531, %c0_532] : memref<3x128x128xbf16, #tpu.memory_space<vmem>>, vector<1x128x128xbf16>
    %386 = vector.shape_cast %385 : vector<1x128x128xbf16> to vector<128x128xbf16>
    %cst_533 = arith.constant dense<0.000000e+00> : vector<2x128xf32>
    %387 = tpu.matmul %384, %386, %cst_533 {dimension_numbers = #tpu.dot_dimension_numbers<[1], [0], [0], [1], [0, 0, 1, 1], [], []>} : vector<2x128xbf16>, vector<128x128xbf16>, vector<2x128xf32> -> vector<2x128xf32>
    %c0_534 = arith.constant 0 : index
    %c0_535 = arith.constant 0 : index
    %388 = vector.load %arg9[%c0_534, %c0_535] : memref<3x128xf32, #tpu.memory_space<vmem>>, vector<1x128xf32>
    %389 = vector.broadcast %388 : vector<1x128xf32> to vector<2x128xf32>
    %390 = arith.addf %387, %389 : vector<2x128xf32>
    %cst_536 = arith.constant 0.000000e+00 : f32
    %391 = vector.broadcast %cst_536 : f32 to vector<2x128xf32>
    %392 = arith.maximumf %390, %391 : vector<2x128xf32>
    %393 = arith.truncf %392 : vector<2x128xf32> to vector<2x128xbf16>
    %c1_537 = arith.constant 1 : index
    %c0_538 = arith.constant 0 : index
    %c0_539 = arith.constant 0 : index
    %394 = vector.load %arg8[%c1_537, %c0_538, %c0_539] : memref<3x128x128xbf16, #tpu.memory_space<vmem>>, vector<1x128x128xbf16>
    %395 = vector.shape_cast %394 : vector<1x128x128xbf16> to vector<128x128xbf16>
    %cst_540 = arith.constant dense<0.000000e+00> : vector<2x128xf32>
    %396 = tpu.matmul %393, %395, %cst_540 {dimension_numbers = #tpu.dot_dimension_numbers<[1], [0], [0], [1], [0, 0, 1, 1], [], []>} : vector<2x128xbf16>, vector<128x128xbf16>, vector<2x128xf32> -> vector<2x128xf32>
    %c1_541 = arith.constant 1 : index
    %c0_542 = arith.constant 0 : index
    %397 = vector.load %arg9[%c1_541, %c0_542] : memref<3x128xf32, #tpu.memory_space<vmem>>, vector<1x128xf32>
    %398 = vector.broadcast %397 : vector<1x128xf32> to vector<2x128xf32>
    %399 = arith.addf %396, %398 : vector<2x128xf32>
    %cst_543 = arith.constant 0.000000e+00 : f32
    %400 = vector.broadcast %cst_543 : f32 to vector<2x128xf32>
    %401 = arith.maximumf %399, %400 : vector<2x128xf32>
    %402 = arith.truncf %401 : vector<2x128xf32> to vector<2x128xbf16>
    %c2_544 = arith.constant 2 : index
    %c0_545 = arith.constant 0 : index
    %c0_546 = arith.constant 0 : index
    %403 = vector.load %arg8[%c2_544, %c0_545, %c0_546] : memref<3x128x128xbf16, #tpu.memory_space<vmem>>, vector<1x128x128xbf16>
    %404 = vector.shape_cast %403 : vector<1x128x128xbf16> to vector<128x128xbf16>
    %cst_547 = arith.constant dense<0.000000e+00> : vector<2x128xf32>
    %405 = tpu.matmul %402, %404, %cst_547 {dimension_numbers = #tpu.dot_dimension_numbers<[1], [0], [0], [1], [0, 0, 1, 1], [], []>} : vector<2x128xbf16>, vector<128x128xbf16>, vector<2x128xf32> -> vector<2x128xf32>
    %c2_548 = arith.constant 2 : index
    %c0_549 = arith.constant 0 : index
    %406 = vector.load %arg9[%c2_548, %c0_549] : memref<3x128xf32, #tpu.memory_space<vmem>>, vector<1x128xf32>
    %407 = vector.broadcast %406 : vector<1x128xf32> to vector<2x128xf32>
    %408 = arith.addf %405, %407 : vector<2x128xf32>
    %c0_550 = arith.constant 0 : index
    %c0_551 = arith.constant 0 : index
    %c0_552 = arith.constant 0 : index
    %409 = vector.load %arg10[%c0_550, %c0_551, %c0_552] : memref<1x2x128xf32, #tpu.memory_space<vmem>>, vector<1x2x128xf32>
    %410 = vector.shape_cast %409 : vector<1x2x128xf32> to vector<2x128xf32>
    %411 = vector.shape_cast %408 : vector<2x128xf32> to vector<1x2x128xf32>
    tpu.vector_store %arg10[%c0_550, %c0_551, %c0_552], %411 {strides = array<i32>} : memref<1x2x128xf32, #tpu.memory_space<vmem>>, vector<1x2x128xf32>,
    return
  }
  func.func @transform_0(%arg0: i32) -> (i32, i32, i32) {
    %c0_i32 = arith.constant 0 : i32
    %c0_i32_0 = arith.constant 0 : i32
    %c0_i32_1 = arith.constant 0 : i32
    return %arg0, %c0_i32, %c0_i32_0 : i32, i32, i32
  }
  func.func @transform_1(%arg0: i32) -> (i32, i32) {
    %c0_i32 = arith.constant 0 : i32
    %c0_i32_0 = arith.constant 0 : i32
    %c0_i32_1 = arith.constant 0 : i32
    return %c0_i32, %c0_i32_0 : i32, i32
  }
  func.func @transform_2(%arg0: i32) -> (i32, i32) {
    %c0_i32 = arith.constant 0 : i32
    %c0_i32_0 = arith.constant 0 : i32
    %c0_i32_1 = arith.constant 0 : i32
    return %c0_i32, %c0_i32_0 : i32, i32
  }
  func.func @transform_3(%arg0: i32) -> (i32, i32) {
    %c0_i32 = arith.constant 0 : i32
    %c0_i32_0 = arith.constant 0 : i32
    %c0_i32_1 = arith.constant 0 : i32
    return %c0_i32, %c0_i32_0 : i32, i32
  }
  func.func @transform_4(%arg0: i32) -> (i32, i32) {
    %c0_i32 = arith.constant 0 : i32
    %c0_i32_0 = arith.constant 0 : i32
    %c0_i32_1 = arith.constant 0 : i32
    return %c0_i32, %c0_i32_0 : i32, i32
  }
  func.func @transform_5(%arg0: i32) -> (i32, i32) {
    %c0_i32 = arith.constant 0 : i32
    %c0_i32_0 = arith.constant 0 : i32
    %c0_i32_1 = arith.constant 0 : i32
    return %c0_i32, %c0_i32_0 : i32, i32
  }
  func.func @transform_6(%arg0: i32) -> (i32, i32) {
    %c0_i32 = arith.constant 0 : i32
    %c0_i32_0 = arith.constant 0 : i32
    %c0_i32_1 = arith.constant 0 : i32
    return %c0_i32, %c0_i32_0 : i32, i32
  }
  func.func @transform_7(%arg0: i32) -> (i32, i32, i32) {
    %c0_i32 = arith.constant 0 : i32
    %c0_i32_0 = arith.constant 0 : i32
    %c0_i32_1 = arith.constant 0 : i32
    %c0_i32_2 = arith.constant 0 : i32
    return %c0_i32, %c0_i32_0, %c0_i32_1 : i32, i32, i32
  }
  func.func @transform_8(%arg0: i32) -> (i32, i32) {
    %c0_i32 = arith.constant 0 : i32
    %c0_i32_0 = arith.constant 0 : i32
    %c0_i32_1 = arith.constant 0 : i32
    return %c0_i32, %c0_i32_0 : i32, i32
  }
  func.func @transform_9(%arg0: i32) -> (i32, i32, i32) {
    %c0_i32 = arith.constant 0 : i32
    %c0_i32_0 = arith.constant 0 : i32
    %c0_i32_1 = arith.constant 0 : i32
    return %arg0, %c0_i32, %c0_i32_0 : i32, i32, i32
  }
}

</mosaic_0001>

<llo_original>
// kernel: _lambda_.1
$region0: #{_lambda_.1}
  #allocation0 [shape = 'u32[]', space=smem, size = 0x4, offset = 0x4, fixed_abs, tag = 'smem constant byte address 0x4 - core index']
  #allocation1 [shape = 'u32[144,128]{1,0:T(1,128)}', space=vmem, size = 0x12000, scoped, tag = 'internal scratch']
  #allocation2 [shape = 'f32[240,128]{1,0:T(8,128)}', space=vmem, size = 0x1e000, scoped, tag = 'scratch operand']
  #allocation3 [shape = 'f32[240,512]{1,0:T(8,128)}', space=vmem, size = 0x78000, scoped, tag = 'scratch operand']
  #allocation4 [shape = 'f32[2,128]{1,0:T(2,128)}', space=vmem, size = 0x400, scoped, tag = 'scratch operand']
  %s0 = inlined_call_operand.vmem [shape: f32[2,1024,12], index: 0, kind: input, shape index: {}]
  %s1 = inlined_call_operand.vmem [shape: bf16[128,128], index: 1, kind: input, shape index: {}]
  %s2 = inlined_call_operand.vmem [shape: bf16[128,128], index: 2, kind: input, shape index: {}]
  %s3 = inlined_call_operand.vmem [shape: bf16[256,128], index: 3, kind: input, shape index: {}]
  %s4 = inlined_call_operand.vmem [shape: bf16[256,128], index: 4, kind: input, shape index: {}]
  %s5 = inlined_call_operand.vmem [shape: bf16[512,128], index: 5, kind: input, shape index: {}]
  %s6 = inlined_call_operand.vmem [shape: f32[5,128], index: 6, kind: input, shape index: {}]
  %s7 = inlined_call_operand.vmem [shape: bf16[3,128,128], index: 7, kind: input, shape index: {}]
  %s8 = inlined_call_operand.vmem [shape: f32[3,128], index: 8, kind: input, shape index: {}]
  %s9 = inlined_call_operand.vmem [shape: f32[2,2,128], index: 9, kind: output, shape index: {}]
  %s10 = sld [smem:[#allocation0]]
  $region69: #{_lambda_.1} parent=0
    _
  %s12 = ssub.s32 1, %s10
  %s13 = scalar_select 0, %s12, %s10
  loop: start=0, step=1, limit=4
  $region2: #{_lambda_.1} parent=0 // loop_pre_header
    _
  $region3: #{_lambda_.1} parent=0 // loop_header
    %s15 = sphi 0, %s19
    %p16 = scmp.ge.s32.totalorder %s15, 4
    %s25 = sphi 0, %s27
    %s28 = sphi 0, %s25
    %s29 = sphi 0, %s28
    %s45 = sphi 0, %s29
    %s49 = sphi 0, %s49
    %s51 = sphi 0, %s49
    %s52 = sphi 0, %s51
    %s66 = sphi 0, %s52
    %s70 = sphi 0, %s70
    %s72 = sphi 0, %s70
    %s73 = sphi 0, %s72
    %s87 = sphi 0, %s73
    %s91 = sphi 0, %s91
    %s93 = sphi 0, %s91
    %s94 = sphi 0, %s93
    %s108 = sphi 0, %s94
    %s112 = sphi 0, %s112
    %s114 = sphi 0, %s112
    %s115 = sphi 0, %s114
    %s129 = sphi 0, %s115
    %s133 = sphi 0, %s133
    %s135 = sphi 0, %s133
    %s136 = sphi 0, %s135
    %s150 = sphi 0, %s136
    %s154 = sphi 0, %s154
    %s156 = sphi 0, %s154
    %s157 = sphi 0, %s156
    %s171 = sphi 0, %s157
    %s175 = sphi 0, %s175
    %s177 = sphi 0, %s175
    %s178 = sphi 0, %s177
    %s192 = sphi 0, %s178
    %s196 = sphi 0, %s196
    %s198 = sphi 0, %s196
    %s199 = sphi 0, %s198
    %s213 = sphi 0, %s199
    %s219 = sphi 0, %s221
    %s222 = sphi 0, %s219
    %s223 = sphi 0, %s222
    %s239 = sphi 0, %s223
  $region4: #{_lambda_.1} parent=0 // loop_header_branch
    %18 = sbr.rel (%p16) target = $region8
  $region5: #{_lambda_.1} parent=0 // loop_body
    %s20 = ssub.s32 %s15, 1
    %s21 = ssub.s32 %s15, 2
    %s22 = sadd.s32 %s15, 1
    %s23 = ssub.s32 %s15, %s22
    %p24 = scmp.eq.s32.totalorder %s23, 0
    %s26 = sadd.s32 %s25, 1
    %s27 = scalar_select %p24, %s25, %s26
    %p30 = pneg %p24
    %p31 = scmp.eq.s32.totalorder %s15, 1
    %p32 = por %p30, %p31
    %p33 = scmp.ne.s32.totalorder %s25, %s28
    %p34 = scmp.eq.s32.totalorder %s15, 0
    %p35 = por %p33, %p34
    %p36 = scmp.ne.s32.totalorder %s25, %s28
    %p37 = scmp.eq.s32.totalorder %s20, 1
    %p38 = por %p36, %p37
    %p39 = scmp.ne.s32.totalorder %s28, %s29
    %p40 = scmp.eq.s32.totalorder %s20, 0
    %p41 = por %p39, %p40
    %p42 = scmp.ne.s32.totalorder %s28, %s29
    %p43 = scmp.eq.s32.totalorder %s21, 1
    %p44 = por %p42, %p43
    %p46 = scmp.ne.s32.totalorder %s29, %s45
    %p47 = scmp.eq.s32.totalorder %s21, 0
    %p48 = por %p46, %p47
    %s50 = sadd.s32 %s49, 1
    %p53 = scmp.eq.s32.totalorder %s15, 1
    %p54 = scmp.ne.s32.totalorder %s49, %s51
    %p55 = scmp.eq.s32.totalorder %s15, 0
    %p56 = por %p54, %p55
    %p57 = scmp.ne.s32.totalorder %s49, %s51
    %p58 = scmp.eq.s32.totalorder %s20, 1
    %p59 = por %p57, %p58
    %p60 = scmp.ne.s32.totalorder %s51, %s52
    %p61 = scmp.eq.s32.totalorder %s20, 0
    %p62 = por %p60, %p61
    %p63 = scmp.ne.s32.totalorder %s51, %s52
    %p64 = scmp.eq.s32.totalorder %s21, 1
    %p65 = por %p63, %p64
    %p67 = scmp.ne.s32.totalorder %s52, %s66
    %p68 = scmp.eq.s32.totalorder %s21, 0
    %p69 = por %p67, %p68
    %s71 = sadd.s32 %s70, 1
    %p74 = scmp.eq.s32.totalorder %s15, 1
    %p75 = scmp.ne.s32.totalorder %s70, %s72
    %p76 = scmp.eq.s32.totalorder %s15, 0
    %p77 = por %p75, %p76
    %p78 = scmp.ne.s32.totalorder %s70, %s72
    %p79 = scmp.eq.s32.totalorder %s20, 1
    %p80 = por %p78, %p79
    %p81 = scmp.ne.s32.totalorder %s72, %s73
    %p82 = scmp.eq.s32.totalorder %s20, 0
    %p83 = por %p81, %p82
    %p84 = scmp.ne.s32.totalorder %s72, %s73
    %p85 = scmp.eq.s32.totalorder %s21, 1
    %p86 = por %p84, %p85
    %p88 = scmp.ne.s32.totalorder %s73, %s87
    %p89 = scmp.eq.s32.totalorder %s21, 0
    %p90 = por %p88, %p89
    %s92 = sadd.s32 %s91, 1
    %p95 = scmp.eq.s32.totalorder %s15, 1
    %p96 = scmp.ne.s32.totalorder %s91, %s93
    %p97 = scmp.eq.s32.totalorder %s15, 0
    %p98 = por %p96, %p97
    %p99 = scmp.ne.s32.totalorder %s91, %s93
    %p100 = scmp.eq.s32.totalorder %s20, 1
    %p101 = por %p99, %p100
    %p102 = scmp.ne.s32.totalorder %s93, %s94
    %p103 = scmp.eq.s32.totalorder %s20, 0
    %p104 = por %p102, %p103
    %p105 = scmp.ne.s32.totalorder %s93, %s94
    %p106 = scmp.eq.s32.totalorder %s21, 1
    %p107 = por %p105, %p106
    %p109 = scmp.ne.s32.totalorder %s94, %s108
    %p110 = scmp.eq.s32.totalorder %s21, 0
    %p111 = por %p109, %p110
    %s113 = sadd.s32 %s112, 1
    %p116 = scmp.eq.s32.totalorder %s15, 1
    %p117 = scmp.ne.s32.totalorder %s112, %s114
    %p118 = scmp.eq.s32.totalorder %s15, 0
    %p119 = por %p117, %p118
    %p120 = scmp.ne.s32.totalorder %s112, %s114
    %p121 = scmp.eq.s32.totalorder %s20, 1
    %p122 = por %p120, %p121
    %p123 = scmp.ne.s32.totalorder %s114, %s115
    %p124 = scmp.eq.s32.totalorder %s20, 0
    %p125 = por %p123, %p124
    %p126 = scmp.ne.s32.totalorder %s114, %s115
    %p127 = scmp.eq.s32.totalorder %s21, 1
    %p128 = por %p126, %p127
    %p130 = scmp.ne.s32.totalorder %s115, %s129
    %p131 = scmp.eq.s32.totalorder %s21, 0
    %p132 = por %p130, %p131
    %s134 = sadd.s32 %s133, 1
    %p137 = scmp.eq.s32.totalorder %s15, 1
    %p138 = scmp.ne.s32.totalorder %s133, %s135
    %p139 = scmp.eq.s32.totalorder %s15, 0
    %p140 = por %p138, %p139
    %p141 = scmp.ne.s32.totalorder %s133, %s135
    %p142 = scmp.eq.s32.totalorder %s20, 1
    %p143 = por %p141, %p142
    %p144 = scmp.ne.s32.totalorder %s135, %s136
    %p145 = scmp.eq.s32.totalorder %s20, 0
    %p146 = por %p144, %p145
    %p147 = scmp.ne.s32.totalorder %s135, %s136
    %p148 = scmp.eq.s32.totalorder %s21, 1
    %p149 = por %p147, %p148
    %p151 = scmp.ne.s32.totalorder %s136, %s150
    %p152 = scmp.eq.s32.totalorder %s21, 0
    %p153 = por %p151, %p152
    %s155 = sadd.s32 %s154, 1
    %p158 = scmp.eq.s32.totalorder %s15, 1
    %p159 = scmp.ne.s32.totalorder %s154, %s156
    %p160 = scmp.eq.s32.totalorder %s15, 0
    %p161 = por %p159, %p160
    %p162 = scmp.ne.s32.totalorder %s154, %s156
    %p163 = scmp.eq.s32.totalorder %s20, 1
    %p164 = por %p162, %p163
    %p165 = scmp.ne.s32.totalorder %s156, %s157
    %p166 = scmp.eq.s32.totalorder %s20, 0
    %p167 = por %p165, %p166
    %p168 = scmp.ne.s32.totalorder %s156, %s157
    %p169 = scmp.eq.s32.totalorder %s21, 1
    %p170 = por %p168, %p169
    %p172 = scmp.ne.s32.totalorder %s157, %s171
    %p173 = scmp.eq.s32.totalorder %s21, 0
    %p174 = por %p172, %p173
    %s176 = sadd.s32 %s175, 1
    %p179 = scmp.eq.s32.totalorder %s15, 1
    %p180 = scmp.ne.s32.totalorder %s175, %s177
    %p181 = scmp.eq.s32.totalorder %s15, 0
    %p182 = por %p180, %p181
    %p183 = scmp.ne.s32.totalorder %s175, %s177
    %p184 = scmp.eq.s32.totalorder %s20, 1
    %p185 = por %p183, %p184
    %p186 = scmp.ne.s32.totalorder %s177, %s178
    %p187 = scmp.eq.s32.totalorder %s20, 0
    %p188 = por %p186, %p187
    %p189 = scmp.ne.s32.totalorder %s177, %s178
    %p190 = scmp.eq.s32.totalorder %s21, 1
    %p191 = por %p189, %p190
    %p193 = scmp.ne.s32.totalorder %s178, %s192
    %p194 = scmp.eq.s32.totalorder %s21, 0
    %p195 = por %p193, %p194
    %s197 = sadd.s32 %s196, 1
    %p200 = scmp.eq.s32.totalorder %s15, 1
    %p201 = scmp.ne.s32.totalorder %s196, %s198
    %p202 = scmp.eq.s32.totalorder %s15, 0
    %p203 = por %p201, %p202
    %p204 = scmp.ne.s32.totalorder %s196, %s198
    %p205 = scmp.eq.s32.totalorder %s20, 1
    %p206 = por %p204, %p205
    %p207 = scmp.ne.s32.totalorder %s198, %s199
    %p208 = scmp.eq.s32.totalorder %s20, 0
    %p209 = por %p207, %p208
    %p210 = scmp.ne.s32.totalorder %s198, %s199
    %p211 = scmp.eq.s32.totalorder %s21, 1
    %p212 = por %p210, %p211
    %p214 = scmp.ne.s32.totalorder %s199, %s213
    %p215 = scmp.eq.s32.totalorder %s21, 0
    %p216 = por %p214, %p215
    %s217 = ssub.s32 %s15, %s22
    %p218 = scmp.eq.s32.totalorder %s217, 0
    %s220 = sadd.s32 %s219, 1
    %s221 = scalar_select %p218, %s219, %s220
    %p224 = pneg %p218
    %p225 = scmp.eq.s32.totalorder %s15, 1
    %p226 = por %p224, %p225
    %p227 = scmp.ne.s32.totalorder %s219, %s222
    %p228 = scmp.eq.s32.totalorder %s15, 0
    %p229 = por %p227, %p228
    %p230 = scmp.ne.s32.totalorder %s219, %s222
    %p231 = scmp.eq.s32.totalorder %s20, 1
    %p232 = por %p230, %p231
    %p233 = scmp.ne.s32.totalorder %s222, %s223
    %p234 = scmp.eq.s32.totalorder %s20, 0
    %p235 = por %p233, %p234
    %p236 = scmp.ne.s32.totalorder %s222, %s223
    %p237 = scmp.eq.s32.totalorder %s21, 1
    %p238 = por %p236, %p237
    %p240 = scmp.ne.s32.totalorder %s223, %s239
    %p241 = scmp.eq.s32.totalorder %s21, 0
    %p242 = por %p240, %p241
    %p243 = scmp.le.s32.totalorder 1, %s15
    %p244 = scmp.lt.s32.totalorder %s15, 3
    %p245 = pnand %p243, %p244
    %p246 = pneg %p245
    // Predicated region
    $region9: #{_lambda_.1} parent=5 // pred_check
      _
    $region10: #{_lambda_.1} parent=5 // pred_check_branch
      %248 = sbr.rel (%p245) target = $region12
    $region11: #{_lambda_.1} parent=5 // pred_region
      %s249 = ssub.s32 %s15, 1
      // Predicated region
      $region13: #{_lambda_.1} parent=11 // pred_check
        %p250 = pneg %p62
      $region14: #{_lambda_.1} parent=11 // pred_check_branch
        %252 = sbr.rel (%p250) target = $region16
      $region15: #{_lambda_.1} parent=11 // pred_region
        _
      $region16: #{_lambda_.1} parent=11 // pred_fallthru
        _
      // Predicated region
      $region17: #{_lambda_.1} parent=11 // pred_check
        %p253 = pneg %p83
      $region18: #{_lambda_.1} parent=11 // pred_check_branch
        %255 = sbr.rel (%p253) target = $region20
      $region19: #{_lambda_.1} parent=11 // pred_region
        _
      $region20: #{_lambda_.1} parent=11 // pred_fallthru
        _
      // Predicated region
      $region21: #{_lambda_.1} parent=11 // pred_check
        %p256 = pneg %p104
      $region22: #{_lambda_.1} parent=11 // pred_check_branch
        %258 = sbr.rel (%p256) target = $region24
      $region23: #{_lambda_.1} parent=11 // pred_region
        _
      $region24: #{_lambda_.1} parent=11 // pred_fallthru
        _
      // Predicated region
      $region25: #{_lambda_.1} parent=11 // pred_check
        %p259 = pneg %p125
      $region26: #{_lambda_.1} parent=11 // pred_check_branch
        %261 = sbr.rel (%p259) target = $region28
      $region27: #{_lambda_.1} parent=11 // pred_region
        _
      $region28: #{_lambda_.1} parent=11 // pred_fallthru
        _
      // Predicated region
      $region29: #{_lambda_.1} parent=11 // pred_check
        %p262 = pneg %p146
      $region30: #{_lambda_.1} parent=11 // pred_check_branch
        %264 = sbr.rel (%p262) target = $region32
      $region31: #{_lambda_.1} parent=11 // pred_region
        _
      $region32: #{_lambda_.1} parent=11 // pred_fallthru
        _
      // Predicated region
      $region33: #{_lambda_.1} parent=11 // pred_check
        %p265 = pneg %p167
      $region34: #{_lambda_.1} parent=11 // pred_check_branch
        %267 = sbr.rel (%p265) target = $region36
      $region35: #{_lambda_.1} parent=11 // pred_region
        _
      $region36: #{_lambda_.1} parent=11 // pred_fallthru
        _
      // Predicated region
      $region37: #{_lambda_.1} parent=11 // pred_check
        %p268 = pneg %p188
      $region38: #{_lambda_.1} parent=11 // pred_check_branch
        %270 = sbr.rel (%p268) target = $region40
      $region39: #{_lambda_.1} parent=11 // pred_region
        _
      $region40: #{_lambda_.1} parent=11 // pred_fallthru
        _
      // Predicated region
      $region41: #{_lambda_.1} parent=11 // pred_check
        %p271 = pneg %p209
      $region42: #{_lambda_.1} parent=11 // pred_check_branch
        %273 = sbr.rel (%p271) target = $region44
      $region43: #{_lambda_.1} parent=11 // pred_region
        _
      $region44: #{_lambda_.1} parent=11 // pred_fallthru
        _
    $region12: #{_lambda_.1} parent=5 // pred_fallthru
      _
    %p274 = scmp.lt.s32.totalorder %s15, 2
    // Predicated region
    $region45: #{_lambda_.1} parent=5 // pred_check
      %p275 = pneg %p274
    $region46: #{_lambda_.1} parent=5 // pred_check_branch
      %277 = sbr.rel (%p275) target = $region48
    $region47: #{_lambda_.1} parent=5 // pred_region
      // Predicated region
      $region49: #{_lambda_.1} parent=47 // pred_check
        %p278 = pneg %p35
      $region50: #{_lambda_.1} parent=47 // pred_check_branch
        %280 = sbr.rel (%p278) target = $region52
      $region51: #{_lambda_.1} parent=47 // pred_region
        %p281 = scmp.lt.s32.totalorder %s15, 1
        %s282 = scalar_select %p281, %s15, 1
        %s283 = smul.addr %s282, 128
        %s284 = smul.addr %s283, 8
        %s285 = scalar_lea.vmem %s0, %s284
      $region52: #{_lambda_.1} parent=47 // pred_fallthru
        _
    $region48: #{_lambda_.1} parent=5 // pred_fallthru
      _
    %p286 = scmp.le.s32.totalorder 1, %s15
    %p287 = scmp.lt.s32.totalorder %s15, 3
    %p288 = pnand %p286, %p287
    %p289 = pneg %p288
    // Predicated region
    $region53: #{_lambda_.1} parent=5 // pred_check
      _
    $region54: #{_lambda_.1} parent=5 // pred_check_branch
      %291 = sbr.rel (%p288) target = $region56
    $region55: #{_lambda_.1} parent=5 // pred_region
      %s292 = ssub.s32 %s15, 1
      %p293 = scmp.lt.s32.totalorder %s20, 1
      %s294 = scalar_select %p293, %s20, 1
      %s295 = smul.addr %s294, 128
      %s296 = smul.addr %s295, 8
      %s297 = scalar_lea.vmem %s0, %s296
      %p298 = pneg %p41
      %p299 = pneg %p38
      %p300 = pneg %p62
      %p301 = pneg %p59
      %p302 = pneg %p83
      %p303 = pneg %p80
      %p304 = pneg %p104
      %p305 = pneg %p101
      %p306 = pneg %p125
      %p307 = pneg %p122
      %p308 = pneg %p146
      %p309 = pneg %p143
      %p310 = pneg %p167
      %p311 = pneg %p164
      %p312 = pneg %p188
      %p313 = pneg %p185
      %p314 = pneg %p209
      %p315 = pneg %p206
      %p316 = pneg %p235
      %p317 = pneg %p232
      %p318 = scmp.lt.s32.totalorder %s20, 1
      %s319 = scalar_select %p318, %s20, 1
      %s320 = smul.addr %s319, 2
      %s321 = scalar_lea.vmem %s9, %s320
      %p322 = scmp.lt.s32.totalorder %s20, 1
      %s323 = scalar_select %p322, %s20, 1
      %s324 = smul.addr %s323, 128
      %s325 = smul.addr %s324, 8
      %s326 = scalar_lea.vmem %s0, %s325
      %p327 = scmp.lt.s32.totalorder %s20, 1
      %s328 = scalar_select %p327, %s20, 1
      %s329 = smul.addr %s328, 2
      %s330 = scalar_lea.vmem %s9, %s329
      %332 = vst [vmem:[#allocation3] sm:$0xff] 0.0
      %333 = vst [vmem:[#allocation3 + $0x8] sm:$0xff] 0.0
      %334 = vst [vmem:[#allocation3 + $0x10] sm:$0xff] 0.0
      %335 = vst [vmem:[#allocation3 + $0x18] sm:$0xff] 0.0
      %336 = vst [vmem:[#allocation3 + $0x20] sm:$0xff] 0.0
      %337 = vst [vmem:[#allocation3 + $0x28] sm:$0xff] 0.0
      %338 = vst [vmem:[#allocation3 + $0x30] sm:$0xff] 0.0
      %339 = vst [vmem:[#allocation3 + $0x38] sm:$0xff] 0.0
      %340 = vst [vmem:[#allocation3 + $0x40] sm:$0xff] 0.0
      %341 = vst [vmem:[#allocation3 + $0x48] sm:$0xff] 0.0
      %342 = vst [vmem:[#allocation3 + $0x50] sm:$0xff] 0.0
      %343 = vst [vmem:[#allocation3 + $0x58] sm:$0xff] 0.0
      %344 = vst [vmem:[#allocation3 + $0x60] sm:$0xff] 0.0
      %345 = vst [vmem:[#allocation3 + $0x68] sm:$0xff] 0.0
      %346 = vst [vmem:[#allocation3 + $0x70] sm:$0xff] 0.0
      %347 = vst [vmem:[#allocation3 + $0x78] sm:$0xff] 0.0
      %348 = vst [vmem:[#allocation3 + $0x80] sm:$0xff] 0.0
      %349 = vst [vmem:[#allocation3 + $0x88] sm:$0xff] 0.0
      %350 = vst [vmem:[#allocation3 + $0x90] sm:$0xff] 0.0
      %351 = vst [vmem:[#allocation3 + $0x98] sm:$0xff] 0.0
      %352 = vst [vmem:[#allocation3 + $0xa0] sm:$0xff] 0.0
      %353 = vst [vmem:[#allocation3 + $0xa8] sm:$0xff] 0.0
      %354 = vst [vmem:[#allocation3 + $0xb0] sm:$0xff] 0.0
      %355 = vst [vmem:[#allocation3 + $0xb8] sm:$0xff] 0.0
      %356 = vst [vmem:[#allocation3 + $0xc0] sm:$0xff] 0.0
      %357 = vst [vmem:[#allocation3 + $0xc8] sm:$0xff] 0.0
      %358 = vst [vmem:[#allocation3 + $0xd0] sm:$0xff] 0.0
      %359 = vst [vmem:[#allocation3 + $0xd8] sm:$0xff] 0.0
      %360 = vst [vmem:[#allocation3 + $0xe0] sm:$0xff] 0.0
      %361 = vst [vmem:[#allocation3 + $0xe8] sm:$0xff] 0.0
      %362 = vst [vmem:[#allocation3 + $0xf0] sm:$0xff] 0.0
      %363 = vst [vmem:[#allocation3 + $0xf8] sm:$0xff] 0.0
      %364 = vst [vmem:[#allocation3 + $0x100] sm:$0xff] 0.0
      %365 = vst [vmem:[#allocation3 + $0x108] sm:$0xff] 0.0
      %366 = vst [vmem:[#allocation3 + $0x110] sm:$0xff] 0.0
      %367 = vst [vmem:[#allocation3 + $0x118] sm:$0xff] 0.0
      %368 = vst [vmem:[#allocation3 + $0x120] sm:$0xff] 0.0
      %369 = vst [vmem:[#allocation3 + $0x128] sm:$0xff] 0.0
      %370 = vst [vmem:[#allocation3 + $0x130] sm:$0xff] 0.0
      %371 = vst [vmem:[#allocation3 + $0x138] sm:$0xff] 0.0
      %372 = vst [vmem:[#allocation3 + $0x140] sm:$0xff] 0.0
      %373 = vst [vmem:[#allocation3 + $0x148] sm:$0xff] 0.0
      %374 = vst [vmem:[#allocation3 + $0x150] sm:$0xff] 0.0
      %375 = vst [vmem:[#allocation3 + $0x158] sm:$0xff] 0.0
      %376 = vst [vmem:[#allocation3 + $0x160] sm:$0xff] 0.0
      %377 = vst [vmem:[#allocation3 + $0x168] sm:$0xff] 0.0
      %378 = vst [vmem:[#allocation3 + $0x170] sm:$0xff] 0.0
      %379 = vst [vmem:[#allocation3 + $0x178] sm:$0xff] 0.0
      %380 = vst [vmem:[#allocation3 + $0x180] sm:$0xff] 0.0
      %381 = vst [vmem:[#allocation3 + $0x188] sm:$0xff] 0.0
      %382 = vst [vmem:[#allocation3 + $0x190] sm:$0xff] 0.0
      %383 = vst [vmem:[#allocation3 + $0x198] sm:$0xff] 0.0
      %384 = vst [vmem:[#allocation3 + $0x1a0] sm:$0xff] 0.0
      %385 = vst [vmem:[#allocation3 + $0x1a8] sm:$0xff] 0.0
      %386 = vst [vmem:[#allocation3 + $0x1b0] sm:$0xff] 0.0
      %387 = vst [vmem:[#allocation3 + $0x1b8] sm:$0xff] 0.0
      %388 = vst [vmem:[#allocation3 + $0x1c0] sm:$0xff] 0.0
      %389 = vst [vmem:[#allocation3 + $0x1c8] sm:$0xff] 0.0
      %390 = vst [vmem:[#allocation3 + $0x1d0] sm:$0xff] 0.0
      %391 = vst [vmem:[#allocation3 + $0x1d8] sm:$0xff] 0.0
      %392 = vst [vmem:[#allocation3 + $0x1e0] sm:$0xff] 0.0
      %393 = vst [vmem:[#allocation3 + $0x1e8] sm:$0xff] 0.0
      %394 = vst [vmem:[#allocation3 + $0x1f0] sm:$0xff] 0.0
      %395 = vst [vmem:[#allocation3 + $0x1f8] sm:$0xff] 0.0
      %396 = vst [vmem:[#allocation3 + $0x200] sm:$0xff] 0.0
      %397 = vst [vmem:[#allocation3 + $0x208] sm:$0xff] 0.0
      %398 = vst [vmem:[#allocation3 + $0x210] sm:$0xff] 0.0
      %399 = vst [vmem:[#allocation3 + $0x218] sm:$0xff] 0.0
      %400 = vst [vmem:[#allocation3 + $0x220] sm:$0xff] 0.0
      %401 = vst [vmem:[#allocation3 + $0x228] sm:$0xff] 0.0
      %402 = vst [vmem:[#allocation3 + $0x230] sm:$0xff] 0.0
      %403 = vst [vmem:[#allocation3 + $0x238] sm:$0xff] 0.0
      %404 = vst [vmem:[#allocation3 + $0x240] sm:$0xff] 0.0
      %405 = vst [vmem:[#allocation3 + $0x248] sm:$0xff] 0.0
      %406 = vst [vmem:[#allocation3 + $0x250] sm:$0xff] 0.0
      %407 = vst [vmem:[#allocation3 + $0x258] sm:$0xff] 0.0
      %408 = vst [vmem:[#allocation3 + $0x260] sm:$0xff] 0.0
      %409 = vst [vmem:[#allocation3 + $0x268] sm:$0xff] 0.0
      %410 = vst [vmem:[#allocation3 + $0x270] sm:$0xff] 0.0
      %411 = vst [vmem:[#allocation3 + $0x278] sm:$0xff] 0.0
      %412 = vst [vmem:[#allocation3 + $0x280] sm:$0xff] 0.0
      %413 = vst [vmem:[#allocation3 + $0x288] sm:$0xff] 0.0
      %414 = vst [vmem:[#allocation3 + $0x290] sm:$0xff] 0.0
      %415 = vst [vmem:[#allocation3 + $0x298] sm:$0xff] 0.0
      %416 = vst [vmem:[#allocation3 + $0x2a0] sm:$0xff] 0.0
      %417 = vst [vmem:[#allocation3 + $0x2a8] sm:$0xff] 0.0
      %418 = vst [vmem:[#allocation3 + $0x2b0] sm:$0xff] 0.0
      %419 = vst [vmem:[#allocation3 + $0x2b8] sm:$0xff] 0.0
      %420 = vst [vmem:[#allocation3 + $0x2c0] sm:$0xff] 0.0
      %421 = vst [vmem:[#allocation3 + $0x2c8] sm:$0xff] 0.0
      %422 = vst [vmem:[#allocation3 + $0x2d0] sm:$0xff] 0.0
      %423 = vst [vmem:[#allocation3 + $0x2d8] sm:$0xff] 0.0
      %424 = vst [vmem:[#allocation3 + $0x2e0] sm:$0xff] 0.0
      %425 = vst [vmem:[#allocation3 + $0x2e8] sm:$0xff] 0.0
      %426 = vst [vmem:[#allocation3 + $0x2f0] sm:$0xff] 0.0
      %427 = vst [vmem:[#allocation3 + $0x2f8] sm:$0xff] 0.0
      %428 = vst [vmem:[#allocation3 + $0x300] sm:$0xff] 0.0
      %429 = vst [vmem:[#allocation3 + $0x308] sm:$0xff] 0.0
      %430 = vst [vmem:[#allocation3 + $0x310] sm:$0xff] 0.0
      %431 = vst [vmem:[#allocation3 + $0x318] sm:$0xff] 0.0
      %432 = vst [vmem:[#allocation3 + $0x320] sm:$0xff] 0.0
      %433 = vst [vmem:[#allocation3 + $0x328] sm:$0xff] 0.0
      %434 = vst [vmem:[#allocation3 + $0x330] sm:$0xff] 0.0
      %435 = vst [vmem:[#allocation3 + $0x338] sm:$0xff] 0.0
      %436 = vst [vmem:[#allocation3 + $0x340] sm:$0xff] 0.0
      %437 = vst [vmem:[#allocation3 + $0x348] sm:$0xff] 0.0
      %438 = vst [vmem:[#allocation3 + $0x350] sm:$0xff] 0.0
      %439 = vst [vmem:[#allocation3 + $0x358] sm:$0xff] 0.0
      %440 = vst [vmem:[#allocation3 + $0x360] sm:$0xff] 0.0
      %441 = vst [vmem:[#allocation3 + $0x368] sm:$0xff] 0.0
      %442 = vst [vmem:[#allocation3 + $0x370] sm:$0xff] 0.0
      %443 = vst [vmem:[#allocation3 + $0x378] sm:$0xff] 0.0
      %444 = vst [vmem:[#allocation3 + $0x380] sm:$0xff] 0.0
      %445 = vst [vmem:[#allocation3 + $0x388] sm:$0xff] 0.0
      %446 = vst [vmem:[#allocation3 + $0x390] sm:$0xff] 0.0
      %447 = vst [vmem:[#allocation3 + $0x398] sm:$0xff] 0.0
      %448 = vst [vmem:[#allocation3 + $0x3a0] sm:$0xff] 0.0
      %449 = vst [vmem:[#allocation3 + $0x3a8] sm:$0xff] 0.0
      %450 = vst [vmem:[#allocation3 + $0x3b0] sm:$0xff] 0.0
      %451 = vst [vmem:[#allocation3 + $0x3b8] sm:$0xff] 0.0
      %v452 = vld [vmem:[%s326] ss:$2 sm:$0xff]
      %s453 = scalar_lea.vmem %s326, 16
      %v454 = vld [vmem:[%s453] ss:$2 sm:$0xff]
      %s455 = scalar_lea.vmem %s326, 32
      %v456 = vld [vmem:[%s455] ss:$2 sm:$0xff]
      %s457 = scalar_lea.vmem %s326, 48
      %v458 = vld [vmem:[%s457] ss:$2 sm:$0x1f]
      %vm459 = vcmask 97280
      %460 = vst.msk [vmem:[#allocation3] sm:$0xff] %vm459, %v452
      %461 = vst.msk [vmem:[#allocation3 + $0x20] sm:$0xff] %vm459, %v454
      %462 = vst.msk [vmem:[#allocation3 + $0x40] sm:$0xff] %vm459, %v456
      %vm463 = vcmask 94208
      %464 = vst.msk [vmem:[#allocation3 + $0x60] sm:$0x1f] %vm463, %v458
      %s465 = scalar_lea.vmem %s326, 1
      %v466 = vld [vmem:[%s465] ss:$2 sm:$0xff]
      %s467 = scalar_lea.vmem %s326, 17
      %v468 = vld [vmem:[%s467] ss:$2 sm:$0xff]
      %s469 = scalar_lea.vmem %s326, 33
      %v470 = vld [vmem:[%s469] ss:$2 sm:$0xff]
      %s471 = scalar_lea.vmem %s326, 49
      %v472 = vld [vmem:[%s471] ss:$2 sm:$0x1f]
      %477 = vrot.lane.b32.xlu0 %v466, 12
      %v478 = vpop.permute.xlu0 %477
      %479 = vrot.lane.b32.xlu0 %v468, 12
      %v480 = vpop.permute.xlu0 %479
      %481 = vrot.lane.b32.xlu0 %v470, 12
      %v482 = vpop.permute.xlu0 %481
      %483 = vrot.lane.b32.xlu0 %v472, 12
      %v484 = vpop.permute.xlu0 %483
      %vm489 = vcmask 195680
      %490 = vst.msk [vmem:[#allocation3] sm:$0xff] %vm489, %v478
      %491 = vst.msk [vmem:[#allocation3 + $0x20] sm:$0xff] %vm489, %v480
      %492 = vst.msk [vmem:[#allocation3 + $0x40] sm:$0xff] %vm489, %v482
      %vm493 = vcmask 192608
      %494 = vst.msk [vmem:[#allocation3 + $0x60] sm:$0x1f] %vm493, %v484
      %s495 = scalar_lea.vmem %s326, 2
      %v496 = vld [vmem:[%s495] ss:$2 sm:$0xff]
      %s497 = scalar_lea.vmem %s326, 18
      %v498 = vld [vmem:[%s497] ss:$2 sm:$0xff]
      %s499 = scalar_lea.vmem %s326, 34
      %v500 = vld [vmem:[%s499] ss:$2 sm:$0xff]
      %s501 = scalar_lea.vmem %s326, 50
      %v502 = vld [vmem:[%s501] ss:$2 sm:$0x1f]
      %507 = vrot.lane.b32.xlu0 %v496, 24
      %v508 = vpop.permute.xlu0 %507
      %509 = vrot.lane.b32.xlu0 %v498, 24
      %v510 = vpop.permute.xlu0 %509
      %511 = vrot.lane.b32.xlu0 %v500, 24
      %v512 = vpop.permute.xlu0 %511
      %513 = vrot.lane.b32.xlu0 %v502, 24
      %v514 = vpop.permute.xlu0 %513
      %vm519 = vcmask 294080
      %520 = vst.msk [vmem:[#allocation3] sm:$0xff] %vm519, %v508
      %521 = vst.msk [vmem:[#allocation3 + $0x20] sm:$0xff] %vm519, %v510
      %522 = vst.msk [vmem:[#allocation3 + $0x40] sm:$0xff] %vm519, %v512
      %vm523 = vcmask 291008
      %524 = vst.msk [vmem:[#allocation3 + $0x60] sm:$0x1f] %vm523, %v514
      %s525 = scalar_lea.vmem %s326, 3
      %v526 = vld [vmem:[%s525] ss:$2 sm:$0xff]
      %s527 = scalar_lea.vmem %s326, 19
      %v528 = vld [vmem:[%s527] ss:$2 sm:$0xff]
      %s529 = scalar_lea.vmem %s326, 35
      %v530 = vld [vmem:[%s529] ss:$2 sm:$0xff]
      %s531 = scalar_lea.vmem %s326, 51
      %v532 = vld [vmem:[%s531] ss:$2 sm:$0x1f]
      %537 = vrot.lane.b32.xlu0 %v526, 36
      %v538 = vpop.permute.xlu0 %537
      %539 = vrot.lane.b32.xlu0 %v528, 36
      %v540 = vpop.permute.xlu0 %539
      %541 = vrot.lane.b32.xlu0 %v530, 36
      %v542 = vpop.permute.xlu0 %541
      %543 = vrot.lane.b32.xlu0 %v532, 36
      %v544 = vpop.permute.xlu0 %543
      %vm549 = vcmask 392480
      %550 = vst.msk [vmem:[#allocation3] sm:$0xff] %vm549, %v538
      %551 = vst.msk [vmem:[#allocation3 + $0x20] sm:$0xff] %vm549, %v540
      %552 = vst.msk [vmem:[#allocation3 + $0x40] sm:$0xff] %vm549, %v542
      %vm553 = vcmask 389408
      %554 = vst.msk [vmem:[#allocation3 + $0x60] sm:$0x1f] %vm553, %v544
      %s555 = scalar_lea.vmem %s326, 4
      %v556 = vld [vmem:[%s555] ss:$2 sm:$0xff]
      %s557 = scalar_lea.vmem %s326, 20
      %v558 = vld [vmem:[%s557] ss:$2 sm:$0xff]
      %s559 = scalar_lea.vmem %s326, 36
      %v560 = vld [vmem:[%s559] ss:$2 sm:$0xff]
      %s561 = scalar_lea.vmem %s326, 52
      %v562 = vld [vmem:[%s561] ss:$2 sm:$0x1f]
      %567 = vrot.lane.b32.xlu0 %v556, 48
      %v568 = vpop.permute.xlu0 %567
      %569 = vrot.lane.b32.xlu0 %v558, 48
      %v570 = vpop.permute.xlu0 %569
      %571 = vrot.lane.b32.xlu0 %v560, 48
      %v572 = vpop.permute.xlu0 %571
      %573 = vrot.lane.b32.xlu0 %v562, 48
      %v574 = vpop.permute.xlu0 %573
      %vm579 = vcmask 490880
      %580 = vst.msk [vmem:[#allocation3] sm:$0xff] %vm579, %v568
      %581 = vst.msk [vmem:[#allocation3 + $0x20] sm:$0xff] %vm579, %v570
      %582 = vst.msk [vmem:[#allocation3 + $0x40] sm:$0xff] %vm579, %v572
      %vm583 = vcmask 487808
      %584 = vst.msk [vmem:[#allocation3 + $0x60] sm:$0x1f] %vm583, %v574
      %s585 = scalar_lea.vmem %s326, 5
      %v586 = vld [vmem:[%s585] ss:$2 sm:$0xff]
      %s587 = scalar_lea.vmem %s326, 21
      %v588 = vld [vmem:[%s587] ss:$2 sm:$0xff]
      %s589 = scalar_lea.vmem %s326, 37
      %v590 = vld [vmem:[%s589] ss:$2 sm:$0xff]
      %s591 = scalar_lea.vmem %s326, 53
      %v592 = vld [vmem:[%s591] ss:$2 sm:$0x1f]
      %597 = vrot.lane.b32.xlu0 %v586, 60
      %v598 = vpop.permute.xlu0 %597
      %599 = vrot.lane.b32.xlu0 %v588, 60
      %v600 = vpop.permute.xlu0 %599
      %601 = vrot.lane.b32.xlu0 %v590, 60
      %v602 = vpop.permute.xlu0 %601
      %603 = vrot.lane.b32.xlu0 %v592, 60
      %v604 = vpop.permute.xlu0 %603
      %vm609 = vcmask 589280
      %610 = vst.msk [vmem:[#allocation3] sm:$0xff] %vm609, %v598
      %611 = vst.msk [vmem:[#allocation3 + $0x20] sm:$0xff] %vm609, %v600
      %612 = vst.msk [vmem:[#allocation3 + $0x40] sm:$0xff] %vm609, %v602
      %vm613 = vcmask 586208
      %614 = vst.msk [vmem:[#allocation3 + $0x60] sm:$0x1f] %vm613, %v604
      %s615 = scalar_lea.vmem %s326, 6
      %v616 = vld [vmem:[%s615] ss:$2 sm:$0xff]
      %s617 = scalar_lea.vmem %s326, 22
      %v618 = vld [vmem:[%s617] ss:$2 sm:$0xff]
      %s619 = scalar_lea.vmem %s326, 38
      %v620 = vld [vmem:[%s619] ss:$2 sm:$0xff]
      %s621 = scalar_lea.vmem %s326, 54
      %v622 = vld [vmem:[%s621] ss:$2 sm:$0x1f]
      %627 = vrot.lane.b32.xlu0 %v616, 72
      %v628 = vpop.permute.xlu0 %627
      %629 = vrot.lane.b32.xlu0 %v618, 72
      %v630 = vpop.permute.xlu0 %629
      %631 = vrot.lane.b32.xlu0 %v620, 72
      %v632 = vpop.permute.xlu0 %631
      %633 = vrot.lane.b32.xlu0 %v622, 72
      %v634 = vpop.permute.xlu0 %633
      %vm639 = vcmask 687680
      %640 = vst.msk [vmem:[#allocation3] sm:$0xff] %vm639, %v628
      %641 = vst.msk [vmem:[#allocation3 + $0x20] sm:$0xff] %vm639, %v630
      %642 = vst.msk [vmem:[#allocation3 + $0x40] sm:$0xff] %vm639, %v632
      %vm643 = vcmask 684608
      %644 = vst.msk [vmem:[#allocation3 + $0x60] sm:$0x1f] %vm643, %v634
      %s645 = scalar_lea.vmem %s326, 128
      %v646 = vld [vmem:[%s645] ss:$2 sm:$0xff]
      %s647 = scalar_lea.vmem %s326, 144
      %v648 = vld [vmem:[%s647] ss:$2 sm:$0xff]
      %s649 = scalar_lea.vmem %s326, 160
      %v650 = vld [vmem:[%s649] ss:$2 sm:$0xff]
      %s651 = scalar_lea.vmem %s326, 176
      %v652 = vld [vmem:[%s651] ss:$2 sm:$0x1f]
      %vm657 = vcmask 1044480
      %v658 = vrot.slane %v646, 3
      %v659 = vrot.slane %v648, 3
      %v660 = vsel %vm657, %v658, %v659
      %v661 = vrot.slane %v650, 3
      %v662 = vsel %vm657, %v659, %v661
      %v663 = vrot.slane %v652, 3
      %v664 = vsel %vm657, %v661, %v663
      %vm670 = vcmask 97285
      %671 = vst.msk [vmem:[#allocation3 + $0x60] sm:$0xe0] %vm670, %v658
      %672 = vst.msk [vmem:[#allocation3 + $0x80] sm:$0xff] %vm459, %v660
      %673 = vst.msk [vmem:[#allocation3 + $0xa0] sm:$0xff] %vm459, %v662
      %674 = vst.msk [vmem:[#allocation3 + $0xc0] sm:$0xff] %vm459, %v664
      %vm675 = vcmask 91136
      %676 = vst.msk [vmem:[#allocation3 + $0xe0] sm:$0x3] %vm675, %v663
      %s677 = scalar_lea.vmem %s326, 129
      %v678 = vld [vmem:[%s677] ss:$2 sm:$0xff]
      %s679 = scalar_lea.vmem %s326, 145
      %v680 = vld [vmem:[%s679] ss:$2 sm:$0xff]
      %s681 = scalar_lea.vmem %s326, 161
      %v682 = vld [vmem:[%s681] ss:$2 sm:$0xff]
      %s683 = scalar_lea.vmem %s326, 177
      %v684 = vld [vmem:[%s683] ss:$2 sm:$0x1f]
      %v689 = vrot.slane %v678, 3
      %v690 = vrot.slane %v680, 3
      %v691 = vsel %vm657, %v689, %v690
      %v692 = vrot.slane %v682, 3
      %v693 = vsel %vm657, %v690, %v692
      %v694 = vrot.slane %v684, 3
      %v695 = vsel %vm657, %v692, %v694
      %696 = vrot.lane.b32.xlu0 %v689, 12
      %v697 = vpop.permute.xlu0 %696
      %698 = vrot.lane.b32.xlu0 %v691, 12
      %v699 = vpop.permute.xlu0 %698
      %700 = vrot.lane.b32.xlu0 %v693, 12
      %v701 = vpop.permute.xlu0 %700
      %702 = vrot.lane.b32.xlu0 %v695, 12
      %v703 = vpop.permute.xlu0 %702
      %704 = vrot.lane.b32.xlu0 %v694, 12
      %v705 = vpop.permute.xlu0 %704
      %vm711 = vcmask 195685
      %712 = vst.msk [vmem:[#allocation3 + $0x60] sm:$0xe0] %vm711, %v697
      %713 = vst.msk [vmem:[#allocation3 + $0x80] sm:$0xff] %vm489, %v699
      %714 = vst.msk [vmem:[#allocation3 + $0xa0] sm:$0xff] %vm489, %v701
      %715 = vst.msk [vmem:[#allocation3 + $0xc0] sm:$0xff] %vm489, %v703
      %vm716 = vcmask 189536
      %717 = vst.msk [vmem:[#allocation3 + $0xe0] sm:$0x3] %vm716, %v705
      %s718 = scalar_lea.vmem %s326, 130
      %v719 = vld [vmem:[%s718] ss:$2 sm:$0xff]
      %s720 = scalar_lea.vmem %s326, 146
      %v721 = vld [vmem:[%s720] ss:$2 sm:$0xff]
      %s722 = scalar_lea.vmem %s326, 162
      %v723 = vld [vmem:[%s722] ss:$2 sm:$0xff]
      %s724 = scalar_lea.vmem %s326, 178
      %v725 = vld [vmem:[%s724] ss:$2 sm:$0x1f]
      %v730 = vrot.slane %v719, 3
      %v731 = vrot.slane %v721, 3
      %v732 = vsel %vm657, %v730, %v731
      %v733 = vrot.slane %v723, 3
      %v734 = vsel %vm657, %v731, %v733
      %v735 = vrot.slane %v725, 3
      %v736 = vsel %vm657, %v733, %v735
      %737 = vrot.lane.b32.xlu0 %v730, 24
      %v738 = vpop.permute.xlu0 %737
      %739 = vrot.lane.b32.xlu0 %v732, 24
      %v740 = vpop.permute.xlu0 %739
      %741 = vrot.lane.b32.xlu0 %v734, 24
      %v742 = vpop.permute.xlu0 %741
      %743 = vrot.lane.b32.xlu0 %v736, 24
      %v744 = vpop.permute.xlu0 %743
      %745 = vrot.lane.b32.xlu0 %v735, 24
      %v746 = vpop.permute.xlu0 %745
      %vm752 = vcmask 294085
      %753 = vst.msk [vmem:[#allocation3 + $0x60] sm:$0xe0] %vm752, %v738
      %754 = vst.msk [vmem:[#allocation3 + $0x80] sm:$0xff] %vm519, %v740
      %755 = vst.msk [vmem:[#allocation3 + $0xa0] sm:$0xff] %vm519, %v742
      %756 = vst.msk [vmem:[#allocation3 + $0xc0] sm:$0xff] %vm519, %v744
      %vm757 = vcmask 287936
      %758 = vst.msk [vmem:[#allocation3 + $0xe0] sm:$0x3] %vm757, %v746
      %s759 = scalar_lea.vmem %s326, 131
      %v760 = vld [vmem:[%s759] ss:$2 sm:$0xff]
      %s761 = scalar_lea.vmem %s326, 147
      %v762 = vld [vmem:[%s761] ss:$2 sm:$0xff]
      %s763 = scalar_lea.vmem %s326, 163
      %v764 = vld [vmem:[%s763] ss:$2 sm:$0xff]
      %s765 = scalar_lea.vmem %s326, 179
      %v766 = vld [vmem:[%s765] ss:$2 sm:$0x1f]
      %v771 = vrot.slane %v760, 3
      %v772 = vrot.slane %v762, 3
      %v773 = vsel %vm657, %v771, %v772
      %v774 = vrot.slane %v764, 3
      %v775 = vsel %vm657, %v772, %v774
      %v776 = vrot.slane %v766, 3
      %v777 = vsel %vm657, %v774, %v776
      %778 = vrot.lane.b32.xlu0 %v771, 36
      %v779 = vpop.permute.xlu0 %778
      %780 = vrot.lane.b32.xlu0 %v773, 36
      %v781 = vpop.permute.xlu0 %780
      %782 = vrot.lane.b32.xlu0 %v775, 36
      %v783 = vpop.permute.xlu0 %782
      %784 = vrot.lane.b32.xlu0 %v777, 36
      %v785 = vpop.permute.xlu0 %784
      %786 = vrot.lane.b32.xlu0 %v776, 36
      %v787 = vpop.permute.xlu0 %786
      %vm793 = vcmask 392485
      %794 = vst.msk [vmem:[#allocation3 + $0x60] sm:$0xe0] %vm793, %v779
      %795 = vst.msk [vmem:[#allocation3 + $0x80] sm:$0xff] %vm549, %v781
      %796 = vst.msk [vmem:[#allocation3 + $0xa0] sm:$0xff] %vm549, %v783
      %797 = vst.msk [vmem:[#allocation3 + $0xc0] sm:$0xff] %vm549, %v785
      %vm798 = vcmask 386336
      %799 = vst.msk [vmem:[#allocation3 + $0xe0] sm:$0x3] %vm798, %v787
      %s800 = scalar_lea.vmem %s326, 132
      %v801 = vld [vmem:[%s800] ss:$2 sm:$0xff]
      %s802 = scalar_lea.vmem %s326, 148
      %v803 = vld [vmem:[%s802] ss:$2 sm:$0xff]
      %s804 = scalar_lea.vmem %s326, 164
      %v805 = vld [vmem:[%s804] ss:$2 sm:$0xff]
      %s806 = scalar_lea.vmem %s326, 180
      %v807 = vld [vmem:[%s806] ss:$2 sm:$0x1f]
      %v812 = vrot.slane %v801, 3
      %v813 = vrot.slane %v803, 3
      %v814 = vsel %vm657, %v812, %v813
      %v815 = vrot.slane %v805, 3
      %v816 = vsel %vm657, %v813, %v815
      %v817 = vrot.slane %v807, 3
      %v818 = vsel %vm657, %v815, %v817
      %819 = vrot.lane.b32.xlu0 %v812, 48
      %v820 = vpop.permute.xlu0 %819
      %821 = vrot.lane.b32.xlu0 %v814, 48
      %v822 = vpop.permute.xlu0 %821
      %823 = vrot.lane.b32.xlu0 %v816, 48
      %v824 = vpop.permute.xlu0 %823
      %825 = vrot.lane.b32.xlu0 %v818, 48
      %v826 = vpop.permute.xlu0 %825
      %827 = vrot.lane.b32.xlu0 %v817, 48
      %v828 = vpop.permute.xlu0 %827
      %vm834 = vcmask 490885
      %835 = vst.msk [vmem:[#allocation3 + $0x60] sm:$0xe0] %vm834, %v820
      %836 = vst.msk [vmem:[#allocation3 + $0x80] sm:$0xff] %vm579, %v822
      %837 = vst.msk [vmem:[#allocation3 + $0xa0] sm:$0xff] %vm579, %v824
      %838 = vst.msk [vmem:[#allocation3 + $0xc0] sm:$0xff] %vm579, %v826
      %vm839 = vcmask 484736
      %840 = vst.msk [vmem:[#allocation3 + $0xe0] sm:$0x3] %vm839, %v828
      %s841 = scalar_lea.vmem %s326, 133
      %v842 = vld [vmem:[%s841] ss:$2 sm:$0xff]
      %s843 = scalar_lea.vmem %s326, 149
      %v844 = vld [vmem:[%s843] ss:$2 sm:$0xff]
      %s845 = scalar_lea.vmem %s326, 165
      %v846 = vld [vmem:[%s845] ss:$2 sm:$0xff]
      %s847 = scalar_lea.vmem %s326, 181
      %v848 = vld [vmem:[%s847] ss:$2 sm:$0x1f]
      %v853 = vrot.slane %v842, 3
      %v854 = vrot.slane %v844, 3
      %v855 = vsel %vm657, %v853, %v854
      %v856 = vrot.slane %v846, 3
      %v857 = vsel %vm657, %v854, %v856
      %v858 = vrot.slane %v848, 3
      %v859 = vsel %vm657, %v856, %v858
      %860 = vrot.lane.b32.xlu0 %v853, 60
      %v861 = vpop.permute.xlu0 %860
      %862 = vrot.lane.b32.xlu0 %v855, 60
      %v863 = vpop.permute.xlu0 %862
      %864 = vrot.lane.b32.xlu0 %v857, 60
      %v865 = vpop.permute.xlu0 %864
      %866 = vrot.lane.b32.xlu0 %v859, 60
      %v867 = vpop.permute.xlu0 %866
      %868 = vrot.lane.b32.xlu0 %v858, 60
      %v869 = vpop.permute.xlu0 %868
      %vm875 = vcmask 589285
      %876 = vst.msk [vmem:[#allocation3 + $0x60] sm:$0xe0] %vm875, %v861
      %877 = vst.msk [vmem:[#allocation3 + $0x80] sm:$0xff] %vm609, %v863
      %878 = vst.msk [vmem:[#allocation3 + $0xa0] sm:$0xff] %vm609, %v865
      %879 = vst.msk [vmem:[#allocation3 + $0xc0] sm:$0xff] %vm609, %v867
      %vm880 = vcmask 583136
      %881 = vst.msk [vmem:[#allocation3 + $0xe0] sm:$0x3] %vm880, %v869
      %s882 = scalar_lea.vmem %s326, 134
      %v883 = vld [vmem:[%s882] ss:$2 sm:$0xff]
      %s884 = scalar_lea.vmem %s326, 150
      %v885 = vld [vmem:[%s884] ss:$2 sm:$0xff]
      %s886 = scalar_lea.vmem %s326, 166
      %v887 = vld [vmem:[%s886] ss:$2 sm:$0xff]
      %s888 = scalar_lea.vmem %s326, 182
      %v889 = vld [vmem:[%s888] ss:$2 sm:$0x1f]
      %v894 = vrot.slane %v883, 3
      %v895 = vrot.slane %v885, 3
      %v896 = vsel %vm657, %v894, %v895
      %v897 = vrot.slane %v887, 3
      %v898 = vsel %vm657, %v895, %v897
      %v899 = vrot.slane %v889, 3
      %v900 = vsel %vm657, %v897, %v899
      %901 = vrot.lane.b32.xlu0 %v894, 72
      %v902 = vpop.permute.xlu0 %901
      %903 = vrot.lane.b32.xlu0 %v896, 72
      %v904 = vpop.permute.xlu0 %903
      %905 = vrot.lane.b32.xlu0 %v898, 72
      %v906 = vpop.permute.xlu0 %905
      %907 = vrot.lane.b32.xlu0 %v900, 72
      %v908 = vpop.permute.xlu0 %907
      %909 = vrot.lane.b32.xlu0 %v899, 72
      %v910 = vpop.permute.xlu0 %909
      %vm916 = vcmask 687685
      %917 = vst.msk [vmem:[#allocation3 + $0x60] sm:$0xe0] %vm916, %v902
      %918 = vst.msk [vmem:[#allocation3 + $0x80] sm:$0xff] %vm639, %v904
      %919 = vst.msk [vmem:[#allocation3 + $0xa0] sm:$0xff] %vm639, %v906
      %920 = vst.msk [vmem:[#allocation3 + $0xc0] sm:$0xff] %vm639, %v908
      %vm921 = vcmask 681536
      %922 = vst.msk [vmem:[#allocation3 + $0xe0] sm:$0x3] %vm921, %v910
      %s923 = scalar_lea.vmem %s326, 256
      %v924 = vld [vmem:[%s923] ss:$2 sm:$0xff]
      %s925 = scalar_lea.vmem %s326, 272
      %v926 = vld [vmem:[%s925] ss:$2 sm:$0xff]
      %s927 = scalar_lea.vmem %s326, 288
      %v928 = vld [vmem:[%s927] ss:$2 sm:$0xff]
      %s929 = scalar_lea.vmem %s326, 304
      %v930 = vld [vmem:[%s929] ss:$2 sm:$0x1f]
      %vm935 = vcmask 1041408
      %v936 = vrot.slane %v924, 6
      %v937 = vrot.slane %v926, 6
      %v938 = vsel %vm935, %v936, %v937
      %v939 = vrot.slane %v928, 6
      %v940 = vsel %vm935, %v937, %v939
      %v941 = vrot.slane %v930, 6
      %v942 = vsel %vm935, %v939, %v941
      %vm947 = vcmask 97282
      %948 = vst.msk [vmem:[#allocation3 + $0xe0] sm:$0xfc] %vm947, %v936
      %949 = vst.msk [vmem:[#allocation3 + $0x100] sm:$0xff] %vm459, %v938
      %950 = vst.msk [vmem:[#allocation3 + $0x120] sm:$0xff] %vm459, %v940
      %vm951 = vcmask 96256
      %952 = vst.msk [vmem:[#allocation3 + $0x140] sm:$0x7f] %vm951, %v942
      %s953 = scalar_lea.vmem %s326, 257
      %v954 = vld [vmem:[%s953] ss:$2 sm:$0xff]
      %s955 = scalar_lea.vmem %s326, 273
      %v956 = vld [vmem:[%s955] ss:$2 sm:$0xff]
      %s957 = scalar_lea.vmem %s326, 289
      %v958 = vld [vmem:[%s957] ss:$2 sm:$0xff]
      %s959 = scalar_lea.vmem %s326, 305
      %v960 = vld [vmem:[%s959] ss:$2 sm:$0x1f]
      %v965 = vrot.slane %v954, 6
      %v966 = vrot.slane %v956, 6
      %v967 = vsel %vm935, %v965, %v966
      %v968 = vrot.slane %v958, 6
      %v969 = vsel %vm935, %v966, %v968
      %v970 = vrot.slane %v960, 6
      %v971 = vsel %vm935, %v968, %v970
      %972 = vrot.lane.b32.xlu0 %v965, 12
      %v973 = vpop.permute.xlu0 %972
      %974 = vrot.lane.b32.xlu0 %v967, 12
      %v975 = vpop.permute.xlu0 %974
      %976 = vrot.lane.b32.xlu0 %v969, 12
      %v977 = vpop.permute.xlu0 %976
      %978 = vrot.lane.b32.xlu0 %v971, 12
      %v979 = vpop.permute.xlu0 %978
      %vm984 = vcmask 195682
      %985 = vst.msk [vmem:[#allocation3 + $0xe0] sm:$0xfc] %vm984, %v973
      %986 = vst.msk [vmem:[#allocation3 + $0x100] sm:$0xff] %vm489, %v975
      %987 = vst.msk [vmem:[#allocation3 + $0x120] sm:$0xff] %vm489, %v977
      %vm988 = vcmask 194656
      %989 = vst.msk [vmem:[#allocation3 + $0x140] sm:$0x7f] %vm988, %v979
      %s990 = scalar_lea.vmem %s326, 258
      %v991 = vld [vmem:[%s990] ss:$2 sm:$0xff]
      %s992 = scalar_lea.vmem %s326, 274
      %v993 = vld [vmem:[%s992] ss:$2 sm:$0xff]
      %s994 = scalar_lea.vmem %s326, 290
      %v995 = vld [vmem:[%s994] ss:$2 sm:$0xff]
      %s996 = scalar_lea.vmem %s326, 306
      %v997 = vld [vmem:[%s996] ss:$2 sm:$0x1f]
      %v1002 = vrot.slane %v991, 6
      %v1003 = vrot.slane %v993, 6
      %v1004 = vsel %vm935, %v1002, %v1003
      %v1005 = vrot.slane %v995, 6
      %v1006 = vsel %vm935, %v1003, %v1005
      %v1007 = vrot.slane %v997, 6
      %v1008 = vsel %vm935, %v1005, %v1007
      %1009 = vrot.lane.b32.xlu0 %v1002, 24
      %v1010 = vpop.permute.xlu0 %1009
      %1011 = vrot.lane.b32.xlu0 %v1004, 24
      %v1012 = vpop.permute.xlu0 %1011
      %1013 = vrot.lane.b32.xlu0 %v1006, 24
      %v1014 = vpop.permute.xlu0 %1013
      %1015 = vrot.lane.b32.xlu0 %v1008, 24
      %v1016 = vpop.permute.xlu0 %1015
      %vm1021 = vcmask 294082
      %1022 = vst.msk [vmem:[#allocation3 + $0xe0] sm:$0xfc] %vm1021, %v1010
      %1023 = vst.msk [vmem:[#allocation3 + $0x100] sm:$0xff] %vm519, %v1012
      %1024 = vst.msk [vmem:[#allocation3 + $0x120] sm:$0xff] %vm519, %v1014
      %vm1025 = vcmask 293056
      %1026 = vst.msk [vmem:[#allocation3 + $0x140] sm:$0x7f] %vm1025, %v1016
      %s1027 = scalar_lea.vmem %s326, 259
      %v1028 = vld [vmem:[%s1027] ss:$2 sm:$0xff]
      %s1029 = scalar_lea.vmem %s326, 275
      %v1030 = vld [vmem:[%s1029] ss:$2 sm:$0xff]
      %s1031 = scalar_lea.vmem %s326, 291
      %v1032 = vld [vmem:[%s1031] ss:$2 sm:$0xff]
      %s1033 = scalar_lea.vmem %s326, 307
      %v1034 = vld [vmem:[%s1033] ss:$2 sm:$0x1f]
      %v1039 = vrot.slane %v1028, 6
      %v1040 = vrot.slane %v1030, 6
      %v1041 = vsel %vm935, %v1039, %v1040
      %v1042 = vrot.slane %v1032, 6
      %v1043 = vsel %vm935, %v1040, %v1042
      %v1044 = vrot.slane %v1034, 6
      %v1045 = vsel %vm935, %v1042, %v1044
      %1046 = vrot.lane.b32.xlu0 %v1039, 36
      %v1047 = vpop.permute.xlu0 %1046
      %1048 = vrot.lane.b32.xlu0 %v1041, 36
      %v1049 = vpop.permute.xlu0 %1048
      %1050 = vrot.lane.b32.xlu0 %v1043, 36
      %v1051 = vpop.permute.xlu0 %1050
      %1052 = vrot.lane.b32.xlu0 %v1045, 36
      %v1053 = vpop.permute.xlu0 %1052
      %vm1058 = vcmask 392482
      %1059 = vst.msk [vmem:[#allocation3 + $0xe0] sm:$0xfc] %vm1058, %v1047
      %1060 = vst.msk [vmem:[#allocation3 + $0x100] sm:$0xff] %vm549, %v1049
      %1061 = vst.msk [vmem:[#allocation3 + $0x120] sm:$0xff] %vm549, %v1051
      %vm1062 = vcmask 391456
      %1063 = vst.msk [vmem:[#allocation3 + $0x140] sm:$0x7f] %vm1062, %v1053
      %s1064 = scalar_lea.vmem %s326, 260
      %v1065 = vld [vmem:[%s1064] ss:$2 sm:$0xff]
      %s1066 = scalar_lea.vmem %s326, 276
      %v1067 = vld [vmem:[%s1066] ss:$2 sm:$0xff]
      %s1068 = scalar_lea.vmem %s326, 292
      %v1069 = vld [vmem:[%s1068] ss:$2 sm:$0xff]
      %s1070 = scalar_lea.vmem %s326, 308
      %v1071 = vld [vmem:[%s1070] ss:$2 sm:$0x1f]
      %v1076 = vrot.slane %v1065, 6
      %v1077 = vrot.slane %v1067, 6
      %v1078 = vsel %vm935, %v1076, %v1077
      %v1079 = vrot.slane %v1069, 6
      %v1080 = vsel %vm935, %v1077, %v1079
      %v1081 = vrot.slane %v1071, 6
      %v1082 = vsel %vm935, %v1079, %v1081
      %1083 = vrot.lane.b32.xlu0 %v1076, 48
      %v1084 = vpop.permute.xlu0 %1083
      %1085 = vrot.lane.b32.xlu0 %v1078, 48
      %v1086 = vpop.permute.xlu0 %1085
      %1087 = vrot.lane.b32.xlu0 %v1080, 48
      %v1088 = vpop.permute.xlu0 %1087
      %1089 = vrot.lane.b32.xlu0 %v1082, 48
      %v1090 = vpop.permute.xlu0 %1089
      %vm1095 = vcmask 490882
      %1096 = vst.msk [vmem:[#allocation3 + $0xe0] sm:$0xfc] %vm1095, %v1084
      %1097 = vst.msk [vmem:[#allocation3 + $0x100] sm:$0xff] %vm579, %v1086
      %1098 = vst.msk [vmem:[#allocation3 + $0x120] sm:$0xff] %vm579, %v1088
      %vm1099 = vcmask 489856
      %1100 = vst.msk [vmem:[#allocation3 + $0x140] sm:$0x7f] %vm1099, %v1090
      %s1101 = scalar_lea.vmem %s326, 261
      %v1102 = vld [vmem:[%s1101] ss:$2 sm:$0xff]
      %s1103 = scalar_lea.vmem %s326, 277
      %v1104 = vld [vmem:[%s1103] ss:$2 sm:$0xff]
      %s1105 = scalar_lea.vmem %s326, 293
      %v1106 = vld [vmem:[%s1105] ss:$2 sm:$0xff]
      %s1107 = scalar_lea.vmem %s326, 309
      %v1108 = vld [vmem:[%s1107] ss:$2 sm:$0x1f]
      %v1113 = vrot.slane %v1102, 6
      %v1114 = vrot.slane %v1104, 6
      %v1115 = vsel %vm935, %v1113, %v1114
      %v1116 = vrot.slane %v1106, 6
      %v1117 = vsel %vm935, %v1114, %v1116
      %v1118 = vrot.slane %v1108, 6
      %v1119 = vsel %vm935, %v1116, %v1118
      %1120 = vrot.lane.b32.xlu0 %v1113, 60
      %v1121 = vpop.permute.xlu0 %1120
      %1122 = vrot.lane.b32.xlu0 %v1115, 60
      %v1123 = vpop.permute.xlu0 %1122
      %1124 = vrot.lane.b32.xlu0 %v1117, 60
      %v1125 = vpop.permute.xlu0 %1124
      %1126 = vrot.lane.b32.xlu0 %v1119, 60
      %v1127 = vpop.permute.xlu0 %1126
      %vm1132 = vcmask 589282
      %1133 = vst.msk [vmem:[#allocation3 + $0xe0] sm:$0xfc] %vm1132, %v1121
      %1134 = vst.msk [vmem:[#allocation3 + $0x100] sm:$0xff] %vm609, %v1123
      %1135 = vst.msk [vmem:[#allocation3 + $0x120] sm:$0xff] %vm609, %v1125
      %vm1136 = vcmask 588256
      %1137 = vst.msk [vmem:[#allocation3 + $0x140] sm:$0x7f] %vm1136, %v1127
      %s1138 = scalar_lea.vmem %s326, 262
      %v1139 = vld [vmem:[%s1138] ss:$2 sm:$0xff]
      %s1140 = scalar_lea.vmem %s326, 278
      %v1141 = vld [vmem:[%s1140] ss:$2 sm:$0xff]
      %s1142 = scalar_lea.vmem %s326, 294
      %v1143 = vld [vmem:[%s1142] ss:$2 sm:$0xff]
      %s1144 = scalar_lea.vmem %s326, 310
      %v1145 = vld [vmem:[%s1144] ss:$2 sm:$0x1f]
      %v1150 = vrot.slane %v1139, 6
      %v1151 = vrot.slane %v1141, 6
      %v1152 = vsel %vm935, %v1150, %v1151
      %v1153 = vrot.slane %v1143, 6
      %v1154 = vsel %vm935, %v1151, %v1153
      %v1155 = vrot.slane %v1145, 6
      %v1156 = vsel %vm935, %v1153, %v1155
      %1157 = vrot.lane.b32.xlu0 %v1150, 72
      %v1158 = vpop.permute.xlu0 %1157
      %1159 = vrot.lane.b32.xlu0 %v1152, 72
      %v1160 = vpop.permute.xlu0 %1159
      %1161 = vrot.lane.b32.xlu0 %v1154, 72
      %v1162 = vpop.permute.xlu0 %1161
      %1163 = vrot.lane.b32.xlu0 %v1156, 72
      %v1164 = vpop.permute.xlu0 %1163
      %vm1169 = vcmask 687682
      %1170 = vst.msk [vmem:[#allocation3 + $0xe0] sm:$0xfc] %vm1169, %v1158
      %1171 = vst.msk [vmem:[#allocation3 + $0x100] sm:$0xff] %vm639, %v1160
      %1172 = vst.msk [vmem:[#allocation3 + $0x120] sm:$0xff] %vm639, %v1162
      %vm1173 = vcmask 686656
      %1174 = vst.msk [vmem:[#allocation3 + $0x140] sm:$0x7f] %vm1173, %v1164
      %s1175 = scalar_lea.vmem %s326, 384
      %v1176 = vld [vmem:[%s1175] ss:$2 sm:$0xff]
      %s1177 = scalar_lea.vmem %s326, 400
      %v1178 = vld [vmem:[%s1177] ss:$2 sm:$0xff]
      %s1179 = scalar_lea.vmem %s326, 416
      %v1180 = vld [vmem:[%s1179] ss:$2 sm:$0xff]
      %s1181 = scalar_lea.vmem %s326, 432
      %v1182 = vld [vmem:[%s1181] ss:$2 sm:$0x1f]
      %vm1187 = vcmask 1046528
      %v1188 = vrot.slane %v1176, 1
      %v1189 = vrot.slane %v1178, 1
      %v1190 = vsel %vm1187, %v1188, %v1189
      %v1191 = vrot.slane %v1180, 1
      %v1192 = vsel %vm1187, %v1189, %v1191
      %v1193 = vrot.slane %v1182, 1
      %v1194 = vsel %vm1187, %v1191, %v1193
      %vm1200 = vcmask 97287
      %1201 = vst.msk [vmem:[#allocation3 + $0x140] sm:$0x80] %vm1200, %v1188
      %1202 = vst.msk [vmem:[#allocation3 + $0x160] sm:$0xff] %vm459, %v1190
      %1203 = vst.msk [vmem:[#allocation3 + $0x180] sm:$0xff] %vm459, %v1192
      %1204 = vst.msk [vmem:[#allocation3 + $0x1a0] sm:$0xff] %vm459, %v1194
      %vm1205 = vcmask 93184
      %1206 = vst.msk [vmem:[#allocation3 + $0x1c0] sm:$0xf] %vm1205, %v1193
      %s1207 = scalar_lea.vmem %s326, 385
      %v1208 = vld [vmem:[%s1207] ss:$2 sm:$0xff]
      %s1209 = scalar_lea.vmem %s326, 401
      %v1210 = vld [vmem:[%s1209] ss:$2 sm:$0xff]
      %s1211 = scalar_lea.vmem %s326, 417
      %v1212 = vld [vmem:[%s1211] ss:$2 sm:$0xff]
      %s1213 = scalar_lea.vmem %s326, 433
      %v1214 = vld [vmem:[%s1213] ss:$2 sm:$0x1f]
      %v1219 = vrot.slane %v1208, 1
      %v1220 = vrot.slane %v1210, 1
      %v1221 = vsel %vm1187, %v1219, %v1220
      %v1222 = vrot.slane %v1212, 1
      %v1223 = vsel %vm1187, %v1220, %v1222
      %v1224 = vrot.slane %v1214, 1
      %v1225 = vsel %vm1187, %v1222, %v1224
      %1226 = vrot.lane.b32.xlu0 %v1219, 12
      %v1227 = vpop.permute.xlu0 %1226
      %1228 = vrot.lane.b32.xlu0 %v1221, 12
      %v1229 = vpop.permute.xlu0 %1228
      %1230 = vrot.lane.b32.xlu0 %v1223, 12
      %v1231 = vpop.permute.xlu0 %1230
      %1232 = vrot.lane.b32.xlu0 %v1225, 12
      %v1233 = vpop.permute.xlu0 %1232
      %1234 = vrot.lane.b32.xlu0 %v1224, 12
      %v1235 = vpop.permute.xlu0 %1234
      %vm1241 = vcmask 195687
      %1242 = vst.msk [vmem:[#allocation3 + $0x140] sm:$0x80] %vm1241, %v1227
      %1243 = vst.msk [vmem:[#allocation3 + $0x160] sm:$0xff] %vm489, %v1229
      %1244 = vst.msk [vmem:[#allocation3 + $0x180] sm:$0xff] %vm489, %v1231
      %1245 = vst.msk [vmem:[#allocation3 + $0x1a0] sm:$0xff] %vm489, %v1233
      %vm1246 = vcmask 191584
      %1247 = vst.msk [vmem:[#allocation3 + $0x1c0] sm:$0xf] %vm1246, %v1235
      %s1248 = scalar_lea.vmem %s326, 386
      %v1249 = vld [vmem:[%s1248] ss:$2 sm:$0xff]
      %s1250 = scalar_lea.vmem %s326, 402
      %v1251 = vld [vmem:[%s1250] ss:$2 sm:$0xff]
      %s1252 = scalar_lea.vmem %s326, 418
      %v1253 = vld [vmem:[%s1252] ss:$2 sm:$0xff]
      %s1254 = scalar_lea.vmem %s326, 434
      %v1255 = vld [vmem:[%s1254] ss:$2 sm:$0x1f]
      %v1260 = vrot.slane %v1249, 1
      %v1261 = vrot.slane %v1251, 1
      %v1262 = vsel %vm1187, %v1260, %v1261
      %v1263 = vrot.slane %v1253, 1
      %v1264 = vsel %vm1187, %v1261, %v1263
      %v1265 = vrot.slane %v1255, 1
      %v1266 = vsel %vm1187, %v1263, %v1265
      %1267 = vrot.lane.b32.xlu0 %v1260, 24
      %v1268 = vpop.permute.xlu0 %1267
      %1269 = vrot.lane.b32.xlu0 %v1262, 24
      %v1270 = vpop.permute.xlu0 %1269
      %1271 = vrot.lane.b32.xlu0 %v1264, 24
      %v1272 = vpop.permute.xlu0 %1271
      %1273 = vrot.lane.b32.xlu0 %v1266, 24
      %v1274 = vpop.permute.xlu0 %1273
      %1275 = vrot.lane.b32.xlu0 %v1265, 24
      %v1276 = vpop.permute.xlu0 %1275
      %vm1282 = vcmask 294087
      %1283 = vst.msk [vmem:[#allocation3 + $0x140] sm:$0x80] %vm1282, %v1268
      %1284 = vst.msk [vmem:[#allocation3 + $0x160] sm:$0xff] %vm519, %v1270
      %1285 = vst.msk [vmem:[#allocation3 + $0x180] sm:$0xff] %vm519, %v1272
      %1286 = vst.msk [vmem:[#allocation3 + $0x1a0] sm:$0xff] %vm519, %v1274
      %vm1287 = vcmask 289984
      %1288 = vst.msk [vmem:[#allocation3 + $0x1c0] sm:$0xf] %vm1287, %v1276
      %s1289 = scalar_lea.vmem %s326, 387
      %v1290 = vld [vmem:[%s1289] ss:$2 sm:$0xff]
      %s1291 = scalar_lea.vmem %s326, 403
      %v1292 = vld [vmem:[%s1291] ss:$2 sm:$0xff]
      %s1293 = scalar_lea.vmem %s326, 419
      %v1294 = vld [vmem:[%s1293] ss:$2 sm:$0xff]
      %s1295 = scalar_lea.vmem %s326, 435
      %v1296 = vld [vmem:[%s1295] ss:$2 sm:$0x1f]
      %v1301 = vrot.slane %v1290, 1
      %v1302 = vrot.slane %v1292, 1
      %v1303 = vsel %vm1187, %v1301, %v1302
      %v1304 = vrot.slane %v1294, 1
      %v1305 = vsel %vm1187, %v1302, %v1304
      %v1306 = vrot.slane %v1296, 1
      %v1307 = vsel %vm1187, %v1304, %v1306
      %1308 = vrot.lane.b32.xlu0 %v1301, 36
      %v1309 = vpop.permute.xlu0 %1308
      %1310 = vrot.lane.b32.xlu0 %v1303, 36
      %v1311 = vpop.permute.xlu0 %1310
      %1312 = vrot.lane.b32.xlu0 %v1305, 36
      %v1313 = vpop.permute.xlu0 %1312
      %1314 = vrot.lane.b32.xlu0 %v1307, 36
      %v1315 = vpop.permute.xlu0 %1314
      %1316 = vrot.lane.b32.xlu0 %v1306, 36
      %v1317 = vpop.permute.xlu0 %1316
      %vm1323 = vcmask 392487
      %1324 = vst.msk [vmem:[#allocation3 + $0x140] sm:$0x80] %vm1323, %v1309
      %1325 = vst.msk [vmem:[#allocation3 + $0x160] sm:$0xff] %vm549, %v1311
      %1326 = vst.msk [vmem:[#allocation3 + $0x180] sm:$0xff] %vm549, %v1313
      %1327 = vst.msk [vmem:[#allocation3 + $0x1a0] sm:$0xff] %vm549, %v1315
      %vm1328 = vcmask 388384
      %1329 = vst.msk [vmem:[#allocation3 + $0x1c0] sm:$0xf] %vm1328, %v1317
      %s1330 = scalar_lea.vmem %s326, 388
      %v1331 = vld [vmem:[%s1330] ss:$2 sm:$0xff]
      %s1332 = scalar_lea.vmem %s326, 404
      %v1333 = vld [vmem:[%s1332] ss:$2 sm:$0xff]
      %s1334 = scalar_lea.vmem %s326, 420
      %v1335 = vld [vmem:[%s1334] ss:$2 sm:$0xff]
      %s1336 = scalar_lea.vmem %s326, 436
      %v1337 = vld [vmem:[%s1336] ss:$2 sm:$0x1f]
      %v1342 = vrot.slane %v1331, 1
      %v1343 = vrot.slane %v1333, 1
      %v1344 = vsel %vm1187, %v1342, %v1343
      %v1345 = vrot.slane %v1335, 1
      %v1346 = vsel %vm1187, %v1343, %v1345
      %v1347 = vrot.slane %v1337, 1
      %v1348 = vsel %vm1187, %v1345, %v1347
      %1349 = vrot.lane.b32.xlu0 %v1342, 48
      %v1350 = vpop.permute.xlu0 %1349
      %1351 = vrot.lane.b32.xlu0 %v1344, 48
      %v1352 = vpop.permute.xlu0 %1351
      %1353 = vrot.lane.b32.xlu0 %v1346, 48
      %v1354 = vpop.permute.xlu0 %1353
      %1355 = vrot.lane.b32.xlu0 %v1348, 48
      %v1356 = vpop.permute.xlu0 %1355
      %1357 = vrot.lane.b32.xlu0 %v1347, 48
      %v1358 = vpop.permute.xlu0 %1357
      %vm1364 = vcmask 490887
      %1365 = vst.msk [vmem:[#allocation3 + $0x140] sm:$0x80] %vm1364, %v1350
      %1366 = vst.msk [vmem:[#allocation3 + $0x160] sm:$0xff] %vm579, %v1352
      %1367 = vst.msk [vmem:[#allocation3 + $0x180] sm:$0xff] %vm579, %v1354
      %1368 = vst.msk [vmem:[#allocation3 + $0x1a0] sm:$0xff] %vm579, %v1356
      %vm1369 = vcmask 486784
      %1370 = vst.msk [vmem:[#allocation3 + $0x1c0] sm:$0xf] %vm1369, %v1358
      %s1371 = scalar_lea.vmem %s326, 389
      %v1372 = vld [vmem:[%s1371] ss:$2 sm:$0xff]
      %s1373 = scalar_lea.vmem %s326, 405
      %v1374 = vld [vmem:[%s1373] ss:$2 sm:$0xff]
      %s1375 = scalar_lea.vmem %s326, 421
      %v1376 = vld [vmem:[%s1375] ss:$2 sm:$0xff]
      %s1377 = scalar_lea.vmem %s326, 437
      %v1378 = vld [vmem:[%s1377] ss:$2 sm:$0x1f]
      %v1383 = vrot.slane %v1372, 1
      %v1384 = vrot.slane %v1374, 1
      %v1385 = vsel %vm1187, %v1383, %v1384
      %v1386 = vrot.slane %v1376, 1
      %v1387 = vsel %vm1187, %v1384, %v1386
      %v1388 = vrot.slane %v1378, 1
      %v1389 = vsel %vm1187, %v1386, %v1388
      %1390 = vrot.lane.b32.xlu0 %v1383, 60
      %v1391 = vpop.permute.xlu0 %1390
      %1392 = vrot.lane.b32.xlu0 %v1385, 60
      %v1393 = vpop.permute.xlu0 %1392
      %1394 = vrot.lane.b32.xlu0 %v1387, 60
      %v1395 = vpop.permute.xlu0 %1394
      %1396 = vrot.lane.b32.xlu0 %v1389, 60
      %v1397 = vpop.permute.xlu0 %1396
      %1398 = vrot.lane.b32.xlu0 %v1388, 60
      %v1399 = vpop.permute.xlu0 %1398
      %vm1405 = vcmask 589287
      %1406 = vst.msk [vmem:[#allocation3 + $0x140] sm:$0x80] %vm1405, %v1391
      %1407 = vst.msk [vmem:[#allocation3 + $0x160] sm:$0xff] %vm609, %v1393
      %1408 = vst.msk [vmem:[#allocation3 + $0x180] sm:$0xff] %vm609, %v1395
      %1409 = vst.msk [vmem:[#allocation3 + $0x1a0] sm:$0xff] %vm609, %v1397
      %vm1410 = vcmask 585184
      %1411 = vst.msk [vmem:[#allocation3 + $0x1c0] sm:$0xf] %vm1410, %v1399
      %s1412 = scalar_lea.vmem %s326, 390
      %v1413 = vld [vmem:[%s1412] ss:$2 sm:$0xff]
      %s1414 = scalar_lea.vmem %s326, 406
      %v1415 = vld [vmem:[%s1414] ss:$2 sm:$0xff]
      %s1416 = scalar_lea.vmem %s326, 422
      %v1417 = vld [vmem:[%s1416] ss:$2 sm:$0xff]
      %s1418 = scalar_lea.vmem %s326, 438
      %v1419 = vld [vmem:[%s1418] ss:$2 sm:$0x1f]
      %v1424 = vrot.slane %v1413, 1
      %v1425 = vrot.slane %v1415, 1
      %v1426 = vsel %vm1187, %v1424, %v1425
      %v1427 = vrot.slane %v1417, 1
      %v1428 = vsel %vm1187, %v1425, %v1427
      %v1429 = vrot.slane %v1419, 1
      %v1430 = vsel %vm1187, %v1427, %v1429
      %1431 = vrot.lane.b32.xlu0 %v1424, 72
      %v1432 = vpop.permute.xlu0 %1431
      %1433 = vrot.lane.b32.xlu0 %v1426, 72
      %v1434 = vpop.permute.xlu0 %1433
      %1435 = vrot.lane.b32.xlu0 %v1428, 72
      %v1436 = vpop.permute.xlu0 %1435
      %1437 = vrot.lane.b32.xlu0 %v1430, 72
      %v1438 = vpop.permute.xlu0 %1437
      %1439 = vrot.lane.b32.xlu0 %v1429, 72
      %v1440 = vpop.permute.xlu0 %1439
      %vm1446 = vcmask 687687
      %1447 = vst.msk [vmem:[#allocation3 + $0x140] sm:$0x80] %vm1446, %v1432
      %1448 = vst.msk [vmem:[#allocation3 + $0x160] sm:$0xff] %vm639, %v1434
      %1449 = vst.msk [vmem:[#allocation3 + $0x180] sm:$0xff] %vm639, %v1436
      %1450 = vst.msk [vmem:[#allocation3 + $0x1a0] sm:$0xff] %vm639, %v1438
      %vm1451 = vcmask 683584
      %1452 = vst.msk [vmem:[#allocation3 + $0x1c0] sm:$0xf] %vm1451, %v1440
      %s1453 = scalar_lea.vmem %s326, 512
      %v1454 = vld [vmem:[%s1453] ss:$2 sm:$0xff]
      %s1455 = scalar_lea.vmem %s326, 528
      %v1456 = vld [vmem:[%s1455] ss:$2 sm:$0xff]
      %s1457 = scalar_lea.vmem %s326, 544
      %v1458 = vld [vmem:[%s1457] ss:$2 sm:$0xff]
      %s1459 = scalar_lea.vmem %s326, 560
      %v1460 = vld [vmem:[%s1459] ss:$2 sm:$0x1f]
      %1461 = vst.msk [vmem:[#allocation3 + $0x1e0] sm:$0xff] %vm459, %v1454
      %1462 = vst.msk [vmem:[#allocation3 + $0x200] sm:$0xff] %vm459, %v1456
      %1463 = vst.msk [vmem:[#allocation3 + $0x220] sm:$0xff] %vm459, %v1458
      %1464 = vst.msk [vmem:[#allocation3 + $0x240] sm:$0x1f] %vm463, %v1460
      %s1465 = scalar_lea.vmem %s326, 513
      %v1466 = vld [vmem:[%s1465] ss:$2 sm:$0xff]
      %s1467 = scalar_lea.vmem %s326, 529
      %v1468 = vld [vmem:[%s1467] ss:$2 sm:$0xff]
      %s1469 = scalar_lea.vmem %s326, 545
      %v1470 = vld [vmem:[%s1469] ss:$2 sm:$0xff]
      %s1471 = scalar_lea.vmem %s326, 561
      %v1472 = vld [vmem:[%s1471] ss:$2 sm:$0x1f]
      %1477 = vrot.lane.b32.xlu0 %v1466, 12
      %v1478 = vpop.permute.xlu0 %1477
      %1479 = vrot.lane.b32.xlu0 %v1468, 12
      %v1480 = vpop.permute.xlu0 %1479
      %1481 = vrot.lane.b32.xlu0 %v1470, 12
      %v1482 = vpop.permute.xlu0 %1481
      %1483 = vrot.lane.b32.xlu0 %v1472, 12
      %v1484 = vpop.permute.xlu0 %1483
      %1489 = vst.msk [vmem:[#allocation3 + $0x1e0] sm:$0xff] %vm489, %v1478
      %1490 = vst.msk [vmem:[#allocation3 + $0x200] sm:$0xff] %vm489, %v1480
      %1491 = vst.msk [vmem:[#allocation3 + $0x220] sm:$0xff] %vm489, %v1482
      %1492 = vst.msk [vmem:[#allocation3 + $0x240] sm:$0x1f] %vm493, %v1484
      %s1493 = scalar_lea.vmem %s326, 514
      %v1494 = vld [vmem:[%s1493] ss:$2 sm:$0xff]
      %s1495 = scalar_lea.vmem %s326, 530
      %v1496 = vld [vmem:[%s1495] ss:$2 sm:$0xff]
      %s1497 = scalar_lea.vmem %s326, 546
      %v1498 = vld [vmem:[%s1497] ss:$2 sm:$0xff]
      %s1499 = scalar_lea.vmem %s326, 562
      %v1500 = vld [vmem:[%s1499] ss:$2 sm:$0x1f]
      %1505 = vrot.lane.b32.xlu0 %v1494, 24
      %v1506 = vpop.permute.xlu0 %1505
      %1507 = vrot.lane.b32.xlu0 %v1496, 24
      %v1508 = vpop.permute.xlu0 %1507
      %1509 = vrot.lane.b32.xlu0 %v1498, 24
      %v1510 = vpop.permute.xlu0 %1509
      %1511 = vrot.lane.b32.xlu0 %v1500, 24
      %v1512 = vpop.permute.xlu0 %1511
      %1517 = vst.msk [vmem:[#allocation3 + $0x1e0] sm:$0xff] %vm519, %v1506
      %1518 = vst.msk [vmem:[#allocation3 + $0x200] sm:$0xff] %vm519, %v1508
      %1519 = vst.msk [vmem:[#allocation3 + $0x220] sm:$0xff] %vm519, %v1510
      %1520 = vst.msk [vmem:[#allocation3 + $0x240] sm:$0x1f] %vm523, %v1512
      %s1521 = scalar_lea.vmem %s326, 515
      %v1522 = vld [vmem:[%s1521] ss:$2 sm:$0xff]
      %s1523 = scalar_lea.vmem %s326, 531
      %v1524 = vld [vmem:[%s1523] ss:$2 sm:$0xff]
      %s1525 = scalar_lea.vmem %s326, 547
      %v1526 = vld [vmem:[%s1525] ss:$2 sm:$0xff]
      %s1527 = scalar_lea.vmem %s326, 563
      %v1528 = vld [vmem:[%s1527] ss:$2 sm:$0x1f]
      %1533 = vrot.lane.b32.xlu0 %v1522, 36
      %v1534 = vpop.permute.xlu0 %1533
      %1535 = vrot.lane.b32.xlu0 %v1524, 36
      %v1536 = vpop.permute.xlu0 %1535
      %1537 = vrot.lane.b32.xlu0 %v1526, 36
      %v1538 = vpop.permute.xlu0 %1537
      %1539 = vrot.lane.b32.xlu0 %v1528, 36
      %v1540 = vpop.permute.xlu0 %1539
      %1545 = vst.msk [vmem:[#allocation3 + $0x1e0] sm:$0xff] %vm549, %v1534
      %1546 = vst.msk [vmem:[#allocation3 + $0x200] sm:$0xff] %vm549, %v1536
      %1547 = vst.msk [vmem:[#allocation3 + $0x220] sm:$0xff] %vm549, %v1538
      %1548 = vst.msk [vmem:[#allocation3 + $0x240] sm:$0x1f] %vm553, %v1540
      %s1549 = scalar_lea.vmem %s326, 516
      %v1550 = vld [vmem:[%s1549] ss:$2 sm:$0xff]
      %s1551 = scalar_lea.vmem %s326, 532
      %v1552 = vld [vmem:[%s1551] ss:$2 sm:$0xff]
      %s1553 = scalar_lea.vmem %s326, 548
      %v1554 = vld [vmem:[%s1553] ss:$2 sm:$0xff]
      %s1555 = scalar_lea.vmem %s326, 564
      %v1556 = vld [vmem:[%s1555] ss:$2 sm:$0x1f]
      %1561 = vrot.lane.b32.xlu0 %v1550, 48
      %v1562 = vpop.permute.xlu0 %1561
      %1563 = vrot.lane.b32.xlu0 %v1552, 48
      %v1564 = vpop.permute.xlu0 %1563
      %1565 = vrot.lane.b32.xlu0 %v1554, 48
      %v1566 = vpop.permute.xlu0 %1565
      %1567 = vrot.lane.b32.xlu0 %v1556, 48
      %v1568 = vpop.permute.xlu0 %1567
      %1573 = vst.msk [vmem:[#allocation3 + $0x1e0] sm:$0xff] %vm579, %v1562
      %1574 = vst.msk [vmem:[#allocation3 + $0x200] sm:$0xff] %vm579, %v1564
      %1575 = vst.msk [vmem:[#allocation3 + $0x220] sm:$0xff] %vm579, %v1566
      %1576 = vst.msk [vmem:[#allocation3 + $0x240] sm:$0x1f] %vm583, %v1568
      %s1577 = scalar_lea.vmem %s326, 517
      %v1578 = vld [vmem:[%s1577] ss:$2 sm:$0xff]
      %s1579 = scalar_lea.vmem %s326, 533
      %v1580 = vld [vmem:[%s1579] ss:$2 sm:$0xff]
      %s1581 = scalar_lea.vmem %s326, 549
      %v1582 = vld [vmem:[%s1581] ss:$2 sm:$0xff]
      %s1583 = scalar_lea.vmem %s326, 565
      %v1584 = vld [vmem:[%s1583] ss:$2 sm:$0x1f]
      %1589 = vrot.lane.b32.xlu0 %v1578, 60
      %v1590 = vpop.permute.xlu0 %1589
      %1591 = vrot.lane.b32.xlu0 %v1580, 60
      %v1592 = vpop.permute.xlu0 %1591
      %1593 = vrot.lane.b32.xlu0 %v1582, 60
      %v1594 = vpop.permute.xlu0 %1593
      %1595 = vrot.lane.b32.xlu0 %v1584, 60
      %v1596 = vpop.permute.xlu0 %1595
      %1601 = vst.msk [vmem:[#allocation3 + $0x1e0] sm:$0xff] %vm609, %v1590
      %1602 = vst.msk [vmem:[#allocation3 + $0x200] sm:$0xff] %vm609, %v1592
      %1603 = vst.msk [vmem:[#allocation3 + $0x220] sm:$0xff] %vm609, %v1594
      %1604 = vst.msk [vmem:[#allocation3 + $0x240] sm:$0x1f] %vm613, %v1596
      %s1605 = scalar_lea.vmem %s326, 518
      %v1606 = vld [vmem:[%s1605] ss:$2 sm:$0xff]
      %s1607 = scalar_lea.vmem %s326, 534
      %v1608 = vld [vmem:[%s1607] ss:$2 sm:$0xff]
      %s1609 = scalar_lea.vmem %s326, 550
      %v1610 = vld [vmem:[%s1609] ss:$2 sm:$0xff]
      %s1611 = scalar_lea.vmem %s326, 566
      %v1612 = vld [vmem:[%s1611] ss:$2 sm:$0x1f]
      %1617 = vrot.lane.b32.xlu0 %v1606, 72
      %v1618 = vpop.permute.xlu0 %1617
      %1619 = vrot.lane.b32.xlu0 %v1608, 72
      %v1620 = vpop.permute.xlu0 %1619
      %1621 = vrot.lane.b32.xlu0 %v1610, 72
      %v1622 = vpop.permute.xlu0 %1621
      %1623 = vrot.lane.b32.xlu0 %v1612, 72
      %v1624 = vpop.permute.xlu0 %1623
      %1629 = vst.msk [vmem:[#allocation3 + $0x1e0] sm:$0xff] %vm639, %v1618
      %1630 = vst.msk [vmem:[#allocation3 + $0x200] sm:$0xff] %vm639, %v1620
      %1631 = vst.msk [vmem:[#allocation3 + $0x220] sm:$0xff] %vm639, %v1622
      %1632 = vst.msk [vmem:[#allocation3 + $0x240] sm:$0x1f] %vm643, %v1624
      %s1633 = scalar_lea.vmem %s326, 640
      %v1634 = vld [vmem:[%s1633] ss:$2 sm:$0xff]
      %s1635 = scalar_lea.vmem %s326, 656
      %v1636 = vld [vmem:[%s1635] ss:$2 sm:$0xff]
      %s1637 = scalar_lea.vmem %s326, 672
      %v1638 = vld [vmem:[%s1637] ss:$2 sm:$0xff]
      %s1639 = scalar_lea.vmem %s326, 688
      %v1640 = vld [vmem:[%s1639] ss:$2 sm:$0x1f]
      %v1645 = vrot.slane %v1634, 3
      %v1646 = vrot.slane %v1636, 3
      %v1647 = vsel %vm657, %v1645, %v1646
      %v1648 = vrot.slane %v1638, 3
      %v1649 = vsel %vm657, %v1646, %v1648
      %v1650 = vrot.slane %v1640, 3
      %v1651 = vsel %vm657, %v1648, %v1650
      %1657 = vst.msk [vmem:[#allocation3 + $0x240] sm:$0xe0] %vm670, %v1645
      %1658 = vst.msk [vmem:[#allocation3 + $0x260] sm:$0xff] %vm459, %v1647
      %1659 = vst.msk [vmem:[#allocation3 + $0x280] sm:$0xff] %vm459, %v1649
      %1660 = vst.msk [vmem:[#allocation3 + $0x2a0] sm:$0xff] %vm459, %v1651
      %1661 = vst.msk [vmem:[#allocation3 + $0x2c0] sm:$0x3] %vm675, %v1650
      %s1662 = scalar_lea.vmem %s326, 641
      %v1663 = vld [vmem:[%s1662] ss:$2 sm:$0xff]
      %s1664 = scalar_lea.vmem %s326, 657
      %v1665 = vld [vmem:[%s1664] ss:$2 sm:$0xff]
      %s1666 = scalar_lea.vmem %s326, 673
      %v1667 = vld [vmem:[%s1666] ss:$2 sm:$0xff]
      %s1668 = scalar_lea.vmem %s326, 689
      %v1669 = vld [vmem:[%s1668] ss:$2 sm:$0x1f]
      %v1674 = vrot.slane %v1663, 3
      %v1675 = vrot.slane %v1665, 3
      %v1676 = vsel %vm657, %v1674, %v1675
      %v1677 = vrot.slane %v1667, 3
      %v1678 = vsel %vm657, %v1675, %v1677
      %v1679 = vrot.slane %v1669, 3
      %v1680 = vsel %vm657, %v1677, %v1679
      %1681 = vrot.lane.b32.xlu0 %v1674, 12
      %v1682 = vpop.permute.xlu0 %1681
      %1683 = vrot.lane.b32.xlu0 %v1676, 12
      %v1684 = vpop.permute.xlu0 %1683
      %1685 = vrot.lane.b32.xlu0 %v1678, 12
      %v1686 = vpop.permute.xlu0 %1685
      %1687 = vrot.lane.b32.xlu0 %v1680, 12
      %v1688 = vpop.permute.xlu0 %1687
      %1689 = vrot.lane.b32.xlu0 %v1679, 12
      %v1690 = vpop.permute.xlu0 %1689
      %1696 = vst.msk [vmem:[#allocation3 + $0x240] sm:$0xe0] %vm711, %v1682
      %1697 = vst.msk [vmem:[#allocation3 + $0x260] sm:$0xff] %vm489, %v1684
      %1698 = vst.msk [vmem:[#allocation3 + $0x280] sm:$0xff] %vm489, %v1686
      %1699 = vst.msk [vmem:[#allocation3 + $0x2a0] sm:$0xff] %vm489, %v1688
      %1700 = vst.msk [vmem:[#allocation3 + $0x2c0] sm:$0x3] %vm716, %v1690
      %s1701 = scalar_lea.vmem %s326, 642
      %v1702 = vld [vmem:[%s1701] ss:$2 sm:$0xff]
      %s1703 = scalar_lea.vmem %s326, 658
      %v1704 = vld [vmem:[%s1703] ss:$2 sm:$0xff]
      %s1705 = scalar_lea.vmem %s326, 674
      %v1706 = vld [vmem:[%s1705] ss:$2 sm:$0xff]
      %s1707 = scalar_lea.vmem %s326, 690
      %v1708 = vld [vmem:[%s1707] ss:$2 sm:$0x1f]
      %v1713 = vrot.slane %v1702, 3
      %v1714 = vrot.slane %v1704, 3
      %v1715 = vsel %vm657, %v1713, %v1714
      %v1716 = vrot.slane %v1706, 3
      %v1717 = vsel %vm657, %v1714, %v1716
      %v1718 = vrot.slane %v1708, 3
      %v1719 = vsel %vm657, %v1716, %v1718
      %1720 = vrot.lane.b32.xlu0 %v1713, 24
      %v1721 = vpop.permute.xlu0 %1720
      %1722 = vrot.lane.b32.xlu0 %v1715, 24
      %v1723 = vpop.permute.xlu0 %1722
      %1724 = vrot.lane.b32.xlu0 %v1717, 24
      %v1725 = vpop.permute.xlu0 %1724
      %1726 = vrot.lane.b32.xlu0 %v1719, 24
      %v1727 = vpop.permute.xlu0 %1726
      %1728 = vrot.lane.b32.xlu0 %v1718, 24
      %v1729 = vpop.permute.xlu0 %1728
      %1735 = vst.msk [vmem:[#allocation3 + $0x240] sm:$0xe0] %vm752, %v1721
      %1736 = vst.msk [vmem:[#allocation3 + $0x260] sm:$0xff] %vm519, %v1723
      %1737 = vst.msk [vmem:[#allocation3 + $0x280] sm:$0xff] %vm519, %v1725
      %1738 = vst.msk [vmem:[#allocation3 + $0x2a0] sm:$0xff] %vm519, %v1727
      %1739 = vst.msk [vmem:[#allocation3 + $0x2c0] sm:$0x3] %vm757, %v1729
      %s1740 = scalar_lea.vmem %s326, 643
      %v1741 = vld [vmem:[%s1740] ss:$2 sm:$0xff]
      %s1742 = scalar_lea.vmem %s326, 659
      %v1743 = vld [vmem:[%s1742] ss:$2 sm:$0xff]
      %s1744 = scalar_lea.vmem %s326, 675
      %v1745 = vld [vmem:[%s1744] ss:$2 sm:$0xff]
      %s1746 = scalar_lea.vmem %s326, 691
      %v1747 = vld [vmem:[%s1746] ss:$2 sm:$0x1f]
      %v1752 = vrot.slane %v1741, 3
      %v1753 = vrot.slane %v1743, 3
      %v1754 = vsel %vm657, %v1752, %v1753
      %v1755 = vrot.slane %v1745, 3
      %v1756 = vsel %vm657, %v1753, %v1755
      %v1757 = vrot.slane %v1747, 3
      %v1758 = vsel %vm657, %v1755, %v1757
      %1759 = vrot.lane.b32.xlu0 %v1752, 36
      %v1760 = vpop.permute.xlu0 %1759
      %1761 = vrot.lane.b32.xlu0 %v1754, 36
      %v1762 = vpop.permute.xlu0 %1761
      %1763 = vrot.lane.b32.xlu0 %v1756, 36
      %v1764 = vpop.permute.xlu0 %1763
      %1765 = vrot.lane.b32.xlu0 %v1758, 36
      %v1766 = vpop.permute.xlu0 %1765
      %1767 = vrot.lane.b32.xlu0 %v1757, 36
      %v1768 = vpop.permute.xlu0 %1767
      %1774 = vst.msk [vmem:[#allocation3 + $0x240] sm:$0xe0] %vm793, %v1760
      %1775 = vst.msk [vmem:[#allocation3 + $0x260] sm:$0xff] %vm549, %v1762
      %1776 = vst.msk [vmem:[#allocation3 + $0x280] sm:$0xff] %vm549, %v1764
      %1777 = vst.msk [vmem:[#allocation3 + $0x2a0] sm:$0xff] %vm549, %v1766
      %1778 = vst.msk [vmem:[#allocation3 + $0x2c0] sm:$0x3] %vm798, %v1768
      %s1779 = scalar_lea.vmem %s326, 644
      %v1780 = vld [vmem:[%s1779] ss:$2 sm:$0xff]
      %s1781 = scalar_lea.vmem %s326, 660
      %v1782 = vld [vmem:[%s1781] ss:$2 sm:$0xff]
      %s1783 = scalar_lea.vmem %s326, 676
      %v1784 = vld [vmem:[%s1783] ss:$2 sm:$0xff]
      %s1785 = scalar_lea.vmem %s326, 692
      %v1786 = vld [vmem:[%s1785] ss:$2 sm:$0x1f]
      %v1791 = vrot.slane %v1780, 3
      %v1792 = vrot.slane %v1782, 3
      %v1793 = vsel %vm657, %v1791, %v1792
      %v1794 = vrot.slane %v1784, 3
      %v1795 = vsel %vm657, %v1792, %v1794
      %v1796 = vrot.slane %v1786, 3
      %v1797 = vsel %vm657, %v1794, %v1796
      %1798 = vrot.lane.b32.xlu0 %v1791, 48
      %v1799 = vpop.permute.xlu0 %1798
      %1800 = vrot.lane.b32.xlu0 %v1793, 48
      %v1801 = vpop.permute.xlu0 %1800
      %1802 = vrot.lane.b32.xlu0 %v1795, 48
      %v1803 = vpop.permute.xlu0 %1802
      %1804 = vrot.lane.b32.xlu0 %v1797, 48
      %v1805 = vpop.permute.xlu0 %1804
      %1806 = vrot.lane.b32.xlu0 %v1796, 48
      %v1807 = vpop.permute.xlu0 %1806
      %1813 = vst.msk [vmem:[#allocation3 + $0x240] sm:$0xe0] %vm834, %v1799
      %1814 = vst.msk [vmem:[#allocation3 + $0x260] sm:$0xff] %vm579, %v1801
      %1815 = vst.msk [vmem:[#allocation3 + $0x280] sm:$0xff] %vm579, %v1803
      %1816 = vst.msk [vmem:[#allocation3 + $0x2a0] sm:$0xff] %vm579, %v1805
      %1817 = vst.msk [vmem:[#allocation3 + $0x2c0] sm:$0x3] %vm839, %v1807
      %s1818 = scalar_lea.vmem %s326, 645
      %v1819 = vld [vmem:[%s1818] ss:$2 sm:$0xff]
      %s1820 = scalar_lea.vmem %s326, 661
      %v1821 = vld [vmem:[%s1820] ss:$2 sm:$0xff]
      %s1822 = scalar_lea.vmem %s326, 677
      %v1823 = vld [vmem:[%s1822] ss:$2 sm:$0xff]
      %s1824 = scalar_lea.vmem %s326, 693
      %v1825 = vld [vmem:[%s1824] ss:$2 sm:$0x1f]
      %v1830 = vrot.slane %v1819, 3
      %v1831 = vrot.slane %v1821, 3
      %v1832 = vsel %vm657, %v1830, %v1831
      %v1833 = vrot.slane %v1823, 3
      %v1834 = vsel %vm657, %v1831, %v1833
      %v1835 = vrot.slane %v1825, 3
      %v1836 = vsel %vm657, %v1833, %v1835
      %1837 = vrot.lane.b32.xlu0 %v1830, 60
      %v1838 = vpop.permute.xlu0 %1837
      %1839 = vrot.lane.b32.xlu0 %v1832, 60
      %v1840 = vpop.permute.xlu0 %1839
      %1841 = vrot.lane.b32.xlu0 %v1834, 60
      %v1842 = vpop.permute.xlu0 %1841
      %1843 = vrot.lane.b32.xlu0 %v1836, 60
      %v1844 = vpop.permute.xlu0 %1843
      %1845 = vrot.lane.b32.xlu0 %v1835, 60
      %v1846 = vpop.permute.xlu0 %1845
      %1852 = vst.msk [vmem:[#allocation3 + $0x240] sm:$0xe0] %vm875, %v1838
      %1853 = vst.msk [vmem:[#allocation3 + $0x260] sm:$0xff] %vm609, %v1840
      %1854 = vst.msk [vmem:[#allocation3 + $0x280] sm:$0xff] %vm609, %v1842
      %1855 = vst.msk [vmem:[#allocation3 + $0x2a0] sm:$0xff] %vm609, %v1844
      %1856 = vst.msk [vmem:[#allocation3 + $0x2c0] sm:$0x3] %vm880, %v1846
      %s1857 = scalar_lea.vmem %s326, 646
      %v1858 = vld [vmem:[%s1857] ss:$2 sm:$0xff]
      %s1859 = scalar_lea.vmem %s326, 662
      %v1860 = vld [vmem:[%s1859] ss:$2 sm:$0xff]
      %s1861 = scalar_lea.vmem %s326, 678
      %v1862 = vld [vmem:[%s1861] ss:$2 sm:$0xff]
      %s1863 = scalar_lea.vmem %s326, 694
      %v1864 = vld [vmem:[%s1863] ss:$2 sm:$0x1f]
      %v1869 = vrot.slane %v1858, 3
      %v1870 = vrot.slane %v1860, 3
      %v1871 = vsel %vm657, %v1869, %v1870
      %v1872 = vrot.slane %v1862, 3
      %v1873 = vsel %vm657, %v1870, %v1872
      %v1874 = vrot.slane %v1864, 3
      %v1875 = vsel %vm657, %v1872, %v1874
      %1876 = vrot.lane.b32.xlu0 %v1869, 72
      %v1877 = vpop.permute.xlu0 %1876
      %1878 = vrot.lane.b32.xlu0 %v1871, 72
      %v1879 = vpop.permute.xlu0 %1878
      %1880 = vrot.lane.b32.xlu0 %v1873, 72
      %v1881 = vpop.permute.xlu0 %1880
      %1882 = vrot.lane.b32.xlu0 %v1875, 72
      %v1883 = vpop.permute.xlu0 %1882
      %1884 = vrot.lane.b32.xlu0 %v1874, 72
      %v1885 = vpop.permute.xlu0 %1884
      %1891 = vst.msk [vmem:[#allocation3 + $0x240] sm:$0xe0] %vm916, %v1877
      %1892 = vst.msk [vmem:[#allocation3 + $0x260] sm:$0xff] %vm639, %v1879
      %1893 = vst.msk [vmem:[#allocation3 + $0x280] sm:$0xff] %vm639, %v1881
      %1894 = vst.msk [vmem:[#allocation3 + $0x2a0] sm:$0xff] %vm639, %v1883
      %1895 = vst.msk [vmem:[#allocation3 + $0x2c0] sm:$0x3] %vm921, %v1885
      %s1896 = scalar_lea.vmem %s326, 768
      %v1897 = vld [vmem:[%s1896] ss:$2 sm:$0xff]
      %s1898 = scalar_lea.vmem %s326, 784
      %v1899 = vld [vmem:[%s1898] ss:$2 sm:$0xff]
      %s1900 = scalar_lea.vmem %s326, 800
      %v1901 = vld [vmem:[%s1900] ss:$2 sm:$0xff]
      %s1902 = scalar_lea.vmem %s326, 816
      %v1903 = vld [vmem:[%s1902] ss:$2 sm:$0x1f]
      %v1908 = vrot.slane %v1897, 6
      %v1909 = vrot.slane %v1899, 6
      %v1910 = vsel %vm935, %v1908, %v1909
      %v1911 = vrot.slane %v1901, 6
      %v1912 = vsel %vm935, %v1909, %v1911
      %v1913 = vrot.slane %v1903, 6
      %v1914 = vsel %vm935, %v1911, %v1913
      %1919 = vst.msk [vmem:[#allocation3 + $0x2c0] sm:$0xfc] %vm947, %v1908
      %1920 = vst.msk [vmem:[#allocation3 + $0x2e0] sm:$0xff] %vm459, %v1910
      %1921 = vst.msk [vmem:[#allocation3 + $0x300] sm:$0xff] %vm459, %v1912
      %1922 = vst.msk [vmem:[#allocation3 + $0x320] sm:$0x7f] %vm951, %v1914
      %s1923 = scalar_lea.vmem %s326, 769
      %v1924 = vld [vmem:[%s1923] ss:$2 sm:$0xff]
      %s1925 = scalar_lea.vmem %s326, 785
      %v1926 = vld [vmem:[%s1925] ss:$2 sm:$0xff]
      %s1927 = scalar_lea.vmem %s326, 801
      %v1928 = vld [vmem:[%s1927] ss:$2 sm:$0xff]
      %s1929 = scalar_lea.vmem %s326, 817
      %v1930 = vld [vmem:[%s1929] ss:$2 sm:$0x1f]
      %v1935 = vrot.slane %v1924, 6
      %v1936 = vrot.slane %v1926, 6
      %v1937 = vsel %vm935, %v1935, %v1936
      %v1938 = vrot.slane %v1928, 6
      %v1939 = vsel %vm935, %v1936, %v1938
      %v1940 = vrot.slane %v1930, 6
      %v1941 = vsel %vm935, %v1938, %v1940
      %1942 = vrot.lane.b32.xlu0 %v1935, 12
      %v1943 = vpop.permute.xlu0 %1942
      %1944 = vrot.lane.b32.xlu0 %v1937, 12
      %v1945 = vpop.permute.xlu0 %1944
      %1946 = vrot.lane.b32.xlu0 %v1939, 12
      %v1947 = vpop.permute.xlu0 %1946
      %1948 = vrot.lane.b32.xlu0 %v1941, 12
      %v1949 = vpop.permute.xlu0 %1948
      %1954 = vst.msk [vmem:[#allocation3 + $0x2c0] sm:$0xfc] %vm984, %v1943
      %1955 = vst.msk [vmem:[#allocation3 + $0x2e0] sm:$0xff] %vm489, %v1945
      %1956 = vst.msk [vmem:[#allocation3 + $0x300] sm:$0xff] %vm489, %v1947
      %1957 = vst.msk [vmem:[#allocation3 + $0x320] sm:$0x7f] %vm988, %v1949
      %s1958 = scalar_lea.vmem %s326, 770
      %v1959 = vld [vmem:[%s1958] ss:$2 sm:$0xff]
      %s1960 = scalar_lea.vmem %s326, 786
      %v1961 = vld [vmem:[%s1960] ss:$2 sm:$0xff]
      %s1962 = scalar_lea.vmem %s326, 802
      %v1963 = vld [vmem:[%s1962] ss:$2 sm:$0xff]
      %s1964 = scalar_lea.vmem %s326, 818
      %v1965 = vld [vmem:[%s1964] ss:$2 sm:$0x1f]
      %v1970 = vrot.slane %v1959, 6
      %v1971 = vrot.slane %v1961, 6
      %v1972 = vsel %vm935, %v1970, %v1971
      %v1973 = vrot.slane %v1963, 6
      %v1974 = vsel %vm935, %v1971, %v1973
      %v1975 = vrot.slane %v1965, 6
      %v1976 = vsel %vm935, %v1973, %v1975
      %1977 = vrot.lane.b32.xlu0 %v1970, 24
      %v1978 = vpop.permute.xlu0 %1977
      %1979 = vrot.lane.b32.xlu0 %v1972, 24
      %v1980 = vpop.permute.xlu0 %1979
      %1981 = vrot.lane.b32.xlu0 %v1974, 24
      %v1982 = vpop.permute.xlu0 %1981
      %1983 = vrot.lane.b32.xlu0 %v1976, 24
      %v1984 = vpop.permute.xlu0 %1983
      %1989 = vst.msk [vmem:[#allocation3 + $0x2c0] sm:$0xfc] %vm1021, %v1978
      %1990 = vst.msk [vmem:[#allocation3 + $0x2e0] sm:$0xff] %vm519, %v1980
      %1991 = vst.msk [vmem:[#allocation3 + $0x300] sm:$0xff] %vm519, %v1982
      %1992 = vst.msk [vmem:[#allocation3 + $0x320] sm:$0x7f] %vm1025, %v1984
      %s1993 = scalar_lea.vmem %s326, 771
      %v1994 = vld [vmem:[%s1993] ss:$2 sm:$0xff]
      %s1995 = scalar_lea.vmem %s326, 787
      %v1996 = vld [vmem:[%s1995] ss:$2 sm:$0xff]
      %s1997 = scalar_lea.vmem %s326, 803
      %v1998 = vld [vmem:[%s1997] ss:$2 sm:$0xff]
      %s1999 = scalar_lea.vmem %s326, 819
      %v2000 = vld [vmem:[%s1999] ss:$2 sm:$0x1f]
      %v2005 = vrot.slane %v1994, 6
      %v2006 = vrot.slane %v1996, 6
      %v2007 = vsel %vm935, %v2005, %v2006
      %v2008 = vrot.slane %v1998, 6
      %v2009 = vsel %vm935, %v2006, %v2008
      %v2010 = vrot.slane %v2000, 6
      %v2011 = vsel %vm935, %v2008, %v2010
      %2012 = vrot.lane.b32.xlu0 %v2005, 36
      %v2013 = vpop.permute.xlu0 %2012
      %2014 = vrot.lane.b32.xlu0 %v2007, 36
      %v2015 = vpop.permute.xlu0 %2014
      %2016 = vrot.lane.b32.xlu0 %v2009, 36
      %v2017 = vpop.permute.xlu0 %2016
      %2018 = vrot.lane.b32.xlu0 %v2011, 36
      %v2019 = vpop.permute.xlu0 %2018
      %2024 = vst.msk [vmem:[#allocation3 + $0x2c0] sm:$0xfc] %vm1058, %v2013
      %2025 = vst.msk [vmem:[#allocation3 + $0x2e0] sm:$0xff] %vm549, %v2015
      %2026 = vst.msk [vmem:[#allocation3 + $0x300] sm:$0xff] %vm549, %v2017
      %2027 = vst.msk [vmem:[#allocation3 + $0x320] sm:$0x7f] %vm1062, %v2019
      %s2028 = scalar_lea.vmem %s326, 772
      %v2029 = vld [vmem:[%s2028] ss:$2 sm:$0xff]
      %s2030 = scalar_lea.vmem %s326, 788
      %v2031 = vld [vmem:[%s2030] ss:$2 sm:$0xff]
      %s2032 = scalar_lea.vmem %s326, 804
      %v2033 = vld [vmem:[%s2032] ss:$2 sm:$0xff]
      %s2034 = scalar_lea.vmem %s326, 820
      %v2035 = vld [vmem:[%s2034] ss:$2 sm:$0x1f]
      %v2040 = vrot.slane %v2029, 6
      %v2041 = vrot.slane %v2031, 6
      %v2042 = vsel %vm935, %v2040, %v2041
      %v2043 = vrot.slane %v2033, 6
      %v2044 = vsel %vm935, %v2041, %v2043
      %v2045 = vrot.slane %v2035, 6
      %v2046 = vsel %vm935, %v2043, %v2045
      %2047 = vrot.lane.b32.xlu0 %v2040, 48
      %v2048 = vpop.permute.xlu0 %2047
      %2049 = vrot.lane.b32.xlu0 %v2042, 48
      %v2050 = vpop.permute.xlu0 %2049
      %2051 = vrot.lane.b32.xlu0 %v2044, 48
      %v2052 = vpop.permute.xlu0 %2051
      %2053 = vrot.lane.b32.xlu0 %v2046, 48
      %v2054 = vpop.permute.xlu0 %2053
      %2059 = vst.msk [vmem:[#allocation3 + $0x2c0] sm:$0xfc] %vm1095, %v2048
      %2060 = vst.msk [vmem:[#allocation3 + $0x2e0] sm:$0xff] %vm579, %v2050
      %2061 = vst.msk [vmem:[#allocation3 + $0x300] sm:$0xff] %vm579, %v2052
      %2062 = vst.msk [vmem:[#allocation3 + $0x320] sm:$0x7f] %vm1099, %v2054
      %s2063 = scalar_lea.vmem %s326, 773
      %v2064 = vld [vmem:[%s2063] ss:$2 sm:$0xff]
      %s2065 = scalar_lea.vmem %s326, 789
      %v2066 = vld [vmem:[%s2065] ss:$2 sm:$0xff]
      %s2067 = scalar_lea.vmem %s326, 805
      %v2068 = vld [vmem:[%s2067] ss:$2 sm:$0xff]
      %s2069 = scalar_lea.vmem %s326, 821
      %v2070 = vld [vmem:[%s2069] ss:$2 sm:$0x1f]
      %v2075 = vrot.slane %v2064, 6
      %v2076 = vrot.slane %v2066, 6
      %v2077 = vsel %vm935, %v2075, %v2076
      %v2078 = vrot.slane %v2068, 6
      %v2079 = vsel %vm935, %v2076, %v2078
      %v2080 = vrot.slane %v2070, 6
      %v2081 = vsel %vm935, %v2078, %v2080
      %2082 = vrot.lane.b32.xlu0 %v2075, 60
      %v2083 = vpop.permute.xlu0 %2082
      %2084 = vrot.lane.b32.xlu0 %v2077, 60
      %v2085 = vpop.permute.xlu0 %2084
      %2086 = vrot.lane.b32.xlu0 %v2079, 60
      %v2087 = vpop.permute.xlu0 %2086
      %2088 = vrot.lane.b32.xlu0 %v2081, 60
      %v2089 = vpop.permute.xlu0 %2088
      %2094 = vst.msk [vmem:[#allocation3 + $0x2c0] sm:$0xfc] %vm1132, %v2083
      %2095 = vst.msk [vmem:[#allocation3 + $0x2e0] sm:$0xff] %vm609, %v2085
      %2096 = vst.msk [vmem:[#allocation3 + $0x300] sm:$0xff] %vm609, %v2087
      %2097 = vst.msk [vmem:[#allocation3 + $0x320] sm:$0x7f] %vm1136, %v2089
      %s2098 = scalar_lea.vmem %s326, 774
      %v2099 = vld [vmem:[%s2098] ss:$2 sm:$0xff]
      %s2100 = scalar_lea.vmem %s326, 790
      %v2101 = vld [vmem:[%s2100] ss:$2 sm:$0xff]
      %s2102 = scalar_lea.vmem %s326, 806
      %v2103 = vld [vmem:[%s2102] ss:$2 sm:$0xff]
      %s2104 = scalar_lea.vmem %s326, 822
      %v2105 = vld [vmem:[%s2104] ss:$2 sm:$0x1f]
      %v2110 = vrot.slane %v2099, 6
      %v2111 = vrot.slane %v2101, 6
      %v2112 = vsel %vm935, %v2110, %v2111
      %v2113 = vrot.slane %v2103, 6
      %v2114 = vsel %vm935, %v2111, %v2113
      %v2115 = vrot.slane %v2105, 6
      %v2116 = vsel %vm935, %v2113, %v2115
      %2117 = vrot.lane.b32.xlu0 %v2110, 72
      %v2118 = vpop.permute.xlu0 %2117
      %2119 = vrot.lane.b32.xlu0 %v2112, 72
      %v2120 = vpop.permute.xlu0 %2119
      %2121 = vrot.lane.b32.xlu0 %v2114, 72
      %v2122 = vpop.permute.xlu0 %2121
      %2123 = vrot.lane.b32.xlu0 %v2116, 72
      %v2124 = vpop.permute.xlu0 %2123
      %2129 = vst.msk [vmem:[#allocation3 + $0x2c0] sm:$0xfc] %vm1169, %v2118
      %2130 = vst.msk [vmem:[#allocation3 + $0x2e0] sm:$0xff] %vm639, %v2120
      %2131 = vst.msk [vmem:[#allocation3 + $0x300] sm:$0xff] %vm639, %v2122
      %2132 = vst.msk [vmem:[#allocation3 + $0x320] sm:$0x7f] %vm1173, %v2124
      %s2133 = scalar_lea.vmem %s326, 896
      %v2134 = vld [vmem:[%s2133] ss:$2 sm:$0xff]
      %s2135 = scalar_lea.vmem %s326, 912
      %v2136 = vld [vmem:[%s2135] ss:$2 sm:$0xff]
      %s2137 = scalar_lea.vmem %s326, 928
      %v2138 = vld [vmem:[%s2137] ss:$2 sm:$0xff]
      %s2139 = scalar_lea.vmem %s326, 944
      %v2140 = vld [vmem:[%s2139] ss:$2 sm:$0x1f]
      %v2145 = vrot.slane %v2134, 1
      %v2146 = vrot.slane %v2136, 1
      %v2147 = vsel %vm1187, %v2145, %v2146
      %v2148 = vrot.slane %v2138, 1
      %v2149 = vsel %vm1187, %v2146, %v2148
      %v2150 = vrot.slane %v2140, 1
      %v2151 = vsel %vm1187, %v2148, %v2150
      %2157 = vst.msk [vmem:[#allocation3 + $0x320] sm:$0x80] %vm1200, %v2145
      %2158 = vst.msk [vmem:[#allocation3 + $0x340] sm:$0xff] %vm459, %v2147
      %2159 = vst.msk [vmem:[#allocation3 + $0x360] sm:$0xff] %vm459, %v2149
      %2160 = vst.msk [vmem:[#allocation3 + $0x380] sm:$0xff] %vm459, %v2151
      %2161 = vst.msk [vmem:[#allocation3 + $0x3a0] sm:$0xf] %vm1205, %v2150
      %s2162 = scalar_lea.vmem %s326, 897
      %v2163 = vld [vmem:[%s2162] ss:$2 sm:$0xff]
      %s2164 = scalar_lea.vmem %s326, 913
      %v2165 = vld [vmem:[%s2164] ss:$2 sm:$0xff]
      %s2166 = scalar_lea.vmem %s326, 929
      %v2167 = vld [vmem:[%s2166] ss:$2 sm:$0xff]
      %s2168 = scalar_lea.vmem %s326, 945
      %v2169 = vld [vmem:[%s2168] ss:$2 sm:$0x1f]
      %v2174 = vrot.slane %v2163, 1
      %v2175 = vrot.slane %v2165, 1
      %v2176 = vsel %vm1187, %v2174, %v2175
      %v2177 = vrot.slane %v2167, 1
      %v2178 = vsel %vm1187, %v2175, %v2177
      %v2179 = vrot.slane %v2169, 1
      %v2180 = vsel %vm1187, %v2177, %v2179
      %2181 = vrot.lane.b32.xlu0 %v2174, 12
      %v2182 = vpop.permute.xlu0 %2181
      %2183 = vrot.lane.b32.xlu0 %v2176, 12
      %v2184 = vpop.permute.xlu0 %2183
      %2185 = vrot.lane.b32.xlu0 %v2178, 12
      %v2186 = vpop.permute.xlu0 %2185
      %2187 = vrot.lane.b32.xlu0 %v2180, 12
      %v2188 = vpop.permute.xlu0 %2187
      %2189 = vrot.lane.b32.xlu0 %v2179, 12
      %v2190 = vpop.permute.xlu0 %2189
      %2196 = vst.msk [vmem:[#allocation3 + $0x320] sm:$0x80] %vm1241, %v2182
      %2197 = vst.msk [vmem:[#allocation3 + $0x340] sm:$0xff] %vm489, %v2184
      %2198 = vst.msk [vmem:[#allocation3 + $0x360] sm:$0xff] %vm489, %v2186
      %2199 = vst.msk [vmem:[#allocation3 + $0x380] sm:$0xff] %vm489, %v2188
      %2200 = vst.msk [vmem:[#allocation3 + $0x3a0] sm:$0xf] %vm1246, %v2190
      %s2201 = scalar_lea.vmem %s326, 898
      %v2202 = vld [vmem:[%s2201] ss:$2 sm:$0xff]
      %s2203 = scalar_lea.vmem %s326, 914
      %v2204 = vld [vmem:[%s2203] ss:$2 sm:$0xff]
      %s2205 = scalar_lea.vmem %s326, 930
      %v2206 = vld [vmem:[%s2205] ss:$2 sm:$0xff]
      %s2207 = scalar_lea.vmem %s326, 946
      %v2208 = vld [vmem:[%s2207] ss:$2 sm:$0x1f]
      %v2213 = vrot.slane %v2202, 1
      %v2214 = vrot.slane %v2204, 1
      %v2215 = vsel %vm1187, %v2213, %v2214
      %v2216 = vrot.slane %v2206, 1
      %v2217 = vsel %vm1187, %v2214, %v2216
      %v2218 = vrot.slane %v2208, 1
      %v2219 = vsel %vm1187, %v2216, %v2218
      %2220 = vrot.lane.b32.xlu0 %v2213, 24
      %v2221 = vpop.permute.xlu0 %2220
      %2222 = vrot.lane.b32.xlu0 %v2215, 24
      %v2223 = vpop.permute.xlu0 %2222
      %2224 = vrot.lane.b32.xlu0 %v2217, 24
      %v2225 = vpop.permute.xlu0 %2224
      %2226 = vrot.lane.b32.xlu0 %v2219, 24
      %v2227 = vpop.permute.xlu0 %2226
      %2228 = vrot.lane.b32.xlu0 %v2218, 24
      %v2229 = vpop.permute.xlu0 %2228
      %2235 = vst.msk [vmem:[#allocation3 + $0x320] sm:$0x80] %vm1282, %v2221
      %2236 = vst.msk [vmem:[#allocation3 + $0x340] sm:$0xff] %vm519, %v2223
      %2237 = vst.msk [vmem:[#allocation3 + $0x360] sm:$0xff] %vm519, %v2225
      %2238 = vst.msk [vmem:[#allocation3 + $0x380] sm:$0xff] %vm519, %v2227
      %2239 = vst.msk [vmem:[#allocation3 + $0x3a0] sm:$0xf] %vm1287, %v2229
      %s2240 = scalar_lea.vmem %s326, 899
      %v2241 = vld [vmem:[%s2240] ss:$2 sm:$0xff]
      %s2242 = scalar_lea.vmem %s326, 915
      %v2243 = vld [vmem:[%s2242] ss:$2 sm:$0xff]
      %s2244 = scalar_lea.vmem %s326, 931
      %v2245 = vld [vmem:[%s2244] ss:$2 sm:$0xff]
      %s2246 = scalar_lea.vmem %s326, 947
      %v2247 = vld [vmem:[%s2246] ss:$2 sm:$0x1f]
      %v2252 = vrot.slane %v2241, 1
      %v2253 = vrot.slane %v2243, 1
      %v2254 = vsel %vm1187, %v2252, %v2253
      %v2255 = vrot.slane %v2245, 1
      %v2256 = vsel %vm1187, %v2253, %v2255
      %v2257 = vrot.slane %v2247, 1
      %v2258 = vsel %vm1187, %v2255, %v2257
      %2259 = vrot.lane.b32.xlu0 %v2252, 36
      %v2260 = vpop.permute.xlu0 %2259
      %2261 = vrot.lane.b32.xlu0 %v2254, 36
      %v2262 = vpop.permute.xlu0 %2261
      %2263 = vrot.lane.b32.xlu0 %v2256, 36
      %v2264 = vpop.permute.xlu0 %2263
      %2265 = vrot.lane.b32.xlu0 %v2258, 36
      %v2266 = vpop.permute.xlu0 %2265
      %2267 = vrot.lane.b32.xlu0 %v2257, 36
      %v2268 = vpop.permute.xlu0 %2267
      %2274 = vst.msk [vmem:[#allocation3 + $0x320] sm:$0x80] %vm1323, %v2260
      %2275 = vst.msk [vmem:[#allocation3 + $0x340] sm:$0xff] %vm549, %v2262
      %2276 = vst.msk [vmem:[#allocation3 + $0x360] sm:$0xff] %vm549, %v2264
      %2277 = vst.msk [vmem:[#allocation3 + $0x380] sm:$0xff] %vm549, %v2266
      %2278 = vst.msk [vmem:[#allocation3 + $0x3a0] sm:$0xf] %vm1328, %v2268
      %s2279 = scalar_lea.vmem %s326, 900
      %v2280 = vld [vmem:[%s2279] ss:$2 sm:$0xff]
      %s2281 = scalar_lea.vmem %s326, 916
      %v2282 = vld [vmem:[%s2281] ss:$2 sm:$0xff]
      %s2283 = scalar_lea.vmem %s326, 932
      %v2284 = vld [vmem:[%s2283] ss:$2 sm:$0xff]
      %s2285 = scalar_lea.vmem %s326, 948
      %v2286 = vld [vmem:[%s2285] ss:$2 sm:$0x1f]
      %v2291 = vrot.slane %v2280, 1
      %v2292 = vrot.slane %v2282, 1
      %v2293 = vsel %vm1187, %v2291, %v2292
      %v2294 = vrot.slane %v2284, 1
      %v2295 = vsel %vm1187, %v2292, %v2294
      %v2296 = vrot.slane %v2286, 1
      %v2297 = vsel %vm1187, %v2294, %v2296
      %2298 = vrot.lane.b32.xlu0 %v2291, 48
      %v2299 = vpop.permute.xlu0 %2298
      %2300 = vrot.lane.b32.xlu0 %v2293, 48
      %v2301 = vpop.permute.xlu0 %2300
      %2302 = vrot.lane.b32.xlu0 %v2295, 48
      %v2303 = vpop.permute.xlu0 %2302
      %2304 = vrot.lane.b32.xlu0 %v2297, 48
      %v2305 = vpop.permute.xlu0 %2304
      %2306 = vrot.lane.b32.xlu0 %v2296, 48
      %v2307 = vpop.permute.xlu0 %2306
      %2313 = vst.msk [vmem:[#allocation3 + $0x320] sm:$0x80] %vm1364, %v2299
      %2314 = vst.msk [vmem:[#allocation3 + $0x340] sm:$0xff] %vm579, %v2301
      %2315 = vst.msk [vmem:[#allocation3 + $0x360] sm:$0xff] %vm579, %v2303
      %2316 = vst.msk [vmem:[#allocation3 + $0x380] sm:$0xff] %vm579, %v2305
      %2317 = vst.msk [vmem:[#allocation3 + $0x3a0] sm:$0xf] %vm1369, %v2307
      %s2318 = scalar_lea.vmem %s326, 901
      %v2319 = vld [vmem:[%s2318] ss:$2 sm:$0xff]
      %s2320 = scalar_lea.vmem %s326, 917
      %v2321 = vld [vmem:[%s2320] ss:$2 sm:$0xff]
      %s2322 = scalar_lea.vmem %s326, 933
      %v2323 = vld [vmem:[%s2322] ss:$2 sm:$0xff]
      %s2324 = scalar_lea.vmem %s326, 949
      %v2325 = vld [vmem:[%s2324] ss:$2 sm:$0x1f]
      %v2330 = vrot.slane %v2319, 1
      %v2331 = vrot.slane %v2321, 1
      %v2332 = vsel %vm1187, %v2330, %v2331
      %v2333 = vrot.slane %v2323, 1
      %v2334 = vsel %vm1187, %v2331, %v2333
      %v2335 = vrot.slane %v2325, 1
      %v2336 = vsel %vm1187, %v2333, %v2335
      %2337 = vrot.lane.b32.xlu0 %v2330, 60
      %v2338 = vpop.permute.xlu0 %2337
      %2339 = vrot.lane.b32.xlu0 %v2332, 60
      %v2340 = vpop.permute.xlu0 %2339
      %2341 = vrot.lane.b32.xlu0 %v2334, 60
      %v2342 = vpop.permute.xlu0 %2341
      %2343 = vrot.lane.b32.xlu0 %v2336, 60
      %v2344 = vpop.permute.xlu0 %2343
      %2345 = vrot.lane.b32.xlu0 %v2335, 60
      %v2346 = vpop.permute.xlu0 %2345
      %2352 = vst.msk [vmem:[#allocation3 + $0x320] sm:$0x80] %vm1405, %v2338
      %2353 = vst.msk [vmem:[#allocation3 + $0x340] sm:$0xff] %vm609, %v2340
      %2354 = vst.msk [vmem:[#allocation3 + $0x360] sm:$0xff] %vm609, %v2342
      %2355 = vst.msk [vmem:[#allocation3 + $0x380] sm:$0xff] %vm609, %v2344
      %2356 = vst.msk [vmem:[#allocation3 + $0x3a0] sm:$0xf] %vm1410, %v2346
      %s2357 = scalar_lea.vmem %s326, 902
      %v2358 = vld [vmem:[%s2357] ss:$2 sm:$0xff]
      %s2359 = scalar_lea.vmem %s326, 918
      %v2360 = vld [vmem:[%s2359] ss:$2 sm:$0xff]
      %s2361 = scalar_lea.vmem %s326, 934
      %v2362 = vld [vmem:[%s2361] ss:$2 sm:$0xff]
      %s2363 = scalar_lea.vmem %s326, 950
      %v2364 = vld [vmem:[%s2363] ss:$2 sm:$0x1f]
      %v2369 = vrot.slane %v2358, 1
      %v2370 = vrot.slane %v2360, 1
      %v2371 = vsel %vm1187, %v2369, %v2370
      %v2372 = vrot.slane %v2362, 1
      %v2373 = vsel %vm1187, %v2370, %v2372
      %v2374 = vrot.slane %v2364, 1
      %v2375 = vsel %vm1187, %v2372, %v2374
      %2376 = vrot.lane.b32.xlu0 %v2369, 72
      %v2377 = vpop.permute.xlu0 %2376
      %2378 = vrot.lane.b32.xlu0 %v2371, 72
      %v2379 = vpop.permute.xlu0 %2378
      %2380 = vrot.lane.b32.xlu0 %v2373, 72
      %v2381 = vpop.permute.xlu0 %2380
      %2382 = vrot.lane.b32.xlu0 %v2375, 72
      %v2383 = vpop.permute.xlu0 %2382
      %2384 = vrot.lane.b32.xlu0 %v2374, 72
      %v2385 = vpop.permute.xlu0 %2384
      %2391 = vst.msk [vmem:[#allocation3 + $0x320] sm:$0x80] %vm1446, %v2377
      %2392 = vst.msk [vmem:[#allocation3 + $0x340] sm:$0xff] %vm639, %v2379
      %2393 = vst.msk [vmem:[#allocation3 + $0x360] sm:$0xff] %vm639, %v2381
      %2394 = vst.msk [vmem:[#allocation3 + $0x380] sm:$0xff] %vm639, %v2383
      %2395 = vst.msk [vmem:[#allocation3 + $0x3a0] sm:$0xf] %vm1451, %v2385
      %v2396 = vld [vmem:[#allocation3] sm:$0xff]
      %v2397 = vld [vmem:[#allocation3 + $0x20] sm:$0xff]
      %v2398 = vld [vmem:[#allocation3 + $0x40] sm:$0xff]
      %v2399 = vld [vmem:[#allocation3 + $0x60] sm:$0xff]
      %v2400 = vld [vmem:[#allocation3 + $0x80] sm:$0xff]
      %v2401 = vld [vmem:[#allocation3 + $0xa0] sm:$0xff]
      %v2402 = vld [vmem:[#allocation3 + $0xc0] sm:$0xff]
      %v2403 = vld [vmem:[#allocation3 + $0xe0] sm:$0xff]
      %v2404 = vld [vmem:[#allocation3 + $0x100] sm:$0xff]
      %v2405 = vld [vmem:[#allocation3 + $0x120] sm:$0xff]
      %v2406 = vld [vmem:[#allocation3 + $0x140] sm:$0xff]
      %v2407 = vld [vmem:[#allocation3 + $0x160] sm:$0xff]
      %v2408 = vld [vmem:[#allocation3 + $0x180] sm:$0xff]
      %v2409 = vld [vmem:[#allocation3 + $0x1a0] sm:$0xff]
      %v2410 = vld [vmem:[#allocation3 + $0x1c0] sm:$0xff]
      %v2411 = vld [vmem:[#allocation3 + $0x1e0] sm:$0xff]
      %v2412 = vld [vmem:[#allocation3 + $0x200] sm:$0xff]
      %v2413 = vld [vmem:[#allocation3 + $0x220] sm:$0xff]
      %v2414 = vld [vmem:[#allocation3 + $0x240] sm:$0xff]
      %v2415 = vld [vmem:[#allocation3 + $0x260] sm:$0xff]
      %v2416 = vld [vmem:[#allocation3 + $0x280] sm:$0xff]
      %v2417 = vld [vmem:[#allocation3 + $0x2a0] sm:$0xff]
      %v2418 = vld [vmem:[#allocation3 + $0x2c0] sm:$0xff]
      %v2419 = vld [vmem:[#allocation3 + $0x2e0] sm:$0xff]
      %v2420 = vld [vmem:[#allocation3 + $0x300] sm:$0xff]
      %v2421 = vld [vmem:[#allocation3 + $0x320] sm:$0xff]
      %v2422 = vld [vmem:[#allocation3 + $0x340] sm:$0xff]
      %v2423 = vld [vmem:[#allocation3 + $0x360] sm:$0xff]
      %v2424 = vld [vmem:[#allocation3 + $0x380] sm:$0xff]
      %v2425 = vld [vmem:[#allocation3 + $0x3a0] sm:$0xff]
      %v2426 = vpack.c.bf16 %v2397, %v2396
      %v2427 = vpack.c.bf16 %v2399, %v2398
      %v2428 = vpack.c.bf16 %v2401, %v2400
      %v2429 = vpack.c.bf16 %v2403, %v2402
      %v2430 = vpack.c.bf16 %v2405, %v2404
      %v2431 = vpack.c.bf16 %v2407, %v2406
      %v2432 = vpack.c.bf16 %v2409, %v2408
      %v2433 = vpack.c.bf16 %v2411, %v2410
      %v2434 = vpack.c.bf16 %v2413, %v2412
      %v2435 = vpack.c.bf16 %v2415, %v2414
      %v2436 = vpack.c.bf16 %v2417, %v2416
      %v2437 = vpack.c.bf16 %v2419, %v2418
      %v2438 = vpack.c.bf16 %v2421, %v2420
      %v2439 = vpack.c.bf16 %v2423, %v2422
      %v2440 = vpack.c.bf16 %v2425, %v2424
      %v2441 = vld [vmem:[%s1] sm:$0xf]
      %v2442 = vld [vmem:[%s1 + $0x4] sm:$0xf]
      %v2443 = vld [vmem:[%s1 + $0x8] sm:$0xf]
      %v2444 = vld [vmem:[%s1 + $0xc] sm:$0xf]
      %v2445 = vld [vmem:[%s1 + $0x10] sm:$0xf]
      %v2446 = vld [vmem:[%s1 + $0x14] sm:$0xf]
      %v2447 = vld [vmem:[%s1 + $0x18] sm:$0xf]
      %v2448 = vld [vmem:[%s1 + $0x1c] sm:$0xf]
      %v2449 = vld [vmem:[%s1 + $0x20] sm:$0xf]
      %v2450 = vld [vmem:[%s1 + $0x24] sm:$0xf]
      %v2451 = vld [vmem:[%s1 + $0x28] sm:$0xf]
      %v2452 = vld [vmem:[%s1 + $0x2c] sm:$0xf]
      %v2453 = vld [vmem:[%s1 + $0x30] sm:$0xf]
      %v2454 = vld [vmem:[%s1 + $0x34] sm:$0xf]
      %v2455 = vld [vmem:[%s1 + $0x38] sm:$0xf]
      %v2456 = vld [vmem:[%s1 + $0x3c] sm:$0xf]
      %v2457 = vld [vmem:[%s6] sm:$0x1]
      %v2458 = vlaneseq
      %v2459 = vshrl.u32 %v2458, 7
      %v2460 = vsub.s32 0, %v2459
      %v2461 = vrot.slane %v2457, %v2460
      %v2478 = vunpack.c.l.b16 %v2441
      %v2479 = vunpack.c.l.b16 %v2442
      %v2480 = vunpack.c.l.b16 %v2443
      %v2481 = vunpack.c.l.b16 %v2444
      %v2482 = vunpack.c.l.b16 %v2445
      %v2483 = vunpack.c.l.b16 %v2446
      %v2484 = vunpack.c.l.b16 %v2447
      %v2485 = vunpack.c.l.b16 %v2448
      %v2486 = vunpack.c.l.b16 %v2449
      %v2487 = vunpack.c.l.b16 %v2450
      %v2488 = vunpack.c.l.b16 %v2451
      %v2489 = vunpack.c.l.b16 %v2452
      %v2490 = vunpack.c.l.b16 %v2453
      %v2491 = vunpack.c.l.b16 %v2454
      %v2492 = vunpack.c.l.b16 %v2455
      %v2493 = vunpack.c.l.b16 %v2456
      %v2494 = vpack.c.b16 %v2479, %v2478
      %v2495 = vpack.c.b16 %v2481, %v2480
      %v2496 = vpack.c.b16 %v2483, %v2482
      %v2497 = vpack.c.b16 %v2485, %v2484
      %v2498 = vpack.c.b16 %v2487, %v2486
      %v2499 = vpack.c.b16 %v2489, %v2488
      %v2500 = vpack.c.b16 %v2491, %v2490
      %v2501 = vpack.c.b16 %v2493, %v2492
      %2510 = vmatprep.subr.bf16.mxu0 0
      %2511 = vmatpush1.bf16.msra.mxu0 %v2501
      %2512 = vmatprep.subr.bf16.mxu0 0
      %2513 = vmatpush1.bf16.msra.mxu0 %v2500
      %2514 = vmatprep.subr.bf16.mxu0 0
      %2515 = vmatpush1.bf16.msra.mxu0 %v2499
      %2516 = vmatprep.subr.bf16.mxu0 0
      %2517 = vmatpush1.bf16.msra.mxu0 %v2498
      %2518 = vmatprep.subr.bf16.mxu0 0
      %2519 = vmatpush1.bf16.msra.mxu0 %v2497
      %2520 = vmatprep.subr.bf16.mxu0 0
      %2521 = vmatpush1.bf16.msra.mxu0 %v2496
      %2522 = vmatprep.subr.bf16.mxu0 0
      %2523 = vmatpush1.bf16.msra.mxu0 %v2495
      %2524 = vmatprep.subr.bf16.mxu0 0
      %2525 = vmatpush1.bf16.msra.mxu0 %v2494
      %2526 = vmatprep.subr.bf16.mxu0 0
      %2527 = vmatpush2.bf16.msra.mxu0 0
      %2528 = vmatprep.subr.bf16.mxu0 0
      %2529 = vmatpush2.bf16.msra.mxu0 0
      %2530 = vmatprep.subr.bf16.mxu0 0
      %2531 = vmatpush2.bf16.msra.mxu0 0
      %2532 = vmatprep.subr.bf16.mxu0 0
      %2533 = vmatpush2.bf16.msra.mxu0 0
      %2534 = vmatprep.subr.bf16.mxu0 0
      %2535 = vmatpush2.bf16.msra.mxu0 0
      %2536 = vmatprep.subr.bf16.mxu0 0
      %2537 = vmatpush2.bf16.msra.mxu0 0
      %2538 = vmatprep.subr.bf16.mxu0 0
      %2539 = vmatpush2.bf16.msra.mxu0 0
      %2540 = vmatprep.subr.bf16.mxu0 0
      %2541 = vmatpush2.bf16.msra.mxu0 0
      %2542 = vmatprep.mubr.bf16.mxu0 0
      %2543 = vmatmul.mubr.bf16.gmra.mxu0 %v2426
      %v2544 = vpop.f32.mrf.mxu0
      %v2545 = vadd.f32 %v2461, %v2544
      %v2546 = vpop.f32.mrf.mxu0
      %v2547 = vpop.f32.mrf.mxu0
      %v2548 = vadd.f32 %v2461, %v2547
      %v2549 = vpop.f32.mrf.mxu0
      %2550 = vmatprep.mubr.bf16.mxu0 0
      %2551 = vmatmul.mubr.bf16.gmra.mxu0 %v2427
      %v2552 = vpop.f32.mrf.mxu0
      %v2553 = vadd.f32 %v2461, %v2552
      %v2554 = vpop.f32.mrf.mxu0
      %v2555 = vpop.f32.mrf.mxu0
      %v2556 = vadd.f32 %v2461, %v2555
      %v2557 = vpop.f32.mrf.mxu0
      %2558 = vmatprep.mubr.bf16.mxu0 0
      %2559 = vmatmul.mubr.bf16.gmra.mxu0 %v2428
      %v2560 = vpop.f32.mrf.mxu0
      %v2561 = vadd.f32 %v2461, %v2560
      %v2562 = vpop.f32.mrf.mxu0
      %v2563 = vpop.f32.mrf.mxu0
      %v2564 = vadd.f32 %v2461, %v2563
      %v2565 = vpop.f32.mrf.mxu0
      %2566 = vmatprep.mubr.bf16.mxu0 0
      %2567 = vmatmul.mubr.bf16.gmra.mxu0 %v2429
      %v2568 = vpop.f32.mrf.mxu0
      %v2569 = vadd.f32 %v2461, %v2568
      %v2570 = vpop.f32.mrf.mxu0
      %v2571 = vpop.f32.mrf.mxu0
      %v2572 = vadd.f32 %v2461, %v2571
      %v2573 = vpop.f32.mrf.mxu0
      %2574 = vmatprep.mubr.bf16.mxu0 0
      %2575 = vmatmul.mubr.bf16.gmra.mxu0 %v2430
      %v2576 = vpop.f32.mrf.mxu0
      %v2577 = vadd.f32 %v2461, %v2576
      %v2578 = vpop.f32.mrf.mxu0
      %v2579 = vpop.f32.mrf.mxu0
      %v2580 = vadd.f32 %v2461, %v2579
      %v2581 = vpop.f32.mrf.mxu0
      %2582 = vmatprep.mubr.bf16.mxu0 0
      %2583 = vmatmul.mubr.bf16.gmra.mxu0 %v2431
      %v2584 = vpop.f32.mrf.mxu0
      %v2585 = vadd.f32 %v2461, %v2584
      %v2586 = vpop.f32.mrf.mxu0
      %v2587 = vpop.f32.mrf.mxu0
      %v2588 = vadd.f32 %v2461, %v2587
      %v2589 = vpop.f32.mrf.mxu0
      %2590 = vmatprep.mubr.bf16.mxu0 0
      %2591 = vmatmul.mubr.bf16.gmra.mxu0 %v2432
      %v2592 = vpop.f32.mrf.mxu0
      %v2593 = vadd.f32 %v2461, %v2592
      %v2594 = vpop.f32.mrf.mxu0
      %v2595 = vpop.f32.mrf.mxu0
      %v2596 = vadd.f32 %v2461, %v2595
      %v2597 = vpop.f32.mrf.mxu0
      %2598 = vmatprep.mubr.bf16.mxu0 0
      %2599 = vmatmul.mubr.bf16.gmra.mxu0 %v2433
      %v2600 = vpop.f32.mrf.mxu0
      %v2601 = vadd.f32 %v2461, %v2600
      %v2602 = vpop.f32.mrf.mxu0
      %v2603 = vpop.f32.mrf.mxu0
      %v2604 = vadd.f32 %v2461, %v2603
      %v2605 = vpop.f32.mrf.mxu0
      %2606 = vmatprep.mubr.bf16.mxu0 0
      %2607 = vmatmul.mubr.bf16.gmra.mxu0 %v2434
      %v2608 = vpop.f32.mrf.mxu0
      %v2609 = vadd.f32 %v2461, %v2608
      %v2610 = vpop.f32.mrf.mxu0
      %v2611 = vpop.f32.mrf.mxu0
      %v2612 = vadd.f32 %v2461, %v2611
      %v2613 = vpop.f32.mrf.mxu0
      %2614 = vmatprep.mubr.bf16.mxu0 0
      %2615 = vmatmul.mubr.bf16.gmra.mxu0 %v2435
      %v2616 = vpop.f32.mrf.mxu0
      %v2617 = vadd.f32 %v2461, %v2616
      %v2618 = vpop.f32.mrf.mxu0
      %v2619 = vpop.f32.mrf.mxu0
      %v2620 = vadd.f32 %v2461, %v2619
      %v2621 = vpop.f32.mrf.mxu0
      %2622 = vmatprep.mubr.bf16.mxu0 0
      %2623 = vmatmul.mubr.bf16.gmra.mxu0 %v2436
      %v2624 = vpop.f32.mrf.mxu0
      %v2625 = vadd.f32 %v2461, %v2624
      %v2626 = vpop.f32.mrf.mxu0
      %v2627 = vpop.f32.mrf.mxu0
      %v2628 = vadd.f32 %v2461, %v2627
      %v2629 = vpop.f32.mrf.mxu0
      %2630 = vmatprep.mubr.bf16.mxu0 0
      %2631 = vmatmul.mubr.bf16.gmra.mxu0 %v2437
      %v2632 = vpop.f32.mrf.mxu0
      %v2633 = vadd.f32 %v2461, %v2632
      %v2634 = vpop.f32.mrf.mxu0
      %v2635 = vpop.f32.mrf.mxu0
      %v2636 = vadd.f32 %v2461, %v2635
      %v2637 = vpop.f32.mrf.mxu0
      %2638 = vmatprep.mubr.bf16.mxu0 0
      %2639 = vmatmul.mubr.bf16.gmra.mxu0 %v2438
      %v2640 = vpop.f32.mrf.mxu0
      %v2641 = vadd.f32 %v2461, %v2640
      %v2642 = vpop.f32.mrf.mxu0
      %v2643 = vpop.f32.mrf.mxu0
      %v2644 = vadd.f32 %v2461, %v2643
      %v2645 = vpop.f32.mrf.mxu0
      %2646 = vmatprep.mubr.bf16.mxu0 0
      %2647 = vmatmul.mubr.bf16.gmra.mxu0 %v2439
      %v2648 = vpop.f32.mrf.mxu0
      %v2649 = vadd.f32 %v2461, %v2648
      %v2650 = vpop.f32.mrf.mxu0
      %v2651 = vpop.f32.mrf.mxu0
      %v2652 = vadd.f32 %v2461, %v2651
      %v2653 = vpop.f32.mrf.mxu0
      %2654 = vmatprep.mubr.bf16.mxu0 0
      %2655 = vmatmul.mubr.bf16.gmra.mxu0 %v2440
      %v2656 = vpop.f32.mrf.mxu0
      %v2657 = vadd.f32 %v2461, %v2656
      %v2658 = vpop.f32.mrf.mxu0
      %v2659 = vpop.f32.mrf.mxu0
      %v2660 = vadd.f32 %v2461, %v2659
      %v2661 = vpop.f32.mrf.mxu0
      %2662 = vdwg.mxu0
      %v2663 = vmax.f32 %v2545, 0.0
      %v2664 = vmax.f32 %v2548, 0.0
      %v2665 = vmax.f32 %v2553, 0.0
      %v2666 = vmax.f32 %v2556, 0.0
      %v2667 = vmax.f32 %v2561, 0.0
      %v2668 = vmax.f32 %v2564, 0.0
      %v2669 = vmax.f32 %v2569, 0.0
      %v2670 = vmax.f32 %v2572, 0.0
      %v2671 = vmax.f32 %v2577, 0.0
      %v2672 = vmax.f32 %v2580, 0.0
      %v2673 = vmax.f32 %v2585, 0.0
      %v2674 = vmax.f32 %v2588, 0.0
      %v2675 = vmax.f32 %v2593, 0.0
      %v2676 = vmax.f32 %v2596, 0.0
      %v2677 = vmax.f32 %v2601, 0.0
      %v2678 = vmax.f32 %v2604, 0.0
      %v2679 = vmax.f32 %v2609, 0.0
      %v2680 = vmax.f32 %v2612, 0.0
      %v2681 = vmax.f32 %v2617, 0.0
      %v2682 = vmax.f32 %v2620, 0.0
      %v2683 = vmax.f32 %v2625, 0.0
      %v2684 = vmax.f32 %v2628, 0.0
      %v2685 = vmax.f32 %v2633, 0.0
      %v2686 = vmax.f32 %v2636, 0.0
      %v2687 = vmax.f32 %v2641, 0.0
      %v2688 = vmax.f32 %v2644, 0.0
      %v2689 = vmax.f32 %v2649, 0.0
      %v2690 = vmax.f32 %v2652, 0.0
      %v2691 = vmax.f32 %v2657, 0.0
      %v2692 = vmax.f32 %v2660, 0.0
      %2693 = vst [vmem:[#allocation2] sm:$0xff] %v2663
      %2694 = vst [vmem:[#allocation2 + $0x8] sm:$0xff] %v2664
      %2695 = vst [vmem:[#allocation2 + $0x10] sm:$0xff] %v2665
      %2696 = vst [vmem:[#allocation2 + $0x18] sm:$0xff] %v2666
      %2697 = vst [vmem:[#allocation2 + $0x20] sm:$0xff] %v2667
      %2698 = vst [vmem:[#allocation2 + $0x28] sm:$0xff] %v2668
      %2699 = vst [vmem:[#allocation2 + $0x30] sm:$0xff] %v2669
      %2700 = vst [vmem:[#allocation2 + $0x38] sm:$0xff] %v2670
      %2701 = vst [vmem:[#allocation2 + $0x40] sm:$0xff] %v2671
      %2702 = vst [vmem:[#allocation2 + $0x48] sm:$0xff] %v2672
      %2703 = vst [vmem:[#allocation2 + $0x50] sm:$0xff] %v2673
      %2704 = vst [vmem:[#allocation2 + $0x58] sm:$0xff] %v2674
      %2705 = vst [vmem:[#allocation2 + $0x60] sm:$0xff] %v2675
      %2706 = vst [vmem:[#allocation2 + $0x68] sm:$0xff] %v2676
      %2707 = vst [vmem:[#allocation2 + $0x70] sm:$0xff] %v2677
      %2708 = vst [vmem:[#allocation2 + $0x78] sm:$0xff] %v2678
      %2709 = vst [vmem:[#allocation2 + $0x80] sm:$0xff] %v2679
      %2710 = vst [vmem:[#allocation2 + $0x88] sm:$0xff] %v2680
      %2711 = vst [vmem:[#allocation2 + $0x90] sm:$0xff] %v2681
      %2712 = vst [vmem:[#allocation2 + $0x98] sm:$0xff] %v2682
      %2713 = vst [vmem:[#allocation2 + $0xa0] sm:$0xff] %v2683
      %2714 = vst [vmem:[#allocation2 + $0xa8] sm:$0xff] %v2684
      %2715 = vst [vmem:[#allocation2 + $0xb0] sm:$0xff] %v2685
      %2716 = vst [vmem:[#allocation2 + $0xb8] sm:$0xff] %v2686
      %2717 = vst [vmem:[#allocation2 + $0xc0] sm:$0xff] %v2687
      %2718 = vst [vmem:[#allocation2 + $0xc8] sm:$0xff] %v2688
      %2719 = vst [vmem:[#allocation2 + $0xd0] sm:$0xff] %v2689
      %2720 = vst [vmem:[#allocation2 + $0xd8] sm:$0xff] %v2690
      %2721 = vst [vmem:[#allocation2 + $0xe0] sm:$0xff] %v2691
      %2722 = vst [vmem:[#allocation2 + $0xe8] sm:$0xff] %v2692
      %v2723 = vld [vmem:[#allocation2] sm:$0xff]
      %v2724 = vld [vmem:[#allocation2 + $0x8] sm:$0xff]
      %v2725 = vld [vmem:[#allocation2 + $0x10] sm:$0xff]
      %v2726 = vld [vmem:[#allocation2 + $0x18] sm:$0x7]
      %vm2727 = vcmask 261120
      %2728 = vst.msk [vmem:[#allocation3] sm:$0xff] %vm2727, %v2723
      %2729 = vst.msk [vmem:[#allocation3 + $0x20] sm:$0xff] %vm2727, %v2724
      %2730 = vst.msk [vmem:[#allocation3 + $0x40] sm:$0xff] %vm2727, %v2725
      %vm2731 = vcmask 256000
      %2732 = vst.msk [vmem:[#allocation3 + $0x60] sm:$0x7] %vm2731, %v2726
      %v2733 = vld [vmem:[#allocation2 + $0x1] sm:$0xff]
      %v2734 = vld [vmem:[#allocation2 + $0x9] sm:$0xff]
      %v2735 = vld [vmem:[#allocation2 + $0x11] sm:$0xff]
      %v2736 = vld [vmem:[#allocation2 + $0x19] sm:$0x7]
      %2741 = vrot.lane.b32.xlu0 %v2733, 32
      %v2742 = vpop.permute.xlu0 %2741
      %2743 = vrot.lane.b32.xlu0 %v2734, 32
      %v2744 = vpop.permute.xlu0 %2743
      %2745 = vrot.lane.b32.xlu0 %v2735, 32
      %v2746 = vpop.permute.xlu0 %2745
      %2747 = vrot.lane.b32.xlu0 %v2736, 32
      %v2748 = vpop.permute.xlu0 %2747
      %vm2753 = vcmask 523520
      %2754 = vst.msk [vmem:[#allocation3] sm:$0xff] %vm2753, %v2742
      %2755 = vst.msk [vmem:[#allocation3 + $0x20] sm:$0xff] %vm2753, %v2744
      %2756 = vst.msk [vmem:[#allocation3 + $0x40] sm:$0xff] %vm2753, %v2746
      %vm2757 = vcmask 518400
      %2758 = vst.msk [vmem:[#allocation3 + $0x60] sm:$0x7] %vm2757, %v2748
      %v2759 = vld [vmem:[#allocation2 + $0x2] sm:$0xff]
      %v2760 = vld [vmem:[#allocation2 + $0xa] sm:$0xff]
      %v2761 = vld [vmem:[#allocation2 + $0x12] sm:$0xff]
      %v2762 = vld [vmem:[#allocation2 + $0x1a] sm:$0x7]
      %2767 = vrot.lane.b32.xlu0 %v2759, 64
      %v2768 = vpop.permute.xlu0 %2767
      %2769 = vrot.lane.b32.xlu0 %v2760, 64
      %v2770 = vpop.permute.xlu0 %2769
      %2771 = vrot.lane.b32.xlu0 %v2761, 64
      %v2772 = vpop.permute.xlu0 %2771
      %2773 = vrot.lane.b32.xlu0 %v2762, 64
      %v2774 = vpop.permute.xlu0 %2773
      %vm2779 = vcmask 785920
      %2780 = vst.msk [vmem:[#allocation3] sm:$0xff] %vm2779, %v2768
      %2781 = vst.msk [vmem:[#allocation3 + $0x20] sm:$0xff] %vm2779, %v2770
      %2782 = vst.msk [vmem:[#allocation3 + $0x40] sm:$0xff] %vm2779, %v2772
      %vm2783 = vcmask 780800
      %2784 = vst.msk [vmem:[#allocation3 + $0x60] sm:$0x7] %vm2783, %v2774
      %v2785 = vld [vmem:[#allocation2 + $0x1d] sm:$0xff]
      %v2786 = vld [vmem:[#allocation2 + $0x25] sm:$0xff]
      %v2787 = vld [vmem:[#allocation2 + $0x2d] sm:$0xff]
      %v2788 = vld [vmem:[#allocation2 + $0x35] sm:$0x7]
      %vm2793 = vcmask 1042432
      %v2794 = vrot.slane %v2785, 5
      %v2795 = vrot.slane %v2786, 5
      %v2796 = vsel %vm2793, %v2794, %v2795
      %v2797 = vrot.slane %v2787, 5
      %v2798 = vsel %vm2793, %v2795, %v2797
      %v2799 = vrot.slane %v2788, 5
      %v2800 = vsel %vm2793, %v2797, %v2799
      %vm2805 = vcmask 261123
      %2806 = vst.msk [vmem:[#allocation3 + $0x60] sm:$0xf8] %vm2805, %v2794
      %2807 = vst.msk [vmem:[#allocation3 + $0x80] sm:$0xff] %vm2727, %v2796
      %2808 = vst.msk [vmem:[#allocation3 + $0xa0] sm:$0xff] %vm2727, %v2798
      %vm2809 = vcmask 259072
      %2810 = vst.msk [vmem:[#allocation3 + $0xc0] sm:$0x3f] %vm2809, %v2800
      %v2811 = vld [vmem:[#allocation2 + $0x1e] sm:$0xff]
      %v2812 = vld [vmem:[#allocation2 + $0x26] sm:$0xff]
      %v2813 = vld [vmem:[#allocation2 + $0x2e] sm:$0xff]
      %v2814 = vld [vmem:[#allocation2 + $0x36] sm:$0x7]
      %v2819 = vrot.slane %v2811, 5
      %v2820 = vrot.slane %v2812, 5
      %v2821 = vsel %vm2793, %v2819, %v2820
      %v2822 = vrot.slane %v2813, 5
      %v2823 = vsel %vm2793, %v2820, %v2822
      %v2824 = vrot.slane %v2814, 5
      %v2825 = vsel %vm2793, %v2822, %v2824
      %2826 = vrot.lane.b32.xlu0 %v2819, 32
      %v2827 = vpop.permute.xlu0 %2826
      %2828 = vrot.lane.b32.xlu0 %v2821, 32
      %v2829 = vpop.permute.xlu0 %2828
      %2830 = vrot.lane.b32.xlu0 %v2823, 32
      %v2831 = vpop.permute.xlu0 %2830
      %2832 = vrot.lane.b32.xlu0 %v2825, 32
      %v2833 = vpop.permute.xlu0 %2832
      %vm2838 = vcmask 523523
      %2839 = vst.msk [vmem:[#allocation3 + $0x60] sm:$0xf8] %vm2838, %v2827
      %2840 = vst.msk [vmem:[#allocation3 + $0x80] sm:$0xff] %vm2753, %v2829
      %2841 = vst.msk [vmem:[#allocation3 + $0xa0] sm:$0xff] %vm2753, %v2831
      %vm2842 = vcmask 521472
      %2843 = vst.msk [vmem:[#allocation3 + $0xc0] sm:$0x3f] %vm2842, %v2833
      %v2844 = vld [vmem:[#allocation2 + $0x1f] sm:$0xff]
      %v2845 = vld [vmem:[#allocation2 + $0x27] sm:$0xff]
      %v2846 = vld [vmem:[#allocation2 + $0x2f] sm:$0xff]
      %v2847 = vld [vmem:[#allocation2 + $0x37] sm:$0x7]
      %v2852 = vrot.slane %v2844, 5
      %v2853 = vrot.slane %v2845, 5
      %v2854 = vsel %vm2793, %v2852, %v2853
      %v2855 = vrot.slane %v2846, 5
      %v2856 = vsel %vm2793, %v2853, %v2855
      %v2857 = vrot.slane %v2847, 5
      %v2858 = vsel %vm2793, %v2855, %v2857
      %2859 = vrot.lane.b32.xlu0 %v2852, 64
      %v2860 = vpop.permute.xlu0 %2859
      %2861 = vrot.lane.b32.xlu0 %v2854, 64
      %v2862 = vpop.permute.xlu0 %2861
      %2863 = vrot.lane.b32.xlu0 %v2856, 64
      %v2864 = vpop.permute.xlu0 %2863
      %2865 = vrot.lane.b32.xlu0 %v2858, 64
      %v2866 = vpop.permute.xlu0 %2865
      %vm2871 = vcmask 785923
      %2872 = vst.msk [vmem:[#allocation3 + $0x60] sm:$0xf8] %vm2871, %v2860
      %2873 = vst.msk [vmem:[#allocation3 + $0x80] sm:$0xff] %vm2779, %v2862
      %2874 = vst.msk [vmem:[#allocation3 + $0xa0] sm:$0xff] %vm2779, %v2864
      %vm2875 = vcmask 783872
      %2876 = vst.msk [vmem:[#allocation3 + $0xc0] sm:$0x3f] %vm2875, %v2866
      %v2877 = vld [vmem:[#allocation2 + $0x3a] sm:$0xff]
      %v2878 = vld [vmem:[#allocation2 + $0x42] sm:$0xff]
      %v2879 = vld [vmem:[#allocation2 + $0x4a] sm:$0xff]
      %v2880 = vld [vmem:[#allocation2 + $0x52] sm:$0x7]
      %vm2885 = vcmask 1045504
      %v2886 = vrot.slane %v2877, 2
      %v2887 = vrot.slane %v2878, 2
      %v2888 = vsel %vm2885, %v2886, %v2887
      %v2889 = vrot.slane %v2879, 2
      %v2890 = vsel %vm2885, %v2887, %v2889
      %v2891 = vrot.slane %v2880, 2
      %v2892 = vsel %vm2885, %v2889, %v2891
      %vm2898 = vcmask 261126
      %2899 = vst.msk [vmem:[#allocation3 + $0xc0] sm:$0xc0] %vm2898, %v2886
      %2900 = vst.msk [vmem:[#allocation3 + $0xe0] sm:$0xff] %vm2727, %v2888
      %2901 = vst.msk [vmem:[#allocation3 + $0x100] sm:$0xff] %vm2727, %v2890
      %2902 = vst.msk [vmem:[#allocation3 + $0x120] sm:$0xff] %vm2727, %v2892
      %vm2903 = vcmask 253952
      %2904 = vst.msk [vmem:[#allocation3 + $0x140] sm:$0x1] %vm2903, %v2891
      %v2905 = vld [vmem:[#allocation2 + $0x3b] sm:$0xff]
      %v2906 = vld [vmem:[#allocation2 + $0x43] sm:$0xff]
      %v2907 = vld [vmem:[#allocation2 + $0x4b] sm:$0xff]
      %v2908 = vld [vmem:[#allocation2 + $0x53] sm:$0x7]
      %v2913 = vrot.slane %v2905, 2
      %v2914 = vrot.slane %v2906, 2
      %v2915 = vsel %vm2885, %v2913, %v2914
      %v2916 = vrot.slane %v2907, 2
      %v2917 = vsel %vm2885, %v2914, %v2916
      %v2918 = vrot.slane %v2908, 2
      %v2919 = vsel %vm2885, %v2916, %v2918
      %2920 = vrot.lane.b32.xlu0 %v2913, 32
      %v2921 = vpop.permute.xlu0 %2920
      %2922 = vrot.lane.b32.xlu0 %v2915, 32
      %v2923 = vpop.permute.xlu0 %2922
      %2924 = vrot.lane.b32.xlu0 %v2917, 32
      %v2925 = vpop.permute.xlu0 %2924
      %2926 = vrot.lane.b32.xlu0 %v2919, 32
      %v2927 = vpop.permute.xlu0 %2926
      %2928 = vrot.lane.b32.xlu0 %v2918, 32
      %v2929 = vpop.permute.xlu0 %2928
      %vm2935 = vcmask 523526
      %2936 = vst.msk [vmem:[#allocation3 + $0xc0] sm:$0xc0] %vm2935, %v2921
      %2937 = vst.msk [vmem:[#allocation3 + $0xe0] sm:$0xff] %vm2753, %v2923
      %2938 = vst.msk [vmem:[#allocation3 + $0x100] sm:$0xff] %vm2753, %v2925
      %2939 = vst.msk [vmem:[#allocation3 + $0x120] sm:$0xff] %vm2753, %v2927
      %vm2940 = vcmask 516352
      %2941 = vst.msk [vmem:[#allocation3 + $0x140] sm:$0x1] %vm2940, %v2929
      %v2942 = vld [vmem:[#allocation2 + $0x3c] sm:$0xff]
      %v2943 = vld [vmem:[#allocation2 + $0x44] sm:$0xff]
      %v2944 = vld [vmem:[#allocation2 + $0x4c] sm:$0xff]
      %v2945 = vld [vmem:[#allocation2 + $0x54] sm:$0x7]
      %v2950 = vrot.slane %v2942, 2
      %v2951 = vrot.slane %v2943, 2
      %v2952 = vsel %vm2885, %v2950, %v2951
      %v2953 = vrot.slane %v2944, 2
      %v2954 = vsel %vm2885, %v2951, %v2953
      %v2955 = vrot.slane %v2945, 2
      %v2956 = vsel %vm2885, %v2953, %v2955
      %2957 = vrot.lane.b32.xlu0 %v2950, 64
      %v2958 = vpop.permute.xlu0 %2957
      %2959 = vrot.lane.b32.xlu0 %v2952, 64
      %v2960 = vpop.permute.xlu0 %2959
      %2961 = vrot.lane.b32.xlu0 %v2954, 64
      %v2962 = vpop.permute.xlu0 %2961
      %2963 = vrot.lane.b32.xlu0 %v2956, 64
      %v2964 = vpop.permute.xlu0 %2963
      %2965 = vrot.lane.b32.xlu0 %v2955, 64
      %v2966 = vpop.permute.xlu0 %2965
      %vm2972 = vcmask 785926
      %2973 = vst.msk [vmem:[#allocation3 + $0xc0] sm:$0xc0] %vm2972, %v2958
      %2974 = vst.msk [vmem:[#allocation3 + $0xe0] sm:$0xff] %vm2779, %v2960
      %2975 = vst.msk [vmem:[#allocation3 + $0x100] sm:$0xff] %vm2779, %v2962
      %2976 = vst.msk [vmem:[#allocation3 + $0x120] sm:$0xff] %vm2779, %v2964
      %vm2977 = vcmask 778752
      %2978 = vst.msk [vmem:[#allocation3 + $0x140] sm:$0x1] %vm2977, %v2966
      %v2979 = vld [vmem:[#allocation2 + $0x57] sm:$0xff]
      %v2980 = vld [vmem:[#allocation2 + $0x5f] sm:$0xff]
      %v2981 = vld [vmem:[#allocation2 + $0x67] sm:$0xff]
      %v2982 = vld [vmem:[#allocation2 + $0x6f] sm:$0x7]
      %vm2987 = vcmask 1040384
      %v2988 = vrot.slane %v2979, 7
      %v2989 = vrot.slane %v2980, 7
      %v2990 = vsel %vm2987, %v2988, %v2989
      %v2991 = vrot.slane %v2981, 7
      %v2992 = vsel %vm2987, %v2989, %v2991
      %v2993 = vrot.slane %v2982, 7
      %v2994 = vsel %vm2987, %v2991, %v2993
      %vm2999 = vcmask 261121
      %3000 = vst.msk [vmem:[#allocation3 + $0x140] sm:$0xfe] %vm2999, %v2988
      %3001 = vst.msk [vmem:[#allocation3 + $0x160] sm:$0xff] %vm2727, %v2990
      %3002 = vst.msk [vmem:[#allocation3 + $0x180] sm:$0xff] %vm2727, %v2992
      %vm3003 = vcmask 257024
      %3004 = vst.msk [vmem:[#allocation3 + $0x1a0] sm:$0xf] %vm3003, %v2994
      %v3005 = vld [vmem:[#allocation2 + $0x58] sm:$0xff]
      %v3006 = vld [vmem:[#allocation2 + $0x60] sm:$0xff]
      %v3007 = vld [vmem:[#allocation2 + $0x68] sm:$0xff]
      %v3008 = vld [vmem:[#allocation2 + $0x70] sm:$0x7]
      %v3013 = vrot.slane %v3005, 7
      %v3014 = vrot.slane %v3006, 7
      %v3015 = vsel %vm2987, %v3013, %v3014
      %v3016 = vrot.slane %v3007, 7
      %v3017 = vsel %vm2987, %v3014, %v3016
      %v3018 = vrot.slane %v3008, 7
      %v3019 = vsel %vm2987, %v3016, %v3018
      %3020 = vrot.lane.b32.xlu0 %v3013, 32
      %v3021 = vpop.permute.xlu0 %3020
      %3022 = vrot.lane.b32.xlu0 %v3015, 32
      %v3023 = vpop.permute.xlu0 %3022
      %3024 = vrot.lane.b32.xlu0 %v3017, 32
      %v3025 = vpop.permute.xlu0 %3024
      %3026 = vrot.lane.b32.xlu0 %v3019, 32
      %v3027 = vpop.permute.xlu0 %3026
      %vm3032 = vcmask 523521
      %3033 = vst.msk [vmem:[#allocation3 + $0x140] sm:$0xfe] %vm3032, %v3021
      %3034 = vst.msk [vmem:[#allocation3 + $0x160] sm:$0xff] %vm2753, %v3023
      %3035 = vst.msk [vmem:[#allocation3 + $0x180] sm:$0xff] %vm2753, %v3025
      %vm3036 = vcmask 519424
      %3037 = vst.msk [vmem:[#allocation3 + $0x1a0] sm:$0xf] %vm3036, %v3027
      %v3038 = vld [vmem:[#allocation2 + $0x59] sm:$0xff]
      %v3039 = vld [vmem:[#allocation2 + $0x61] sm:$0xff]
      %v3040 = vld [vmem:[#allocation2 + $0x69] sm:$0xff]
      %v3041 = vld [vmem:[#allocation2 + $0x71] sm:$0x7]
      %v3046 = vrot.slane %v3038, 7
      %v3047 = vrot.slane %v3039, 7
      %v3048 = vsel %vm2987, %v3046, %v3047
      %v3049 = vrot.slane %v3040, 7
      %v3050 = vsel %vm2987, %v3047, %v3049
      %v3051 = vrot.slane %v3041, 7
      %v3052 = vsel %vm2987, %v3049, %v3051
      %3053 = vrot.lane.b32.xlu0 %v3046, 64
      %v3054 = vpop.permute.xlu0 %3053
      %3055 = vrot.lane.b32.xlu0 %v3048, 64
      %v3056 = vpop.permute.xlu0 %3055
      %3057 = vrot.lane.b32.xlu0 %v3050, 64
      %v3058 = vpop.permute.xlu0 %3057
      %3059 = vrot.lane.b32.xlu0 %v3052, 64
      %v3060 = vpop.permute.xlu0 %3059
      %vm3065 = vcmask 785921
      %3066 = vst.msk [vmem:[#allocation3 + $0x140] sm:$0xfe] %vm3065, %v3054
      %3067 = vst.msk [vmem:[#allocation3 + $0x160] sm:$0xff] %vm2779, %v3056
      %3068 = vst.msk [vmem:[#allocation3 + $0x180] sm:$0xff] %vm2779, %v3058
      %vm3069 = vcmask 781824
      %3070 = vst.msk [vmem:[#allocation3 + $0x1a0] sm:$0xf] %vm3069, %v3060
      %v3071 = vld [vmem:[#allocation2 + $0x78] sm:$0xff]
      %v3072 = vld [vmem:[#allocation2 + $0x80] sm:$0xff]
      %v3073 = vld [vmem:[#allocation2 + $0x88] sm:$0xff]
      %v3074 = vld [vmem:[#allocation2 + $0x90] sm:$0x7]
      %3075 = vst.msk [vmem:[#allocation3 + $0x1c0] sm:$0xff] %vm2727, %v3071
      %3076 = vst.msk [vmem:[#allocation3 + $0x1e0] sm:$0xff] %vm2727, %v3072
      %3077 = vst.msk [vmem:[#allocation3 + $0x200] sm:$0xff] %vm2727, %v3073
      %3078 = vst.msk [vmem:[#allocation3 + $0x220] sm:$0x7] %vm2731, %v3074
      %v3079 = vld [vmem:[#allocation2 + $0x79] sm:$0xff]
      %v3080 = vld [vmem:[#allocation2 + $0x81] sm:$0xff]
      %v3081 = vld [vmem:[#allocation2 + $0x89] sm:$0xff]
      %v3082 = vld [vmem:[#allocation2 + $0x91] sm:$0x7]
      %3087 = vrot.lane.b32.xlu0 %v3079, 32
      %v3088 = vpop.permute.xlu0 %3087
      %3089 = vrot.lane.b32.xlu0 %v3080, 32
      %v3090 = vpop.permute.xlu0 %3089
      %3091 = vrot.lane.b32.xlu0 %v3081, 32
      %v3092 = vpop.permute.xlu0 %3091
      %3093 = vrot.lane.b32.xlu0 %v3082, 32
      %v3094 = vpop.permute.xlu0 %3093
      %3099 = vst.msk [vmem:[#allocation3 + $0x1c0] sm:$0xff] %vm2753, %v3088
      %3100 = vst.msk [vmem:[#allocation3 + $0x1e0] sm:$0xff] %vm2753, %v3090
      %3101 = vst.msk [vmem:[#allocation3 + $0x200] sm:$0xff] %vm2753, %v3092
      %3102 = vst.msk [vmem:[#allocation3 + $0x220] sm:$0x7] %vm2757, %v3094
      %v3103 = vld [vmem:[#allocation2 + $0x7a] sm:$0xff]
      %v3104 = vld [vmem:[#allocation2 + $0x82] sm:$0xff]
      %v3105 = vld [vmem:[#allocation2 + $0x8a] sm:$0xff]
      %v3106 = vld [vmem:[#allocation2 + $0x92] sm:$0x7]
      %3111 = vrot.lane.b32.xlu0 %v3103, 64
      %v3112 = vpop.permute.xlu0 %3111
      %3113 = vrot.lane.b32.xlu0 %v3104, 64
      %v3114 = vpop.permute.xlu0 %3113
      %3115 = vrot.lane.b32.xlu0 %v3105, 64
      %v3116 = vpop.permute.xlu0 %3115
      %3117 = vrot.lane.b32.xlu0 %v3106, 64
      %v3118 = vpop.permute.xlu0 %3117
      %3123 = vst.msk [vmem:[#allocation3 + $0x1c0] sm:$0xff] %vm2779, %v3112
      %3124 = vst.msk [vmem:[#allocation3 + $0x1e0] sm:$0xff] %vm2779, %v3114
      %3125 = vst.msk [vmem:[#allocation3 + $0x200] sm:$0xff] %vm2779, %v3116
      %3126 = vst.msk [vmem:[#allocation3 + $0x220] sm:$0x7] %vm2783, %v3118
      %v3127 = vld [vmem:[#allocation2 + $0x95] sm:$0xff]
      %v3128 = vld [vmem:[#allocation2 + $0x9d] sm:$0xff]
      %v3129 = vld [vmem:[#allocation2 + $0xa5] sm:$0xff]
      %v3130 = vld [vmem:[#allocation2 + $0xad] sm:$0x7]
      %v3135 = vrot.slane %v3127, 5
      %v3136 = vrot.slane %v3128, 5
      %v3137 = vsel %vm2793, %v3135, %v3136
      %v3138 = vrot.slane %v3129, 5
      %v3139 = vsel %vm2793, %v3136, %v3138
      %v3140 = vrot.slane %v3130, 5
      %v3141 = vsel %vm2793, %v3138, %v3140
      %3146 = vst.msk [vmem:[#allocation3 + $0x220] sm:$0xf8] %vm2805, %v3135
      %3147 = vst.msk [vmem:[#allocation3 + $0x240] sm:$0xff] %vm2727, %v3137
      %3148 = vst.msk [vmem:[#allocation3 + $0x260] sm:$0xff] %vm2727, %v3139
      %3149 = vst.msk [vmem:[#allocation3 + $0x280] sm:$0x3f] %vm2809, %v3141
      %v3150 = vld [vmem:[#allocation2 + $0x96] sm:$0xff]
      %v3151 = vld [vmem:[#allocation2 + $0x9e] sm:$0xff]
      %v3152 = vld [vmem:[#allocation2 + $0xa6] sm:$0xff]
      %v3153 = vld [vmem:[#allocation2 + $0xae] sm:$0x7]
      %v3158 = vrot.slane %v3150, 5
      %v3159 = vrot.slane %v3151, 5
      %v3160 = vsel %vm2793, %v3158, %v3159
      %v3161 = vrot.slane %v3152, 5
      %v3162 = vsel %vm2793, %v3159, %v3161
      %v3163 = vrot.slane %v3153, 5
      %v3164 = vsel %vm2793, %v3161, %v3163
      %3165 = vrot.lane.b32.xlu0 %v3158, 32
      %v3166 = vpop.permute.xlu0 %3165
      %3167 = vrot.lane.b32.xlu0 %v3160, 32
      %v3168 = vpop.permute.xlu0 %3167
      %3169 = vrot.lane.b32.xlu0 %v3162, 32
      %v3170 = vpop.permute.xlu0 %3169
      %3171 = vrot.lane.b32.xlu0 %v3164, 32
      %v3172 = vpop.permute.xlu0 %3171
      %3177 = vst.msk [vmem:[#allocation3 + $0x220] sm:$0xf8] %vm2838, %v3166
      %3178 = vst.msk [vmem:[#allocation3 + $0x240] sm:$0xff] %vm2753, %v3168
      %3179 = vst.msk [vmem:[#allocation3 + $0x260] sm:$0xff] %vm2753, %v3170
      %3180 = vst.msk [vmem:[#allocation3 + $0x280] sm:$0x3f] %vm2842, %v3172
      %v3181 = vld [vmem:[#allocation2 + $0x97] sm:$0xff]
      %v3182 = vld [vmem:[#allocation2 + $0x9f] sm:$0xff]
      %v3183 = vld [vmem:[#allocation2 + $0xa7] sm:$0xff]
      %v3184 = vld [vmem:[#allocation2 + $0xaf] sm:$0x7]
      %v3189 = vrot.slane %v3181, 5
      %v3190 = vrot.slane %v3182, 5
      %v3191 = vsel %vm2793, %v3189, %v3190
      %v3192 = vrot.slane %v3183, 5
      %v3193 = vsel %vm2793, %v3190, %v3192
      %v3194 = vrot.slane %v3184, 5
      %v3195 = vsel %vm2793, %v3192, %v3194
      %3196 = vrot.lane.b32.xlu0 %v3189, 64
      %v3197 = vpop.permute.xlu0 %3196
      %3198 = vrot.lane.b32.xlu0 %v3191, 64
      %v3199 = vpop.permute.xlu0 %3198
      %3200 = vrot.lane.b32.xlu0 %v3193, 64
      %v3201 = vpop.permute.xlu0 %3200
      %3202 = vrot.lane.b32.xlu0 %v3195, 64
      %v3203 = vpop.permute.xlu0 %3202
      %3208 = vst.msk [vmem:[#allocation3 + $0x220] sm:$0xf8] %vm2871, %v3197
      %3209 = vst.msk [vmem:[#allocation3 + $0x240] sm:$0xff] %vm2779, %v3199
      %3210 = vst.msk [vmem:[#allocation3 + $0x260] sm:$0xff] %vm2779, %v3201
      %3211 = vst.msk [vmem:[#allocation3 + $0x280] sm:$0x3f] %vm2875, %v3203
      %v3212 = vld [vmem:[#allocation2 + $0xb2] sm:$0xff]
      %v3213 = vld [vmem:[#allocation2 + $0xba] sm:$0xff]
      %v3214 = vld [vmem:[#allocation2 + $0xc2] sm:$0xff]
      %v3215 = vld [vmem:[#allocation2 + $0xca] sm:$0x7]
      %v3220 = vrot.slane %v3212, 2
      %v3221 = vrot.slane %v3213, 2
      %v3222 = vsel %vm2885, %v3220, %v3221
      %v3223 = vrot.slane %v3214, 2
      %v3224 = vsel %vm2885, %v3221, %v3223
      %v3225 = vrot.slane %v3215, 2
      %v3226 = vsel %vm2885, %v3223, %v3225
      %3232 = vst.msk [vmem:[#allocation3 + $0x280] sm:$0xc0] %vm2898, %v3220
      %3233 = vst.msk [vmem:[#allocation3 + $0x2a0] sm:$0xff] %vm2727, %v3222
      %3234 = vst.msk [vmem:[#allocation3 + $0x2c0] sm:$0xff] %vm2727, %v3224
      %3235 = vst.msk [vmem:[#allocation3 + $0x2e0] sm:$0xff] %vm2727, %v3226
      %3236 = vst.msk [vmem:[#allocation3 + $0x300] sm:$0x1] %vm2903, %v3225
      %v3237 = vld [vmem:[#allocation2 + $0xb3] sm:$0xff]
      %v3238 = vld [vmem:[#allocation2 + $0xbb] sm:$0xff]
      %v3239 = vld [vmem:[#allocation2 + $0xc3] sm:$0xff]
      %v3240 = vld [vmem:[#allocation2 + $0xcb] sm:$0x7]
      %v3245 = vrot.slane %v3237, 2
      %v3246 = vrot.slane %v3238, 2
      %v3247 = vsel %vm2885, %v3245, %v3246
      %v3248 = vrot.slane %v3239, 2
      %v3249 = vsel %vm2885, %v3246, %v3248
      %v3250 = vrot.slane %v3240, 2
      %v3251 = vsel %vm2885, %v3248, %v3250
      %3252 = vrot.lane.b32.xlu0 %v3245, 32
      %v3253 = vpop.permute.xlu0 %3252
      %3254 = vrot.lane.b32.xlu0 %v3247, 32
      %v3255 = vpop.permute.xlu0 %3254
      %3256 = vrot.lane.b32.xlu0 %v3249, 32
      %v3257 = vpop.permute.xlu0 %3256
      %3258 = vrot.lane.b32.xlu0 %v3251, 32
      %v3259 = vpop.permute.xlu0 %3258
      %3260 = vrot.lane.b32.xlu0 %v3250, 32
      %v3261 = vpop.permute.xlu0 %3260
      %3267 = vst.msk [vmem:[#allocation3 + $0x280] sm:$0xc0] %vm2935, %v3253
      %3268 = vst.msk [vmem:[#allocation3 + $0x2a0] sm:$0xff] %vm2753, %v3255
      %3269 = vst.msk [vmem:[#allocation3 + $0x2c0] sm:$0xff] %vm2753, %v3257
      %3270 = vst.msk [vmem:[#allocation3 + $0x2e0] sm:$0xff] %vm2753, %v3259
      %3271 = vst.msk [vmem:[#allocation3 + $0x300] sm:$0x1] %vm2940, %v3261
      %v3272 = vld [vmem:[#allocation2 + $0xb4] sm:$0xff]
      %v3273 = vld [vmem:[#allocation2 + $0xbc] sm:$0xff]
      %v3274 = vld [vmem:[#allocation2 + $0xc4] sm:$0xff]
      %v3275 = vld [vmem:[#allocation2 + $0xcc] sm:$0x7]
      %v3280 = vrot.slane %v3272, 2
      %v3281 = vrot.slane %v3273, 2
      %v3282 = vsel %vm2885, %v3280, %v3281
      %v3283 = vrot.slane %v3274, 2
      %v3284 = vsel %vm2885, %v3281, %v3283
      %v3285 = vrot.slane %v3275, 2
      %v3286 = vsel %vm2885, %v3283, %v3285
      %3287 = vrot.lane.b32.xlu0 %v3280, 64
      %v3288 = vpop.permute.xlu0 %3287
      %3289 = vrot.lane.b32.xlu0 %v3282, 64
      %v3290 = vpop.permute.xlu0 %3289
      %3291 = vrot.lane.b32.xlu0 %v3284, 64
      %v3292 = vpop.permute.xlu0 %3291
      %3293 = vrot.lane.b32.xlu0 %v3286, 64
      %v3294 = vpop.permute.xlu0 %3293
      %3295 = vrot.lane.b32.xlu0 %v3285, 64
      %v3296 = vpop.permute.xlu0 %3295
      %3302 = vst.msk [vmem:[#allocation3 + $0x280] sm:$0xc0] %vm2972, %v3288
      %3303 = vst.msk [vmem:[#allocation3 + $0x2a0] sm:$0xff] %vm2779, %v3290
      %3304 = vst.msk [vmem:[#allocation3 + $0x2c0] sm:$0xff] %vm2779, %v3292
      %3305 = vst.msk [vmem:[#allocation3 + $0x2e0] sm:$0xff] %vm2779, %v3294
      %3306 = vst.msk [vmem:[#allocation3 + $0x300] sm:$0x1] %vm2977, %v3296
      %v3307 = vld [vmem:[#allocation2 + $0xcf] sm:$0xff]
      %v3308 = vld [vmem:[#allocation2 + $0xd7] sm:$0xff]
      %v3309 = vld [vmem:[#allocation2 + $0xdf] sm:$0xff]
      %v3310 = vld [vmem:[#allocation2 + $0xe7] sm:$0x7]
      %v3315 = vrot.slane %v3307, 7
      %v3316 = vrot.slane %v3308, 7
      %v3317 = vsel %vm2987, %v3315, %v3316
      %v3318 = vrot.slane %v3309, 7
      %v3319 = vsel %vm2987, %v3316, %v3318
      %v3320 = vrot.slane %v3310, 7
      %v3321 = vsel %vm2987, %v3318, %v3320
      %3326 = vst.msk [vmem:[#allocation3 + $0x300] sm:$0xfe] %vm2999, %v3315
      %3327 = vst.msk [vmem:[#allocation3 + $0x320] sm:$0xff] %vm2727, %v3317
      %3328 = vst.msk [vmem:[#allocation3 + $0x340] sm:$0xff] %vm2727, %v3319
      %3329 = vst.msk [vmem:[#allocation3 + $0x360] sm:$0xf] %vm3003, %v3321
      %v3330 = vld [vmem:[#allocation2 + $0xd0] sm:$0xff]
      %v3331 = vld [vmem:[#allocation2 + $0xd8] sm:$0xff]
      %v3332 = vld [vmem:[#allocation2 + $0xe0] sm:$0xff]
      %v3333 = vld [vmem:[#allocation2 + $0xe8] sm:$0x7]
      %v3338 = vrot.slane %v3330, 7
      %v3339 = vrot.slane %v3331, 7
      %v3340 = vsel %vm2987, %v3338, %v3339
      %v3341 = vrot.slane %v3332, 7
      %v3342 = vsel %vm2987, %v3339, %v3341
      %v3343 = vrot.slane %v3333, 7
      %v3344 = vsel %vm2987, %v3341, %v3343
      %3345 = vrot.lane.b32.xlu0 %v3338, 32
      %v3346 = vpop.permute.xlu0 %3345
      %3347 = vrot.lane.b32.xlu0 %v3340, 32
      %v3348 = vpop.permute.xlu0 %3347
      %3349 = vrot.lane.b32.xlu0 %v3342, 32
      %v3350 = vpop.permute.xlu0 %3349
      %3351 = vrot.lane.b32.xlu0 %v3344, 32
      %v3352 = vpop.permute.xlu0 %3351
      %3357 = vst.msk [vmem:[#allocation3 + $0x300] sm:$0xfe] %vm3032, %v3346
      %3358 = vst.msk [vmem:[#allocation3 + $0x320] sm:$0xff] %vm2753, %v3348
      %3359 = vst.msk [vmem:[#allocation3 + $0x340] sm:$0xff] %vm2753, %v3350
      %3360 = vst.msk [vmem:[#allocation3 + $0x360] sm:$0xf] %vm3036, %v3352
      %v3361 = vld [vmem:[#allocation2 + $0xd1] sm:$0xff]
      %v3362 = vld [vmem:[#allocation2 + $0xd9] sm:$0xff]
      %v3363 = vld [vmem:[#allocation2 + $0xe1] sm:$0xff]
      %v3364 = vld [vmem:[#allocation2 + $0xe9] sm:$0x7]
      %v3369 = vrot.slane %v3361, 7
      %v3370 = vrot.slane %v3362, 7
      %v3371 = vsel %vm2987, %v3369, %v3370
      %v3372 = vrot.slane %v3363, 7
      %v3373 = vsel %vm2987, %v3370, %v3372
      %v3374 = vrot.slane %v3364, 7
      %v3375 = vsel %vm2987, %v3372, %v3374
      %3376 = vrot.lane.b32.xlu0 %v3369, 64
      %v3377 = vpop.permute.xlu0 %3376
      %3378 = vrot.lane.b32.xlu0 %v3371, 64
      %v3379 = vpop.permute.xlu0 %3378
      %3380 = vrot.lane.b32.xlu0 %v3373, 64
      %v3381 = vpop.permute.xlu0 %3380
      %3382 = vrot.lane.b32.xlu0 %v3375, 64
      %v3383 = vpop.permute.xlu0 %3382
      %3388 = vst.msk [vmem:[#allocation3 + $0x300] sm:$0xfe] %vm3065, %v3377
      %3389 = vst.msk [vmem:[#allocation3 + $0x320] sm:$0xff] %vm2779, %v3379
      %3390 = vst.msk [vmem:[#allocation3 + $0x340] sm:$0xff] %vm2779, %v3381
      %3391 = vst.msk [vmem:[#allocation3 + $0x360] sm:$0xf] %vm3069, %v3383
      %v3392 = vld [vmem:[#allocation3] sm:$0xff]
      %v3393 = vld [vmem:[#allocation3 + $0x20] sm:$0xff]
      %v3394 = vld [vmem:[#allocation3 + $0x40] sm:$0xff]
      %v3395 = vld [vmem:[#allocation3 + $0x60] sm:$0xff]
      %v3396 = vld [vmem:[#allocation3 + $0x80] sm:$0xff]
      %v3397 = vld [vmem:[#allocation3 + $0xa0] sm:$0xff]
      %v3398 = vld [vmem:[#allocation3 + $0xc0] sm:$0xff]
      %v3399 = vld [vmem:[#allocation3 + $0xe0] sm:$0xff]
      %v3400 = vld [vmem:[#allocation3 + $0x100] sm:$0xff]
      %v3401 = vld [vmem:[#allocation3 + $0x120] sm:$0xff]
      %v3402 = vld [vmem:[#allocation3 + $0x140] sm:$0xff]
      %v3403 = vld [vmem:[#allocation3 + $0x160] sm:$0xff]
      %v3404 = vld [vmem:[#allocation3 + $0x180] sm:$0xff]
      %v3405 = vld [vmem:[#allocation3 + $0x1a0] sm:$0xff]
      %v3406 = vld [vmem:[#allocation3 + $0x1c0] sm:$0xff]
      %v3407 = vld [vmem:[#allocation3 + $0x1e0] sm:$0xff]
      %v3408 = vld [vmem:[#allocation3 + $0x200] sm:$0xff]
      %v3409 = vld [vmem:[#allocation3 + $0x220] sm:$0xff]
      %v3410 = vld [vmem:[#allocation3 + $0x240] sm:$0xff]
      %v3411 = vld [vmem:[#allocation3 + $0x260] sm:$0xff]
      %v3412 = vld [vmem:[#allocation3 + $0x280] sm:$0xff]
      %v3413 = vld [vmem:[#allocation3 + $0x2a0] sm:$0xff]
      %v3414 = vld [vmem:[#allocation3 + $0x2c0] sm:$0xff]
      %v3415 = vld [vmem:[#allocation3 + $0x2e0] sm:$0xff]
      %v3416 = vld [vmem:[#allocation3 + $0x300] sm:$0xff]
      %v3417 = vld [vmem:[#allocation3 + $0x320] sm:$0xff]
      %v3418 = vld [vmem:[#allocation3 + $0x340] sm:$0xff]
      %v3419 = vld [vmem:[#allocation3 + $0x360] sm:$0xff]
      %v3420 = vpack.c.bf16 %v3393, %v3392
      %v3421 = vpack.c.bf16 %v3395, %v3394
      %v3422 = vpack.c.bf16 %v3397, %v3396
      %v3423 = vpack.c.bf16 %v3399, %v3398
      %v3424 = vpack.c.bf16 %v3401, %v3400
      %v3425 = vpack.c.bf16 %v3403, %v3402
      %v3426 = vpack.c.bf16 %v3405, %v3404
      %v3427 = vpack.c.bf16 %v3407, %v3406
      %v3428 = vpack.c.bf16 %v3409, %v3408
      %v3429 = vpack.c.bf16 %v3411, %v3410
      %v3430 = vpack.c.bf16 %v3413, %v3412
      %v3431 = vpack.c.bf16 %v3415, %v3414
      %v3432 = vpack.c.bf16 %v3417, %v3416
      %v3433 = vpack.c.bf16 %v3419, %v3418
      %v3434 = vld [vmem:[%s2] sm:$0xf]
      %v3435 = vld [vmem:[%s2 + $0x4] sm:$0xf]
      %v3436 = vld [vmem:[%s2 + $0x8] sm:$0xf]
      %v3437 = vld [vmem:[%s2 + $0xc] sm:$0xf]
      %v3438 = vld [vmem:[%s2 + $0x10] sm:$0xf]
      %v3439 = vld [vmem:[%s2 + $0x14] sm:$0xf]
      %v3440 = vld [vmem:[%s2 + $0x18] sm:$0xf]
      %v3441 = vld [vmem:[%s2 + $0x1c] sm:$0xf]
      %v3442 = vld [vmem:[%s2 + $0x20] sm:$0xf]
      %v3443 = vld [vmem:[%s2 + $0x24] sm:$0xf]
      %v3444 = vld [vmem:[%s2 + $0x28] sm:$0xf]
      %v3445 = vld [vmem:[%s2 + $0x2c] sm:$0xf]
      %v3446 = vld [vmem:[%s2 + $0x30] sm:$0xf]
      %v3447 = vld [vmem:[%s2 + $0x34] sm:$0xf]
      %v3448 = vld [vmem:[%s2 + $0x38] sm:$0xf]
      %v3449 = vld [vmem:[%s2 + $0x3c] sm:$0xf]
      %v3450 = vld [vmem:[%s6 + $0x1] sm:$0x1]
      %v3451 = vlaneseq
      %v3452 = vshrl.u32 %v3451, 7
      %v3453 = vsub.s32 0, %v3452
      %v3454 = vrot.slane %v3450, %v3453
      %v3471 = vunpack.c.l.b16 %v3434
      %v3472 = vunpack.c.l.b16 %v3435
      %v3473 = vunpack.c.l.b16 %v3436
      %v3474 = vunpack.c.l.b16 %v3437
      %v3475 = vunpack.c.l.b16 %v3438
      %v3476 = vunpack.c.l.b16 %v3439
      %v3477 = vunpack.c.l.b16 %v3440
      %v3478 = vunpack.c.l.b16 %v3441
      %v3479 = vunpack.c.l.b16 %v3442
      %v3480 = vunpack.c.l.b16 %v3443
      %v3481 = vunpack.c.l.b16 %v3444
      %v3482 = vunpack.c.l.b16 %v3445
      %v3483 = vunpack.c.l.b16 %v3446
      %v3484 = vunpack.c.l.b16 %v3447
      %v3485 = vunpack.c.l.b16 %v3448
      %v3486 = vunpack.c.l.b16 %v3449
      %v3487 = vpack.c.b16 %v3472, %v3471
      %v3488 = vpack.c.b16 %v3474, %v3473
      %v3489 = vpack.c.b16 %v3476, %v3475
      %v3490 = vpack.c.b16 %v3478, %v3477
      %v3491 = vpack.c.b16 %v3480, %v3479
      %v3492 = vpack.c.b16 %v3482, %v3481
      %v3493 = vpack.c.b16 %v3484, %v3483
      %v3494 = vpack.c.b16 %v3486, %v3485
      %3503 = vmatprep.subr.bf16.mxu0 0
      %3504 = vmatpush1.bf16.msra.mxu0 %v3494
      %3505 = vmatprep.subr.bf16.mxu0 0
      %3506 = vmatpush1.bf16.msra.mxu0 %v3493
      %3507 = vmatprep.subr.bf16.mxu0 0
      %3508 = vmatpush1.bf16.msra.mxu0 %v3492
      %3509 = vmatprep.subr.bf16.mxu0 0
      %3510 = vmatpush1.bf16.msra.mxu0 %v3491
      %3511 = vmatprep.subr.bf16.mxu0 0
      %3512 = vmatpush1.bf16.msra.mxu0 %v3490
      %3513 = vmatprep.subr.bf16.mxu0 0
      %3514 = vmatpush1.bf16.msra.mxu0 %v3489
      %3515 = vmatprep.subr.bf16.mxu0 0
      %3516 = vmatpush1.bf16.msra.mxu0 %v3488
      %3517 = vmatprep.subr.bf16.mxu0 0
      %3518 = vmatpush1.bf16.msra.mxu0 %v3487
      %3519 = vmatprep.subr.bf16.mxu0 0
      %3520 = vmatpush2.bf16.msra.mxu0 0
      %3521 = vmatprep.subr.bf16.mxu0 0
      %3522 = vmatpush2.bf16.msra.mxu0 0
      %3523 = vmatprep.subr.bf16.mxu0 0
      %3524 = vmatpush2.bf16.msra.mxu0 0
      %3525 = vmatprep.subr.bf16.mxu0 0
      %3526 = vmatpush2.bf16.msra.mxu0 0
      %3527 = vmatprep.subr.bf16.mxu0 0
      %3528 = vmatpush2.bf16.msra.mxu0 0
      %3529 = vmatprep.subr.bf16.mxu0 0
      %3530 = vmatpush2.bf16.msra.mxu0 0
      %3531 = vmatprep.subr.bf16.mxu0 0
      %3532 = vmatpush2.bf16.msra.mxu0 0
      %3533 = vmatprep.subr.bf16.mxu0 0
      %3534 = vmatpush2.bf16.msra.mxu0 0
      %3535 = vmatprep.mubr.bf16.mxu0 0
      %3536 = vmatmul.mubr.bf16.gmra.mxu0 %v3420
      %v3537 = vpop.f32.mrf.mxu0
      %v3538 = vadd.f32 %v3454, %v3537
      %v3539 = vpop.f32.mrf.mxu0
      %v3540 = vpop.f32.mrf.mxu0
      %v3541 = vadd.f32 %v3454, %v3540
      %v3542 = vpop.f32.mrf.mxu0
      %3543 = vmatprep.mubr.bf16.mxu0 0
      %3544 = vmatmul.mubr.bf16.gmra.mxu0 %v3421
      %v3545 = vpop.f32.mrf.mxu0
      %v3546 = vadd.f32 %v3454, %v3545
      %v3547 = vpop.f32.mrf.mxu0
      %v3548 = vpop.f32.mrf.mxu0
      %v3549 = vadd.f32 %v3454, %v3548
      %v3550 = vpop.f32.mrf.mxu0
      %3551 = vmatprep.mubr.bf16.mxu0 0
      %3552 = vmatmul.mubr.bf16.gmra.mxu0 %v3422
      %v3553 = vpop.f32.mrf.mxu0
      %v3554 = vadd.f32 %v3454, %v3553
      %v3555 = vpop.f32.mrf.mxu0
      %v3556 = vpop.f32.mrf.mxu0
      %v3557 = vadd.f32 %v3454, %v3556
      %v3558 = vpop.f32.mrf.mxu0
      %3559 = vmatprep.mubr.bf16.mxu0 0
      %3560 = vmatmul.mubr.bf16.gmra.mxu0 %v3423
      %v3561 = vpop.f32.mrf.mxu0
      %v3562 = vadd.f32 %v3454, %v3561
      %v3563 = vpop.f32.mrf.mxu0
      %v3564 = vpop.f32.mrf.mxu0
      %v3565 = vadd.f32 %v3454, %v3564
      %v3566 = vpop.f32.mrf.mxu0
      %3567 = vmatprep.mubr.bf16.mxu0 0
      %3568 = vmatmul.mubr.bf16.gmra.mxu0 %v3424
      %v3569 = vpop.f32.mrf.mxu0
      %v3570 = vadd.f32 %v3454, %v3569
      %v3571 = vpop.f32.mrf.mxu0
      %v3572 = vpop.f32.mrf.mxu0
      %v3573 = vadd.f32 %v3454, %v3572
      %v3574 = vpop.f32.mrf.mxu0
      %3575 = vmatprep.mubr.bf16.mxu0 0
      %3576 = vmatmul.mubr.bf16.gmra.mxu0 %v3425
      %v3577 = vpop.f32.mrf.mxu0
      %v3578 = vadd.f32 %v3454, %v3577
      %v3579 = vpop.f32.mrf.mxu0
      %v3580 = vpop.f32.mrf.mxu0
      %v3581 = vadd.f32 %v3454, %v3580
      %v3582 = vpop.f32.mrf.mxu0
      %3583 = vmatprep.mubr.bf16.mxu0 0
      %3584 = vmatmul.mubr.bf16.gmra.mxu0 %v3426
      %v3585 = vpop.f32.mrf.mxu0
      %v3586 = vadd.f32 %v3454, %v3585
      %v3587 = vpop.f32.mrf.mxu0
      %v3588 = vpop.f32.mrf.mxu0
      %v3589 = vadd.f32 %v3454, %v3588
      %v3590 = vpop.f32.mrf.mxu0
      %3591 = vmatprep.mubr.bf16.mxu0 0
      %3592 = vmatmul.mubr.bf16.gmra.mxu0 %v3427
      %v3593 = vpop.f32.mrf.mxu0
      %v3594 = vadd.f32 %v3454, %v3593
      %v3595 = vpop.f32.mrf.mxu0
      %v3596 = vpop.f32.mrf.mxu0
      %v3597 = vadd.f32 %v3454, %v3596
      %v3598 = vpop.f32.mrf.mxu0
      %3599 = vmatprep.mubr.bf16.mxu0 0
      %3600 = vmatmul.mubr.bf16.gmra.mxu0 %v3428
      %v3601 = vpop.f32.mrf.mxu0
      %v3602 = vadd.f32 %v3454, %v3601
      %v3603 = vpop.f32.mrf.mxu0
      %v3604 = vpop.f32.mrf.mxu0
      %v3605 = vadd.f32 %v3454, %v3604
      %v3606 = vpop.f32.mrf.mxu0
      %3607 = vmatprep.mubr.bf16.mxu0 0
      %3608 = vmatmul.mubr.bf16.gmra.mxu0 %v3429
      %v3609 = vpop.f32.mrf.mxu0
      %v3610 = vadd.f32 %v3454, %v3609
      %v3611 = vpop.f32.mrf.mxu0
      %v3612 = vpop.f32.mrf.mxu0
      %v3613 = vadd.f32 %v3454, %v3612
      %v3614 = vpop.f32.mrf.mxu0
      %3615 = vmatprep.mubr.bf16.mxu0 0
      %3616 = vmatmul.mubr.bf16.gmra.mxu0 %v3430
      %v3617 = vpop.f32.mrf.mxu0
      %v3618 = vadd.f32 %v3454, %v3617
      %v3619 = vpop.f32.mrf.mxu0
      %v3620 = vpop.f32.mrf.mxu0
      %v3621 = vadd.f32 %v3454, %v3620
      %v3622 = vpop.f32.mrf.mxu0
      %3623 = vmatprep.mubr.bf16.mxu0 0
      %3624 = vmatmul.mubr.bf16.gmra.mxu0 %v3431
      %v3625 = vpop.f32.mrf.mxu0
      %v3626 = vadd.f32 %v3454, %v3625
      %v3627 = vpop.f32.mrf.mxu0
      %v3628 = vpop.f32.mrf.mxu0
      %v3629 = vadd.f32 %v3454, %v3628
      %v3630 = vpop.f32.mrf.mxu0
      %3631 = vmatprep.mubr.bf16.mxu0 0
      %3632 = vmatmul.mubr.bf16.gmra.mxu0 %v3432
      %v3633 = vpop.f32.mrf.mxu0
      %v3634 = vadd.f32 %v3454, %v3633
      %v3635 = vpop.f32.mrf.mxu0
      %v3636 = vpop.f32.mrf.mxu0
      %v3637 = vadd.f32 %v3454, %v3636
      %v3638 = vpop.f32.mrf.mxu0
      %3639 = vmatprep.mubr.bf16.mxu0 0
      %3640 = vmatmul.mubr.bf16.gmra.mxu0 %v3433
      %v3641 = vpop.f32.mrf.mxu0
      %v3642 = vadd.f32 %v3454, %v3641
      %v3643 = vpop.f32.mrf.mxu0
      %v3644 = vpop.f32.mrf.mxu0
      %v3645 = vadd.f32 %v3454, %v3644
      %v3646 = vpop.f32.mrf.mxu0
      %3647 = vdwg.mxu0
      %v3648 = vmax.f32 %v3538, 0.0
      %v3649 = vmax.f32 %v3541, 0.0
      %v3650 = vmax.f32 %v3546, 0.0
      %v3651 = vmax.f32 %v3549, 0.0
      %v3652 = vmax.f32 %v3554, 0.0
      %v3653 = vmax.f32 %v3557, 0.0
      %v3654 = vmax.f32 %v3562, 0.0
      %v3655 = vmax.f32 %v3565, 0.0
      %v3656 = vmax.f32 %v3570, 0.0
      %v3657 = vmax.f32 %v3573, 0.0
      %v3658 = vmax.f32 %v3578, 0.0
      %v3659 = vmax.f32 %v3581, 0.0
      %v3660 = vmax.f32 %v3586, 0.0
      %v3661 = vmax.f32 %v3589, 0.0
      %v3662 = vmax.f32 %v3594, 0.0
      %v3663 = vmax.f32 %v3597, 0.0
      %v3664 = vmax.f32 %v3602, 0.0
      %v3665 = vmax.f32 %v3605, 0.0
      %v3666 = vmax.f32 %v3610, 0.0
      %v3667 = vmax.f32 %v3613, 0.0
      %v3668 = vmax.f32 %v3618, 0.0
      %v3669 = vmax.f32 %v3621, 0.0
      %v3670 = vmax.f32 %v3626, 0.0
      %v3671 = vmax.f32 %v3629, 0.0
      %v3672 = vmax.f32 %v3634, 0.0
      %v3673 = vmax.f32 %v3637, 0.0
      %v3674 = vmax.f32 %v3642, 0.0
      %v3675 = vmax.f32 %v3645, 0.0
      %3676 = vst [vmem:[#allocation2] sm:$0xff] %v3648
      %3677 = vst [vmem:[#allocation2 + $0x8] sm:$0xff] %v3649
      %3678 = vst [vmem:[#allocation2 + $0x10] sm:$0xff] %v3650
      %3679 = vst [vmem:[#allocation2 + $0x18] sm:$0xff] %v3651
      %3680 = vst [vmem:[#allocation2 + $0x20] sm:$0xff] %v3652
      %3681 = vst [vmem:[#allocation2 + $0x28] sm:$0xff] %v3653
      %3682 = vst [vmem:[#allocation2 + $0x30] sm:$0xff] %v3654
      %3683 = vst [vmem:[#allocation2 + $0x38] sm:$0xff] %v3655
      %3684 = vst [vmem:[#allocation2 + $0x40] sm:$0xff] %v3656
      %3685 = vst [vmem:[#allocation2 + $0x48] sm:$0xff] %v3657
      %3686 = vst [vmem:[#allocation2 + $0x50] sm:$0xff] %v3658
      %3687 = vst [vmem:[#allocation2 + $0x58] sm:$0xff] %v3659
      %3688 = vst [vmem:[#allocation2 + $0x60] sm:$0xff] %v3660
      %3689 = vst [vmem:[#allocation2 + $0x68] sm:$0xff] %v3661
      %3690 = vst [vmem:[#allocation2 + $0x70] sm:$0xff] %v3662
      %3691 = vst [vmem:[#allocation2 + $0x78] sm:$0xff] %v3663
      %3692 = vst [vmem:[#allocation2 + $0x80] sm:$0xff] %v3664
      %3693 = vst [vmem:[#allocation2 + $0x88] sm:$0xff] %v3665
      %3694 = vst [vmem:[#allocation2 + $0x90] sm:$0xff] %v3666
      %3695 = vst [vmem:[#allocation2 + $0x98] sm:$0xff] %v3667
      %3696 = vst [vmem:[#allocation2 + $0xa0] sm:$0xff] %v3668
      %3697 = vst [vmem:[#allocation2 + $0xa8] sm:$0xff] %v3669
      %3698 = vst [vmem:[#allocation2 + $0xb0] sm:$0xff] %v3670
      %3699 = vst [vmem:[#allocation2 + $0xb8] sm:$0xff] %v3671
      %3700 = vst [vmem:[#allocation2 + $0xc0] sm:$0xff] %v3672
      %3701 = vst [vmem:[#allocation2 + $0xc8] sm:$0xff] %v3673
      %3702 = vst [vmem:[#allocation2 + $0xd0] sm:$0xff] %v3674
      %3703 = vst [vmem:[#allocation2 + $0xd8] sm:$0xff] %v3675
      %v3704 = vld [vmem:[#allocation2] ss:$2 sm:$0xff]
      %s3705 = scalar_lea.vmem [#allocation2], 16
      %v3706 = vld [vmem:[%s3705] ss:$2 sm:$0x7]
      %3707 = vst.msk [vmem:[#allocation3] sm:$0xff] %vm2727, %v3704
      %3708 = vst.msk [vmem:[#allocation3 + $0x20] sm:$0x7] %vm2731, %v3706
      %s3709 = scalar_lea.vmem [#allocation2], 1
      %v3710 = vld [vmem:[%s3709] ss:$2 sm:$0xff]
      %s3711 = scalar_lea.vmem [#allocation2], 17
      %v3712 = vld [vmem:[%s3711] ss:$2 sm:$0x7]
      %3715 = vrot.lane.b32.xlu0 %v3710, 32
      %v3716 = vpop.permute.xlu0 %3715
      %3717 = vrot.lane.b32.xlu0 %v3712, 32
      %v3718 = vpop.permute.xlu0 %3717
      %3721 = vst.msk [vmem:[#allocation3] sm:$0xff] %vm2753, %v3716
      %3722 = vst.msk [vmem:[#allocation3 + $0x20] sm:$0x7] %vm2757, %v3718
      %s3723 = scalar_lea.vmem [#allocation2], 2
      %v3724 = vld [vmem:[%s3723] ss:$2 sm:$0xff]
      %s3725 = scalar_lea.vmem [#allocation2], 18
      %v3726 = vld [vmem:[%s3725] ss:$2 sm:$0x7]
      %3729 = vrot.lane.b32.xlu0 %v3724, 64
      %v3730 = vpop.permute.xlu0 %3729
      %3731 = vrot.lane.b32.xlu0 %v3726, 64
      %v3732 = vpop.permute.xlu0 %3731
      %3735 = vst.msk [vmem:[#allocation3] sm:$0xff] %vm2779, %v3730
      %3736 = vst.msk [vmem:[#allocation3 + $0x20] sm:$0x7] %vm2783, %v3732
      %s3737 = scalar_lea.vmem [#allocation2], 3
      %v3738 = vld [vmem:[%s3737] ss:$2 sm:$0xff]
      %s3739 = scalar_lea.vmem [#allocation2], 19
      %v3740 = vld [vmem:[%s3739] ss:$2 sm:$0x7]
      %3743 = vrot.lane.b32.xlu0 %v3738, 96
      %v3744 = vpop.permute.xlu0 %3743
      %3745 = vrot.lane.b32.xlu0 %v3740, 96
      %v3746 = vpop.permute.xlu0 %3745
      %vm3749 = vcmask 1048320
      %3750 = vst.msk [vmem:[#allocation3] sm:$0xff] %vm3749, %v3744
      %vm3751 = vcmask 1043200
      %3752 = vst.msk [vmem:[#allocation3 + $0x20] sm:$0x7] %vm3751, %v3746
      %s3753 = scalar_lea.vmem [#allocation2], 4
      %v3754 = vld [vmem:[%s3753] ss:$2 sm:$0xff]
      %s3755 = scalar_lea.vmem [#allocation2], 20
      %v3756 = vld [vmem:[%s3755] ss:$2 sm:$0x7]
      %3757 = vst.msk [vmem:[#allocation3 + $0x8] sm:$0xff] %vm2727, %v3754
      %3758 = vst.msk [vmem:[#allocation3 + $0x28] sm:$0x7] %vm2731, %v3756
      %s3759 = scalar_lea.vmem [#allocation2], 5
      %v3760 = vld [vmem:[%s3759] ss:$2 sm:$0xff]
      %s3761 = scalar_lea.vmem [#allocation2], 21
      %v3762 = vld [vmem:[%s3761] ss:$2 sm:$0x7]
      %3765 = vrot.lane.b32.xlu0 %v3760, 32
      %v3766 = vpop.permute.xlu0 %3765
      %3767 = vrot.lane.b32.xlu0 %v3762, 32
      %v3768 = vpop.permute.xlu0 %3767
      %3771 = vst.msk [vmem:[#allocation3 + $0x8] sm:$0xff] %vm2753, %v3766
      %3772 = vst.msk [vmem:[#allocation3 + $0x28] sm:$0x7] %vm2757, %v3768
      %s3773 = scalar_lea.vmem [#allocation2], 6
      %v3774 = vld [vmem:[%s3773] ss:$2 sm:$0xff]
      %s3775 = scalar_lea.vmem [#allocation2], 22
      %v3776 = vld [vmem:[%s3775] ss:$2 sm:$0x7]
      %3779 = vrot.lane.b32.xlu0 %v3774, 64
      %v3780 = vpop.permute.xlu0 %3779
      %3781 = vrot.lane.b32.xlu0 %v3776, 64
      %v3782 = vpop.permute.xlu0 %3781
      %3785 = vst.msk [vmem:[#allocation3 + $0x8] sm:$0xff] %vm2779, %v3780
      %3786 = vst.msk [vmem:[#allocation3 + $0x28] sm:$0x7] %vm2783, %v3782
      %s3787 = scalar_lea.vmem [#allocation2], 54
      %v3788 = vld [vmem:[%s3787] ss:$2 sm:$0xff]
      %s3789 = scalar_lea.vmem [#allocation2], 70
      %v3790 = vld [vmem:[%s3789] ss:$2 sm:$0x7]
      %v3793 = vrot.slane %v3788, 5
      %v3794 = vrot.slane %v3790, 5
      %v3795 = vsel %vm2793, %v3793, %v3794
      %3798 = vst.msk [vmem:[#allocation3 + $0x20] sm:$0xf8] %vm2805, %v3793
      %3799 = vst.msk [vmem:[#allocation3 + $0x40] sm:$0x3f] %vm2809, %v3795
      %s3800 = scalar_lea.vmem [#allocation2], 55
      %v3801 = vld [vmem:[%s3800] ss:$2 sm:$0xff]
      %s3802 = scalar_lea.vmem [#allocation2], 71
      %v3803 = vld [vmem:[%s3802] ss:$2 sm:$0x7]
      %v3806 = vrot.slane %v3801, 5
      %v3807 = vrot.slane %v3803, 5
      %v3808 = vsel %vm2793, %v3806, %v3807
      %3809 = vrot.lane.b32.xlu0 %v3806, 32
      %v3810 = vpop.permute.xlu0 %3809
      %3811 = vrot.lane.b32.xlu0 %v3808, 32
      %v3812 = vpop.permute.xlu0 %3811
      %3815 = vst.msk [vmem:[#allocation3 + $0x20] sm:$0xf8] %vm2838, %v3810
      %3816 = vst.msk [vmem:[#allocation3 + $0x40] sm:$0x3f] %vm2842, %v3812
      %s3817 = scalar_lea.vmem [#allocation2], 56
      %v3818 = vld [vmem:[%s3817] ss:$2 sm:$0xff]
      %s3819 = scalar_lea.vmem [#allocation2], 72
      %v3820 = vld [vmem:[%s3819] ss:$2 sm:$0x7]
      %v3823 = vrot.slane %v3818, 5
      %v3824 = vrot.slane %v3820, 5
      %v3825 = vsel %vm2793, %v3823, %v3824
      %3826 = vrot.lane.b32.xlu0 %v3823, 64
      %v3827 = vpop.permute.xlu0 %3826
      %3828 = vrot.lane.b32.xlu0 %v3825, 64
      %v3829 = vpop.permute.xlu0 %3828
      %3832 = vst.msk [vmem:[#allocation3 + $0x20] sm:$0xf8] %vm2871, %v3827
      %3833 = vst.msk [vmem:[#allocation3 + $0x40] sm:$0x3f] %vm2875, %v3829
      %s3834 = scalar_lea.vmem [#allocation2], 57
      %v3835 = vld [vmem:[%s3834] ss:$2 sm:$0xff]
      %s3836 = scalar_lea.vmem [#allocation2], 73
      %v3837 = vld [vmem:[%s3836] ss:$2 sm:$0x7]
      %v3840 = vrot.slane %v3835, 5
      %v3841 = vrot.slane %v3837, 5
      %v3842 = vsel %vm2793, %v3840, %v3841
      %3843 = vrot.lane.b32.xlu0 %v3840, 96
      %v3844 = vpop.permute.xlu0 %3843
      %3845 = vrot.lane.b32.xlu0 %v3842, 96
      %v3846 = vpop.permute.xlu0 %3845
      %vm3849 = vcmask 1048323
      %3850 = vst.msk [vmem:[#allocation3 + $0x20] sm:$0xf8] %vm3849, %v3844
      %vm3851 = vcmask 1046272
      %3852 = vst.msk [vmem:[#allocation3 + $0x40] sm:$0x3f] %vm3851, %v3846
      %s3853 = scalar_lea.vmem [#allocation2], 58
      %v3854 = vld [vmem:[%s3853] ss:$2 sm:$0xff]
      %s3855 = scalar_lea.vmem [#allocation2], 74
      %v3856 = vld [vmem:[%s3855] ss:$2 sm:$0x7]
      %v3859 = vrot.slane %v3854, 5
      %v3860 = vrot.slane %v3856, 5
      %v3861 = vsel %vm2793, %v3859, %v3860
      %3864 = vst.msk [vmem:[#allocation3 + $0x28] sm:$0xf8] %vm2805, %v3859
      %3865 = vst.msk [vmem:[#allocation3 + $0x48] sm:$0x3f] %vm2809, %v3861
      %s3866 = scalar_lea.vmem [#allocation2], 59
      %v3867 = vld [vmem:[%s3866] ss:$2 sm:$0xff]
      %s3868 = scalar_lea.vmem [#allocation2], 75
      %v3869 = vld [vmem:[%s3868] ss:$2 sm:$0x7]
      %v3872 = vrot.slane %v3867, 5
      %v3873 = vrot.slane %v3869, 5
      %v3874 = vsel %vm2793, %v3872, %v3873
      %3875 = vrot.lane.b32.xlu0 %v3872, 32
      %v3876 = vpop.permute.xlu0 %3875
      %3877 = vrot.lane.b32.xlu0 %v3874, 32
      %v3878 = vpop.permute.xlu0 %3877
      %3881 = vst.msk [vmem:[#allocation3 + $0x28] sm:$0xf8] %vm2838, %v3876
      %3882 = vst.msk [vmem:[#allocation3 + $0x48] sm:$0x3f] %vm2842, %v3878
      %s3883 = scalar_lea.vmem [#allocation2], 60
      %v3884 = vld [vmem:[%s3883] ss:$2 sm:$0xff]
      %s3885 = scalar_lea.vmem [#allocation2], 76
      %v3886 = vld [vmem:[%s3885] ss:$2 sm:$0x7]
      %v3889 = vrot.slane %v3884, 5
      %v3890 = vrot.slane %v3886, 5
      %v3891 = vsel %vm2793, %v3889, %v3890
      %3892 = vrot.lane.b32.xlu0 %v3889, 64
      %v3893 = vpop.permute.xlu0 %3892
      %3894 = vrot.lane.b32.xlu0 %v3891, 64
      %v3895 = vpop.permute.xlu0 %3894
      %3898 = vst.msk [vmem:[#allocation3 + $0x28] sm:$0xf8] %vm2871, %v3893
      %3899 = vst.msk [vmem:[#allocation3 + $0x48] sm:$0x3f] %vm2875, %v3895
      %s3900 = scalar_lea.vmem [#allocation2], 112
      %v3901 = vld [vmem:[%s3900] ss:$2 sm:$0xff]
      %s3902 = scalar_lea.vmem [#allocation2], 128
      %v3903 = vld [vmem:[%s3902] ss:$2 sm:$0x7]
      %3904 = vst.msk [vmem:[#allocation3 + $0x60] sm:$0xff] %vm2727, %v3901
      %3905 = vst.msk [vmem:[#allocation3 + $0x80] sm:$0x7] %vm2731, %v3903
      %s3906 = scalar_lea.vmem [#allocation2], 113
      %v3907 = vld [vmem:[%s3906] ss:$2 sm:$0xff]
      %s3908 = scalar_lea.vmem [#allocation2], 129
      %v3909 = vld [vmem:[%s3908] ss:$2 sm:$0x7]
      %3912 = vrot.lane.b32.xlu0 %v3907, 32
      %v3913 = vpop.permute.xlu0 %3912
      %3914 = vrot.lane.b32.xlu0 %v3909, 32
      %v3915 = vpop.permute.xlu0 %3914
      %3918 = vst.msk [vmem:[#allocation3 + $0x60] sm:$0xff] %vm2753, %v3913
      %3919 = vst.msk [vmem:[#allocation3 + $0x80] sm:$0x7] %vm2757, %v3915
      %s3920 = scalar_lea.vmem [#allocation2], 114
      %v3921 = vld [vmem:[%s3920] ss:$2 sm:$0xff]
      %s3922 = scalar_lea.vmem [#allocation2], 130
      %v3923 = vld [vmem:[%s3922] ss:$2 sm:$0x7]
      %3926 = vrot.lane.b32.xlu0 %v3921, 64
      %v3927 = vpop.permute.xlu0 %3926
      %3928 = vrot.lane.b32.xlu0 %v3923, 64
      %v3929 = vpop.permute.xlu0 %3928
      %3932 = vst.msk [vmem:[#allocation3 + $0x60] sm:$0xff] %vm2779, %v3927
      %3933 = vst.msk [vmem:[#allocation3 + $0x80] sm:$0x7] %vm2783, %v3929
      %s3934 = scalar_lea.vmem [#allocation2], 115
      %v3935 = vld [vmem:[%s3934] ss:$2 sm:$0xff]
      %s3936 = scalar_lea.vmem [#allocation2], 131
      %v3937 = vld [vmem:[%s3936] ss:$2 sm:$0x7]
      %3940 = vrot.lane.b32.xlu0 %v3935, 96
      %v3941 = vpop.permute.xlu0 %3940
      %3942 = vrot.lane.b32.xlu0 %v3937, 96
      %v3943 = vpop.permute.xlu0 %3942
      %3946 = vst.msk [vmem:[#allocation3 + $0x60] sm:$0xff] %vm3749, %v3941
      %3947 = vst.msk [vmem:[#allocation3 + $0x80] sm:$0x7] %vm3751, %v3943
      %s3948 = scalar_lea.vmem [#allocation2], 116
      %v3949 = vld [vmem:[%s3948] ss:$2 sm:$0xff]
      %s3950 = scalar_lea.vmem [#allocation2], 132
      %v3951 = vld [vmem:[%s3950] ss:$2 sm:$0x7]
      %3952 = vst.msk [vmem:[#allocation3 + $0x68] sm:$0xff] %vm2727, %v3949
      %3953 = vst.msk [vmem:[#allocation3 + $0x88] sm:$0x7] %vm2731, %v3951
      %s3954 = scalar_lea.vmem [#allocation2], 117
      %v3955 = vld [vmem:[%s3954] ss:$2 sm:$0xff]
      %s3956 = scalar_lea.vmem [#allocation2], 133
      %v3957 = vld [vmem:[%s3956] ss:$2 sm:$0x7]
      %3960 = vrot.lane.b32.xlu0 %v3955, 32
      %v3961 = vpop.permute.xlu0 %3960
      %3962 = vrot.lane.b32.xlu0 %v3957, 32
      %v3963 = vpop.permute.xlu0 %3962
      %3966 = vst.msk [vmem:[#allocation3 + $0x68] sm:$0xff] %vm2753, %v3961
      %3967 = vst.msk [vmem:[#allocation3 + $0x88] sm:$0x7] %vm2757, %v3963
      %s3968 = scalar_lea.vmem [#allocation2], 118
      %v3969 = vld [vmem:[%s3968] ss:$2 sm:$0xff]
      %s3970 = scalar_lea.vmem [#allocation2], 134
      %v3971 = vld [vmem:[%s3970] ss:$2 sm:$0x7]
      %3974 = vrot.lane.b32.xlu0 %v3969, 64
      %v3975 = vpop.permute.xlu0 %3974
      %3976 = vrot.lane.b32.xlu0 %v3971, 64
      %v3977 = vpop.permute.xlu0 %3976
      %3980 = vst.msk [vmem:[#allocation3 + $0x68] sm:$0xff] %vm2779, %v3975
      %3981 = vst.msk [vmem:[#allocation3 + $0x88] sm:$0x7] %vm2783, %v3977
      %s3982 = scalar_lea.vmem [#allocation2], 166
      %v3983 = vld [vmem:[%s3982] ss:$2 sm:$0xff]
      %s3984 = scalar_lea.vmem [#allocation2], 182
      %v3985 = vld [vmem:[%s3984] ss:$2 sm:$0x7]
      %v3988 = vrot.slane %v3983, 5
      %v3989 = vrot.slane %v3985, 5
      %v3990 = vsel %vm2793, %v3988, %v3989
      %3993 = vst.msk [vmem:[#allocation3 + $0x80] sm:$0xf8] %vm2805, %v3988
      %3994 = vst.msk [vmem:[#allocation3 + $0xa0] sm:$0x3f] %vm2809, %v3990
      %s3995 = scalar_lea.vmem [#allocation2], 167
      %v3996 = vld [vmem:[%s3995] ss:$2 sm:$0xff]
      %s3997 = scalar_lea.vmem [#allocation2], 183
      %v3998 = vld [vmem:[%s3997] ss:$2 sm:$0x7]
      %v4001 = vrot.slane %v3996, 5
      %v4002 = vrot.slane %v3998, 5
      %v4003 = vsel %vm2793, %v4001, %v4002
      %4004 = vrot.lane.b32.xlu0 %v4001, 32
      %v4005 = vpop.permute.xlu0 %4004
      %4006 = vrot.lane.b32.xlu0 %v4003, 32
      %v4007 = vpop.permute.xlu0 %4006
      %4010 = vst.msk [vmem:[#allocation3 + $0x80] sm:$0xf8] %vm2838, %v4005
      %4011 = vst.msk [vmem:[#allocation3 + $0xa0] sm:$0x3f] %vm2842, %v4007
      %s4012 = scalar_lea.vmem [#allocation2], 168
      %v4013 = vld [vmem:[%s4012] ss:$2 sm:$0xff]
      %s4014 = scalar_lea.vmem [#allocation2], 184
      %v4015 = vld [vmem:[%s4014] ss:$2 sm:$0x7]
      %v4018 = vrot.slane %v4013, 5
      %v4019 = vrot.slane %v4015, 5
      %v4020 = vsel %vm2793, %v4018, %v4019
      %4021 = vrot.lane.b32.xlu0 %v4018, 64
      %v4022 = vpop.permute.xlu0 %4021
      %4023 = vrot.lane.b32.xlu0 %v4020, 64
      %v4024 = vpop.permute.xlu0 %4023
      %4027 = vst.msk [vmem:[#allocation3 + $0x80] sm:$0xf8] %vm2871, %v4022
      %4028 = vst.msk [vmem:[#allocation3 + $0xa0] sm:$0x3f] %vm2875, %v4024
      %s4029 = scalar_lea.vmem [#allocation2], 169
      %v4030 = vld [vmem:[%s4029] ss:$2 sm:$0xff]
      %s4031 = scalar_lea.vmem [#allocation2], 185
      %v4032 = vld [vmem:[%s4031] ss:$2 sm:$0x7]
      %v4035 = vrot.slane %v4030, 5
      %v4036 = vrot.slane %v4032, 5
      %v4037 = vsel %vm2793, %v4035, %v4036
      %4038 = vrot.lane.b32.xlu0 %v4035, 96
      %v4039 = vpop.permute.xlu0 %4038
      %4040 = vrot.lane.b32.xlu0 %v4037, 96
      %v4041 = vpop.permute.xlu0 %4040
      %4044 = vst.msk [vmem:[#allocation3 + $0x80] sm:$0xf8] %vm3849, %v4039
      %4045 = vst.msk [vmem:[#allocation3 + $0xa0] sm:$0x3f] %vm3851, %v4041
      %s4046 = scalar_lea.vmem [#allocation2], 170
      %v4047 = vld [vmem:[%s4046] ss:$2 sm:$0xff]
      %s4048 = scalar_lea.vmem [#allocation2], 186
      %v4049 = vld [vmem:[%s4048] ss:$2 sm:$0x7]
      %v4052 = vrot.slane %v4047, 5
      %v4053 = vrot.slane %v4049, 5
      %v4054 = vsel %vm2793, %v4052, %v4053
      %4057 = vst.msk [vmem:[#allocation3 + $0x88] sm:$0xf8] %vm2805, %v4052
      %4058 = vst.msk [vmem:[#allocation3 + $0xa8] sm:$0x3f] %vm2809, %v4054
      %s4059 = scalar_lea.vmem [#allocation2], 171
      %v4060 = vld [vmem:[%s4059] ss:$2 sm:$0xff]
      %s4061 = scalar_lea.vmem [#allocation2], 187
      %v4062 = vld [vmem:[%s4061] ss:$2 sm:$0x7]
      %v4065 = vrot.slane %v4060, 5
      %v4066 = vrot.slane %v4062, 5
      %v4067 = vsel %vm2793, %v4065, %v4066
      %4068 = vrot.lane.b32.xlu0 %v4065, 32
      %v4069 = vpop.permute.xlu0 %4068
      %4070 = vrot.lane.b32.xlu0 %v4067, 32
      %v4071 = vpop.permute.xlu0 %4070
      %4074 = vst.msk [vmem:[#allocation3 + $0x88] sm:$0xf8] %vm2838, %v4069
      %4075 = vst.msk [vmem:[#allocation3 + $0xa8] sm:$0x3f] %vm2842, %v4071
      %s4076 = scalar_lea.vmem [#allocation2], 172
      %v4077 = vld [vmem:[%s4076] ss:$2 sm:$0xff]
      %s4078 = scalar_lea.vmem [#allocation2], 188
      %v4079 = vld [vmem:[%s4078] ss:$2 sm:$0x7]
      %v4082 = vrot.slane %v4077, 5
      %v4083 = vrot.slane %v4079, 5
      %v4084 = vsel %vm2793, %v4082, %v4083
      %4085 = vrot.lane.b32.xlu0 %v4082, 64
      %v4086 = vpop.permute.xlu0 %4085
      %4087 = vrot.lane.b32.xlu0 %v4084, 64
      %v4088 = vpop.permute.xlu0 %4087
      %4091 = vst.msk [vmem:[#allocation3 + $0x88] sm:$0xf8] %vm2871, %v4086
      %4092 = vst.msk [vmem:[#allocation3 + $0xa8] sm:$0x3f] %vm2875, %v4088
      %v4093 = vld [vmem:[#allocation3] sm:$0xff]
      %v4094 = vld [vmem:[#allocation3 + $0x8] sm:$0xff]
      %v4095 = vld [vmem:[#allocation3 + $0x20] sm:$0xff]
      %v4096 = vld [vmem:[#allocation3 + $0x28] sm:$0xff]
      %v4097 = vld [vmem:[#allocation3 + $0x40] sm:$0xff]
      %v4098 = vld [vmem:[#allocation3 + $0x48] sm:$0xff]
      %v4099 = vld [vmem:[#allocation3 + $0x60] sm:$0xff]
      %v4100 = vld [vmem:[#allocation3 + $0x68] sm:$0xff]
      %v4101 = vld [vmem:[#allocation3 + $0x80] sm:$0xff]
      %v4102 = vld [vmem:[#allocation3 + $0x88] sm:$0xff]
      %v4103 = vld [vmem:[#allocation3 + $0xa0] sm:$0xff]
      %v4104 = vld [vmem:[#allocation3 + $0xa8] sm:$0xff]
      %v4105 = vpack.c.bf16 %v4095, %v4093
      %v4106 = vpack.c.bf16 %v4096, %v4094
      %v4107 = vpack.c.bf16 %v4099, %v4097
      %v4108 = vpack.c.bf16 %v4100, %v4098
      %v4109 = vpack.c.bf16 %v4103, %v4101
      %v4110 = vpack.c.bf16 %v4104, %v4102
      %v4111 = vld [vmem:[%s3] sm:$0xf]
      %v4112 = vld [vmem:[%s3 + $0x4] sm:$0xf]
      %v4113 = vld [vmem:[%s3 + $0x8] sm:$0xf]
      %v4114 = vld [vmem:[%s3 + $0xc] sm:$0xf]
      %v4115 = vld [vmem:[%s3 + $0x10] sm:$0xf]
      %v4116 = vld [vmem:[%s3 + $0x14] sm:$0xf]
      %v4117 = vld [vmem:[%s3 + $0x18] sm:$0xf]
      %v4118 = vld [vmem:[%s3 + $0x1c] sm:$0xf]
      %v4119 = vld [vmem:[%s3 + $0x20] sm:$0xf]
      %v4120 = vld [vmem:[%s3 + $0x24] sm:$0xf]
      %v4121 = vld [vmem:[%s3 + $0x28] sm:$0xf]
      %v4122 = vld [vmem:[%s3 + $0x2c] sm:$0xf]
      %v4123 = vld [vmem:[%s3 + $0x30] sm:$0xf]
      %v4124 = vld [vmem:[%s3 + $0x34] sm:$0xf]
      %v4125 = vld [vmem:[%s3 + $0x38] sm:$0xf]
      %v4126 = vld [vmem:[%s3 + $0x3c] sm:$0xf]
      %v4127 = vld [vmem:[%s3 + $0x40] sm:$0xf]
      %v4128 = vld [vmem:[%s3 + $0x44] sm:$0xf]
      %v4129 = vld [vmem:[%s3 + $0x48] sm:$0xf]
      %v4130 = vld [vmem:[%s3 + $0x4c] sm:$0xf]
      %v4131 = vld [vmem:[%s3 + $0x50] sm:$0xf]
      %v4132 = vld [vmem:[%s3 + $0x54] sm:$0xf]
      %v4133 = vld [vmem:[%s3 + $0x58] sm:$0xf]
      %v4134 = vld [vmem:[%s3 + $0x5c] sm:$0xf]
      %v4135 = vld [vmem:[%s3 + $0x60] sm:$0xf]
      %v4136 = vld [vmem:[%s3 + $0x64] sm:$0xf]
      %v4137 = vld [vmem:[%s3 + $0x68] sm:$0xf]
      %v4138 = vld [vmem:[%s3 + $0x6c] sm:$0xf]
      %v4139 = vld [vmem:[%s3 + $0x70] sm:$0xf]
      %v4140 = vld [vmem:[%s3 + $0x74] sm:$0xf]
      %v4141 = vld [vmem:[%s3 + $0x78] sm:$0xf]
      %v4142 = vld [vmem:[%s3 + $0x7c] sm:$0xf]
      %v4143 = vld [vmem:[%s6 + $0x2] sm:$0x1]
      %v4144 = vlaneseq
      %v4145 = vshrl.u32 %v4144, 7
      %v4146 = vsub.s32 0, %v4145
      %v4147 = vrot.slane %v4143, %v4146
      %v4180 = vunpack.c.l.b16 %v4111
      %v4181 = vunpack.c.l.b16 %v4112
      %v4182 = vunpack.c.l.b16 %v4113
      %v4183 = vunpack.c.l.b16 %v4114
      %v4184 = vunpack.c.l.b16 %v4115
      %v4185 = vunpack.c.l.b16 %v4116
      %v4186 = vunpack.c.l.b16 %v4117
      %v4187 = vunpack.c.l.b16 %v4118
      %v4188 = vunpack.c.l.b16 %v4119
      %v4189 = vunpack.c.l.b16 %v4120
      %v4190 = vunpack.c.l.b16 %v4121
      %v4191 = vunpack.c.l.b16 %v4122
      %v4192 = vunpack.c.l.b16 %v4123
      %v4193 = vunpack.c.l.b16 %v4124
      %v4194 = vunpack.c.l.b16 %v4125
      %v4195 = vunpack.c.l.b16 %v4126
      %v4196 = vunpack.c.l.b16 %v4127
      %v4197 = vunpack.c.l.b16 %v4128
      %v4198 = vunpack.c.l.b16 %v4129
      %v4199 = vunpack.c.l.b16 %v4130
      %v4200 = vunpack.c.l.b16 %v4131
      %v4201 = vunpack.c.l.b16 %v4132
      %v4202 = vunpack.c.l.b16 %v4133
      %v4203 = vunpack.c.l.b16 %v4134
      %v4204 = vunpack.c.l.b16 %v4135
      %v4205 = vunpack.c.l.b16 %v4136
      %v4206 = vunpack.c.l.b16 %v4137
      %v4207 = vunpack.c.l.b16 %v4138
      %v4208 = vunpack.c.l.b16 %v4139
      %v4209 = vunpack.c.l.b16 %v4140
      %v4210 = vunpack.c.l.b16 %v4141
      %v4211 = vunpack.c.l.b16 %v4142
      %v4212 = vpack.c.b16 %v4181, %v4180
      %v4213 = vpack.c.b16 %v4183, %v4182
      %v4214 = vpack.c.b16 %v4185, %v4184
      %v4215 = vpack.c.b16 %v4187, %v4186
      %v4216 = vpack.c.b16 %v4189, %v4188
      %v4217 = vpack.c.b16 %v4191, %v4190
      %v4218 = vpack.c.b16 %v4193, %v4192
      %v4219 = vpack.c.b16 %v4195, %v4194
      %v4220 = vpack.c.b16 %v4197, %v4196
      %v4221 = vpack.c.b16 %v4199, %v4198
      %v4222 = vpack.c.b16 %v4201, %v4200
      %v4223 = vpack.c.b16 %v4203, %v4202
      %v4224 = vpack.c.b16 %v4205, %v4204
      %v4225 = vpack.c.b16 %v4207, %v4206
      %v4226 = vpack.c.b16 %v4209, %v4208
      %v4227 = vpack.c.b16 %v4211, %v4210
      %4244 = vmatprep.subr.bf16.mxu0 0
      %4245 = vmatpush1.bf16.msra.mxu0 %v4219
      %4246 = vmatprep.subr.bf16.mxu0 0
      %4247 = vmatpush1.bf16.msra.mxu0 %v4218
      %4248 = vmatprep.subr.bf16.mxu0 0
      %4249 = vmatpush1.bf16.msra.mxu0 %v4217
      %4250 = vmatprep.subr.bf16.mxu0 0
      %4251 = vmatpush1.bf16.msra.mxu0 %v4216
      %4252 = vmatprep.subr.bf16.mxu0 0
      %4253 = vmatpush1.bf16.msra.mxu0 %v4215
      %4254 = vmatprep.subr.bf16.mxu0 0
      %4255 = vmatpush1.bf16.msra.mxu0 %v4214
      %4256 = vmatprep.subr.bf16.mxu0 0
      %4257 = vmatpush1.bf16.msra.mxu0 %v4213
      %4258 = vmatprep.subr.bf16.mxu0 0
      %4259 = vmatpush1.bf16.msra.mxu0 %v4212
      %4260 = vmatprep.subr.bf16.mxu0 0
      %4261 = vmatpush2.bf16.msra.mxu0 %v4227
      %4262 = vmatprep.subr.bf16.mxu0 0
      %4263 = vmatpush2.bf16.msra.mxu0 %v4226
      %4264 = vmatprep.subr.bf16.mxu0 0
      %4265 = vmatpush2.bf16.msra.mxu0 %v4225
      %4266 = vmatprep.subr.bf16.mxu0 0
      %4267 = vmatpush2.bf16.msra.mxu0 %v4224
      %4268 = vmatprep.subr.bf16.mxu0 0
      %4269 = vmatpush2.bf16.msra.mxu0 %v4223
      %4270 = vmatprep.subr.bf16.mxu0 0
      %4271 = vmatpush2.bf16.msra.mxu0 %v4222
      %4272 = vmatprep.subr.bf16.mxu0 0
      %4273 = vmatpush2.bf16.msra.mxu0 %v4221
      %4274 = vmatprep.subr.bf16.mxu0 0
      %4275 = vmatpush2.bf16.msra.mxu0 %v4220
      %4276 = vmatprep.mubr.bf16.mxu0 %v4106
      %4277 = vmatmul.mubr.bf16.gmra.mxu0 %v4105
      %v4278 = vpop.f32.mrf.mxu0
      %v4279 = vadd.f32 %v4147, %v4278
      %v4280 = vpop.f32.mrf.mxu0
      %v4281 = vpop.f32.mrf.mxu0
      %v4282 = vadd.f32 %v4147, %v4281
      %v4283 = vpop.f32.mrf.mxu0
      %4284 = vmatprep.mubr.bf16.mxu0 %v4108
      %4285 = vmatmul.mubr.bf16.gmra.mxu0 %v4107
      %v4286 = vpop.f32.mrf.mxu0
      %v4287 = vadd.f32 %v4147, %v4286
      %v4288 = vpop.f32.mrf.mxu0
      %v4289 = vpop.f32.mrf.mxu0
      %v4290 = vadd.f32 %v4147, %v4289
      %v4291 = vpop.f32.mrf.mxu0
      %4292 = vmatprep.mubr.bf16.mxu0 %v4110
      %4293 = vmatmul.mubr.bf16.gmra.mxu0 %v4109
      %v4294 = vpop.f32.mrf.mxu0
      %v4295 = vadd.f32 %v4147, %v4294
      %v4296 = vpop.f32.mrf.mxu0
      %v4297 = vpop.f32.mrf.mxu0
      %v4298 = vadd.f32 %v4147, %v4297
      %v4299 = vpop.f32.mrf.mxu0
      %4300 = vdwg.mxu0
      %v4301 = vmax.f32 %v4279, 0.0
      %v4302 = vmax.f32 %v4282, 0.0
      %v4303 = vmax.f32 %v4287, 0.0
      %v4304 = vmax.f32 %v4290, 0.0
      %v4305 = vmax.f32 %v4295, 0.0
      %v4306 = vmax.f32 %v4298, 0.0
      %4307 = vst [vmem:[#allocation2] sm:$0xff] %v4301
      %4308 = vst [vmem:[#allocation2 + $0x8] sm:$0xff] %v4302
      %4309 = vst [vmem:[#allocation2 + $0x10] sm:$0xff] %v4303
      %4310 = vst [vmem:[#allocation2 + $0x18] sm:$0xff] %v4304
      %4311 = vst [vmem:[#allocation2 + $0x20] sm:$0xff] %v4305
      %4312 = vst [vmem:[#allocation2 + $0x28] sm:$0xff] %v4306
      %v4313 = vld [vmem:[#allocation2] sm:$0xff]
      %v4314 = vld [vmem:[#allocation2 + $0x8] sm:$0x1]
      %vm4315 = vcmask 523264
      %4316 = vst.msk [vmem:[#allocation3] sm:$0xff] %vm4315, %v4313
      %vm4317 = vcmask 516096
      %4318 = vst.msk [vmem:[#allocation3 + $0x20] sm:$0x1] %vm4317, %v4314
      %v4319 = vld [vmem:[#allocation2 + $0x1] sm:$0xff]
      %v4320 = vld [vmem:[#allocation2 + $0x9] sm:$0x1]
      %4323 = vrot.lane.b32.xlu0 %v4319, 64
      %v4324 = vpop.permute.xlu0 %4323
      %4325 = vrot.lane.b32.xlu0 %v4320, 64
      %v4326 = vpop.permute.xlu0 %4325
      %vm4329 = vcmask 1048064
      %4330 = vst.msk [vmem:[#allocation3] sm:$0xff] %vm4329, %v4324
      %vm4331 = vcmask 1040896
      %4332 = vst.msk [vmem:[#allocation3 + $0x20] sm:$0x1] %vm4331, %v4326
      %v4333 = vld [vmem:[#allocation2 + $0x2] sm:$0xff]
      %v4334 = vld [vmem:[#allocation2 + $0xa] sm:$0x1]
      %4335 = vst.msk [vmem:[#allocation3 + $0x8] sm:$0xff] %vm4315, %v4333
      %4336 = vst.msk [vmem:[#allocation3 + $0x28] sm:$0x1] %vm4317, %v4334
      %v4337 = vld [vmem:[#allocation2 + $0xb] sm:$0xff]
      %v4338 = vld [vmem:[#allocation2 + $0x13] sm:$0x1]
      %v4341 = vrot.slane %v4337, 7
      %v4342 = vrot.slane %v4338, 7
      %v4343 = vsel %vm2987, %v4341, %v4342
      %vm4346 = vcmask 523265
      %4347 = vst.msk [vmem:[#allocation3 + $0x20] sm:$0xfe] %vm4346, %v4341
      %vm4348 = vcmask 517120
      %4349 = vst.msk [vmem:[#allocation3 + $0x40] sm:$0x3] %vm4348, %v4343
      %v4350 = vld [vmem:[#allocation2 + $0xc] sm:$0xff]
      %v4351 = vld [vmem:[#allocation2 + $0x14] sm:$0x1]
      %v4354 = vrot.slane %v4350, 7
      %v4355 = vrot.slane %v4351, 7
      %v4356 = vsel %vm2987, %v4354, %v4355
      %4357 = vrot.lane.b32.xlu0 %v4354, 64
      %v4358 = vpop.permute.xlu0 %4357
      %4359 = vrot.lane.b32.xlu0 %v4356, 64
      %v4360 = vpop.permute.xlu0 %4359
      %vm4363 = vcmask 1048065
      %4364 = vst.msk [vmem:[#allocation3 + $0x20] sm:$0xfe] %vm4363, %v4358
      %vm4365 = vcmask 1041920
      %4366 = vst.msk [vmem:[#allocation3 + $0x40] sm:$0x3] %vm4365, %v4360
      %v4367 = vld [vmem:[#allocation2 + $0xd] sm:$0xff]
      %v4368 = vld [vmem:[#allocation2 + $0x15] sm:$0x1]
      %v4371 = vrot.slane %v4367, 7
      %v4372 = vrot.slane %v4368, 7
      %v4373 = vsel %vm2987, %v4371, %v4372
      %4376 = vst.msk [vmem:[#allocation3 + $0x28] sm:$0xfe] %vm4346, %v4371
      %4377 = vst.msk [vmem:[#allocation3 + $0x48] sm:$0x3] %vm4348, %v4373
      %v4378 = vld [vmem:[#allocation2 + $0x18] sm:$0xff]
      %v4379 = vld [vmem:[#allocation2 + $0x20] sm:$0x1]
      %4380 = vst.msk [vmem:[#allocation3 + $0x60] sm:$0xff] %vm4315, %v4378
      %4381 = vst.msk [vmem:[#allocation3 + $0x80] sm:$0x1] %vm4317, %v4379
      %v4382 = vld [vmem:[#allocation2 + $0x19] sm:$0xff]
      %v4383 = vld [vmem:[#allocation2 + $0x21] sm:$0x1]
      %4386 = vrot.lane.b32.xlu0 %v4382, 64
      %v4387 = vpop.permute.xlu0 %4386
      %4388 = vrot.lane.b32.xlu0 %v4383, 64
      %v4389 = vpop.permute.xlu0 %4388
      %4392 = vst.msk [vmem:[#allocation3 + $0x60] sm:$0xff] %vm4329, %v4387
      %4393 = vst.msk [vmem:[#allocation3 + $0x80] sm:$0x1] %vm4331, %v4389
      %v4394 = vld [vmem:[#allocation2 + $0x1a] sm:$0xff]
      %v4395 = vld [vmem:[#allocation2 + $0x22] sm:$0x1]
      %4396 = vst.msk [vmem:[#allocation3 + $0x68] sm:$0xff] %vm4315, %v4394
      %4397 = vst.msk [vmem:[#allocation3 + $0x88] sm:$0x1] %vm4317, %v4395
      %v4398 = vld [vmem:[#allocation2 + $0x23] sm:$0xff]
      %v4399 = vld [vmem:[#allocation2 + $0x2b] sm:$0x1]
      %v4402 = vrot.slane %v4398, 7
      %v4403 = vrot.slane %v4399, 7
      %v4404 = vsel %vm2987, %v4402, %v4403
      %4407 = vst.msk [vmem:[#allocation3 + $0x80] sm:$0xfe] %vm4346, %v4402
      %4408 = vst.msk [vmem:[#allocation3 + $0xa0] sm:$0x3] %vm4348, %v4404
      %v4409 = vld [vmem:[#allocation2 + $0x24] sm:$0xff]
      %v4410 = vld [vmem:[#allocation2 + $0x2c] sm:$0x1]
      %v4413 = vrot.slane %v4409, 7
      %v4414 = vrot.slane %v4410, 7
      %v4415 = vsel %vm2987, %v4413, %v4414
      %4416 = vrot.lane.b32.xlu0 %v4413, 64
      %v4417 = vpop.permute.xlu0 %4416
      %4418 = vrot.lane.b32.xlu0 %v4415, 64
      %v4419 = vpop.permute.xlu0 %4418
      %4422 = vst.msk [vmem:[#allocation3 + $0x80] sm:$0xfe] %vm4363, %v4417
      %4423 = vst.msk [vmem:[#allocation3 + $0xa0] sm:$0x3] %vm4365, %v4419
      %v4424 = vld [vmem:[#allocation2 + $0x25] sm:$0xff]
      %v4425 = vld [vmem:[#allocation2 + $0x2d] sm:$0x1]
      %v4428 = vrot.slane %v4424, 7
      %v4429 = vrot.slane %v4425, 7
      %v4430 = vsel %vm2987, %v4428, %v4429
      %4433 = vst.msk [vmem:[#allocation3 + $0x88] sm:$0xfe] %vm4346, %v4428
      %4434 = vst.msk [vmem:[#allocation3 + $0xa8] sm:$0x3] %vm4348, %v4430
      %v4435 = vld [vmem:[#allocation3] sm:$0xff]
      %v4436 = vld [vmem:[#allocation3 + $0x8] sm:$0xff]
      %v4437 = vld [vmem:[#allocation3 + $0x20] sm:$0xff]
      %v4438 = vld [vmem:[#allocation3 + $0x28] sm:$0xff]
      %v4439 = vld [vmem:[#allocation3 + $0x40] sm:$0xff]
      %v4440 = vld [vmem:[#allocation3 + $0x48] sm:$0xff]
      %v4441 = vld [vmem:[#allocation3 + $0x60] sm:$0xff]
      %v4442 = vld [vmem:[#allocation3 + $0x68] sm:$0xff]
      %v4443 = vld [vmem:[#allocation3 + $0x80] sm:$0xff]
      %v4444 = vld [vmem:[#allocation3 + $0x88] sm:$0xff]
      %v4445 = vld [vmem:[#allocation3 + $0xa0] sm:$0xff]
      %v4446 = vld [vmem:[#allocation3 + $0xa8] sm:$0xff]
      %v4447 = vpack.c.bf16 %v4437, %v4435
      %v4448 = vpack.c.bf16 %v4438, %v4436
      %v4449 = vpack.c.bf16 %v4441, %v4439
      %v4450 = vpack.c.bf16 %v4442, %v4440
      %v4451 = vpack.c.bf16 %v4445, %v4443
      %v4452 = vpack.c.bf16 %v4446, %v4444
      %v4453 = vld [vmem:[%s4] sm:$0xf]
      %v4454 = vld [vmem:[%s4 + $0x4] sm:$0xf]
      %v4455 = vld [vmem:[%s4 + $0x8] sm:$0xf]
      %v4456 = vld [vmem:[%s4 + $0xc] sm:$0xf]
      %v4457 = vld [vmem:[%s4 + $0x10] sm:$0xf]
      %v4458 = vld [vmem:[%s4 + $0x14] sm:$0xf]
      %v4459 = vld [vmem:[%s4 + $0x18] sm:$0xf]
      %v4460 = vld [vmem:[%s4 + $0x1c] sm:$0xf]
      %v4461 = vld [vmem:[%s4 + $0x20] sm:$0xf]
      %v4462 = vld [vmem:[%s4 + $0x24] sm:$0xf]
      %v4463 = vld [vmem:[%s4 + $0x28] sm:$0xf]
      %v4464 = vld [vmem:[%s4 + $0x2c] sm:$0xf]
      %v4465 = vld [vmem:[%s4 + $0x30] sm:$0xf]
      %v4466 = vld [vmem:[%s4 + $0x34] sm:$0xf]
      %v4467 = vld [vmem:[%s4 + $0x38] sm:$0xf]
      %v4468 = vld [vmem:[%s4 + $0x3c] sm:$0xf]
      %v4469 = vld [vmem:[%s4 + $0x40] sm:$0xf]
      %v4470 = vld [vmem:[%s4 + $0x44] sm:$0xf]
      %v4471 = vld [vmem:[%s4 + $0x48] sm:$0xf]
      %v4472 = vld [vmem:[%s4 + $0x4c] sm:$0xf]
      %v4473 = vld [vmem:[%s4 + $0x50] sm:$0xf]
      %v4474 = vld [vmem:[%s4 + $0x54] sm:$0xf]
      %v4475 = vld [vmem:[%s4 + $0x58] sm:$0xf]
      %v4476 = vld [vmem:[%s4 + $0x5c] sm:$0xf]
      %v4477 = vld [vmem:[%s4 + $0x60] sm:$0xf]
      %v4478 = vld [vmem:[%s4 + $0x64] sm:$0xf]
      %v4479 = vld [vmem:[%s4 + $0x68] sm:$0xf]
      %v4480 = vld [vmem:[%s4 + $0x6c] sm:$0xf]
      %v4481 = vld [vmem:[%s4 + $0x70] sm:$0xf]
      %v4482 = vld [vmem:[%s4 + $0x74] sm:$0xf]
      %v4483 = vld [vmem:[%s4 + $0x78] sm:$0xf]
      %v4484 = vld [vmem:[%s4 + $0x7c] sm:$0xf]
      %v4485 = vld [vmem:[%s6 + $0x3] sm:$0x1]
      %v4486 = vlaneseq
      %v4487 = vshrl.u32 %v4486, 7
      %v4488 = vsub.s32 0, %v4487
      %v4489 = vrot.slane %v4485, %v4488
      %v4522 = vunpack.c.l.b16 %v4453
      %v4523 = vunpack.c.l.b16 %v4454
      %v4524 = vunpack.c.l.b16 %v4455
      %v4525 = vunpack.c.l.b16 %v4456
      %v4526 = vunpack.c.l.b16 %v4457
      %v4527 = vunpack.c.l.b16 %v4458
      %v4528 = vunpack.c.l.b16 %v4459
      %v4529 = vunpack.c.l.b16 %v4460
      %v4530 = vunpack.c.l.b16 %v4461
      %v4531 = vunpack.c.l.b16 %v4462
      %v4532 = vunpack.c.l.b16 %v4463
      %v4533 = vunpack.c.l.b16 %v4464
      %v4534 = vunpack.c.l.b16 %v4465
      %v4535 = vunpack.c.l.b16 %v4466
      %v4536 = vunpack.c.l.b16 %v4467
      %v4537 = vunpack.c.l.b16 %v4468
      %v4538 = vunpack.c.l.b16 %v4469
      %v4539 = vunpack.c.l.b16 %v4470
      %v4540 = vunpack.c.l.b16 %v4471
      %v4541 = vunpack.c.l.b16 %v4472
      %v4542 = vunpack.c.l.b16 %v4473
      %v4543 = vunpack.c.l.b16 %v4474
      %v4544 = vunpack.c.l.b16 %v4475
      %v4545 = vunpack.c.l.b16 %v4476
      %v4546 = vunpack.c.l.b16 %v4477
      %v4547 = vunpack.c.l.b16 %v4478
      %v4548 = vunpack.c.l.b16 %v4479
      %v4549 = vunpack.c.l.b16 %v4480
      %v4550 = vunpack.c.l.b16 %v4481
      %v4551 = vunpack.c.l.b16 %v4482
      %v4552 = vunpack.c.l.b16 %v4483
      %v4553 = vunpack.c.l.b16 %v4484
      %v4554 = vpack.c.b16 %v4523, %v4522
      %v4555 = vpack.c.b16 %v4525, %v4524
      %v4556 = vpack.c.b16 %v4527, %v4526
      %v4557 = vpack.c.b16 %v4529, %v4528
      %v4558 = vpack.c.b16 %v4531, %v4530
      %v4559 = vpack.c.b16 %v4533, %v4532
      %v4560 = vpack.c.b16 %v4535, %v4534
      %v4561 = vpack.c.b16 %v4537, %v4536
      %v4562 = vpack.c.b16 %v4539, %v4538
      %v4563 = vpack.c.b16 %v4541, %v4540
      %v4564 = vpack.c.b16 %v4543, %v4542
      %v4565 = vpack.c.b16 %v4545, %v4544
      %v4566 = vpack.c.b16 %v4547, %v4546
      %v4567 = vpack.c.b16 %v4549, %v4548
      %v4568 = vpack.c.b16 %v4551, %v4550
      %v4569 = vpack.c.b16 %v4553, %v4552
      %4586 = vmatprep.subr.bf16.mxu0 0
      %4587 = vmatpush1.bf16.msra.mxu0 %v4561
      %4588 = vmatprep.subr.bf16.mxu0 0
      %4589 = vmatpush1.bf16.msra.mxu0 %v4560
      %4590 = vmatprep.subr.bf16.mxu0 0
      %4591 = vmatpush1.bf16.msra.mxu0 %v4559
      %4592 = vmatprep.subr.bf16.mxu0 0
      %4593 = vmatpush1.bf16.msra.mxu0 %v4558
      %4594 = vmatprep.subr.bf16.mxu0 0
      %4595 = vmatpush1.bf16.msra.mxu0 %v4557
      %4596 = vmatprep.subr.bf16.mxu0 0
      %4597 = vmatpush1.bf16.msra.mxu0 %v4556
      %4598 = vmatprep.subr.bf16.mxu0 0
      %4599 = vmatpush1.bf16.msra.mxu0 %v4555
      %4600 = vmatprep.subr.bf16.mxu0 0
      %4601 = vmatpush1.bf16.msra.mxu0 %v4554
      %4602 = vmatprep.subr.bf16.mxu0 0
      %4603 = vmatpush2.bf16.msra.mxu0 %v4569
      %4604 = vmatprep.subr.bf16.mxu0 0
      %4605 = vmatpush2.bf16.msra.mxu0 %v4568
      %4606 = vmatprep.subr.bf16.mxu0 0
      %4607 = vmatpush2.bf16.msra.mxu0 %v4567
      %4608 = vmatprep.subr.bf16.mxu0 0
      %4609 = vmatpush2.bf16.msra.mxu0 %v4566
      %4610 = vmatprep.subr.bf16.mxu0 0
      %4611 = vmatpush2.bf16.msra.mxu0 %v4565
      %4612 = vmatprep.subr.bf16.mxu0 0
      %4613 = vmatpush2.bf16.msra.mxu0 %v4564
      %4614 = vmatprep.subr.bf16.mxu0 0
      %4615 = vmatpush2.bf16.msra.mxu0 %v4563
      %4616 = vmatprep.subr.bf16.mxu0 0
      %4617 = vmatpush2.bf16.msra.mxu0 %v4562
      %4618 = vmatprep.mubr.bf16.mxu0 %v4448
      %4619 = vmatmul.mubr.bf16.gmra.mxu0 %v4447
      %v4620 = vpop.f32.mrf.mxu0
      %v4621 = vadd.f32 %v4489, %v4620
      %v4622 = vpop.f32.mrf.mxu0
      %v4623 = vpop.f32.mrf.mxu0
      %v4624 = vadd.f32 %v4489, %v4623
      %v4625 = vpop.f32.mrf.mxu0
      %4626 = vmatprep.mubr.bf16.mxu0 %v4450
      %4627 = vmatmul.mubr.bf16.gmra.mxu0 %v4449
      %v4628 = vpop.f32.mrf.mxu0
      %v4629 = vadd.f32 %v4489, %v4628
      %v4630 = vpop.f32.mrf.mxu0
      %v4631 = vpop.f32.mrf.mxu0
      %v4632 = vadd.f32 %v4489, %v4631
      %v4633 = vpop.f32.mrf.mxu0
      %4634 = vmatprep.mubr.bf16.mxu0 %v4452
      %4635 = vmatmul.mubr.bf16.gmra.mxu0 %v4451
      %v4636 = vpop.f32.mrf.mxu0
      %v4637 = vadd.f32 %v4489, %v4636
      %v4638 = vpop.f32.mrf.mxu0
      %v4639 = vpop.f32.mrf.mxu0
      %v4640 = vadd.f32 %v4489, %v4639
      %v4641 = vpop.f32.mrf.mxu0
      %4642 = vdwg.mxu0
      %v4643 = vmax.f32 %v4621, 0.0
      %v4644 = vmax.f32 %v4624, 0.0
      %v4645 = vmax.f32 %v4629, 0.0
      %v4646 = vmax.f32 %v4632, 0.0
      %v4647 = vmax.f32 %v4637, 0.0
      %v4648 = vmax.f32 %v4640, 0.0
      %4649 = vst [vmem:[#allocation2] sm:$0xff] %v4643
      %4650 = vst [vmem:[#allocation2 + $0x8] sm:$0xff] %v4644
      %4651 = vst [vmem:[#allocation2 + $0x10] sm:$0xff] %v4645
      %4652 = vst [vmem:[#allocation2 + $0x18] sm:$0xff] %v4646
      %4653 = vst [vmem:[#allocation2 + $0x20] sm:$0xff] %v4647
      %4654 = vst [vmem:[#allocation2 + $0x28] sm:$0xff] %v4648
      %v4655 = vld [vmem:[#allocation2] ss:$2 sm:$0x3]
      %4656 = vst.msk [vmem:[#allocation3] sm:$0x3] %vm4348, %v4655
      %v4657 = vld [vmem:[%s3709] ss:$2 sm:$0x3]
      %4659 = vrot.lane.b32.xlu0 %v4657, 64
      %v4660 = vpop.permute.xlu0 %4659
      %4662 = vst.msk [vmem:[#allocation3] sm:$0x3] %vm4365, %v4660
      %v4663 = vld [vmem:[%s3723] ss:$2 sm:$0x3]
      %4664 = vst.msk [vmem:[#allocation3 + $0x8] sm:$0x3] %vm4348, %v4663
      %v4665 = vld [vmem:[%s3737] ss:$2 sm:$0x3]
      %4667 = vrot.lane.b32.xlu0 %v4665, 64
      %v4668 = vpop.permute.xlu0 %4667
      %4670 = vst.msk [vmem:[#allocation3 + $0x8] sm:$0x3] %vm4365, %v4668
      %v4671 = vld [vmem:[%s3753] ss:$2 sm:$0x3]
      %4672 = vst.msk [vmem:[#allocation3 + $0x10] sm:$0x3] %vm4348, %v4671
      %v4673 = vld [vmem:[%s3759] ss:$2 sm:$0x3]
      %4675 = vrot.lane.b32.xlu0 %v4673, 64
      %v4676 = vpop.permute.xlu0 %4675
      %4678 = vst.msk [vmem:[#allocation3 + $0x10] sm:$0x3] %vm4365, %v4676
      %v4679 = vld [vmem:[%s3773] ss:$2 sm:$0x3]
      %4680 = vst.msk [vmem:[#allocation3 + $0x18] sm:$0x3] %vm4348, %v4679
      %s4681 = scalar_lea.vmem [#allocation2], 24
      %v4682 = vld [vmem:[%s4681] ss:$2 sm:$0x3]
      %4683 = vst.msk [vmem:[#allocation3 + $0x20] sm:$0x3] %vm4348, %v4682
      %s4684 = scalar_lea.vmem [#allocation2], 25
      %v4685 = vld [vmem:[%s4684] ss:$2 sm:$0x3]
      %4687 = vrot.lane.b32.xlu0 %v4685, 64
      %v4688 = vpop.permute.xlu0 %4687
      %4690 = vst.msk [vmem:[#allocation3 + $0x20] sm:$0x3] %vm4365, %v4688
      %s4691 = scalar_lea.vmem [#allocation2], 26
      %v4692 = vld [vmem:[%s4691] ss:$2 sm:$0x3]
      %4693 = vst.msk [vmem:[#allocation3 + $0x28] sm:$0x3] %vm4348, %v4692
      %s4694 = scalar_lea.vmem [#allocation2], 27
      %v4695 = vld [vmem:[%s4694] ss:$2 sm:$0x3]
      %4697 = vrot.lane.b32.xlu0 %v4695, 64
      %v4698 = vpop.permute.xlu0 %4697
      %4700 = vst.msk [vmem:[#allocation3 + $0x28] sm:$0x3] %vm4365, %v4698
      %s4701 = scalar_lea.vmem [#allocation2], 28
      %v4702 = vld [vmem:[%s4701] ss:$2 sm:$0x3]
      %4703 = vst.msk [vmem:[#allocation3 + $0x30] sm:$0x3] %vm4348, %v4702
      %s4704 = scalar_lea.vmem [#allocation2], 29
      %v4705 = vld [vmem:[%s4704] ss:$2 sm:$0x3]
      %4707 = vrot.lane.b32.xlu0 %v4705, 64
      %v4708 = vpop.permute.xlu0 %4707
      %4710 = vst.msk [vmem:[#allocation3 + $0x30] sm:$0x3] %vm4365, %v4708
      %s4711 = scalar_lea.vmem [#allocation2], 30
      %v4712 = vld [vmem:[%s4711] ss:$2 sm:$0x3]
      %4713 = vst.msk [vmem:[#allocation3 + $0x38] sm:$0x3] %vm4348, %v4712
      %v4714 = vld [vmem:[#allocation3] sm:$0xff]
      %v4715 = vld [vmem:[#allocation3 + $0x8] sm:$0xff]
      %v4716 = vld [vmem:[#allocation3 + $0x10] sm:$0xff]
      %v4717 = vld [vmem:[#allocation3 + $0x18] sm:$0xff]
      %v4718 = vld [vmem:[#allocation3 + $0x20] sm:$0xff]
      %v4719 = vld [vmem:[#allocation3 + $0x28] sm:$0xff]
      %v4720 = vld [vmem:[#allocation3 + $0x30] sm:$0xff]
      %v4721 = vld [vmem:[#allocation3 + $0x38] sm:$0xff]
      %v4722 = vpack.c.bf16 %v4718, %v4714
      %v4723 = vpack.c.bf16 %v4719, %v4715
      %v4724 = vpack.c.bf16 %v4720, %v4716
      %v4725 = vpack.c.bf16 %v4721, %v4717
      %v4726 = vld [vmem:[%s5] sm:$0xf]
      %v4727 = vld [vmem:[%s5 + $0x4] sm:$0xf]
      %v4728 = vld [vmem:[%s5 + $0x8] sm:$0xf]
      %v4729 = vld [vmem:[%s5 + $0xc] sm:$0xf]
      %v4730 = vld [vmem:[%s5 + $0x10] sm:$0xf]
      %v4731 = vld [vmem:[%s5 + $0x14] sm:$0xf]
      %v4732 = vld [vmem:[%s5 + $0x18] sm:$0xf]
      %v4733 = vld [vmem:[%s5 + $0x1c] sm:$0xf]
      %v4734 = vld [vmem:[%s5 + $0x20] sm:$0xf]
      %v4735 = vld [vmem:[%s5 + $0x24] sm:$0xf]
      %v4736 = vld [vmem:[%s5 + $0x28] sm:$0xf]
      %v4737 = vld [vmem:[%s5 + $0x2c] sm:$0xf]
      %v4738 = vld [vmem:[%s5 + $0x30] sm:$0xf]
      %v4739 = vld [vmem:[%s5 + $0x34] sm:$0xf]
      %v4740 = vld [vmem:[%s5 + $0x38] sm:$0xf]
      %v4741 = vld [vmem:[%s5 + $0x3c] sm:$0xf]
      %v4742 = vld [vmem:[%s5 + $0x40] sm:$0xf]
      %v4743 = vld [vmem:[%s5 + $0x44] sm:$0xf]
      %v4744 = vld [vmem:[%s5 + $0x48] sm:$0xf]
      %v4745 = vld [vmem:[%s5 + $0x4c] sm:$0xf]
      %v4746 = vld [vmem:[%s5 + $0x50] sm:$0xf]
      %v4747 = vld [vmem:[%s5 + $0x54] sm:$0xf]
      %v4748 = vld [vmem:[%s5 + $0x58] sm:$0xf]
      %v4749 = vld [vmem:[%s5 + $0x5c] sm:$0xf]
      %v4750 = vld [vmem:[%s5 + $0x60] sm:$0xf]
      %v4751 = vld [vmem:[%s5 + $0x64] sm:$0xf]
      %v4752 = vld [vmem:[%s5 + $0x68] sm:$0xf]
      %v4753 = vld [vmem:[%s5 + $0x6c] sm:$0xf]
      %v4754 = vld [vmem:[%s5 + $0x70] sm:$0xf]
      %v4755 = vld [vmem:[%s5 + $0x74] sm:$0xf]
      %v4756 = vld [vmem:[%s5 + $0x78] sm:$0xf]
      %v4757 = vld [vmem:[%s5 + $0x7c] sm:$0xf]
      %v4758 = vld [vmem:[%s5 + $0x80] sm:$0xf]
      %v4759 = vld [vmem:[%s5 + $0x84] sm:$0xf]
      %v4760 = vld [vmem:[%s5 + $0x88] sm:$0xf]
      %v4761 = vld [vmem:[%s5 + $0x8c] sm:$0xf]
      %v4762 = vld [vmem:[%s5 + $0x90] sm:$0xf]
      %v4763 = vld [vmem:[%s5 + $0x94] sm:$0xf]
      %v4764 = vld [vmem:[%s5 + $0x98] sm:$0xf]
      %v4765 = vld [vmem:[%s5 + $0x9c] sm:$0xf]
      %v4766 = vld [vmem:[%s5 + $0xa0] sm:$0xf]
      %v4767 = vld [vmem:[%s5 + $0xa4] sm:$0xf]
      %v4768 = vld [vmem:[%s5 + $0xa8] sm:$0xf]
      %v4769 = vld [vmem:[%s5 + $0xac] sm:$0xf]
      %v4770 = vld [vmem:[%s5 + $0xb0] sm:$0xf]
      %v4771 = vld [vmem:[%s5 + $0xb4] sm:$0xf]
      %v4772 = vld [vmem:[%s5 + $0xb8] sm:$0xf]
      %v4773 = vld [vmem:[%s5 + $0xbc] sm:$0xf]
      %v4774 = vld [vmem:[%s5 + $0xc0] sm:$0xf]
      %v4775 = vld [vmem:[%s5 + $0xc4] sm:$0xf]
      %v4776 = vld [vmem:[%s5 + $0xc8] sm:$0xf]
      %v4777 = vld [vmem:[%s5 + $0xcc] sm:$0xf]
      %v4778 = vld [vmem:[%s5 + $0xd0] sm:$0xf]
      %v4779 = vld [vmem:[%s5 + $0xd4] sm:$0xf]
      %v4780 = vld [vmem:[%s5 + $0xd8] sm:$0xf]
      %v4781 = vld [vmem:[%s5 + $0xdc] sm:$0xf]
      %v4782 = vld [vmem:[%s5 + $0xe0] sm:$0xf]
      %v4783 = vld [vmem:[%s5 + $0xe4] sm:$0xf]
      %v4784 = vld [vmem:[%s5 + $0xe8] sm:$0xf]
      %v4785 = vld [vmem:[%s5 + $0xec] sm:$0xf]
      %v4786 = vld [vmem:[%s5 + $0xf0] sm:$0xf]
      %v4787 = vld [vmem:[%s5 + $0xf4] sm:$0xf]
      %v4788 = vld [vmem:[%s5 + $0xf8] sm:$0xf]
      %v4789 = vld [vmem:[%s5 + $0xfc] sm:$0xf]
      %v4790 = vld [vmem:[%s6 + $0x4] sm:$0x1]
      %v4791 = vlaneseq
      %v4792 = vshrl.u32 %v4791, 7
      %v4793 = vsub.s32 0, %v4792
      %v4794 = vrot.slane %v4790, %v4793
      %v4859 = vunpack.c.l.b16 %v4726
      %v4860 = vunpack.c.l.b16 %v4727
      %v4861 = vunpack.c.l.b16 %v4728
      %v4862 = vunpack.c.l.b16 %v4729
      %v4863 = vunpack.c.l.b16 %v4730
      %v4864 = vunpack.c.l.b16 %v4731
      %v4865 = vunpack.c.l.b16 %v4732
      %v4866 = vunpack.c.l.b16 %v4733
      %v4867 = vunpack.c.l.b16 %v4734
      %v4868 = vunpack.c.l.b16 %v4735
      %v4869 = vunpack.c.l.b16 %v4736
      %v4870 = vunpack.c.l.b16 %v4737
      %v4871 = vunpack.c.l.b16 %v4738
      %v4872 = vunpack.c.l.b16 %v4739
      %v4873 = vunpack.c.l.b16 %v4740
      %v4874 = vunpack.c.l.b16 %v4741
      %v4875 = vunpack.c.l.b16 %v4742
      %v4876 = vunpack.c.l.b16 %v4743
      %v4877 = vunpack.c.l.b16 %v4744
      %v4878 = vunpack.c.l.b16 %v4745
      %v4879 = vunpack.c.l.b16 %v4746
      %v4880 = vunpack.c.l.b16 %v4747
      %v4881 = vunpack.c.l.b16 %v4748
      %v4882 = vunpack.c.l.b16 %v4749
      %v4883 = vunpack.c.l.b16 %v4750
      %v4884 = vunpack.c.l.b16 %v4751
      %v4885 = vunpack.c.l.b16 %v4752
      %v4886 = vunpack.c.l.b16 %v4753
      %v4887 = vunpack.c.l.b16 %v4754
      %v4888 = vunpack.c.l.b16 %v4755
      %v4889 = vunpack.c.l.b16 %v4756
      %v4890 = vunpack.c.l.b16 %v4757
      %v4891 = vunpack.c.l.b16 %v4758
      %v4892 = vunpack.c.l.b16 %v4759
      %v4893 = vunpack.c.l.b16 %v4760
      %v4894 = vunpack.c.l.b16 %v4761
      %v4895 = vunpack.c.l.b16 %v4762
      %v4896 = vunpack.c.l.b16 %v4763
      %v4897 = vunpack.c.l.b16 %v4764
      %v4898 = vunpack.c.l.b16 %v4765
      %v4899 = vunpack.c.l.b16 %v4766
      %v4900 = vunpack.c.l.b16 %v4767
      %v4901 = vunpack.c.l.b16 %v4768
      %v4902 = vunpack.c.l.b16 %v4769
      %v4903 = vunpack.c.l.b16 %v4770
      %v4904 = vunpack.c.l.b16 %v4771
      %v4905 = vunpack.c.l.b16 %v4772
      %v4906 = vunpack.c.l.b16 %v4773
      %v4907 = vunpack.c.l.b16 %v4774
      %v4908 = vunpack.c.l.b16 %v4775
      %v4909 = vunpack.c.l.b16 %v4776
      %v4910 = vunpack.c.l.b16 %v4777
      %v4911 = vunpack.c.l.b16 %v4778
      %v4912 = vunpack.c.l.b16 %v4779
      %v4913 = vunpack.c.l.b16 %v4780
      %v4914 = vunpack.c.l.b16 %v4781
      %v4915 = vunpack.c.l.b16 %v4782
      %v4916 = vunpack.c.l.b16 %v4783
      %v4917 = vunpack.c.l.b16 %v4784
      %v4918 = vunpack.c.l.b16 %v4785
      %v4919 = vunpack.c.l.b16 %v4786
      %v4920 = vunpack.c.l.b16 %v4787
      %v4921 = vunpack.c.l.b16 %v4788
      %v4922 = vunpack.c.l.b16 %v4789
      %v4923 = vpack.c.b16 %v4860, %v4859
      %v4924 = vpack.c.b16 %v4862, %v4861
      %v4925 = vpack.c.b16 %v4864, %v4863
      %v4926 = vpack.c.b16 %v4866, %v4865
      %v4927 = vpack.c.b16 %v4868, %v4867
      %v4928 = vpack.c.b16 %v4870, %v4869
      %v4929 = vpack.c.b16 %v4872, %v4871
      %v4930 = vpack.c.b16 %v4874, %v4873
      %v4931 = vpack.c.b16 %v4876, %v4875
      %v4932 = vpack.c.b16 %v4878, %v4877
      %v4933 = vpack.c.b16 %v4880, %v4879
      %v4934 = vpack.c.b16 %v4882, %v4881
      %v4935 = vpack.c.b16 %v4884, %v4883
      %v4936 = vpack.c.b16 %v4886, %v4885
      %v4937 = vpack.c.b16 %v4888, %v4887
      %v4938 = vpack.c.b16 %v4890, %v4889
      %v4939 = vpack.c.b16 %v4892, %v4891
      %v4940 = vpack.c.b16 %v4894, %v4893
      %v4941 = vpack.c.b16 %v4896, %v4895
      %v4942 = vpack.c.b16 %v4898, %v4897
      %v4943 = vpack.c.b16 %v4900, %v4899
      %v4944 = vpack.c.b16 %v4902, %v4901
      %v4945 = vpack.c.b16 %v4904, %v4903
      %v4946 = vpack.c.b16 %v4906, %v4905
      %v4947 = vpack.c.b16 %v4908, %v4907
      %v4948 = vpack.c.b16 %v4910, %v4909
      %v4949 = vpack.c.b16 %v4912, %v4911
      %v4950 = vpack.c.b16 %v4914, %v4913
      %v4951 = vpack.c.b16 %v4916, %v4915
      %v4952 = vpack.c.b16 %v4918, %v4917
      %v4953 = vpack.c.b16 %v4920, %v4919
      %v4954 = vpack.c.b16 %v4922, %v4921
      %4987 = vmatprep.subr.bf16.mxu0 0
      %4988 = vmatpush1.bf16.msra.mxu0 %v4930
      %4989 = vmatprep.subr.bf16.mxu0 0
      %4990 = vmatpush1.bf16.msra.mxu0 %v4929
      %4991 = vmatprep.subr.bf16.mxu0 0
      %4992 = vmatpush1.bf16.msra.mxu0 %v4928
      %4993 = vmatprep.subr.bf16.mxu0 0
      %4994 = vmatpush1.bf16.msra.mxu0 %v4927
      %4995 = vmatprep.subr.bf16.mxu0 0
      %4996 = vmatpush1.bf16.msra.mxu0 %v4926
      %4997 = vmatprep.subr.bf16.mxu0 0
      %4998 = vmatpush1.bf16.msra.mxu0 %v4925
      %4999 = vmatprep.subr.bf16.mxu0 0
      %5000 = vmatpush1.bf16.msra.mxu0 %v4924
      %5001 = vmatprep.subr.bf16.mxu0 0
      %5002 = vmatpush1.bf16.msra.mxu0 %v4923
      %5003 = vmatprep.subr.bf16.mxu0 0
      %5004 = vmatpush2.bf16.msra.mxu0 %v4938
      %5005 = vmatprep.subr.bf16.mxu0 0
      %5006 = vmatpush2.bf16.msra.mxu0 %v4937
      %5007 = vmatprep.subr.bf16.mxu0 0
      %5008 = vmatpush2.bf16.msra.mxu0 %v4936
      %5009 = vmatprep.subr.bf16.mxu0 0
      %5010 = vmatpush2.bf16.msra.mxu0 %v4935
      %5011 = vmatprep.subr.bf16.mxu0 0
      %5012 = vmatpush2.bf16.msra.mxu0 %v4934
      %5013 = vmatprep.subr.bf16.mxu0 0
      %5014 = vmatpush2.bf16.msra.mxu0 %v4933
      %5015 = vmatprep.subr.bf16.mxu0 0
      %5016 = vmatpush2.bf16.msra.mxu0 %v4932
      %5017 = vmatprep.subr.bf16.mxu0 0
      %5018 = vmatpush2.bf16.msra.mxu0 %v4931
      %5019 = vmatprep.mubr.bf16.mxu0 %v4723
      %5020 = vmatmul.mubr.bf16.gmra.mxu0 %v4722
      %v5021 = vpop.f32.mrf.mxu0
      %v5022 = vadd.f32 %v4794, %v5021
      %v5023 = vpop.f32.mrf.mxu0
      %v5024 = vpop.f32.mrf.mxu0
      %v5025 = vadd.f32 %v4794, %v5024
      %v5026 = vpop.f32.mrf.mxu0
      %5027 = vdwg.mxu0
      %5028 = vmatprep.subr.bf16.mxu0 0
      %5029 = vmatpush1.bf16.msra.mxu0 %v4946
      %5030 = vmatprep.subr.bf16.mxu0 0
      %5031 = vmatpush1.bf16.msra.mxu0 %v4945
      %5032 = vmatprep.subr.bf16.mxu0 0
      %5033 = vmatpush1.bf16.msra.mxu0 %v4944
      %5034 = vmatprep.subr.bf16.mxu0 0
      %5035 = vmatpush1.bf16.msra.mxu0 %v4943
      %5036 = vmatprep.subr.bf16.mxu0 0
      %5037 = vmatpush1.bf16.msra.mxu0 %v4942
      %5038 = vmatprep.subr.bf16.mxu0 0
      %5039 = vmatpush1.bf16.msra.mxu0 %v4941
      %5040 = vmatprep.subr.bf16.mxu0 0
      %5041 = vmatpush1.bf16.msra.mxu0 %v4940
      %5042 = vmatprep.subr.bf16.mxu0 0
      %5043 = vmatpush1.bf16.msra.mxu0 %v4939
      %5044 = vmatprep.subr.bf16.mxu0 0
      %5045 = vmatpush2.bf16.msra.mxu0 %v4954
      %5046 = vmatprep.subr.bf16.mxu0 0
      %5047 = vmatpush2.bf16.msra.mxu0 %v4953
      %5048 = vmatprep.subr.bf16.mxu0 0
      %5049 = vmatpush2.bf16.msra.mxu0 %v4952
      %5050 = vmatprep.subr.bf16.mxu0 0
      %5051 = vmatpush2.bf16.msra.mxu0 %v4951
      %5052 = vmatprep.subr.bf16.mxu0 0
      %5053 = vmatpush2.bf16.msra.mxu0 %v4950
      %5054 = vmatprep.subr.bf16.mxu0 0
      %5055 = vmatpush2.bf16.msra.mxu0 %v4949
      %5056 = vmatprep.subr.bf16.mxu0 0
      %5057 = vmatpush2.bf16.msra.mxu0 %v4948
      %5058 = vmatprep.subr.bf16.mxu0 0
      %5059 = vmatpush2.bf16.msra.mxu0 %v4947
      %5060 = vmatprep.mubr.bf16.mxu0 %v4725
      %5061 = vmatmul.mubr.bf16.gmra.mxu0 %v4724
      %v5062 = vpop.f32.mrf.mxu0
      %v5063 = vadd.f32 %v5022, %v5062
      %v5064 = vpop.f32.mrf.mxu0
      %v5065 = vpop.f32.mrf.mxu0
      %v5066 = vadd.f32 %v5025, %v5065
      %v5067 = vpop.f32.mrf.mxu0
      %5068 = vdwg.mxu0
      %v5069 = vmax.f32 %v5063, 0.0
      %v5070 = vmax.f32 %v5066, 0.0
      %v5071 = vsel %vm935, %v5069, -inf
      %v5072 = vrot.slane %v5071, 4
      %v5073 = vmax.f32 %v5071, %v5072
      %v5074 = vrot.slane %v5073, 2
      %v5075 = vmax.f32 %v5073, %v5074
      %v5076 = vrot.slane %v5075, 1
      %v5077 = vmax.f32 %v5075, %v5076
      %5078 = vst [vmem:[#allocation4] sm:$0x1] %v5077
      %v5079 = vsel %vm935, %v5070, -inf
      %v5080 = vrot.slane %v5079, 4
      %v5081 = vmax.f32 %v5079, %v5080
      %v5082 = vrot.slane %v5081, 2
      %v5083 = vmax.f32 %v5081, %v5082
      %v5084 = vrot.slane %v5083, 1
      %v5085 = vmax.f32 %v5083, %v5084
      %5086 = vst [vmem:[#allocation4 + $0x1] sm:$0x1] %v5085
      %v5087 = vld [vmem:[#allocation4] sm:$0x3]
      %v5088 = vpack.c.bf16 %v5087, %v5087
      %v5089 = vld [vmem:[%s7] sm:$0xf]
      %v5090 = vld [vmem:[%s7 + $0x4] sm:$0xf]
      %v5091 = vld [vmem:[%s7 + $0x8] sm:$0xf]
      %v5092 = vld [vmem:[%s7 + $0xc] sm:$0xf]
      %v5093 = vld [vmem:[%s7 + $0x10] sm:$0xf]
      %v5094 = vld [vmem:[%s7 + $0x14] sm:$0xf]
      %v5095 = vld [vmem:[%s7 + $0x18] sm:$0xf]
      %v5096 = vld [vmem:[%s7 + $0x1c] sm:$0xf]
      %v5097 = vld [vmem:[%s7 + $0x20] sm:$0xf]
      %v5098 = vld [vmem:[%s7 + $0x24] sm:$0xf]
      %v5099 = vld [vmem:[%s7 + $0x28] sm:$0xf]
      %v5100 = vld [vmem:[%s7 + $0x2c] sm:$0xf]
      %v5101 = vld [vmem:[%s7 + $0x30] sm:$0xf]
      %v5102 = vld [vmem:[%s7 + $0x34] sm:$0xf]
      %v5103 = vld [vmem:[%s7 + $0x38] sm:$0xf]
      %v5104 = vld [vmem:[%s7 + $0x3c] sm:$0xf]
      %v5105 = vld [vmem:[%s8] sm:$0x1]
      %v5106 = vlaneseq
      %v5107 = vshrl.u32 %v5106, 7
      %v5108 = vsub.s32 0, %v5107
      %v5109 = vrot.slane %v5105, %v5108
      %v5126 = vunpack.c.l.b16 %v5089
      %v5127 = vunpack.c.l.b16 %v5090
      %v5128 = vunpack.c.l.b16 %v5091
      %v5129 = vunpack.c.l.b16 %v5092
      %v5130 = vunpack.c.l.b16 %v5093
      %v5131 = vunpack.c.l.b16 %v5094
      %v5132 = vunpack.c.l.b16 %v5095
      %v5133 = vunpack.c.l.b16 %v5096
      %v5134 = vunpack.c.l.b16 %v5097
      %v5135 = vunpack.c.l.b16 %v5098
      %v5136 = vunpack.c.l.b16 %v5099
      %v5137 = vunpack.c.l.b16 %v5100
      %v5138 = vunpack.c.l.b16 %v5101
      %v5139 = vunpack.c.l.b16 %v5102
      %v5140 = vunpack.c.l.b16 %v5103
      %v5141 = vunpack.c.l.b16 %v5104
      %v5142 = vpack.c.b16 %v5127, %v5126
      %v5143 = vpack.c.b16 %v5129, %v5128
      %v5144 = vpack.c.b16 %v5131, %v5130
      %v5145 = vpack.c.b16 %v5133, %v5132
      %v5146 = vpack.c.b16 %v5135, %v5134
      %v5147 = vpack.c.b16 %v5137, %v5136
      %v5148 = vpack.c.b16 %v5139, %v5138
      %v5149 = vpack.c.b16 %v5141, %v5140
      %5158 = vmatprep.subr.bf16.mxu0 0
      %5159 = vmatpush1.bf16.msra.mxu0 %v5149
      %5160 = vmatprep.subr.bf16.mxu0 0
      %5161 = vmatpush1.bf16.msra.mxu0 %v5148
      %5162 = vmatprep.subr.bf16.mxu0 0
      %5163 = vmatpush1.bf16.msra.mxu0 %v5147
      %5164 = vmatprep.subr.bf16.mxu0 0
      %5165 = vmatpush1.bf16.msra.mxu0 %v5146
      %5166 = vmatprep.subr.bf16.mxu0 0
      %5167 = vmatpush1.bf16.msra.mxu0 %v5145
      %5168 = vmatprep.subr.bf16.mxu0 0
      %5169 = vmatpush1.bf16.msra.mxu0 %v5144
      %5170 = vmatprep.subr.bf16.mxu0 0
      %5171 = vmatpush1.bf16.msra.mxu0 %v5143
      %5172 = vmatprep.subr.bf16.mxu0 0
      %5173 = vmatpush1.bf16.msra.mxu0 %v5142
      %5174 = vmatprep.subr.bf16.mxu0 0
      %5175 = vmatpush2.bf16.msra.mxu0 0
      %5176 = vmatprep.subr.bf16.mxu0 0
      %5177 = vmatpush2.bf16.msra.mxu0 0
      %5178 = vmatprep.subr.bf16.mxu0 0
      %5179 = vmatpush2.bf16.msra.mxu0 0
      %5180 = vmatprep.subr.bf16.mxu0 0
      %5181 = vmatpush2.bf16.msra.mxu0 0
      %5182 = vmatprep.subr.bf16.mxu0 0
      %5183 = vmatpush2.bf16.msra.mxu0 0
      %5184 = vmatprep.subr.bf16.mxu0 0
      %5185 = vmatpush2.bf16.msra.mxu0 0
      %5186 = vmatprep.subr.bf16.mxu0 0
      %5187 = vmatpush2.bf16.msra.mxu0 0
      %5188 = vmatprep.subr.bf16.mxu0 0
      %5189 = vmatpush2.bf16.msra.mxu0 0
      %5190 = vmatprep.mubr.bf16.mxu0 0
      %5191 = vmatmul.mubr.bf16.gmra.mxu0 %v5088
      %v5192 = vpop.f32.mrf.mxu0
      %v5193 = vadd.f32 %v5109, %v5192
      %v5194 = vpop.f32.mrf.mxu0
      %v5195 = vpop.f32.mrf.mxu0
      %v5196 = vpop.f32.mrf.mxu0
      %5197 = vdwg.mxu0
      %v5198 = vmax.f32 %v5193, 0.0
      %v5199 = vpack.c.bf16 %v5198, %v5198
      %s5200 = scalar_lea.vmem %s7, 64
      %v5201 = vld [vmem:[%s5200] sm:$0xf]
      %v5202 = vld [vmem:[%s5200 + $0x4] sm:$0xf]
      %v5203 = vld [vmem:[%s5200 + $0x8] sm:$0xf]
      %v5204 = vld [vmem:[%s5200 + $0xc] sm:$0xf]
      %v5205 = vld [vmem:[%s5200 + $0x10] sm:$0xf]
      %v5206 = vld [vmem:[%s5200 + $0x14] sm:$0xf]
      %v5207 = vld [vmem:[%s5200 + $0x18] sm:$0xf]
      %v5208 = vld [vmem:[%s5200 + $0x1c] sm:$0xf]
      %v5209 = vld [vmem:[%s5200 + $0x20] sm:$0xf]
      %v5210 = vld [vmem:[%s5200 + $0x24] sm:$0xf]
      %v5211 = vld [vmem:[%s5200 + $0x28] sm:$0xf]
      %v5212 = vld [vmem:[%s5200 + $0x2c] sm:$0xf]
      %v5213 = vld [vmem:[%s5200 + $0x30] sm:$0xf]
      %v5214 = vld [vmem:[%s5200 + $0x34] sm:$0xf]
      %v5215 = vld [vmem:[%s5200 + $0x38] sm:$0xf]
      %v5216 = vld [vmem:[%s5200 + $0x3c] sm:$0xf]
      %v5217 = vld [vmem:[%s8 + $0x1] sm:$0x1]
      %v5218 = vlaneseq
      %v5219 = vshrl.u32 %v5218, 7
      %v5220 = vsub.s32 0, %v5219
      %v5221 = vrot.slane %v5217, %v5220
      %v5238 = vunpack.c.l.b16 %v5201
      %v5239 = vunpack.c.l.b16 %v5202
      %v5240 = vunpack.c.l.b16 %v5203
      %v5241 = vunpack.c.l.b16 %v5204
      %v5242 = vunpack.c.l.b16 %v5205
      %v5243 = vunpack.c.l.b16 %v5206
      %v5244 = vunpack.c.l.b16 %v5207
      %v5245 = vunpack.c.l.b16 %v5208
      %v5246 = vunpack.c.l.b16 %v5209
      %v5247 = vunpack.c.l.b16 %v5210
      %v5248 = vunpack.c.l.b16 %v5211
      %v5249 = vunpack.c.l.b16 %v5212
      %v5250 = vunpack.c.l.b16 %v5213
      %v5251 = vunpack.c.l.b16 %v5214
      %v5252 = vunpack.c.l.b16 %v5215
      %v5253 = vunpack.c.l.b16 %v5216
      %v5254 = vpack.c.b16 %v5239, %v5238
      %v5255 = vpack.c.b16 %v5241, %v5240
      %v5256 = vpack.c.b16 %v5243, %v5242
      %v5257 = vpack.c.b16 %v5245, %v5244
      %v5258 = vpack.c.b16 %v5247, %v5246
      %v5259 = vpack.c.b16 %v5249, %v5248
      %v5260 = vpack.c.b16 %v5251, %v5250
      %v5261 = vpack.c.b16 %v5253, %v5252
      %5270 = vmatprep.subr.bf16.mxu0 0
      %5271 = vmatpush1.bf16.msra.mxu0 %v5261
      %5272 = vmatprep.subr.bf16.mxu0 0
      %5273 = vmatpush1.bf16.msra.mxu0 %v5260
      %5274 = vmatprep.subr.bf16.mxu0 0
      %5275 = vmatpush1.bf16.msra.mxu0 %v5259
      %5276 = vmatprep.subr.bf16.mxu0 0
      %5277 = vmatpush1.bf16.msra.mxu0 %v5258
      %5278 = vmatprep.subr.bf16.mxu0 0
      %5279 = vmatpush1.bf16.msra.mxu0 %v5257
      %5280 = vmatprep.subr.bf16.mxu0 0
      %5281 = vmatpush1.bf16.msra.mxu0 %v5256
      %5282 = vmatprep.subr.bf16.mxu0 0
      %5283 = vmatpush1.bf16.msra.mxu0 %v5255
      %5284 = vmatprep.subr.bf16.mxu0 0
      %5285 = vmatpush1.bf16.msra.mxu0 %v5254
      %5286 = vmatprep.subr.bf16.mxu0 0
      %5287 = vmatpush2.bf16.msra.mxu0 0
      %5288 = vmatprep.subr.bf16.mxu0 0
      %5289 = vmatpush2.bf16.msra.mxu0 0
      %5290 = vmatprep.subr.bf16.mxu0 0
      %5291 = vmatpush2.bf16.msra.mxu0 0
      %5292 = vmatprep.subr.bf16.mxu0 0
      %5293 = vmatpush2.bf16.msra.mxu0 0
      %5294 = vmatprep.subr.bf16.mxu0 0
      %5295 = vmatpush2.bf16.msra.mxu0 0
      %5296 = vmatprep.subr.bf16.mxu0 0
      %5297 = vmatpush2.bf16.msra.mxu0 0
      %5298 = vmatprep.subr.bf16.mxu0 0
      %5299 = vmatpush2.bf16.msra.mxu0 0
      %5300 = vmatprep.subr.bf16.mxu0 0
      %5301 = vmatpush2.bf16.msra.mxu0 0
      %5302 = vmatprep.mubr.bf16.mxu0 0
      %5303 = vmatmul.mubr.bf16.gmra.mxu0 %v5199
      %v5304 = vpop.f32.mrf.mxu0
      %v5305 = vadd.f32 %v5221, %v5304
      %v5306 = vpop.f32.mrf.mxu0
      %v5307 = vpop.f32.mrf.mxu0
      %v5308 = vpop.f32.mrf.mxu0
      %5309 = vdwg.mxu0
      %v5310 = vmax.f32 %v5305, 0.0
      %v5311 = vpack.c.bf16 %v5310, %v5310
      %s5312 = scalar_lea.vmem %s7, 128
      %v5313 = vld [vmem:[%s5312] sm:$0xf]
      %v5314 = vld [vmem:[%s5312 + $0x4] sm:$0xf]
      %v5315 = vld [vmem:[%s5312 + $0x8] sm:$0xf]
      %v5316 = vld [vmem:[%s5312 + $0xc] sm:$0xf]
      %v5317 = vld [vmem:[%s5312 + $0x10] sm:$0xf]
      %v5318 = vld [vmem:[%s5312 + $0x14] sm:$0xf]
      %v5319 = vld [vmem:[%s5312 + $0x18] sm:$0xf]
      %v5320 = vld [vmem:[%s5312 + $0x1c] sm:$0xf]
      %v5321 = vld [vmem:[%s5312 + $0x20] sm:$0xf]
      %v5322 = vld [vmem:[%s5312 + $0x24] sm:$0xf]
      %v5323 = vld [vmem:[%s5312 + $0x28] sm:$0xf]
      %v5324 = vld [vmem:[%s5312 + $0x2c] sm:$0xf]
      %v5325 = vld [vmem:[%s5312 + $0x30] sm:$0xf]
      %v5326 = vld [vmem:[%s5312 + $0x34] sm:$0xf]
      %v5327 = vld [vmem:[%s5312 + $0x38] sm:$0xf]
      %v5328 = vld [vmem:[%s5312 + $0x3c] sm:$0xf]
      %v5329 = vld [vmem:[%s8 + $0x2] sm:$0x1]
      %v5330 = vlaneseq
      %v5331 = vshrl.u32 %v5330, 7
      %v5332 = vsub.s32 0, %v5331
      %v5333 = vrot.slane %v5329, %v5332
      %v5350 = vunpack.c.l.b16 %v5313
      %v5351 = vunpack.c.l.b16 %v5314
      %v5352 = vunpack.c.l.b16 %v5315
      %v5353 = vunpack.c.l.b16 %v5316
      %v5354 = vunpack.c.l.b16 %v5317
      %v5355 = vunpack.c.l.b16 %v5318
      %v5356 = vunpack.c.l.b16 %v5319
      %v5357 = vunpack.c.l.b16 %v5320
      %v5358 = vunpack.c.l.b16 %v5321
      %v5359 = vunpack.c.l.b16 %v5322
      %v5360 = vunpack.c.l.b16 %v5323
      %v5361 = vunpack.c.l.b16 %v5324
      %v5362 = vunpack.c.l.b16 %v5325
      %v5363 = vunpack.c.l.b16 %v5326
      %v5364 = vunpack.c.l.b16 %v5327
      %v5365 = vunpack.c.l.b16 %v5328
      %v5366 = vpack.c.b16 %v5351, %v5350
      %v5367 = vpack.c.b16 %v5353, %v5352
      %v5368 = vpack.c.b16 %v5355, %v5354
      %v5369 = vpack.c.b16 %v5357, %v5356
      %v5370 = vpack.c.b16 %v5359, %v5358
      %v5371 = vpack.c.b16 %v5361, %v5360
      %v5372 = vpack.c.b16 %v5363, %v5362
      %v5373 = vpack.c.b16 %v5365, %v5364
      %5382 = vmatprep.subr.bf16.mxu0 0
      %5383 = vmatpush1.bf16.msra.mxu0 %v5373
      %5384 = vmatprep.subr.bf16.mxu0 0
      %5385 = vmatpush1.bf16.msra.mxu0 %v5372
      %5386 = vmatprep.subr.bf16.mxu0 0
      %5387 = vmatpush1.bf16.msra.mxu0 %v5371
      %5388 = vmatprep.subr.bf16.mxu0 0
      %5389 = vmatpush1.bf16.msra.mxu0 %v5370
      %5390 = vmatprep.subr.bf16.mxu0 0
      %5391 = vmatpush1.bf16.msra.mxu0 %v5369
      %5392 = vmatprep.subr.bf16.mxu0 0
      %5393 = vmatpush1.bf16.msra.mxu0 %v5368
      %5394 = vmatprep.subr.bf16.mxu0 0
      %5395 = vmatpush1.bf16.msra.mxu0 %v5367
      %5396 = vmatprep.subr.bf16.mxu0 0
      %5397 = vmatpush1.bf16.msra.mxu0 %v5366
      %5398 = vmatprep.subr.bf16.mxu0 0
      %5399 = vmatpush2.bf16.msra.mxu0 0
      %5400 = vmatprep.subr.bf16.mxu0 0
      %5401 = vmatpush2.bf16.msra.mxu0 0
      %5402 = vmatprep.subr.bf16.mxu0 0
      %5403 = vmatpush2.bf16.msra.mxu0 0
      %5404 = vmatprep.subr.bf16.mxu0 0
      %5405 = vmatpush2.bf16.msra.mxu0 0
      %5406 = vmatprep.subr.bf16.mxu0 0
      %5407 = vmatpush2.bf16.msra.mxu0 0
      %5408 = vmatprep.subr.bf16.mxu0 0
      %5409 = vmatpush2.bf16.msra.mxu0 0
      %5410 = vmatprep.subr.bf16.mxu0 0
      %5411 = vmatpush2.bf16.msra.mxu0 0
      %5412 = vmatprep.subr.bf16.mxu0 0
      %5413 = vmatpush2.bf16.msra.mxu0 0
      %5414 = vmatprep.mubr.bf16.mxu0 0
      %5415 = vmatmul.mubr.bf16.gmra.mxu0 %v5311
      %v5416 = vpop.f32.mrf.mxu0
      %v5417 = vadd.f32 %v5333, %v5416
      %v5418 = vpop.f32.mrf.mxu0
      %v5419 = vpop.f32.mrf.mxu0
      %v5420 = vpop.f32.mrf.mxu0
      %5421 = vdwg.mxu0
      %5422 = vst [vmem:[%s330] sm:$0x3] %v5417
      %p5423 = scmp.lt.s32.totalorder %s20, 1
      %s5424 = scalar_select %p5423, %s20, 1
      %s5425 = smul.addr %s5424, 2
      %s5426 = scalar_lea.vmem %s9, %s5425
      // Predicated region
      $region57: #{_lambda_.1} parent=55 // pred_check
        %p5427 = pneg %p232
      $region58: #{_lambda_.1} parent=55 // pred_check_branch
        %5429 = sbr.rel (%p5427) target = $region60
      $region59: #{_lambda_.1} parent=55 // pred_region
        _
      $region60: #{_lambda_.1} parent=55 // pred_fallthru
        _
    $region56: #{_lambda_.1} parent=5 // pred_fallthru
      _
    %p5430 = scmp.le.s32.totalorder 2, %s15
    // Predicated region
    $region61: #{_lambda_.1} parent=5 // pred_check
      %p5431 = pneg %p5430
    $region62: #{_lambda_.1} parent=5 // pred_check_branch
      %5433 = sbr.rel (%p5431) target = $region64
    $region63: #{_lambda_.1} parent=5 // pred_region
      %s5434 = ssub.s32 %s15, 2
      // Predicated region
      $region65: #{_lambda_.1} parent=63 // pred_check
        %p5435 = pneg %p238
      $region66: #{_lambda_.1} parent=63 // pred_check_branch
        %5437 = sbr.rel (%p5435) target = $region68
      $region67: #{_lambda_.1} parent=63 // pred_region
        %p5438 = scmp.lt.s32.totalorder %s21, 1
        %s5439 = scalar_select %p5438, %s21, 1
        %s5440 = smul.addr %s5439, 2
        %s5441 = scalar_lea.vmem %s9, %s5440
      $region68: #{_lambda_.1} parent=63 // pred_fallthru
        _
    $region64: #{_lambda_.1} parent=5 // pred_fallthru
      _
  $region6: #{_lambda_.1} parent=0 // loop_footer
    %s19 = sadd.s32 1, %s15
  $region7: #{_lambda_.1} parent=0 // loop_footer_branch
    %14 = sbr.rel target = $region3
  $region8: #{_lambda_.1} parent=0 // loop_exit
    _

</llo_original>
